<compile_context>
chip_gen: v5e
topology: v5e:2x2
jax: 0.10.0
libtpu: 0.0.40
codegen_flags: <defaults>
</compile_context>

<pallas_src>
import functools

import jax
import jax.numpy as jnp
from jax import lax
from jax.experimental import pallas as pl
from jax.experimental.pallas import tpu as pltpu


def _fused_conv_diversity_kernel(
    xpad_ref,   # (N, H+2, W+2, Cin)                  bf16, VMEM-resident input
    w_ref,      # (K_PAD, COUT_PAD) or (9, Cin, COUT_PAD)  bf16 conv weight
    out_ref,    # (1, 1)                              f32, scalar reward
    feat_ref,   # (N*band_h*W, COUT_PAD)              f32 VMEM scratch
    *,
    n: int, band_h: int, n_bands: int, w_out: int, cin: int,
    k_pad: int, cout_pad: int, fuse_taps: bool,
):
    band_rows = band_h * w_out            # per-sample rows in one band
    m_band = n * band_rows
    k_used = 9 * cin

    # Pairwise Gram partial sums, kept as (1, COUT_PAD) lane vectors so the
    # expensive cross-lane reduce happens exactly once per pair at the end.
    pvec = {(i, j): jnp.zeros((1, cout_pad), jnp.float32)
            for i in range(n) for j in range(i, n)}

    for b in range(n_bands):              # short static loop (grid collapsed)
        row0 = b * band_h                  # static -> aligned, unmasked slices

        if fuse_taps:
            # One lane-dense (m_band, K=128) im2col tile -> single full-K MXU
            # dot (bf16 inputs, f32 accumulation).
            parts = [
                xpad_ref[:, row0 + kh:row0 + kh + band_h, kw:kw + w_out, :]
                for kh in range(3) for kw in range(3)
            ]
            if k_pad > k_used:
                parts.append(jnp.zeros((n, band_h, w_out, k_pad - k_used),
                                       xpad_ref.dtype))
            lhs = jnp.concatenate(parts, axis=-1).reshape(m_band, k_pad)
            feat_ref[...] = jnp.dot(lhs, w_ref[...],
                                    preferred_element_type=jnp.float32)
        else:
            # Fallback: 9 accumulated K=Cin dots (w_ref is (9, Cin, COUT_PAD)).
            acc = jnp.zeros((m_band, cout_pad), jnp.float32)
            for tap in range(9):
                kh, kw = tap // 3, tap % 3
                sl = xpad_ref[:, row0 + kh:row0 + kh + band_h, kw:kw + w_out, :]
                acc = acc + jnp.dot(sl.reshape(m_band, cin), w_ref[tap],
                                    preferred_element_type=jnp.float32)
            feat_ref[...] = acc

        # Gram accumulation on the VPU in the native (*, 128) layout: no
        # (n, band*W*128) flatten / relayout.  Zero-padded output channels
        # contribute exactly 0 to every entry.
        for i in range(n):
            fi = feat_ref[i * band_rows:(i + 1) * band_rows, :]
            for j in range(i, n):
                fj = feat_ref[j * band_rows:(j + 1) * band_rows, :]
                pvec[(i, j)] += jnp.sum(fi * fj, axis=0, keepdims=True)

    # ---- finalize: cosine similarities -> diversity reward -----------------
    # F.normalize(dim=1) followed by f @ f.T is algebraically
    # G_ij * rsqrt(max(G_ii, eps^2)) * rsqrt(max(G_jj, eps^2)) with eps=1e-12.
    g = {k: jnp.sum(v, axis=1, keepdims=True) for k, v in pvec.items()}  # (1,1)
    inv = [lax.rsqrt(jnp.maximum(g[(i, i)], 1e-24)) for i in range(n)]

    def sim(i, j):
        a, c = (i, j) if i <= j else (j, i)
        return g[(a, c)] * inv[i] * inv[j]

    total = jnp.zeros((1, 1), jnp.float32)
    for i in range(n):
        row = jnp.zeros((1, 1), jnp.float32)
        for j in range(n):
            row = row + sim(i, j)
        # diversity_rewards[i] = sum_j (1 - sim_ij) / (n - 1)
        total = total + (float(n) - row) / float(n - 1)
    reward = total / float(n)                       # mean over samples
    # if reward < 0.1: log(reward + 1e-4) else reward   (branchless)
    out_ref[...] = jnp.where(reward < 0.1, jnp.log(reward + 0.0001), reward)


def _tile_padded_bytes(shape, dtype):
    """Bytes of a VMEM buffer after (sublane, lane) tile padding."""
    itemsize = jnp.dtype(dtype).itemsize
    sublane = 8 * max(1, 4 // itemsize)
    dims = list(shape)
    dims[-1] = pl.cdiv(dims[-1], 128) * 128
    if len(dims) >= 2:
        dims[-2] = pl.cdiv(dims[-2], sublane) * sublane
    total = itemsize
    for d in dims:
        total *= d
    return total


def _forward_pallas(images_nchw, conv_weight, *, fuse_taps, m_target=256):
    n, cin, h, w = images_nchw.shape
    if n < 2:
        raise ValueError("DiversityRewardModel needs >= 2 images "
                         "(diversity divides by N - 1).")
    cout = conv_weight.shape[0]
    cout_pad = pl.cdiv(cout, 128) * 128            # lane-dense output channels
    k_used = 9 * cin
    k_pad = pl.cdiv(k_used, 128) * 128             # lane-dense im2col K

    # band_h: largest divisor of H keeping the per-band MXU M dimension (and
    # the band buffers' VMEM / vreg footprint) near the target.
    band_h = 1
    for d in range(1, h + 1):
        if h % d == 0 and n * d * w <= max(m_target, n * w):
            band_h = d
    n_bands = h // band_h
    m_band = n * band_h * w

    # NHWC + zero halo of 1 on each spatial side; bf16 operands for the MXU.
    x_nhwc = jnp.transpose(images_nchw, (0, 2, 3, 1)).astype(jnp.bfloat16)
    x_pad = jnp.pad(x_nhwc, ((0, 0), (1, 1), (1, 1), (0, 0)))

    # Conv weight -> im2col layout: lane index = (kh*3 + kw)*Cin + ci matches
    # the in-kernel tap concatenation order; zero-padded rows/cols contribute
    # exactly 0 to every feature / Gram entry.
    w_taps = jnp.transpose(conv_weight, (2, 3, 1, 0)).reshape(k_used, cout)
    w_taps = w_taps.astype(jnp.float32)
    if fuse_taps:
        w_op = jnp.pad(w_taps, ((0, k_pad - k_used), (0, cout_pad - cout)))
        w_op = w_op.astype(jnp.bfloat16)
        w_spec = pl.BlockSpec((k_pad, cout_pad), lambda i: (0, 0))
    else:
        w_op = jnp.pad(w_taps, ((0, 0), (0, cout_pad - cout)))
        w_op = w_op.reshape(9, cin, cout_pad).astype(jnp.bfloat16)
        w_spec = pl.BlockSpec((9, cin, cout_pad), lambda i: (0, 0, 0))

    kernel = functools.partial(
        _fused_conv_diversity_kernel,
        n=n, band_h=band_h, n_bands=n_bands, w_out=w, cin=cin,
        k_pad=k_pad, cout_pad=cout_pad, fuse_taps=fuse_taps)

    # VMEM budget derived from the actual buffers (pipeline double-buffers the
    # inputs even for the single grid step).
    vmem_needed = (
        2 * _tile_padded_bytes(x_pad.shape, x_pad.dtype)
        + 2 * _tile_padded_bytes(w_op.shape, w_op.dtype)
        + _tile_padded_bytes((m_band, cout_pad), jnp.float32)     # feat scratch
        + 2 * _tile_padded_bytes((m_band, k_pad), jnp.bfloat16)   # im2col temp
        + (2 << 20))
    vmem_limit = int(min(64 << 20, max(16 << 20, vmem_needed)))

    out = pl.pallas_call(
        kernel,
        out_shape=jax.ShapeDtypeStruct((1, 1), jnp.float32),
        grid=(1,),   # single step: constant block indices pipeline nothing
        in_specs=[
            pl.BlockSpec((n, h + 2, w + 2, cin), lambda i: (0, 0, 0, 0)),
            w_spec,
        ],
        out_specs=pl.BlockSpec((1, 1), lambda i: (0, 0)),
        scratch_shapes=[pltpu.VMEM((m_band, cout_pad), jnp.float32)],
        compiler_params=pltpu.CompilerParams(
            dimension_semantics=("arbitrary",),
            vmem_limit_bytes=vmem_limit,
        ),
    )(x_pad, w_op)
    jax.block_until_ready(out)
    return out[0, 0]


def diversity_reward_model_forward(images_nchw, conv_weight):
    """Fused forward: synthetic-conv features + diversity reward, one kernel.

    TODO(synk): the timm pretrained backbone (forward_features) and the
    PIL/timm eval transforms are replaced by this deterministic synthetic 3x3
    conv feature extractor — pretrained weights / image decoding have no
    Pallas equivalent.
    """
    try:
        return _forward_pallas(images_nchw, conv_weight, fuse_taps=True)
    except Exception:  # noqa: BLE001
        # Robustness: if this Mosaic build rejects the unaligned lane-axis
        # concatenation used for the fused K=128 im2col tile, fall back to the
        # (previously validated) per-tap MXU accumulation — same math.
        return _forward_pallas(images_nchw, conv_weight, fuse_taps=False)


def _reference_reward(images_nchw, conv_weight):
    """Pure-JAX reference mirroring the PyTorch module (same synthetic conv)."""
    feat = lax.conv_general_dilated(
        images_nchw.astype(jnp.float32), conv_weight.astype(jnp.float32),
        window_strides=(1, 1), padding="SAME",
        dimension_numbers=("NCHW", "OIHW", "NCHW"),
        precision=lax.Precision.HIGHEST)
    n, c, hh, ww = feat.shape
    f = jnp.transpose(feat.reshape(n, c, hh * ww), (0, 2, 1)).reshape(n, -1)
    norm = jnp.sqrt(jnp.sum(f * f, axis=1, keepdims=True))
    fn = f / jnp.maximum(norm, 1e-12)
    sim = jnp.matmul(fn, fn.T, precision=lax.Precision.HIGHEST)
    div = 1.0 - sim
    rwd = jnp.sum(div, axis=1) / (n - 1)
    r = jnp.mean(rwd)
    return jnp.where(r < 0.1, jnp.log(r + 0.0001), r)


if __name__ == "__main__":
    key = jax.random.PRNGKey(0)
    k_img, k_w = jax.random.split(key)

    # Small shapes: batch=2, channels=4, spatial=16x16, feature channels=32.
    N, CIN, H, W, COUT = 2, 4, 16, 16, 32
    images = jax.random.normal(k_img, (N, CIN, H, W), dtype=jnp.float32)

    # Deterministic conv weight init (kaiming-uniform-ish scale).
    fan_in = CIN * 3 * 3
    bound = (1.0 / fan_in) ** 0.5
    conv_w = jax.random.uniform(
        k_w, (COUT, CIN, 3, 3), dtype=jnp.float32, minval=-bound, maxval=bound)

    reward = diversity_reward_model_forward(images, conv_w)
    jax.block_until_ready(reward)

    ref = _reference_reward(images, conv_w)
    jax.block_until_ready(ref)
    if not abs(float(reward) - float(ref)) < 5e-2:
        raise AssertionError(
            f"reward mismatch: pallas={float(reward)} ref={float(ref)}")

    print("KERNEL_OK")
</pallas_src>

<mosaic_0001>
module attributes {stable_mosaic.version = 11 : i64} {
  func.func @_fused_conv_diversity_kernel(%arg0: i32, %arg1: memref<2x18x18x4xbf16, #tpu.memory_space<vmem>>, %arg2: memref<128x128xbf16, #tpu.memory_space<vmem>>, %arg3: memref<1x1xf32, #tpu.memory_space<vmem>>, %arg4: memref<256x128xf32, #tpu.memory_space<vmem>>) attributes {dimension_semantics = [#tpu.dimension_semantics<arbitrary>], iteration_bounds = array<i64: 1>, scalar_prefetch = 0 : i64, scratch_operands = 1 : i64, tpu.core_type = #tpu.core_type<tc>, window_params = [{pipeline_mode = #tpu.pipeline_mode<synchronous>, transform_indices = @transform_0, window_bounds = array<i64: 2, 18, 18, 4>}, {pipeline_mode = #tpu.pipeline_mode<synchronous>, transform_indices = @transform_1, window_bounds = array<i64: 128, 128>}, {pipeline_mode = #tpu.pipeline_mode<synchronous>, transform_indices = @transform_2, window_bounds = array<i64: 1, 1>}]} {
    %cst = arith.constant 0.000000e+00 : f32
    %0 = vector.broadcast %cst : f32 to vector<1x128xf32>
    %cst_0 = arith.constant 0.000000e+00 : f32
    %1 = vector.broadcast %cst_0 : f32 to vector<1x128xf32>
    %cst_1 = arith.constant 0.000000e+00 : f32
    %2 = vector.broadcast %cst_1 : f32 to vector<1x128xf32>
    %c0 = arith.constant 0 : index
    %c0_2 = arith.constant 0 : index
    %c0_3 = arith.constant 0 : index
    %c0_4 = arith.constant 0 : index
    %3 = vector.load %arg1[%c0, %c0_2, %c0_3, %c0_4] : memref<2x18x18x4xbf16, #tpu.memory_space<vmem>>, vector<2x8x16x4xbf16>
    %c0_5 = arith.constant 0 : index
    %c0_6 = arith.constant 0 : index
    %c1 = arith.constant 1 : index
    %c0_7 = arith.constant 0 : index
    %4 = vector.load %arg1[%c0_5, %c0_6, %c1, %c0_7] : memref<2x18x18x4xbf16, #tpu.memory_space<vmem>>, vector<2x8x16x4xbf16>
    %c0_8 = arith.constant 0 : index
    %c0_9 = arith.constant 0 : index
    %c2 = arith.constant 2 : index
    %c0_10 = arith.constant 0 : index
    %5 = vector.load %arg1[%c0_8, %c0_9, %c2, %c0_10] : memref<2x18x18x4xbf16, #tpu.memory_space<vmem>>, vector<2x8x16x4xbf16>
    %c0_11 = arith.constant 0 : index
    %c1_12 = arith.constant 1 : index
    %c0_13 = arith.constant 0 : index
    %c0_14 = arith.constant 0 : index
    %6 = vector.load %arg1[%c0_11, %c1_12, %c0_13, %c0_14] : memref<2x18x18x4xbf16, #tpu.memory_space<vmem>>, vector<2x8x16x4xbf16>
    %c0_15 = arith.constant 0 : index
    %c1_16 = arith.constant 1 : index
    %c1_17 = arith.constant 1 : index
    %c0_18 = arith.constant 0 : index
    %7 = vector.load %arg1[%c0_15, %c1_16, %c1_17, %c0_18] : memref<2x18x18x4xbf16, #tpu.memory_space<vmem>>, vector<2x8x16x4xbf16>
    %c0_19 = arith.constant 0 : index
    %c1_20 = arith.constant 1 : index
    %c2_21 = arith.constant 2 : index
    %c0_22 = arith.constant 0 : index
    %8 = vector.load %arg1[%c0_19, %c1_20, %c2_21, %c0_22] : memref<2x18x18x4xbf16, #tpu.memory_space<vmem>>, vector<2x8x16x4xbf16>
    %c0_23 = arith.constant 0 : index
    %c2_24 = arith.constant 2 : index
    %c0_25 = arith.constant 0 : index
    %c0_26 = arith.constant 0 : index
    %9 = vector.load %arg1[%c0_23, %c2_24, %c0_25, %c0_26] : memref<2x18x18x4xbf16, #tpu.memory_space<vmem>>, vector<2x8x16x4xbf16>
    %c0_27 = arith.constant 0 : index
    %c2_28 = arith.constant 2 : index
    %c1_29 = arith.constant 1 : index
    %c0_30 = arith.constant 0 : index
    %10 = vector.load %arg1[%c0_27, %c2_28, %c1_29, %c0_30] : memref<2x18x18x4xbf16, #tpu.memory_space<vmem>>, vector<2x8x16x4xbf16>
    %c0_31 = arith.constant 0 : index
    %c2_32 = arith.constant 2 : index
    %c2_33 = arith.constant 2 : index
    %c0_34 = arith.constant 0 : index
    %11 = vector.load %arg1[%c0_31, %c2_32, %c2_33, %c0_34] : memref<2x18x18x4xbf16, #tpu.memory_space<vmem>>, vector<2x8x16x4xbf16>
    %cst_35 = arith.constant 0.000000e+00 : bf16
    %12 = vector.broadcast %cst_35 : bf16 to vector<2x8x16x92xbf16>
    %13 = tpu.concatenate %3, %4, %5, %6, %7, %8, %9, %10, %11, %12 in 3 : vector<2x8x16x4xbf16>, vector<2x8x16x4xbf16>, vector<2x8x16x4xbf16>, vector<2x8x16x4xbf16>, vector<2x8x16x4xbf16>, vector<2x8x16x4xbf16>, vector<2x8x16x4xbf16>, vector<2x8x16x4xbf16>, vector<2x8x16x4xbf16>, vector<2x8x16x92xbf16> -> vector<2x8x16x128xbf16>
    %14 = vector.shape_cast %13 : vector<2x8x16x128xbf16> to vector<256x128xbf16>
    %c0_36 = arith.constant 0 : index
    %c0_37 = arith.constant 0 : index
    %15 = vector.load %arg2[%c0_36, %c0_37] : memref<128x128xbf16, #tpu.memory_space<vmem>>, vector<128x128xbf16>
    %cst_38 = arith.constant dense<0.000000e+00> : vector<256x128xf32>
    %16 = tpu.matmul %14, %15, %cst_38 {dimension_numbers = #tpu.dot_dimension_numbers<[1], [0], [0], [1], [0, 0, 1, 1], [], []>} : vector<256x128xbf16>, vector<128x128xbf16>, vector<256x128xf32> -> vector<256x128xf32>
    %c0_39 = arith.constant 0 : index
    %c0_40 = arith.constant 0 : index
    %17 = vector.load %arg4[%c0_39, %c0_40] : memref<256x128xf32, #tpu.memory_space<vmem>>, vector<256x128xf32>
    tpu.vector_store %arg4[%c0_39, %c0_40], %16 {strides = array<i32>} : memref<256x128xf32, #tpu.memory_space<vmem>>, vector<256x128xf32>,
    %c0_41 = arith.constant 0 : index
    %c0_42 = arith.constant 0 : index
    %18 = vector.load %arg4[%c0_41, %c0_42] : memref<256x128xf32, #tpu.memory_space<vmem>>, vector<128x128xf32>
    %c0_43 = arith.constant 0 : index
    %c0_44 = arith.constant 0 : index
    %19 = vector.load %arg4[%c0_43, %c0_44] : memref<256x128xf32, #tpu.memory_space<vmem>>, vector<128x128xf32>
    %20 = arith.mulf %18, %19 : vector<128x128xf32>
    %cst_45 = arith.constant dense<0.000000e+00> : vector<128xf32>
    %21 = vector.multi_reduction <add>, %20, %cst_45 [0] : vector<128x128xf32> to vector<128xf32>
    %22 = vector.shape_cast %21 : vector<128xf32> to vector<1x128xf32>
    %23 = arith.addf %0, %22 : vector<1x128xf32>
    %c128 = arith.constant 128 : index
    %c0_46 = arith.constant 0 : index
    %24 = vector.load %arg4[%c128, %c0_46] : memref<256x128xf32, #tpu.memory_space<vmem>>, vector<128x128xf32>
    %25 = arith.mulf %18, %24 : vector<128x128xf32>
    %cst_47 = arith.constant dense<0.000000e+00> : vector<128xf32>
    %26 = vector.multi_reduction <add>, %25, %cst_47 [0] : vector<128x128xf32> to vector<128xf32>
    %27 = vector.shape_cast %26 : vector<128xf32> to vector<1x128xf32>
    %28 = arith.addf %1, %27 : vector<1x128xf32>
    %c128_48 = arith.constant 128 : index
    %c0_49 = arith.constant 0 : index
    %29 = vector.load %arg4[%c128_48, %c0_49] : memref<256x128xf32, #tpu.memory_space<vmem>>, vector<128x128xf32>
    %c128_50 = arith.constant 128 : index
    %c0_51 = arith.constant 0 : index
    %30 = vector.load %arg4[%c128_50, %c0_51] : memref<256x128xf32, #tpu.memory_space<vmem>>, vector<128x128xf32>
    %31 = arith.mulf %29, %30 : vector<128x128xf32>
    %cst_52 = arith.constant dense<0.000000e+00> : vector<128xf32>
    %32 = vector.multi_reduction <add>, %31, %cst_52 [0] : vector<128x128xf32> to vector<128xf32>
    %33 = vector.shape_cast %32 : vector<128xf32> to vector<1x128xf32>
    %34 = arith.addf %2, %33 : vector<1x128xf32>
    %c0_53 = arith.constant 0 : index
    %c8 = arith.constant 8 : index
    %c0_54 = arith.constant 0 : index
    %c0_55 = arith.constant 0 : index
    %35 = vector.load %arg1[%c0_53, %c8, %c0_54, %c0_55] : memref<2x18x18x4xbf16, #tpu.memory_space<vmem>>, vector<2x8x16x4xbf16>
    %c0_56 = arith.constant 0 : index
    %c8_57 = arith.constant 8 : index
    %c1_58 = arith.constant 1 : index
    %c0_59 = arith.constant 0 : index
    %36 = vector.load %arg1[%c0_56, %c8_57, %c1_58, %c0_59] : memref<2x18x18x4xbf16, #tpu.memory_space<vmem>>, vector<2x8x16x4xbf16>
    %c0_60 = arith.constant 0 : index
    %c8_61 = arith.constant 8 : index
    %c2_62 = arith.constant 2 : index
    %c0_63 = arith.constant 0 : index
    %37 = vector.load %arg1[%c0_60, %c8_61, %c2_62, %c0_63] : memref<2x18x18x4xbf16, #tpu.memory_space<vmem>>, vector<2x8x16x4xbf16>
    %c0_64 = arith.constant 0 : index
    %c9 = arith.constant 9 : index
    %c0_65 = arith.constant 0 : index
    %c0_66 = arith.constant 0 : index
    %38 = vector.load %arg1[%c0_64, %c9, %c0_65, %c0_66] : memref<2x18x18x4xbf16, #tpu.memory_space<vmem>>, vector<2x8x16x4xbf16>
    %c0_67 = arith.constant 0 : index
    %c9_68 = arith.constant 9 : index
    %c1_69 = arith.constant 1 : index
    %c0_70 = arith.constant 0 : index
    %39 = vector.load %arg1[%c0_67, %c9_68, %c1_69, %c0_70] : memref<2x18x18x4xbf16, #tpu.memory_space<vmem>>, vector<2x8x16x4xbf16>
    %c0_71 = arith.constant 0 : index
    %c9_72 = arith.constant 9 : index
    %c2_73 = arith.constant 2 : index
    %c0_74 = arith.constant 0 : index
    %40 = vector.load %arg1[%c0_71, %c9_72, %c2_73, %c0_74] : memref<2x18x18x4xbf16, #tpu.memory_space<vmem>>, vector<2x8x16x4xbf16>
    %c0_75 = arith.constant 0 : index
    %c10 = arith.constant 10 : index
    %c0_76 = arith.constant 0 : index
    %c0_77 = arith.constant 0 : index
    %41 = vector.load %arg1[%c0_75, %c10, %c0_76, %c0_77] : memref<2x18x18x4xbf16, #tpu.memory_space<vmem>>, vector<2x8x16x4xbf16>
    %c0_78 = arith.constant 0 : index
    %c10_79 = arith.constant 10 : index
    %c1_80 = arith.constant 1 : index
    %c0_81 = arith.constant 0 : index
    %42 = vector.load %arg1[%c0_78, %c10_79, %c1_80, %c0_81] : memref<2x18x18x4xbf16, #tpu.memory_space<vmem>>, vector<2x8x16x4xbf16>
    %c0_82 = arith.constant 0 : index
    %c10_83 = arith.constant 10 : index
    %c2_84 = arith.constant 2 : index
    %c0_85 = arith.constant 0 : index
    %43 = vector.load %arg1[%c0_82, %c10_83, %c2_84, %c0_85] : memref<2x18x18x4xbf16, #tpu.memory_space<vmem>>, vector<2x8x16x4xbf16>
    %cst_86 = arith.constant 0.000000e+00 : bf16
    %44 = vector.broadcast %cst_86 : bf16 to vector<2x8x16x92xbf16>
    %45 = tpu.concatenate %35, %36, %37, %38, %39, %40, %41, %42, %43, %44 in 3 : vector<2x8x16x4xbf16>, vector<2x8x16x4xbf16>, vector<2x8x16x4xbf16>, vector<2x8x16x4xbf16>, vector<2x8x16x4xbf16>, vector<2x8x16x4xbf16>, vector<2x8x16x4xbf16>, vector<2x8x16x4xbf16>, vector<2x8x16x4xbf16>, vector<2x8x16x92xbf16> -> vector<2x8x16x128xbf16>
    %46 = vector.shape_cast %45 : vector<2x8x16x128xbf16> to vector<256x128xbf16>
    %c0_87 = arith.constant 0 : index
    %c0_88 = arith.constant 0 : index
    %47 = vector.load %arg2[%c0_87, %c0_88] : memref<128x128xbf16, #tpu.memory_space<vmem>>, vector<128x128xbf16>
    %cst_89 = arith.constant dense<0.000000e+00> : vector<256x128xf32>
    %48 = tpu.matmul %46, %47, %cst_89 {dimension_numbers = #tpu.dot_dimension_numbers<[1], [0], [0], [1], [0, 0, 1, 1], [], []>} : vector<256x128xbf16>, vector<128x128xbf16>, vector<256x128xf32> -> vector<256x128xf32>
    %c0_90 = arith.constant 0 : index
    %c0_91 = arith.constant 0 : index
    %49 = vector.load %arg4[%c0_90, %c0_91] : memref<256x128xf32, #tpu.memory_space<vmem>>, vector<256x128xf32>
    tpu.vector_store %arg4[%c0_90, %c0_91], %48 {strides = array<i32>} : memref<256x128xf32, #tpu.memory_space<vmem>>, vector<256x128xf32>,
    %c0_92 = arith.constant 0 : index
    %c0_93 = arith.constant 0 : index
    %50 = vector.load %arg4[%c0_92, %c0_93] : memref<256x128xf32, #tpu.memory_space<vmem>>, vector<128x128xf32>
    %c0_94 = arith.constant 0 : index
    %c0_95 = arith.constant 0 : index
    %51 = vector.load %arg4[%c0_94, %c0_95] : memref<256x128xf32, #tpu.memory_space<vmem>>, vector<128x128xf32>
    %52 = arith.mulf %50, %51 : vector<128x128xf32>
    %cst_96 = arith.constant dense<0.000000e+00> : vector<128xf32>
    %53 = vector.multi_reduction <add>, %52, %cst_96 [0] : vector<128x128xf32> to vector<128xf32>
    %54 = vector.shape_cast %53 : vector<128xf32> to vector<1x128xf32>
    %55 = arith.addf %23, %54 : vector<1x128xf32>
    %c128_97 = arith.constant 128 : index
    %c0_98 = arith.constant 0 : index
    %56 = vector.load %arg4[%c128_97, %c0_98] : memref<256x128xf32, #tpu.memory_space<vmem>>, vector<128x128xf32>
    %57 = arith.mulf %50, %56 : vector<128x128xf32>
    %cst_99 = arith.constant dense<0.000000e+00> : vector<128xf32>
    %58 = vector.multi_reduction <add>, %57, %cst_99 [0] : vector<128x128xf32> to vector<128xf32>
    %59 = vector.shape_cast %58 : vector<128xf32> to vector<1x128xf32>
    %60 = arith.addf %28, %59 : vector<1x128xf32>
    %c128_100 = arith.constant 128 : index
    %c0_101 = arith.constant 0 : index
    %61 = vector.load %arg4[%c128_100, %c0_101] : memref<256x128xf32, #tpu.memory_space<vmem>>, vector<128x128xf32>
    %c128_102 = arith.constant 128 : index
    %c0_103 = arith.constant 0 : index
    %62 = vector.load %arg4[%c128_102, %c0_103] : memref<256x128xf32, #tpu.memory_space<vmem>>, vector<128x128xf32>
    %63 = arith.mulf %61, %62 : vector<128x128xf32>
    %cst_104 = arith.constant dense<0.000000e+00> : vector<128xf32>
    %64 = vector.multi_reduction <add>, %63, %cst_104 [0] : vector<128x128xf32> to vector<128xf32>
    %65 = vector.shape_cast %64 : vector<128xf32> to vector<1x128xf32>
    %66 = arith.addf %34, %65 : vector<1x128xf32>
    %cst_105 = arith.constant dense<0.000000e+00> : vector<1xf32>
    %67 = vector.multi_reduction <add>, %55, %cst_105 [1] : vector<1x128xf32> to vector<1xf32>
    %68 = vector.shape_cast %67 : vector<1xf32> to vector<1x1xf32>
    %cst_106 = arith.constant dense<0.000000e+00> : vector<1xf32>
    %69 = vector.multi_reduction <add>, %60, %cst_106 [1] : vector<1x128xf32> to vector<1xf32>
    %70 = vector.shape_cast %69 : vector<1xf32> to vector<1x1xf32>
    %cst_107 = arith.constant dense<0.000000e+00> : vector<1xf32>
    %71 = vector.multi_reduction <add>, %66, %cst_107 [1] : vector<1x128xf32> to vector<1xf32>
    %72 = vector.shape_cast %71 : vector<1xf32> to vector<1x1xf32>
    %cst_108 = arith.constant 1.000000e-24 : f32
    %73 = vector.broadcast %cst_108 : f32 to vector<1x1xf32>
    %74 = arith.maximumf %68, %73 : vector<1x1xf32>
    %75 = math.rsqrt %74 : vector<1x1xf32>
    %cst_109 = arith.constant 1.000000e-24 : f32
    %76 = vector.broadcast %cst_109 : f32 to vector<1x1xf32>
    %77 = arith.maximumf %72, %76 : vector<1x1xf32>
    %78 = math.rsqrt %77 : vector<1x1xf32>
    %cst_110 = arith.constant 0.000000e+00 : f32
    %79 = vector.broadcast %cst_110 : f32 to vector<1x1xf32>
    %cst_111 = arith.constant 0.000000e+00 : f32
    %80 = vector.broadcast %cst_111 : f32 to vector<1x1xf32>
    %81 = arith.mulf %68, %75 : vector<1x1xf32>
    %82 = arith.mulf %81, %75 : vector<1x1xf32>
    %83 = arith.addf %80, %82 : vector<1x1xf32>
    %84 = arith.mulf %70, %75 : vector<1x1xf32>
    %85 = arith.mulf %84, %78 : vector<1x1xf32>
    %86 = arith.addf %83, %85 : vector<1x1xf32>
    %cst_112 = arith.constant 2.000000e+00 : f32
    %87 = vector.broadcast %cst_112 : f32 to vector<1x1xf32>
    %88 = arith.subf %87, %86 : vector<1x1xf32>
    %cst_113 = arith.constant 1.000000e+00 : f32
    %89 = vector.broadcast %cst_113 : f32 to vector<1x1xf32>
    %90 = arith.divf %88, %89 : vector<1x1xf32>
    %91 = arith.addf %79, %90 : vector<1x1xf32>
    %cst_114 = arith.constant 0.000000e+00 : f32
    %92 = vector.broadcast %cst_114 : f32 to vector<1x1xf32>
    %93 = arith.mulf %70, %78 : vector<1x1xf32>
    %94 = arith.mulf %93, %75 : vector<1x1xf32>
    %95 = arith.addf %92, %94 : vector<1x1xf32>
    %96 = arith.mulf %72, %78 : vector<1x1xf32>
    %97 = arith.mulf %96, %78 : vector<1x1xf32>
    %98 = arith.addf %95, %97 : vector<1x1xf32>
    %cst_115 = arith.constant 2.000000e+00 : f32
    %99 = vector.broadcast %cst_115 : f32 to vector<1x1xf32>
    %100 = arith.subf %99, %98 : vector<1x1xf32>
    %cst_116 = arith.constant 1.000000e+00 : f32
    %101 = vector.broadcast %cst_116 : f32 to vector<1x1xf32>
    %102 = arith.divf %100, %101 : vector<1x1xf32>
    %103 = arith.addf %91, %102 : vector<1x1xf32>
    %cst_117 = arith.constant 2.000000e+00 : f32
    %104 = vector.broadcast %cst_117 : f32 to vector<1x1xf32>
    %105 = arith.divf %103, %104 : vector<1x1xf32>
    %cst_118 = arith.constant 1.000000e-01 : f32
    %106 = vector.broadcast %cst_118 : f32 to vector<1x1xf32>
    %107 = arith.cmpf olt, %105, %106 : vector<1x1xf32>
    %cst_119 = arith.constant 9.99999974E-5 : f32
    %108 = vector.broadcast %cst_119 : f32 to vector<1x1xf32>
    %109 = arith.addf %105, %108 : vector<1x1xf32>
    %110 = math.log %109 : vector<1x1xf32>
    %111 = arith.select %107, %110, %105 : vector<1x1xi1>, vector<1x1xf32>
    %c0_120 = arith.constant 0 : index
    %c0_121 = arith.constant 0 : index
    %112 = vector.load %arg3[%c0_120, %c0_121] : memref<1x1xf32, #tpu.memory_space<vmem>>, vector<1x1xf32>
    tpu.vector_store %arg3[%c0_120, %c0_121], %111 {strides = array<i32>} : memref<1x1xf32, #tpu.memory_space<vmem>>, vector<1x1xf32>,
    return
  }
  func.func @transform_0(%arg0: i32) -> (i32, i32, i32, i32) {
    %c0_i32 = arith.constant 0 : i32
    %c0_i32_0 = arith.constant 0 : i32
    %c0_i32_1 = arith.constant 0 : i32
    %c0_i32_2 = arith.constant 0 : i32
    %c0_i32_3 = arith.constant 0 : i32
    return %c0_i32, %c0_i32_0, %c0_i32_1, %c0_i32_2 : i32, i32, i32, i32
  }
  func.func @transform_1(%arg0: i32) -> (i32, i32) {
    %c0_i32 = arith.constant 0 : i32
    %c0_i32_0 = arith.constant 0 : i32
    %c0_i32_1 = arith.constant 0 : i32
    return %c0_i32, %c0_i32_0 : i32, i32
  }
  func.func @transform_2(%arg0: i32) -> (i32, i32) {
    %c0_i32 = arith.constant 0 : i32
    %c0_i32_0 = arith.constant 0 : i32
    %c0_i32_1 = arith.constant 0 : i32
    return %c0_i32, %c0_i32_0 : i32, i32
  }
}

module attributes {stable_mosaic.version = 11 : i64} {
  func.func @_fused_conv_diversity_kernel(%arg0: i32, %arg1: memref<2x18x18x4xbf16, #tpu.memory_space<vmem>>, %arg2: memref<9x4x128xbf16, #tpu.memory_space<vmem>>, %arg3: memref<1x1xf32, #tpu.memory_space<vmem>>, %arg4: memref<256x128xf32, #tpu.memory_space<vmem>>) attributes {dimension_semantics = [#tpu.dimension_semantics<arbitrary>], iteration_bounds = array<i64: 1>, scalar_prefetch = 0 : i64, scratch_operands = 1 : i64, tpu.core_type = #tpu.core_type<tc>, window_params = [{pipeline_mode = #tpu.pipeline_mode<synchronous>, transform_indices = @transform_0, window_bounds = array<i64: 2, 18, 18, 4>}, {pipeline_mode = #tpu.pipeline_mode<synchronous>, transform_indices = @transform_1, window_bounds = array<i64: 9, 4, 128>}, {pipeline_mode = #tpu.pipeline_mode<synchronous>, transform_indices = @transform_2, window_bounds = array<i64: 1, 1>}]} {
    %cst = arith.constant 0.000000e+00 : f32
    %0 = vector.broadcast %cst : f32 to vector<1x128xf32>
    %cst_0 = arith.constant 0.000000e+00 : f32
    %1 = vector.broadcast %cst_0 : f32 to vector<1x128xf32>
    %cst_1 = arith.constant 0.000000e+00 : f32
    %2 = vector.broadcast %cst_1 : f32 to vector<1x128xf32>
    %cst_2 = arith.constant 0.000000e+00 : f32
    %3 = vector.broadcast %cst_2 : f32 to vector<256x128xf32>
    %c0 = arith.constant 0 : index
    %c0_3 = arith.constant 0 : index
    %c0_4 = arith.constant 0 : index
    %c0_5 = arith.constant 0 : index
    %4 = vector.load %arg1[%c0, %c0_3, %c0_4, %c0_5] : memref<2x18x18x4xbf16, #tpu.memory_space<vmem>>, vector<2x8x16x4xbf16>
    %5 = vector.shape_cast %4 : vector<2x8x16x4xbf16> to vector<256x4xbf16>
    %c0_6 = arith.constant 0 : index
    %c0_7 = arith.constant 0 : index
    %c0_8 = arith.constant 0 : index
    %6 = vector.load %arg2[%c0_6, %c0_7, %c0_8] : memref<9x4x128xbf16, #tpu.memory_space<vmem>>, vector<1x4x128xbf16>
    %7 = vector.shape_cast %6 : vector<1x4x128xbf16> to vector<4x128xbf16>
    %cst_9 = arith.constant dense<0.000000e+00> : vector<256x128xf32>
    %8 = tpu.matmul %5, %7, %cst_9 {dimension_numbers = #tpu.dot_dimension_numbers<[1], [0], [0], [1], [0, 0, 1, 1], [], []>} : vector<256x4xbf16>, vector<4x128xbf16>, vector<256x128xf32> -> vector<256x128xf32>
    %9 = arith.addf %3, %8 : vector<256x128xf32>
    %c0_10 = arith.constant 0 : index
    %c0_11 = arith.constant 0 : index
    %c1 = arith.constant 1 : index
    %c0_12 = arith.constant 0 : index
    %10 = vector.load %arg1[%c0_10, %c0_11, %c1, %c0_12] : memref<2x18x18x4xbf16, #tpu.memory_space<vmem>>, vector<2x8x16x4xbf16>
    %11 = vector.shape_cast %10 : vector<2x8x16x4xbf16> to vector<256x4xbf16>
    %c1_13 = arith.constant 1 : index
    %c0_14 = arith.constant 0 : index
    %c0_15 = arith.constant 0 : index
    %12 = vector.load %arg2[%c1_13, %c0_14, %c0_15] : memref<9x4x128xbf16, #tpu.memory_space<vmem>>, vector<1x4x128xbf16>
    %13 = vector.shape_cast %12 : vector<1x4x128xbf16> to vector<4x128xbf16>
    %cst_16 = arith.constant dense<0.000000e+00> : vector<256x128xf32>
    %14 = tpu.matmul %11, %13, %cst_16 {dimension_numbers = #tpu.dot_dimension_numbers<[1], [0], [0], [1], [0, 0, 1, 1], [], []>} : vector<256x4xbf16>, vector<4x128xbf16>, vector<256x128xf32> -> vector<256x128xf32>
    %15 = arith.addf %9, %14 : vector<256x128xf32>
    %c0_17 = arith.constant 0 : index
    %c0_18 = arith.constant 0 : index
    %c2 = arith.constant 2 : index
    %c0_19 = arith.constant 0 : index
    %16 = vector.load %arg1[%c0_17, %c0_18, %c2, %c0_19] : memref<2x18x18x4xbf16, #tpu.memory_space<vmem>>, vector<2x8x16x4xbf16>
    %17 = vector.shape_cast %16 : vector<2x8x16x4xbf16> to vector<256x4xbf16>
    %c2_20 = arith.constant 2 : index
    %c0_21 = arith.constant 0 : index
    %c0_22 = arith.constant 0 : index
    %18 = vector.load %arg2[%c2_20, %c0_21, %c0_22] : memref<9x4x128xbf16, #tpu.memory_space<vmem>>, vector<1x4x128xbf16>
    %19 = vector.shape_cast %18 : vector<1x4x128xbf16> to vector<4x128xbf16>
    %cst_23 = arith.constant dense<0.000000e+00> : vector<256x128xf32>
    %20 = tpu.matmul %17, %19, %cst_23 {dimension_numbers = #tpu.dot_dimension_numbers<[1], [0], [0], [1], [0, 0, 1, 1], [], []>} : vector<256x4xbf16>, vector<4x128xbf16>, vector<256x128xf32> -> vector<256x128xf32>
    %21 = arith.addf %15, %20 : vector<256x128xf32>
    %c0_24 = arith.constant 0 : index
    %c1_25 = arith.constant 1 : index
    %c0_26 = arith.constant 0 : index
    %c0_27 = arith.constant 0 : index
    %22 = vector.load %arg1[%c0_24, %c1_25, %c0_26, %c0_27] : memref<2x18x18x4xbf16, #tpu.memory_space<vmem>>, vector<2x8x16x4xbf16>
    %23 = vector.shape_cast %22 : vector<2x8x16x4xbf16> to vector<256x4xbf16>
    %c3 = arith.constant 3 : index
    %c0_28 = arith.constant 0 : index
    %c0_29 = arith.constant 0 : index
    %24 = vector.load %arg2[%c3, %c0_28, %c0_29] : memref<9x4x128xbf16, #tpu.memory_space<vmem>>, vector<1x4x128xbf16>
    %25 = vector.shape_cast %24 : vector<1x4x128xbf16> to vector<4x128xbf16>
    %cst_30 = arith.constant dense<0.000000e+00> : vector<256x128xf32>
    %26 = tpu.matmul %23, %25, %cst_30 {dimension_numbers = #tpu.dot_dimension_numbers<[1], [0], [0], [1], [0, 0, 1, 1], [], []>} : vector<256x4xbf16>, vector<4x128xbf16>, vector<256x128xf32> -> vector<256x128xf32>
    %27 = arith.addf %21, %26 : vector<256x128xf32>
    %c0_31 = arith.constant 0 : index
    %c1_32 = arith.constant 1 : index
    %c1_33 = arith.constant 1 : index
    %c0_34 = arith.constant 0 : index
    %28 = vector.load %arg1[%c0_31, %c1_32, %c1_33, %c0_34] : memref<2x18x18x4xbf16, #tpu.memory_space<vmem>>, vector<2x8x16x4xbf16>
    %29 = vector.shape_cast %28 : vector<2x8x16x4xbf16> to vector<256x4xbf16>
    %c4 = arith.constant 4 : index
    %c0_35 = arith.constant 0 : index
    %c0_36 = arith.constant 0 : index
    %30 = vector.load %arg2[%c4, %c0_35, %c0_36] : memref<9x4x128xbf16, #tpu.memory_space<vmem>>, vector<1x4x128xbf16>
    %31 = vector.shape_cast %30 : vector<1x4x128xbf16> to vector<4x128xbf16>
    %cst_37 = arith.constant dense<0.000000e+00> : vector<256x128xf32>
    %32 = tpu.matmul %29, %31, %cst_37 {dimension_numbers = #tpu.dot_dimension_numbers<[1], [0], [0], [1], [0, 0, 1, 1], [], []>} : vector<256x4xbf16>, vector<4x128xbf16>, vector<256x128xf32> -> vector<256x128xf32>
    %33 = arith.addf %27, %32 : vector<256x128xf32>
    %c0_38 = arith.constant 0 : index
    %c1_39 = arith.constant 1 : index
    %c2_40 = arith.constant 2 : index
    %c0_41 = arith.constant 0 : index
    %34 = vector.load %arg1[%c0_38, %c1_39, %c2_40, %c0_41] : memref<2x18x18x4xbf16, #tpu.memory_space<vmem>>, vector<2x8x16x4xbf16>
    %35 = vector.shape_cast %34 : vector<2x8x16x4xbf16> to vector<256x4xbf16>
    %c5 = arith.constant 5 : index
    %c0_42 = arith.constant 0 : index
    %c0_43 = arith.constant 0 : index
    %36 = vector.load %arg2[%c5, %c0_42, %c0_43] : memref<9x4x128xbf16, #tpu.memory_space<vmem>>, vector<1x4x128xbf16>
    %37 = vector.shape_cast %36 : vector<1x4x128xbf16> to vector<4x128xbf16>
    %cst_44 = arith.constant dense<0.000000e+00> : vector<256x128xf32>
    %38 = tpu.matmul %35, %37, %cst_44 {dimension_numbers = #tpu.dot_dimension_numbers<[1], [0], [0], [1], [0, 0, 1, 1], [], []>} : vector<256x4xbf16>, vector<4x128xbf16>, vector<256x128xf32> -> vector<256x128xf32>
    %39 = arith.addf %33, %38 : vector<256x128xf32>
    %c0_45 = arith.constant 0 : index
    %c2_46 = arith.constant 2 : index
    %c0_47 = arith.constant 0 : index
    %c0_48 = arith.constant 0 : index
    %40 = vector.load %arg1[%c0_45, %c2_46, %c0_47, %c0_48] : memref<2x18x18x4xbf16, #tpu.memory_space<vmem>>, vector<2x8x16x4xbf16>
    %41 = vector.shape_cast %40 : vector<2x8x16x4xbf16> to vector<256x4xbf16>
    %c6 = arith.constant 6 : index
    %c0_49 = arith.constant 0 : index
    %c0_50 = arith.constant 0 : index
    %42 = vector.load %arg2[%c6, %c0_49, %c0_50] : memref<9x4x128xbf16, #tpu.memory_space<vmem>>, vector<1x4x128xbf16>
    %43 = vector.shape_cast %42 : vector<1x4x128xbf16> to vector<4x128xbf16>
    %cst_51 = arith.constant dense<0.000000e+00> : vector<256x128xf32>
    %44 = tpu.matmul %41, %43, %cst_51 {dimension_numbers = #tpu.dot_dimension_numbers<[1], [0], [0], [1], [0, 0, 1, 1], [], []>} : vector<256x4xbf16>, vector<4x128xbf16>, vector<256x128xf32> -> vector<256x128xf32>
    %45 = arith.addf %39, %44 : vector<256x128xf32>
    %c0_52 = arith.constant 0 : index
    %c2_53 = arith.constant 2 : index
    %c1_54 = arith.constant 1 : index
    %c0_55 = arith.constant 0 : index
    %46 = vector.load %arg1[%c0_52, %c2_53, %c1_54, %c0_55] : memref<2x18x18x4xbf16, #tpu.memory_space<vmem>>, vector<2x8x16x4xbf16>
    %47 = vector.shape_cast %46 : vector<2x8x16x4xbf16> to vector<256x4xbf16>
    %c7 = arith.constant 7 : index
    %c0_56 = arith.constant 0 : index
    %c0_57 = arith.constant 0 : index
    %48 = vector.load %arg2[%c7, %c0_56, %c0_57] : memref<9x4x128xbf16, #tpu.memory_space<vmem>>, vector<1x4x128xbf16>
    %49 = vector.shape_cast %48 : vector<1x4x128xbf16> to vector<4x128xbf16>
    %cst_58 = arith.constant dense<0.000000e+00> : vector<256x128xf32>
    %50 = tpu.matmul %47, %49, %cst_58 {dimension_numbers = #tpu.dot_dimension_numbers<[1], [0], [0], [1], [0, 0, 1, 1], [], []>} : vector<256x4xbf16>, vector<4x128xbf16>, vector<256x128xf32> -> vector<256x128xf32>
    %51 = arith.addf %45, %50 : vector<256x128xf32>
    %c0_59 = arith.constant 0 : index
    %c2_60 = arith.constant 2 : index
    %c2_61 = arith.constant 2 : index
    %c0_62 = arith.constant 0 : index
    %52 = vector.load %arg1[%c0_59, %c2_60, %c2_61, %c0_62] : memref<2x18x18x4xbf16, #tpu.memory_space<vmem>>, vector<2x8x16x4xbf16>
    %53 = vector.shape_cast %52 : vector<2x8x16x4xbf16> to vector<256x4xbf16>
    %c8 = arith.constant 8 : index
    %c0_63 = arith.constant 0 : index
    %c0_64 = arith.constant 0 : index
    %54 = vector.load %arg2[%c8, %c0_63, %c0_64] : memref<9x4x128xbf16, #tpu.memory_space<vmem>>, vector<1x4x128xbf16>
    %55 = vector.shape_cast %54 : vector<1x4x128xbf16> to vector<4x128xbf16>
    %cst_65 = arith.constant dense<0.000000e+00> : vector<256x128xf32>
    %56 = tpu.matmul %53, %55, %cst_65 {dimension_numbers = #tpu.dot_dimension_numbers<[1], [0], [0], [1], [0, 0, 1, 1], [], []>} : vector<256x4xbf16>, vector<4x128xbf16>, vector<256x128xf32> -> vector<256x128xf32>
    %57 = arith.addf %51, %56 : vector<256x128xf32>
    %c0_66 = arith.constant 0 : index
    %c0_67 = arith.constant 0 : index
    %58 = vector.load %arg4[%c0_66, %c0_67] : memref<256x128xf32, #tpu.memory_space<vmem>>, vector<256x128xf32>
    tpu.vector_store %arg4[%c0_66, %c0_67], %57 {strides = array<i32>} : memref<256x128xf32, #tpu.memory_space<vmem>>, vector<256x128xf32>,
    %c0_68 = arith.constant 0 : index
    %c0_69 = arith.constant 0 : index
    %59 = vector.load %arg4[%c0_68, %c0_69] : memref<256x128xf32, #tpu.memory_space<vmem>>, vector<128x128xf32>
    %c0_70 = arith.constant 0 : index
    %c0_71 = arith.constant 0 : index
    %60 = vector.load %arg4[%c0_70, %c0_71] : memref<256x128xf32, #tpu.memory_space<vmem>>, vector<128x128xf32>
    %61 = arith.mulf %59, %60 : vector<128x128xf32>
    %cst_72 = arith.constant dense<0.000000e+00> : vector<128xf32>
    %62 = vector.multi_reduction <add>, %61, %cst_72 [0] : vector<128x128xf32> to vector<128xf32>
    %63 = vector.shape_cast %62 : vector<128xf32> to vector<1x128xf32>
    %64 = arith.addf %0, %63 : vector<1x128xf32>
    %c128 = arith.constant 128 : index
    %c0_73 = arith.constant 0 : index
    %65 = vector.load %arg4[%c128, %c0_73] : memref<256x128xf32, #tpu.memory_space<vmem>>, vector<128x128xf32>
    %66 = arith.mulf %59, %65 : vector<128x128xf32>
    %cst_74 = arith.constant dense<0.000000e+00> : vector<128xf32>
    %67 = vector.multi_reduction <add>, %66, %cst_74 [0] : vector<128x128xf32> to vector<128xf32>
    %68 = vector.shape_cast %67 : vector<128xf32> to vector<1x128xf32>
    %69 = arith.addf %1, %68 : vector<1x128xf32>
    %c128_75 = arith.constant 128 : index
    %c0_76 = arith.constant 0 : index
    %70 = vector.load %arg4[%c128_75, %c0_76] : memref<256x128xf32, #tpu.memory_space<vmem>>, vector<128x128xf32>
    %c128_77 = arith.constant 128 : index
    %c0_78 = arith.constant 0 : index
    %71 = vector.load %arg4[%c128_77, %c0_78] : memref<256x128xf32, #tpu.memory_space<vmem>>, vector<128x128xf32>
    %72 = arith.mulf %70, %71 : vector<128x128xf32>
    %cst_79 = arith.constant dense<0.000000e+00> : vector<128xf32>
    %73 = vector.multi_reduction <add>, %72, %cst_79 [0] : vector<128x128xf32> to vector<128xf32>
    %74 = vector.shape_cast %73 : vector<128xf32> to vector<1x128xf32>
    %75 = arith.addf %2, %74 : vector<1x128xf32>
    %cst_80 = arith.constant 0.000000e+00 : f32
    %76 = vector.broadcast %cst_80 : f32 to vector<256x128xf32>
    %c0_81 = arith.constant 0 : index
    %c8_82 = arith.constant 8 : index
    %c0_83 = arith.constant 0 : index
    %c0_84 = arith.constant 0 : index
    %77 = vector.load %arg1[%c0_81, %c8_82, %c0_83, %c0_84] : memref<2x18x18x4xbf16, #tpu.memory_space<vmem>>, vector<2x8x16x4xbf16>
    %78 = vector.shape_cast %77 : vector<2x8x16x4xbf16> to vector<256x4xbf16>
    %c0_85 = arith.constant 0 : index
    %c0_86 = arith.constant 0 : index
    %c0_87 = arith.constant 0 : index
    %79 = vector.load %arg2[%c0_85, %c0_86, %c0_87] : memref<9x4x128xbf16, #tpu.memory_space<vmem>>, vector<1x4x128xbf16>
    %80 = vector.shape_cast %79 : vector<1x4x128xbf16> to vector<4x128xbf16>
    %cst_88 = arith.constant dense<0.000000e+00> : vector<256x128xf32>
    %81 = tpu.matmul %78, %80, %cst_88 {dimension_numbers = #tpu.dot_dimension_numbers<[1], [0], [0], [1], [0, 0, 1, 1], [], []>} : vector<256x4xbf16>, vector<4x128xbf16>, vector<256x128xf32> -> vector<256x128xf32>
    %82 = arith.addf %76, %81 : vector<256x128xf32>
    %c0_89 = arith.constant 0 : index
    %c8_90 = arith.constant 8 : index
    %c1_91 = arith.constant 1 : index
    %c0_92 = arith.constant 0 : index
    %83 = vector.load %arg1[%c0_89, %c8_90, %c1_91, %c0_92] : memref<2x18x18x4xbf16, #tpu.memory_space<vmem>>, vector<2x8x16x4xbf16>
    %84 = vector.shape_cast %83 : vector<2x8x16x4xbf16> to vector<256x4xbf16>
    %c1_93 = arith.constant 1 : index
    %c0_94 = arith.constant 0 : index
    %c0_95 = arith.constant 0 : index
    %85 = vector.load %arg2[%c1_93, %c0_94, %c0_95] : memref<9x4x128xbf16, #tpu.memory_space<vmem>>, vector<1x4x128xbf16>
    %86 = vector.shape_cast %85 : vector<1x4x128xbf16> to vector<4x128xbf16>
    %cst_96 = arith.constant dense<0.000000e+00> : vector<256x128xf32>
    %87 = tpu.matmul %84, %86, %cst_96 {dimension_numbers = #tpu.dot_dimension_numbers<[1], [0], [0], [1], [0, 0, 1, 1], [], []>} : vector<256x4xbf16>, vector<4x128xbf16>, vector<256x128xf32> -> vector<256x128xf32>
    %88 = arith.addf %82, %87 : vector<256x128xf32>
    %c0_97 = arith.constant 0 : index
    %c8_98 = arith.constant 8 : index
    %c2_99 = arith.constant 2 : index
    %c0_100 = arith.constant 0 : index
    %89 = vector.load %arg1[%c0_97, %c8_98, %c2_99, %c0_100] : memref<2x18x18x4xbf16, #tpu.memory_space<vmem>>, vector<2x8x16x4xbf16>
    %90 = vector.shape_cast %89 : vector<2x8x16x4xbf16> to vector<256x4xbf16>
    %c2_101 = arith.constant 2 : index
    %c0_102 = arith.constant 0 : index
    %c0_103 = arith.constant 0 : index
    %91 = vector.load %arg2[%c2_101, %c0_102, %c0_103] : memref<9x4x128xbf16, #tpu.memory_space<vmem>>, vector<1x4x128xbf16>
    %92 = vector.shape_cast %91 : vector<1x4x128xbf16> to vector<4x128xbf16>
    %cst_104 = arith.constant dense<0.000000e+00> : vector<256x128xf32>
    %93 = tpu.matmul %90, %92, %cst_104 {dimension_numbers = #tpu.dot_dimension_numbers<[1], [0], [0], [1], [0, 0, 1, 1], [], []>} : vector<256x4xbf16>, vector<4x128xbf16>, vector<256x128xf32> -> vector<256x128xf32>
    %94 = arith.addf %88, %93 : vector<256x128xf32>
    %c0_105 = arith.constant 0 : index
    %c9 = arith.constant 9 : index
    %c0_106 = arith.constant 0 : index
    %c0_107 = arith.constant 0 : index
    %95 = vector.load %arg1[%c0_105, %c9, %c0_106, %c0_107] : memref<2x18x18x4xbf16, #tpu.memory_space<vmem>>, vector<2x8x16x4xbf16>
    %96 = vector.shape_cast %95 : vector<2x8x16x4xbf16> to vector<256x4xbf16>
    %c3_108 = arith.constant 3 : index
    %c0_109 = arith.constant 0 : index
    %c0_110 = arith.constant 0 : index
    %97 = vector.load %arg2[%c3_108, %c0_109, %c0_110] : memref<9x4x128xbf16, #tpu.memory_space<vmem>>, vector<1x4x128xbf16>
    %98 = vector.shape_cast %97 : vector<1x4x128xbf16> to vector<4x128xbf16>
    %cst_111 = arith.constant dense<0.000000e+00> : vector<256x128xf32>
    %99 = tpu.matmul %96, %98, %cst_111 {dimension_numbers = #tpu.dot_dimension_numbers<[1], [0], [0], [1], [0, 0, 1, 1], [], []>} : vector<256x4xbf16>, vector<4x128xbf16>, vector<256x128xf32> -> vector<256x128xf32>
    %100 = arith.addf %94, %99 : vector<256x128xf32>
    %c0_112 = arith.constant 0 : index
    %c9_113 = arith.constant 9 : index
    %c1_114 = arith.constant 1 : index
    %c0_115 = arith.constant 0 : index
    %101 = vector.load %arg1[%c0_112, %c9_113, %c1_114, %c0_115] : memref<2x18x18x4xbf16, #tpu.memory_space<vmem>>, vector<2x8x16x4xbf16>
    %102 = vector.shape_cast %101 : vector<2x8x16x4xbf16> to vector<256x4xbf16>
    %c4_116 = arith.constant 4 : index
    %c0_117 = arith.constant 0 : index
    %c0_118 = arith.constant 0 : index
    %103 = vector.load %arg2[%c4_116, %c0_117, %c0_118] : memref<9x4x128xbf16, #tpu.memory_space<vmem>>, vector<1x4x128xbf16>
    %104 = vector.shape_cast %103 : vector<1x4x128xbf16> to vector<4x128xbf16>
    %cst_119 = arith.constant dense<0.000000e+00> : vector<256x128xf32>
    %105 = tpu.matmul %102, %104, %cst_119 {dimension_numbers = #tpu.dot_dimension_numbers<[1], [0], [0], [1], [0, 0, 1, 1], [], []>} : vector<256x4xbf16>, vector<4x128xbf16>, vector<256x128xf32> -> vector<256x128xf32>
    %106 = arith.addf %100, %105 : vector<256x128xf32>
    %c0_120 = arith.constant 0 : index
    %c9_121 = arith.constant 9 : index
    %c2_122 = arith.constant 2 : index
    %c0_123 = arith.constant 0 : index
    %107 = vector.load %arg1[%c0_120, %c9_121, %c2_122, %c0_123] : memref<2x18x18x4xbf16, #tpu.memory_space<vmem>>, vector<2x8x16x4xbf16>
    %108 = vector.shape_cast %107 : vector<2x8x16x4xbf16> to vector<256x4xbf16>
    %c5_124 = arith.constant 5 : index
    %c0_125 = arith.constant 0 : index
    %c0_126 = arith.constant 0 : index
    %109 = vector.load %arg2[%c5_124, %c0_125, %c0_126] : memref<9x4x128xbf16, #tpu.memory_space<vmem>>, vector<1x4x128xbf16>
    %110 = vector.shape_cast %109 : vector<1x4x128xbf16> to vector<4x128xbf16>
    %cst_127 = arith.constant dense<0.000000e+00> : vector<256x128xf32>
    %111 = tpu.matmul %108, %110, %cst_127 {dimension_numbers = #tpu.dot_dimension_numbers<[1], [0], [0], [1], [0, 0, 1, 1], [], []>} : vector<256x4xbf16>, vector<4x128xbf16>, vector<256x128xf32> -> vector<256x128xf32>
    %112 = arith.addf %106, %111 : vector<256x128xf32>
    %c0_128 = arith.constant 0 : index
    %c10 = arith.constant 10 : index
    %c0_129 = arith.constant 0 : index
    %c0_130 = arith.constant 0 : index
    %113 = vector.load %arg1[%c0_128, %c10, %c0_129, %c0_130] : memref<2x18x18x4xbf16, #tpu.memory_space<vmem>>, vector<2x8x16x4xbf16>
    %114 = vector.shape_cast %113 : vector<2x8x16x4xbf16> to vector<256x4xbf16>
    %c6_131 = arith.constant 6 : index
    %c0_132 = arith.constant 0 : index
    %c0_133 = arith.constant 0 : index
    %115 = vector.load %arg2[%c6_131, %c0_132, %c0_133] : memref<9x4x128xbf16, #tpu.memory_space<vmem>>, vector<1x4x128xbf16>
    %116 = vector.shape_cast %115 : vector<1x4x128xbf16> to vector<4x128xbf16>
    %cst_134 = arith.constant dense<0.000000e+00> : vector<256x128xf32>
    %117 = tpu.matmul %114, %116, %cst_134 {dimension_numbers = #tpu.dot_dimension_numbers<[1], [0], [0], [1], [0, 0, 1, 1], [], []>} : vector<256x4xbf16>, vector<4x128xbf16>, vector<256x128xf32> -> vector<256x128xf32>
    %118 = arith.addf %112, %117 : vector<256x128xf32>
    %c0_135 = arith.constant 0 : index
    %c10_136 = arith.constant 10 : index
    %c1_137 = arith.constant 1 : index
    %c0_138 = arith.constant 0 : index
    %119 = vector.load %arg1[%c0_135, %c10_136, %c1_137, %c0_138] : memref<2x18x18x4xbf16, #tpu.memory_space<vmem>>, vector<2x8x16x4xbf16>
    %120 = vector.shape_cast %119 : vector<2x8x16x4xbf16> to vector<256x4xbf16>
    %c7_139 = arith.constant 7 : index
    %c0_140 = arith.constant 0 : index
    %c0_141 = arith.constant 0 : index
    %121 = vector.load %arg2[%c7_139, %c0_140, %c0_141] : memref<9x4x128xbf16, #tpu.memory_space<vmem>>, vector<1x4x128xbf16>
    %122 = vector.shape_cast %121 : vector<1x4x128xbf16> to vector<4x128xbf16>
    %cst_142 = arith.constant dense<0.000000e+00> : vector<256x128xf32>
    %123 = tpu.matmul %120, %122, %cst_142 {dimension_numbers = #tpu.dot_dimension_numbers<[1], [0], [0], [1], [0, 0, 1, 1], [], []>} : vector<256x4xbf16>, vector<4x128xbf16>, vector<256x128xf32> -> vector<256x128xf32>
    %124 = arith.addf %118, %123 : vector<256x128xf32>
    %c0_143 = arith.constant 0 : index
    %c10_144 = arith.constant 10 : index
    %c2_145 = arith.constant 2 : index
    %c0_146 = arith.constant 0 : index
    %125 = vector.load %arg1[%c0_143, %c10_144, %c2_145, %c0_146] : memref<2x18x18x4xbf16, #tpu.memory_space<vmem>>, vector<2x8x16x4xbf16>
    %126 = vector.shape_cast %125 : vector<2x8x16x4xbf16> to vector<256x4xbf16>
    %c8_147 = arith.constant 8 : index
    %c0_148 = arith.constant 0 : index
    %c0_149 = arith.constant 0 : index
    %127 = vector.load %arg2[%c8_147, %c0_148, %c0_149] : memref<9x4x128xbf16, #tpu.memory_space<vmem>>, vector<1x4x128xbf16>
    %128 = vector.shape_cast %127 : vector<1x4x128xbf16> to vector<4x128xbf16>
    %cst_150 = arith.constant dense<0.000000e+00> : vector<256x128xf32>
    %129 = tpu.matmul %126, %128, %cst_150 {dimension_numbers = #tpu.dot_dimension_numbers<[1], [0], [0], [1], [0, 0, 1, 1], [], []>} : vector<256x4xbf16>, vector<4x128xbf16>, vector<256x128xf32> -> vector<256x128xf32>
    %130 = arith.addf %124, %129 : vector<256x128xf32>
    %c0_151 = arith.constant 0 : index
    %c0_152 = arith.constant 0 : index
    %131 = vector.load %arg4[%c0_151, %c0_152] : memref<256x128xf32, #tpu.memory_space<vmem>>, vector<256x128xf32>
    tpu.vector_store %arg4[%c0_151, %c0_152], %130 {strides = array<i32>} : memref<256x128xf32, #tpu.memory_space<vmem>>, vector<256x128xf32>,
    %c0_153 = arith.constant 0 : index
    %c0_154 = arith.constant 0 : index
    %132 = vector.load %arg4[%c0_153, %c0_154] : memref<256x128xf32, #tpu.memory_space<vmem>>, vector<128x128xf32>
    %c0_155 = arith.constant 0 : index
    %c0_156 = arith.constant 0 : index
    %133 = vector.load %arg4[%c0_155, %c0_156] : memref<256x128xf32, #tpu.memory_space<vmem>>, vector<128x128xf32>
    %134 = arith.mulf %132, %133 : vector<128x128xf32>
    %cst_157 = arith.constant dense<0.000000e+00> : vector<128xf32>
    %135 = vector.multi_reduction <add>, %134, %cst_157 [0] : vector<128x128xf32> to vector<128xf32>
    %136 = vector.shape_cast %135 : vector<128xf32> to vector<1x128xf32>
    %137 = arith.addf %64, %136 : vector<1x128xf32>
    %c128_158 = arith.constant 128 : index
    %c0_159 = arith.constant 0 : index
    %138 = vector.load %arg4[%c128_158, %c0_159] : memref<256x128xf32, #tpu.memory_space<vmem>>, vector<128x128xf32>
    %139 = arith.mulf %132, %138 : vector<128x128xf32>
    %cst_160 = arith.constant dense<0.000000e+00> : vector<128xf32>
    %140 = vector.multi_reduction <add>, %139, %cst_160 [0] : vector<128x128xf32> to vector<128xf32>
    %141 = vector.shape_cast %140 : vector<128xf32> to vector<1x128xf32>
    %142 = arith.addf %69, %141 : vector<1x128xf32>
    %c128_161 = arith.constant 128 : index
    %c0_162 = arith.constant 0 : index
    %143 = vector.load %arg4[%c128_161, %c0_162] : memref<256x128xf32, #tpu.memory_space<vmem>>, vector<128x128xf32>
    %c128_163 = arith.constant 128 : index
    %c0_164 = arith.constant 0 : index
    %144 = vector.load %arg4[%c128_163, %c0_164] : memref<256x128xf32, #tpu.memory_space<vmem>>, vector<128x128xf32>
    %145 = arith.mulf %143, %144 : vector<128x128xf32>
    %cst_165 = arith.constant dense<0.000000e+00> : vector<128xf32>
    %146 = vector.multi_reduction <add>, %145, %cst_165 [0] : vector<128x128xf32> to vector<128xf32>
    %147 = vector.shape_cast %146 : vector<128xf32> to vector<1x128xf32>
    %148 = arith.addf %75, %147 : vector<1x128xf32>
    %cst_166 = arith.constant dense<0.000000e+00> : vector<1xf32>
    %149 = vector.multi_reduction <add>, %137, %cst_166 [1] : vector<1x128xf32> to vector<1xf32>
    %150 = vector.shape_cast %149 : vector<1xf32> to vector<1x1xf32>
    %cst_167 = arith.constant dense<0.000000e+00> : vector<1xf32>
    %151 = vector.multi_reduction <add>, %142, %cst_167 [1] : vector<1x128xf32> to vector<1xf32>
    %152 = vector.shape_cast %151 : vector<1xf32> to vector<1x1xf32>
    %cst_168 = arith.constant dense<0.000000e+00> : vector<1xf32>
    %153 = vector.multi_reduction <add>, %148, %cst_168 [1] : vector<1x128xf32> to vector<1xf32>
    %154 = vector.shape_cast %153 : vector<1xf32> to vector<1x1xf32>
    %cst_169 = arith.constant 1.000000e-24 : f32
    %155 = vector.broadcast %cst_169 : f32 to vector<1x1xf32>
    %156 = arith.maximumf %150, %155 : vector<1x1xf32>
    %157 = math.rsqrt %156 : vector<1x1xf32>
    %cst_170 = arith.constant 1.000000e-24 : f32
    %158 = vector.broadcast %cst_170 : f32 to vector<1x1xf32>
    %159 = arith.maximumf %154, %158 : vector<1x1xf32>
    %160 = math.rsqrt %159 : vector<1x1xf32>
    %cst_171 = arith.constant 0.000000e+00 : f32
    %161 = vector.broadcast %cst_171 : f32 to vector<1x1xf32>
    %cst_172 = arith.constant 0.000000e+00 : f32
    %162 = vector.broadcast %cst_172 : f32 to vector<1x1xf32>
    %163 = arith.mulf %150, %157 : vector<1x1xf32>
    %164 = arith.mulf %163, %157 : vector<1x1xf32>
    %165 = arith.addf %162, %164 : vector<1x1xf32>
    %166 = arith.mulf %152, %157 : vector<1x1xf32>
    %167 = arith.mulf %166, %160 : vector<1x1xf32>
    %168 = arith.addf %165, %167 : vector<1x1xf32>
    %cst_173 = arith.constant 2.000000e+00 : f32
    %169 = vector.broadcast %cst_173 : f32 to vector<1x1xf32>
    %170 = arith.subf %169, %168 : vector<1x1xf32>
    %cst_174 = arith.constant 1.000000e+00 : f32
    %171 = vector.broadcast %cst_174 : f32 to vector<1x1xf32>
    %172 = arith.divf %170, %171 : vector<1x1xf32>
    %173 = arith.addf %161, %172 : vector<1x1xf32>
    %cst_175 = arith.constant 0.000000e+00 : f32
    %174 = vector.broadcast %cst_175 : f32 to vector<1x1xf32>
    %175 = arith.mulf %152, %160 : vector<1x1xf32>
    %176 = arith.mulf %175, %157 : vector<1x1xf32>
    %177 = arith.addf %174, %176 : vector<1x1xf32>
    %178 = arith.mulf %154, %160 : vector<1x1xf32>
    %179 = arith.mulf %178, %160 : vector<1x1xf32>
    %180 = arith.addf %177, %179 : vector<1x1xf32>
    %cst_176 = arith.constant 2.000000e+00 : f32
    %181 = vector.broadcast %cst_176 : f32 to vector<1x1xf32>
    %182 = arith.subf %181, %180 : vector<1x1xf32>
    %cst_177 = arith.constant 1.000000e+00 : f32
    %183 = vector.broadcast %cst_177 : f32 to vector<1x1xf32>
    %184 = arith.divf %182, %183 : vector<1x1xf32>
    %185 = arith.addf %173, %184 : vector<1x1xf32>
    %cst_178 = arith.constant 2.000000e+00 : f32
    %186 = vector.broadcast %cst_178 : f32 to vector<1x1xf32>
    %187 = arith.divf %185, %186 : vector<1x1xf32>
    %cst_179 = arith.constant 1.000000e-01 : f32
    %188 = vector.broadcast %cst_179 : f32 to vector<1x1xf32>
    %189 = arith.cmpf olt, %187, %188 : vector<1x1xf32>
    %cst_180 = arith.constant 9.99999974E-5 : f32
    %190 = vector.broadcast %cst_180 : f32 to vector<1x1xf32>
    %191 = arith.addf %187, %190 : vector<1x1xf32>
    %192 = math.log %191 : vector<1x1xf32>
    %193 = arith.select %189, %192, %187 : vector<1x1xi1>, vector<1x1xf32>
    %c0_181 = arith.constant 0 : index
    %c0_182 = arith.constant 0 : index
    %194 = vector.load %arg3[%c0_181, %c0_182] : memref<1x1xf32, #tpu.memory_space<vmem>>, vector<1x1xf32>
    tpu.vector_store %arg3[%c0_181, %c0_182], %193 {strides = array<i32>} : memref<1x1xf32, #tpu.memory_space<vmem>>, vector<1x1xf32>,
    return
  }
  func.func @transform_0(%arg0: i32) -> (i32, i32, i32, i32) {
    %c0_i32 = arith.constant 0 : i32
    %c0_i32_0 = arith.constant 0 : i32
    %c0_i32_1 = arith.constant 0 : i32
    %c0_i32_2 = arith.constant 0 : i32
    %c0_i32_3 = arith.constant 0 : i32
    return %c0_i32, %c0_i32_0, %c0_i32_1, %c0_i32_2 : i32, i32, i32, i32
  }
  func.func @transform_1(%arg0: i32) -> (i32, i32, i32) {
    %c0_i32 = arith.constant 0 : i32
    %c0_i32_0 = arith.constant 0 : i32
    %c0_i32_1 = arith.constant 0 : i32
    %c0_i32_2 = arith.constant 0 : i32
    return %c0_i32, %c0_i32_0, %c0_i32_1 : i32, i32, i32
  }
  func.func @transform_2(%arg0: i32) -> (i32, i32) {
    %c0_i32 = arith.constant 0 : i32
    %c0_i32_0 = arith.constant 0 : i32
    %c0_i32_1 = arith.constant 0 : i32
    return %c0_i32, %c0_i32_0 : i32, i32
  }
}

</mosaic_0001>

<llo_original>
// kernel: tpu_custom_call.1
$region0: #{tpu_custom_call.1}
  #allocation0 [shape = 'u32[]', space=smem, size = 0x4, offset = 0x4, fixed_abs, tag = 'smem constant byte address 0x4 - core index']
  #allocation1 [shape = 'u32[72,128]{1,0:T(1,128)}', space=vmem, size = 0x9000, scoped, tag = 'internal scratch']
  #allocation2 [shape = 'f32[256,128]{1,0:T(8,128)}', space=vmem, size = 0x20000, scoped, tag = 'scratch operand']
  %s0 = inlined_call_operand.vmem [shape: bf16[2,18,18,4], index: 0, kind: input, shape index: {}]
  %s1 = inlined_call_operand.vmem [shape: bf16[128,128], index: 1, kind: input, shape index: {}]
  %s2 = inlined_call_operand.hbm [shape: f32[1,1], index: 2, kind: output, shape index: {}]
  %s3 = sld [smem:[#allocation0]]
  $region18: #{tpu_custom_call.1} parent=0
    _
  %s5 = ssub.s32 1, %s3
  %s6 = scalar_select 0, %s5, %s3
  $region1: #{tpu_custom_call.1} parent=0
    #allocation3 [shape = 'u8[512]{0}', space=vmem, size = 0x400, scoped, tag = 'output window, operand 0, single buffered']
    #allocation4 [shape = 's32[1]{0}', space=sflag, size = 0x4, scoped, tag = 'scoped memory for tpu_custom_call.1']
    %7 = vsyncpa [#allocation4], 0
    // Predicated region
    $region2: #{tpu_custom_call.1} parent=1 // pred_check
      _
    $region3: #{tpu_custom_call.1} parent=1 // pred_check_branch
      %9 = sbr.rel (0) target = $region5
    $region4: #{tpu_custom_call.1} parent=1 // pred_region
      _
    $region5: #{tpu_custom_call.1} parent=1 // pred_fallthru
      _
    // Predicated region
    $region6: #{tpu_custom_call.1} parent=1 // pred_check
      _
    $region7: #{tpu_custom_call.1} parent=1 // pred_check_branch
      %11 = sbr.rel (0) target = $region9
    $region8: #{tpu_custom_call.1} parent=1 // pred_region
      _
    $region9: #{tpu_custom_call.1} parent=1 // pred_fallthru
      _
    %v13 = vld [vmem:[%s0] sm:$0xf]
    %v14 = vld [vmem:[%s0 + $0x4] sm:$0xf]
    %v15 = vld [vmem:[%s0 + $0xc] sm:$0xf]
    %v16 = vld [vmem:[%s0 + $0x10] sm:$0xf]
    %v17 = vld [vmem:[%s0 + $0x18] sm:$0xf]
    %v18 = vld [vmem:[%s0 + $0x1c] sm:$0xf]
    %v19 = vld [vmem:[%s0 + $0x24] sm:$0xf]
    %v20 = vld [vmem:[%s0 + $0x28] sm:$0xf]
    %v21 = vld [vmem:[%s0 + $0x30] sm:$0xf]
    %v22 = vld [vmem:[%s0 + $0x34] sm:$0xf]
    %v23 = vld [vmem:[%s0 + $0x3c] sm:$0xf]
    %v24 = vld [vmem:[%s0 + $0x40] sm:$0xf]
    %v25 = vld [vmem:[%s0 + $0x48] sm:$0xf]
    %v26 = vld [vmem:[%s0 + $0x4c] sm:$0xf]
    %v27 = vld [vmem:[%s0 + $0x54] sm:$0xf]
    %v28 = vld [vmem:[%s0 + $0x58] sm:$0xf]
    %v29 = vld [vmem:[%s0 + $0xd8] sm:$0xf]
    %v30 = vld [vmem:[%s0 + $0xdc] sm:$0xf]
    %v31 = vld [vmem:[%s0 + $0xe4] sm:$0xf]
    %v32 = vld [vmem:[%s0 + $0xe8] sm:$0xf]
    %v33 = vld [vmem:[%s0 + $0xf0] sm:$0xf]
    %v34 = vld [vmem:[%s0 + $0xf4] sm:$0xf]
    %v35 = vld [vmem:[%s0 + $0xfc] sm:$0xf]
    %v36 = vld [vmem:[%s0 + $0x100] sm:$0xf]
    %v37 = vld [vmem:[%s0 + $0x108] sm:$0xf]
    %v38 = vld [vmem:[%s0 + $0x10c] sm:$0xf]
    %v39 = vld [vmem:[%s0 + $0x114] sm:$0xf]
    %v40 = vld [vmem:[%s0 + $0x118] sm:$0xf]
    %v41 = vld [vmem:[%s0 + $0x120] sm:$0xf]
    %v42 = vld [vmem:[%s0 + $0x124] sm:$0xf]
    %v43 = vld [vmem:[%s0 + $0x12c] sm:$0xf]
    %v44 = vld [vmem:[%s0 + $0x130] sm:$0xf]
    %v45 = vld [vmem:[%s0 + $0x8] sm:$0x1]
    %v46 = vld [vmem:[%s0 + $0x14] sm:$0x1]
    %v47 = vld [vmem:[%s0 + $0x20] sm:$0x1]
    %v48 = vld [vmem:[%s0 + $0x2c] sm:$0x1]
    %v49 = vld [vmem:[%s0 + $0x38] sm:$0x1]
    %v50 = vld [vmem:[%s0 + $0x44] sm:$0x1]
    %v51 = vld [vmem:[%s0 + $0x50] sm:$0x1]
    %v52 = vld [vmem:[%s0 + $0x5c] sm:$0x1]
    %v53 = vld [vmem:[%s0 + $0xe0] sm:$0x1]
    %v54 = vld [vmem:[%s0 + $0xec] sm:$0x1]
    %v55 = vld [vmem:[%s0 + $0xf8] sm:$0x1]
    %v56 = vld [vmem:[%s0 + $0x104] sm:$0x1]
    %v57 = vld [vmem:[%s0 + $0x110] sm:$0x1]
    %v58 = vld [vmem:[%s0 + $0x11c] sm:$0x1]
    %v59 = vld [vmem:[%s0 + $0x128] sm:$0x1]
    %v60 = vld [vmem:[%s0 + $0x134] sm:$0x1]
    %v61 = vld [vmem:[%s0] sm:$0xe]
    %v62 = vld [vmem:[%s0 + $0xc] sm:$0xe]
    %v63 = vld [vmem:[%s0 + $0x18] sm:$0xe]
    %v64 = vld [vmem:[%s0 + $0x24] sm:$0xe]
    %v65 = vld [vmem:[%s0 + $0x30] sm:$0xe]
    %v66 = vld [vmem:[%s0 + $0x3c] sm:$0xe]
    %v67 = vld [vmem:[%s0 + $0x48] sm:$0xe]
    %v68 = vld [vmem:[%s0 + $0x54] sm:$0xe]
    %v69 = vld [vmem:[%s0 + $0xd8] sm:$0xe]
    %v70 = vld [vmem:[%s0 + $0xe4] sm:$0xe]
    %v71 = vld [vmem:[%s0 + $0xf0] sm:$0xe]
    %v72 = vld [vmem:[%s0 + $0xfc] sm:$0xe]
    %v73 = vld [vmem:[%s0 + $0x108] sm:$0xe]
    %v74 = vld [vmem:[%s0 + $0x114] sm:$0xe]
    %v75 = vld [vmem:[%s0 + $0x120] sm:$0xe]
    %v76 = vld [vmem:[%s0 + $0x12c] sm:$0xe]
    %s77 = scalar_lea.vmem %s0, 12
    %v78 = vld [vmem:[%s77] sm:$0xf]
    %v79 = vld [vmem:[%s77 + $0x4] sm:$0xf]
    %v80 = vld [vmem:[%s77 + $0xc] sm:$0xf]
    %v81 = vld [vmem:[%s77 + $0x10] sm:$0xf]
    %v82 = vld [vmem:[%s77 + $0x18] sm:$0xf]
    %v83 = vld [vmem:[%s77 + $0x1c] sm:$0xf]
    %v84 = vld [vmem:[%s77 + $0x24] sm:$0xf]
    %v85 = vld [vmem:[%s77 + $0x28] sm:$0xf]
    %v86 = vld [vmem:[%s77 + $0x30] sm:$0xf]
    %v87 = vld [vmem:[%s77 + $0x34] sm:$0xf]
    %v88 = vld [vmem:[%s77 + $0x3c] sm:$0xf]
    %v89 = vld [vmem:[%s77 + $0x40] sm:$0xf]
    %v90 = vld [vmem:[%s77 + $0x48] sm:$0xf]
    %v91 = vld [vmem:[%s77 + $0x4c] sm:$0xf]
    %v92 = vld [vmem:[%s77 + $0x54] sm:$0xf]
    %v93 = vld [vmem:[%s77 + $0x58] sm:$0xf]
    %v94 = vld [vmem:[%s77 + $0xd8] sm:$0xf]
    %v95 = vld [vmem:[%s77 + $0xdc] sm:$0xf]
    %v96 = vld [vmem:[%s77 + $0xe4] sm:$0xf]
    %v97 = vld [vmem:[%s77 + $0xe8] sm:$0xf]
    %v98 = vld [vmem:[%s77 + $0xf0] sm:$0xf]
    %v99 = vld [vmem:[%s77 + $0xf4] sm:$0xf]
    %v100 = vld [vmem:[%s77 + $0xfc] sm:$0xf]
    %v101 = vld [vmem:[%s77 + $0x100] sm:$0xf]
    %v102 = vld [vmem:[%s77 + $0x108] sm:$0xf]
    %v103 = vld [vmem:[%s77 + $0x10c] sm:$0xf]
    %v104 = vld [vmem:[%s77 + $0x114] sm:$0xf]
    %v105 = vld [vmem:[%s77 + $0x118] sm:$0xf]
    %v106 = vld [vmem:[%s77 + $0x120] sm:$0xf]
    %v107 = vld [vmem:[%s77 + $0x124] sm:$0xf]
    %v108 = vld [vmem:[%s77 + $0x12c] sm:$0xf]
    %v109 = vld [vmem:[%s77 + $0x130] sm:$0xf]
    %v110 = vld [vmem:[%s77 + $0x8] sm:$0x1]
    %v111 = vld [vmem:[%s77 + $0x14] sm:$0x1]
    %v112 = vld [vmem:[%s77 + $0x20] sm:$0x1]
    %v113 = vld [vmem:[%s77 + $0x2c] sm:$0x1]
    %v114 = vld [vmem:[%s77 + $0x38] sm:$0x1]
    %v115 = vld [vmem:[%s77 + $0x44] sm:$0x1]
    %v116 = vld [vmem:[%s77 + $0x50] sm:$0x1]
    %v117 = vld [vmem:[%s77 + $0x5c] sm:$0x1]
    %v118 = vld [vmem:[%s77 + $0xe0] sm:$0x1]
    %v119 = vld [vmem:[%s77 + $0xec] sm:$0x1]
    %v120 = vld [vmem:[%s77 + $0xf8] sm:$0x1]
    %v121 = vld [vmem:[%s77 + $0x104] sm:$0x1]
    %v122 = vld [vmem:[%s77 + $0x110] sm:$0x1]
    %v123 = vld [vmem:[%s77 + $0x11c] sm:$0x1]
    %v124 = vld [vmem:[%s77 + $0x128] sm:$0x1]
    %v125 = vld [vmem:[%s77 + $0x134] sm:$0x1]
    %v126 = vld [vmem:[%s77] sm:$0xe]
    %v127 = vld [vmem:[%s77 + $0xc] sm:$0xe]
    %v128 = vld [vmem:[%s77 + $0x18] sm:$0xe]
    %v129 = vld [vmem:[%s77 + $0x24] sm:$0xe]
    %v130 = vld [vmem:[%s77 + $0x30] sm:$0xe]
    %v131 = vld [vmem:[%s77 + $0x3c] sm:$0xe]
    %v132 = vld [vmem:[%s77 + $0x48] sm:$0xe]
    %v133 = vld [vmem:[%s77 + $0x54] sm:$0xe]
    %v134 = vld [vmem:[%s77 + $0xd8] sm:$0xe]
    %v135 = vld [vmem:[%s77 + $0xe4] sm:$0xe]
    %v136 = vld [vmem:[%s77 + $0xf0] sm:$0xe]
    %v137 = vld [vmem:[%s77 + $0xfc] sm:$0xe]
    %v138 = vld [vmem:[%s77 + $0x108] sm:$0xe]
    %v139 = vld [vmem:[%s77 + $0x114] sm:$0xe]
    %v140 = vld [vmem:[%s77 + $0x120] sm:$0xe]
    %v141 = vld [vmem:[%s77 + $0x12c] sm:$0xe]
    %s142 = scalar_lea.vmem %s0, 24
    %v143 = vld [vmem:[%s142] sm:$0xf]
    %v144 = vld [vmem:[%s142 + $0x4] sm:$0xf]
    %v145 = vld [vmem:[%s142 + $0xc] sm:$0xf]
    %v146 = vld [vmem:[%s142 + $0x10] sm:$0xf]
    %v147 = vld [vmem:[%s142 + $0x18] sm:$0xf]
    %v148 = vld [vmem:[%s142 + $0x1c] sm:$0xf]
    %v149 = vld [vmem:[%s142 + $0x24] sm:$0xf]
    %v150 = vld [vmem:[%s142 + $0x28] sm:$0xf]
    %v151 = vld [vmem:[%s142 + $0x30] sm:$0xf]
    %v152 = vld [vmem:[%s142 + $0x34] sm:$0xf]
    %v153 = vld [vmem:[%s142 + $0x3c] sm:$0xf]
    %v154 = vld [vmem:[%s142 + $0x40] sm:$0xf]
    %v155 = vld [vmem:[%s142 + $0x48] sm:$0xf]
    %v156 = vld [vmem:[%s142 + $0x4c] sm:$0xf]
    %v157 = vld [vmem:[%s142 + $0x54] sm:$0xf]
    %v158 = vld [vmem:[%s142 + $0x58] sm:$0xf]
    %v159 = vld [vmem:[%s142 + $0xd8] sm:$0xf]
    %v160 = vld [vmem:[%s142 + $0xdc] sm:$0xf]
    %v161 = vld [vmem:[%s142 + $0xe4] sm:$0xf]
    %v162 = vld [vmem:[%s142 + $0xe8] sm:$0xf]
    %v163 = vld [vmem:[%s142 + $0xf0] sm:$0xf]
    %v164 = vld [vmem:[%s142 + $0xf4] sm:$0xf]
    %v165 = vld [vmem:[%s142 + $0xfc] sm:$0xf]
    %v166 = vld [vmem:[%s142 + $0x100] sm:$0xf]
    %v167 = vld [vmem:[%s142 + $0x108] sm:$0xf]
    %v168 = vld [vmem:[%s142 + $0x10c] sm:$0xf]
    %v169 = vld [vmem:[%s142 + $0x114] sm:$0xf]
    %v170 = vld [vmem:[%s142 + $0x118] sm:$0xf]
    %v171 = vld [vmem:[%s142 + $0x120] sm:$0xf]
    %v172 = vld [vmem:[%s142 + $0x124] sm:$0xf]
    %v173 = vld [vmem:[%s142 + $0x12c] sm:$0xf]
    %v174 = vld [vmem:[%s142 + $0x130] sm:$0xf]
    %v175 = vld [vmem:[%s142 + $0x8] sm:$0x1]
    %v176 = vld [vmem:[%s142 + $0x14] sm:$0x1]
    %v177 = vld [vmem:[%s142 + $0x20] sm:$0x1]
    %v178 = vld [vmem:[%s142 + $0x2c] sm:$0x1]
    %v179 = vld [vmem:[%s142 + $0x38] sm:$0x1]
    %v180 = vld [vmem:[%s142 + $0x44] sm:$0x1]
    %v181 = vld [vmem:[%s142 + $0x50] sm:$0x1]
    %v182 = vld [vmem:[%s142 + $0x5c] sm:$0x1]
    %v183 = vld [vmem:[%s142 + $0xe0] sm:$0x1]
    %v184 = vld [vmem:[%s142 + $0xec] sm:$0x1]
    %v185 = vld [vmem:[%s142 + $0xf8] sm:$0x1]
    %v186 = vld [vmem:[%s142 + $0x104] sm:$0x1]
    %v187 = vld [vmem:[%s142 + $0x110] sm:$0x1]
    %v188 = vld [vmem:[%s142 + $0x11c] sm:$0x1]
    %v189 = vld [vmem:[%s142 + $0x128] sm:$0x1]
    %v190 = vld [vmem:[%s142 + $0x134] sm:$0x1]
    %v191 = vld [vmem:[%s142] sm:$0xe]
    %v192 = vld [vmem:[%s142 + $0xc] sm:$0xe]
    %v193 = vld [vmem:[%s142 + $0x18] sm:$0xe]
    %v194 = vld [vmem:[%s142 + $0x24] sm:$0xe]
    %v195 = vld [vmem:[%s142 + $0x30] sm:$0xe]
    %v196 = vld [vmem:[%s142 + $0x3c] sm:$0xe]
    %v197 = vld [vmem:[%s142 + $0x48] sm:$0xe]
    %v198 = vld [vmem:[%s142 + $0x54] sm:$0xe]
    %v199 = vld [vmem:[%s142 + $0xd8] sm:$0xe]
    %v200 = vld [vmem:[%s142 + $0xe4] sm:$0xe]
    %v201 = vld [vmem:[%s142 + $0xf0] sm:$0xe]
    %v202 = vld [vmem:[%s142 + $0xfc] sm:$0xe]
    %v203 = vld [vmem:[%s142 + $0x108] sm:$0xe]
    %v204 = vld [vmem:[%s142 + $0x114] sm:$0xe]
    %v205 = vld [vmem:[%s142 + $0x120] sm:$0xe]
    %v206 = vld [vmem:[%s142 + $0x12c] sm:$0xe]
    %v239 = vunpack.c.l.b16 %v13
    %v240 = vunpack.c.l.b16 %v14
    %v241 = vunpack.c.l.b16 %v15
    %v242 = vunpack.c.l.b16 %v16
    %v243 = vunpack.c.l.b16 %v17
    %v244 = vunpack.c.l.b16 %v18
    %v245 = vunpack.c.l.b16 %v19
    %v246 = vunpack.c.l.b16 %v20
    %v247 = vunpack.c.l.b16 %v21
    %v248 = vunpack.c.l.b16 %v22
    %v249 = vunpack.c.l.b16 %v23
    %v250 = vunpack.c.l.b16 %v24
    %v251 = vunpack.c.l.b16 %v25
    %v252 = vunpack.c.l.b16 %v26
    %v253 = vunpack.c.l.b16 %v27
    %v254 = vunpack.c.l.b16 %v28
    %v255 = vunpack.c.l.b16 %v29
    %v256 = vunpack.c.l.b16 %v30
    %v257 = vunpack.c.l.b16 %v31
    %v258 = vunpack.c.l.b16 %v32
    %v259 = vunpack.c.l.b16 %v33
    %v260 = vunpack.c.l.b16 %v34
    %v261 = vunpack.c.l.b16 %v35
    %v262 = vunpack.c.l.b16 %v36
    %v263 = vunpack.c.l.b16 %v37
    %v264 = vunpack.c.l.b16 %v38
    %v265 = vunpack.c.l.b16 %v39
    %v266 = vunpack.c.l.b16 %v40
    %v267 = vunpack.c.l.b16 %v41
    %v268 = vunpack.c.l.b16 %v42
    %v269 = vunpack.c.l.b16 %v43
    %v270 = vunpack.c.l.b16 %v44
    %v271 = vpack.c.b16 %v240, %v239
    %v272 = vpack.c.b16 %v242, %v241
    %v273 = vpack.c.b16 %v244, %v243
    %v274 = vpack.c.b16 %v246, %v245
    %v275 = vpack.c.b16 %v248, %v247
    %v276 = vpack.c.b16 %v250, %v249
    %v277 = vpack.c.b16 %v252, %v251
    %v278 = vpack.c.b16 %v254, %v253
    %v279 = vpack.c.b16 %v256, %v255
    %v280 = vpack.c.b16 %v258, %v257
    %v281 = vpack.c.b16 %v260, %v259
    %v282 = vpack.c.b16 %v262, %v261
    %v283 = vpack.c.b16 %v264, %v263
    %v284 = vpack.c.b16 %v266, %v265
    %v285 = vpack.c.b16 %v268, %v267
    %v286 = vpack.c.b16 %v270, %v269
    %v303 = vunpack.c.l.b16 %v45
    %v304 = vunpack.c.l.b16 %v46
    %v305 = vunpack.c.l.b16 %v47
    %v306 = vunpack.c.l.b16 %v48
    %v307 = vunpack.c.l.b16 %v49
    %v308 = vunpack.c.l.b16 %v50
    %v309 = vunpack.c.l.b16 %v51
    %v310 = vunpack.c.l.b16 %v52
    %v311 = vunpack.c.l.b16 %v53
    %v312 = vunpack.c.l.b16 %v54
    %v313 = vunpack.c.l.b16 %v55
    %v314 = vunpack.c.l.b16 %v56
    %v315 = vunpack.c.l.b16 %v57
    %v316 = vunpack.c.l.b16 %v58
    %v317 = vunpack.c.l.b16 %v59
    %v318 = vunpack.c.l.b16 %v60
    %v319 = vpack.c.b16 %v303, %v303
    %v320 = vpack.c.b16 %v304, %v304
    %v321 = vpack.c.b16 %v305, %v305
    %v322 = vpack.c.b16 %v306, %v306
    %v323 = vpack.c.b16 %v307, %v307
    %v324 = vpack.c.b16 %v308, %v308
    %v325 = vpack.c.b16 %v309, %v309
    %v326 = vpack.c.b16 %v310, %v310
    %v327 = vpack.c.b16 %v311, %v311
    %v328 = vpack.c.b16 %v312, %v312
    %v329 = vpack.c.b16 %v313, %v313
    %v330 = vpack.c.b16 %v314, %v314
    %v331 = vpack.c.b16 %v315, %v315
    %v332 = vpack.c.b16 %v316, %v316
    %v333 = vpack.c.b16 %v317, %v317
    %v334 = vpack.c.b16 %v318, %v318
    %vm335 = vsmask.f32 7424
    %v337 = vshrl.u32 %v271, 16
    %v339 = vshll.u32 %v271, 16
    %v341 = vrot.slane %v339, 1
    %v342 = vor.u32 %v337, %v341
    %v344 = vshll.u32 %v319, 16
    %v346 = vrot.slane %v344, 1
    %v347 = vsel %vm335, %v342, %v346
    %v349 = vshrl.u32 %v272, 16
    %v351 = vshll.u32 %v272, 16
    %v353 = vrot.slane %v351, 1
    %v354 = vor.u32 %v349, %v353
    %v356 = vshll.u32 %v320, 16
    %v358 = vrot.slane %v356, 1
    %v359 = vsel %vm335, %v354, %v358
    %v361 = vshrl.u32 %v273, 16
    %v363 = vshll.u32 %v273, 16
    %v365 = vrot.slane %v363, 1
    %v366 = vor.u32 %v361, %v365
    %v368 = vshll.u32 %v321, 16
    %v370 = vrot.slane %v368, 1
    %v371 = vsel %vm335, %v366, %v370
    %v373 = vshrl.u32 %v274, 16
    %v375 = vshll.u32 %v274, 16
    %v377 = vrot.slane %v375, 1
    %v378 = vor.u32 %v373, %v377
    %v380 = vshll.u32 %v322, 16
    %v382 = vrot.slane %v380, 1
    %v383 = vsel %vm335, %v378, %v382
    %v385 = vshrl.u32 %v275, 16
    %v387 = vshll.u32 %v275, 16
    %v389 = vrot.slane %v387, 1
    %v390 = vor.u32 %v385, %v389
    %v392 = vshll.u32 %v323, 16
    %v394 = vrot.slane %v392, 1
    %v395 = vsel %vm335, %v390, %v394
    %v397 = vshrl.u32 %v276, 16
    %v399 = vshll.u32 %v276, 16
    %v401 = vrot.slane %v399, 1
    %v402 = vor.u32 %v397, %v401
    %v404 = vshll.u32 %v324, 16
    %v406 = vrot.slane %v404, 1
    %v407 = vsel %vm335, %v402, %v406
    %v409 = vshrl.u32 %v277, 16
    %v411 = vshll.u32 %v277, 16
    %v413 = vrot.slane %v411, 1
    %v414 = vor.u32 %v409, %v413
    %v416 = vshll.u32 %v325, 16
    %v418 = vrot.slane %v416, 1
    %v419 = vsel %vm335, %v414, %v418
    %v421 = vshrl.u32 %v278, 16
    %v423 = vshll.u32 %v278, 16
    %v425 = vrot.slane %v423, 1
    %v426 = vor.u32 %v421, %v425
    %v428 = vshll.u32 %v326, 16
    %v430 = vrot.slane %v428, 1
    %v431 = vsel %vm335, %v426, %v430
    %v433 = vshrl.u32 %v279, 16
    %v435 = vshll.u32 %v279, 16
    %v437 = vrot.slane %v435, 1
    %v438 = vor.u32 %v433, %v437
    %v440 = vshll.u32 %v327, 16
    %v442 = vrot.slane %v440, 1
    %v443 = vsel %vm335, %v438, %v442
    %v445 = vshrl.u32 %v280, 16
    %v447 = vshll.u32 %v280, 16
    %v449 = vrot.slane %v447, 1
    %v450 = vor.u32 %v445, %v449
    %v452 = vshll.u32 %v328, 16
    %v454 = vrot.slane %v452, 1
    %v455 = vsel %vm335, %v450, %v454
    %v457 = vshrl.u32 %v281, 16
    %v459 = vshll.u32 %v281, 16
    %v461 = vrot.slane %v459, 1
    %v462 = vor.u32 %v457, %v461
    %v464 = vshll.u32 %v329, 16
    %v466 = vrot.slane %v464, 1
    %v467 = vsel %vm335, %v462, %v466
    %v469 = vshrl.u32 %v282, 16
    %v471 = vshll.u32 %v282, 16
    %v473 = vrot.slane %v471, 1
    %v474 = vor.u32 %v469, %v473
    %v476 = vshll.u32 %v330, 16
    %v478 = vrot.slane %v476, 1
    %v479 = vsel %vm335, %v474, %v478
    %v481 = vshrl.u32 %v283, 16
    %v483 = vshll.u32 %v283, 16
    %v485 = vrot.slane %v483, 1
    %v486 = vor.u32 %v481, %v485
    %v488 = vshll.u32 %v331, 16
    %v490 = vrot.slane %v488, 1
    %v491 = vsel %vm335, %v486, %v490
    %v493 = vshrl.u32 %v284, 16
    %v495 = vshll.u32 %v284, 16
    %v497 = vrot.slane %v495, 1
    %v498 = vor.u32 %v493, %v497
    %v500 = vshll.u32 %v332, 16
    %v502 = vrot.slane %v500, 1
    %v503 = vsel %vm335, %v498, %v502
    %v505 = vshrl.u32 %v285, 16
    %v507 = vshll.u32 %v285, 16
    %v509 = vrot.slane %v507, 1
    %v510 = vor.u32 %v505, %v509
    %v512 = vshll.u32 %v333, 16
    %v514 = vrot.slane %v512, 1
    %v515 = vsel %vm335, %v510, %v514
    %v517 = vshrl.u32 %v286, 16
    %v519 = vshll.u32 %v286, 16
    %v521 = vrot.slane %v519, 1
    %v522 = vor.u32 %v517, %v521
    %v524 = vshll.u32 %v334, 16
    %v526 = vrot.slane %v524, 1
    %v527 = vsel %vm335, %v522, %v526
    %528 = vrot.lane.b32.xlu0 %v347, 4
    %v529 = vpop.permute.xlu0 %528
    %530 = vrot.lane.b32.xlu0 %v359, 4
    %v531 = vpop.permute.xlu0 %530
    %532 = vrot.lane.b32.xlu0 %v371, 4
    %v533 = vpop.permute.xlu0 %532
    %534 = vrot.lane.b32.xlu0 %v383, 4
    %v535 = vpop.permute.xlu0 %534
    %536 = vrot.lane.b32.xlu0 %v395, 4
    %v537 = vpop.permute.xlu0 %536
    %538 = vrot.lane.b32.xlu0 %v407, 4
    %v539 = vpop.permute.xlu0 %538
    %540 = vrot.lane.b32.xlu0 %v419, 4
    %v541 = vpop.permute.xlu0 %540
    %542 = vrot.lane.b32.xlu0 %v431, 4
    %v543 = vpop.permute.xlu0 %542
    %544 = vrot.lane.b32.xlu0 %v443, 4
    %v545 = vpop.permute.xlu0 %544
    %546 = vrot.lane.b32.xlu0 %v455, 4
    %v547 = vpop.permute.xlu0 %546
    %548 = vrot.lane.b32.xlu0 %v467, 4
    %v549 = vpop.permute.xlu0 %548
    %550 = vrot.lane.b32.xlu0 %v479, 4
    %v551 = vpop.permute.xlu0 %550
    %552 = vrot.lane.b32.xlu0 %v491, 4
    %v553 = vpop.permute.xlu0 %552
    %554 = vrot.lane.b32.xlu0 %v503, 4
    %v555 = vpop.permute.xlu0 %554
    %556 = vrot.lane.b32.xlu0 %v515, 4
    %v557 = vpop.permute.xlu0 %556
    %558 = vrot.lane.b32.xlu0 %v527, 4
    %v559 = vpop.permute.xlu0 %558
    %v576 = vunpack.c.l.b16 %v61
    %v577 = vunpack.c.l.b16 %v62
    %v578 = vunpack.c.l.b16 %v63
    %v579 = vunpack.c.l.b16 %v64
    %v580 = vunpack.c.l.b16 %v65
    %v581 = vunpack.c.l.b16 %v66
    %v582 = vunpack.c.l.b16 %v67
    %v583 = vunpack.c.l.b16 %v68
    %v584 = vunpack.c.l.b16 %v69
    %v585 = vunpack.c.l.b16 %v70
    %v586 = vunpack.c.l.b16 %v71
    %v587 = vunpack.c.l.b16 %v72
    %v588 = vunpack.c.l.b16 %v73
    %v589 = vunpack.c.l.b16 %v74
    %v590 = vunpack.c.l.b16 %v75
    %v591 = vunpack.c.l.b16 %v76
    %v592 = vpack.c.b16 %v240, %v576
    %v593 = vpack.c.b16 %v242, %v577
    %v594 = vpack.c.b16 %v244, %v578
    %v595 = vpack.c.b16 %v246, %v579
    %v596 = vpack.c.b16 %v248, %v580
    %v597 = vpack.c.b16 %v250, %v581
    %v598 = vpack.c.b16 %v252, %v582
    %v599 = vpack.c.b16 %v254, %v583
    %v600 = vpack.c.b16 %v256, %v584
    %v601 = vpack.c.b16 %v258, %v585
    %v602 = vpack.c.b16 %v260, %v586
    %v603 = vpack.c.b16 %v262, %v587
    %v604 = vpack.c.b16 %v264, %v588
    %v605 = vpack.c.b16 %v266, %v589
    %v606 = vpack.c.b16 %v268, %v590
    %v607 = vpack.c.b16 %v270, %v591
    %vm608 = vcmask 1046528
    %v609 = vrot.slane %v592, 1
    %v610 = vrot.slane %v319, 1
    %v611 = vsel %vm608, %v609, %v610
    %v612 = vrot.slane %v593, 1
    %v613 = vrot.slane %v320, 1
    %v614 = vsel %vm608, %v612, %v613
    %v615 = vrot.slane %v594, 1
    %v616 = vrot.slane %v321, 1
    %v617 = vsel %vm608, %v615, %v616
    %v618 = vrot.slane %v595, 1
    %v619 = vrot.slane %v322, 1
    %v620 = vsel %vm608, %v618, %v619
    %v621 = vrot.slane %v596, 1
    %v622 = vrot.slane %v323, 1
    %v623 = vsel %vm608, %v621, %v622
    %v624 = vrot.slane %v597, 1
    %v625 = vrot.slane %v324, 1
    %v626 = vsel %vm608, %v624, %v625
    %v627 = vrot.slane %v598, 1
    %v628 = vrot.slane %v325, 1
    %v629 = vsel %vm608, %v627, %v628
    %v630 = vrot.slane %v599, 1
    %v631 = vrot.slane %v326, 1
    %v632 = vsel %vm608, %v630, %v631
    %v633 = vrot.slane %v600, 1
    %v634 = vrot.slane %v327, 1
    %v635 = vsel %vm608, %v633, %v634
    %v636 = vrot.slane %v601, 1
    %v637 = vrot.slane %v328, 1
    %v638 = vsel %vm608, %v636, %v637
    %v639 = vrot.slane %v602, 1
    %v640 = vrot.slane %v329, 1
    %v641 = vsel %vm608, %v639, %v640
    %v642 = vrot.slane %v603, 1
    %v643 = vrot.slane %v330, 1
    %v644 = vsel %vm608, %v642, %v643
    %v645 = vrot.slane %v604, 1
    %v646 = vrot.slane %v331, 1
    %v647 = vsel %vm608, %v645, %v646
    %v648 = vrot.slane %v605, 1
    %v649 = vrot.slane %v332, 1
    %v650 = vsel %vm608, %v648, %v649
    %v651 = vrot.slane %v606, 1
    %v652 = vrot.slane %v333, 1
    %v653 = vsel %vm608, %v651, %v652
    %v654 = vrot.slane %v607, 1
    %v655 = vrot.slane %v334, 1
    %v656 = vsel %vm608, %v654, %v655
    %657 = vrot.lane.b32.xlu0 %v611, 8
    %v658 = vpop.permute.xlu0 %657
    %659 = vrot.lane.b32.xlu0 %v614, 8
    %v660 = vpop.permute.xlu0 %659
    %661 = vrot.lane.b32.xlu0 %v617, 8
    %v662 = vpop.permute.xlu0 %661
    %663 = vrot.lane.b32.xlu0 %v620, 8
    %v664 = vpop.permute.xlu0 %663
    %665 = vrot.lane.b32.xlu0 %v623, 8
    %v666 = vpop.permute.xlu0 %665
    %667 = vrot.lane.b32.xlu0 %v626, 8
    %v668 = vpop.permute.xlu0 %667
    %669 = vrot.lane.b32.xlu0 %v629, 8
    %v670 = vpop.permute.xlu0 %669
    %671 = vrot.lane.b32.xlu0 %v632, 8
    %v672 = vpop.permute.xlu0 %671
    %673 = vrot.lane.b32.xlu0 %v635, 8
    %v674 = vpop.permute.xlu0 %673
    %675 = vrot.lane.b32.xlu0 %v638, 8
    %v676 = vpop.permute.xlu0 %675
    %677 = vrot.lane.b32.xlu0 %v641, 8
    %v678 = vpop.permute.xlu0 %677
    %679 = vrot.lane.b32.xlu0 %v644, 8
    %v680 = vpop.permute.xlu0 %679
    %681 = vrot.lane.b32.xlu0 %v647, 8
    %v682 = vpop.permute.xlu0 %681
    %683 = vrot.lane.b32.xlu0 %v650, 8
    %v684 = vpop.permute.xlu0 %683
    %685 = vrot.lane.b32.xlu0 %v653, 8
    %v686 = vpop.permute.xlu0 %685
    %687 = vrot.lane.b32.xlu0 %v656, 8
    %v688 = vpop.permute.xlu0 %687
    %v721 = vunpack.c.l.b16 %v78
    %v722 = vunpack.c.l.b16 %v79
    %v723 = vunpack.c.l.b16 %v80
    %v724 = vunpack.c.l.b16 %v81
    %v725 = vunpack.c.l.b16 %v82
    %v726 = vunpack.c.l.b16 %v83
    %v727 = vunpack.c.l.b16 %v84
    %v728 = vunpack.c.l.b16 %v85
    %v729 = vunpack.c.l.b16 %v86
    %v730 = vunpack.c.l.b16 %v87
    %v731 = vunpack.c.l.b16 %v88
    %v732 = vunpack.c.l.b16 %v89
    %v733 = vunpack.c.l.b16 %v90
    %v734 = vunpack.c.l.b16 %v91
    %v735 = vunpack.c.l.b16 %v92
    %v736 = vunpack.c.l.b16 %v93
    %v737 = vunpack.c.l.b16 %v94
    %v738 = vunpack.c.l.b16 %v95
    %v739 = vunpack.c.l.b16 %v96
    %v740 = vunpack.c.l.b16 %v97
    %v741 = vunpack.c.l.b16 %v98
    %v742 = vunpack.c.l.b16 %v99
    %v743 = vunpack.c.l.b16 %v100
    %v744 = vunpack.c.l.b16 %v101
    %v745 = vunpack.c.l.b16 %v102
    %v746 = vunpack.c.l.b16 %v103
    %v747 = vunpack.c.l.b16 %v104
    %v748 = vunpack.c.l.b16 %v105
    %v749 = vunpack.c.l.b16 %v106
    %v750 = vunpack.c.l.b16 %v107
    %v751 = vunpack.c.l.b16 %v108
    %v752 = vunpack.c.l.b16 %v109
    %v753 = vpack.c.b16 %v722, %v721
    %v754 = vpack.c.b16 %v724, %v723
    %v755 = vpack.c.b16 %v726, %v725
    %v756 = vpack.c.b16 %v728, %v727
    %v757 = vpack.c.b16 %v730, %v729
    %v758 = vpack.c.b16 %v732, %v731
    %v759 = vpack.c.b16 %v734, %v733
    %v760 = vpack.c.b16 %v736, %v735
    %v761 = vpack.c.b16 %v738, %v737
    %v762 = vpack.c.b16 %v740, %v739
    %v763 = vpack.c.b16 %v742, %v741
    %v764 = vpack.c.b16 %v744, %v743
    %v765 = vpack.c.b16 %v746, %v745
    %v766 = vpack.c.b16 %v748, %v747
    %v767 = vpack.c.b16 %v750, %v749
    %v768 = vpack.c.b16 %v752, %v751
    %769 = vrot.lane.b32.xlu0 %v753, 12
    %v770 = vpop.permute.xlu0 %769
    %771 = vrot.lane.b32.xlu0 %v754, 12
    %v772 = vpop.permute.xlu0 %771
    %773 = vrot.lane.b32.xlu0 %v755, 12
    %v774 = vpop.permute.xlu0 %773
    %775 = vrot.lane.b32.xlu0 %v756, 12
    %v776 = vpop.permute.xlu0 %775
    %777 = vrot.lane.b32.xlu0 %v757, 12
    %v778 = vpop.permute.xlu0 %777
    %779 = vrot.lane.b32.xlu0 %v758, 12
    %v780 = vpop.permute.xlu0 %779
    %781 = vrot.lane.b32.xlu0 %v759, 12
    %v782 = vpop.permute.xlu0 %781
    %783 = vrot.lane.b32.xlu0 %v760, 12
    %v784 = vpop.permute.xlu0 %783
    %785 = vrot.lane.b32.xlu0 %v761, 12
    %v786 = vpop.permute.xlu0 %785
    %787 = vrot.lane.b32.xlu0 %v762, 12
    %v788 = vpop.permute.xlu0 %787
    %789 = vrot.lane.b32.xlu0 %v763, 12
    %v790 = vpop.permute.xlu0 %789
    %791 = vrot.lane.b32.xlu0 %v764, 12
    %v792 = vpop.permute.xlu0 %791
    %793 = vrot.lane.b32.xlu0 %v765, 12
    %v794 = vpop.permute.xlu0 %793
    %795 = vrot.lane.b32.xlu0 %v766, 12
    %v796 = vpop.permute.xlu0 %795
    %797 = vrot.lane.b32.xlu0 %v767, 12
    %v798 = vpop.permute.xlu0 %797
    %799 = vrot.lane.b32.xlu0 %v768, 12
    %v800 = vpop.permute.xlu0 %799
    %v817 = vunpack.c.l.b16 %v110
    %v818 = vunpack.c.l.b16 %v111
    %v819 = vunpack.c.l.b16 %v112
    %v820 = vunpack.c.l.b16 %v113
    %v821 = vunpack.c.l.b16 %v114
    %v822 = vunpack.c.l.b16 %v115
    %v823 = vunpack.c.l.b16 %v116
    %v824 = vunpack.c.l.b16 %v117
    %v825 = vunpack.c.l.b16 %v118
    %v826 = vunpack.c.l.b16 %v119
    %v827 = vunpack.c.l.b16 %v120
    %v828 = vunpack.c.l.b16 %v121
    %v829 = vunpack.c.l.b16 %v122
    %v830 = vunpack.c.l.b16 %v123
    %v831 = vunpack.c.l.b16 %v124
    %v832 = vunpack.c.l.b16 %v125
    %v833 = vpack.c.b16 %v817, %v817
    %v834 = vpack.c.b16 %v818, %v818
    %v835 = vpack.c.b16 %v819, %v819
    %v836 = vpack.c.b16 %v820, %v820
    %v837 = vpack.c.b16 %v821, %v821
    %v838 = vpack.c.b16 %v822, %v822
    %v839 = vpack.c.b16 %v823, %v823
    %v840 = vpack.c.b16 %v824, %v824
    %v841 = vpack.c.b16 %v825, %v825
    %v842 = vpack.c.b16 %v826, %v826
    %v843 = vpack.c.b16 %v827, %v827
    %v844 = vpack.c.b16 %v828, %v828
    %v845 = vpack.c.b16 %v829, %v829
    %v846 = vpack.c.b16 %v830, %v830
    %v847 = vpack.c.b16 %v831, %v831
    %v848 = vpack.c.b16 %v832, %v832
    %v850 = vshrl.u32 %v753, 16
    %v852 = vshll.u32 %v753, 16
    %v854 = vrot.slane %v852, 1
    %v855 = vor.u32 %v850, %v854
    %v857 = vshll.u32 %v833, 16
    %v859 = vrot.slane %v857, 1
    %v860 = vsel %vm335, %v855, %v859
    %v862 = vshrl.u32 %v754, 16
    %v864 = vshll.u32 %v754, 16
    %v866 = vrot.slane %v864, 1
    %v867 = vor.u32 %v862, %v866
    %v869 = vshll.u32 %v834, 16
    %v871 = vrot.slane %v869, 1
    %v872 = vsel %vm335, %v867, %v871
    %v874 = vshrl.u32 %v755, 16
    %v876 = vshll.u32 %v755, 16
    %v878 = vrot.slane %v876, 1
    %v879 = vor.u32 %v874, %v878
    %v881 = vshll.u32 %v835, 16
    %v883 = vrot.slane %v881, 1
    %v884 = vsel %vm335, %v879, %v883
    %v886 = vshrl.u32 %v756, 16
    %v888 = vshll.u32 %v756, 16
    %v890 = vrot.slane %v888, 1
    %v891 = vor.u32 %v886, %v890
    %v893 = vshll.u32 %v836, 16
    %v895 = vrot.slane %v893, 1
    %v896 = vsel %vm335, %v891, %v895
    %v898 = vshrl.u32 %v757, 16
    %v900 = vshll.u32 %v757, 16
    %v902 = vrot.slane %v900, 1
    %v903 = vor.u32 %v898, %v902
    %v905 = vshll.u32 %v837, 16
    %v907 = vrot.slane %v905, 1
    %v908 = vsel %vm335, %v903, %v907
    %v910 = vshrl.u32 %v758, 16
    %v912 = vshll.u32 %v758, 16
    %v914 = vrot.slane %v912, 1
    %v915 = vor.u32 %v910, %v914
    %v917 = vshll.u32 %v838, 16
    %v919 = vrot.slane %v917, 1
    %v920 = vsel %vm335, %v915, %v919
    %v922 = vshrl.u32 %v759, 16
    %v924 = vshll.u32 %v759, 16
    %v926 = vrot.slane %v924, 1
    %v927 = vor.u32 %v922, %v926
    %v929 = vshll.u32 %v839, 16
    %v931 = vrot.slane %v929, 1
    %v932 = vsel %vm335, %v927, %v931
    %v934 = vshrl.u32 %v760, 16
    %v936 = vshll.u32 %v760, 16
    %v938 = vrot.slane %v936, 1
    %v939 = vor.u32 %v934, %v938
    %v941 = vshll.u32 %v840, 16
    %v943 = vrot.slane %v941, 1
    %v944 = vsel %vm335, %v939, %v943
    %v946 = vshrl.u32 %v761, 16
    %v948 = vshll.u32 %v761, 16
    %v950 = vrot.slane %v948, 1
    %v951 = vor.u32 %v946, %v950
    %v953 = vshll.u32 %v841, 16
    %v955 = vrot.slane %v953, 1
    %v956 = vsel %vm335, %v951, %v955
    %v958 = vshrl.u32 %v762, 16
    %v960 = vshll.u32 %v762, 16
    %v962 = vrot.slane %v960, 1
    %v963 = vor.u32 %v958, %v962
    %v965 = vshll.u32 %v842, 16
    %v967 = vrot.slane %v965, 1
    %v968 = vsel %vm335, %v963, %v967
    %v970 = vshrl.u32 %v763, 16
    %v972 = vshll.u32 %v763, 16
    %v974 = vrot.slane %v972, 1
    %v975 = vor.u32 %v970, %v974
    %v977 = vshll.u32 %v843, 16
    %v979 = vrot.slane %v977, 1
    %v980 = vsel %vm335, %v975, %v979
    %v982 = vshrl.u32 %v764, 16
    %v984 = vshll.u32 %v764, 16
    %v986 = vrot.slane %v984, 1
    %v987 = vor.u32 %v982, %v986
    %v989 = vshll.u32 %v844, 16
    %v991 = vrot.slane %v989, 1
    %v992 = vsel %vm335, %v987, %v991
    %v994 = vshrl.u32 %v765, 16
    %v996 = vshll.u32 %v765, 16
    %v998 = vrot.slane %v996, 1
    %v999 = vor.u32 %v994, %v998
    %v1001 = vshll.u32 %v845, 16
    %v1003 = vrot.slane %v1001, 1
    %v1004 = vsel %vm335, %v999, %v1003
    %v1006 = vshrl.u32 %v766, 16
    %v1008 = vshll.u32 %v766, 16
    %v1010 = vrot.slane %v1008, 1
    %v1011 = vor.u32 %v1006, %v1010
    %v1013 = vshll.u32 %v846, 16
    %v1015 = vrot.slane %v1013, 1
    %v1016 = vsel %vm335, %v1011, %v1015
    %v1018 = vshrl.u32 %v767, 16
    %v1020 = vshll.u32 %v767, 16
    %v1022 = vrot.slane %v1020, 1
    %v1023 = vor.u32 %v1018, %v1022
    %v1025 = vshll.u32 %v847, 16
    %v1027 = vrot.slane %v1025, 1
    %v1028 = vsel %vm335, %v1023, %v1027
    %v1030 = vshrl.u32 %v768, 16
    %v1032 = vshll.u32 %v768, 16
    %v1034 = vrot.slane %v1032, 1
    %v1035 = vor.u32 %v1030, %v1034
    %v1037 = vshll.u32 %v848, 16
    %v1039 = vrot.slane %v1037, 1
    %v1040 = vsel %vm335, %v1035, %v1039
    %1041 = vrot.lane.b32.xlu0 %v860, 16
    %v1042 = vpop.permute.xlu0 %1041
    %1043 = vrot.lane.b32.xlu0 %v872, 16
    %v1044 = vpop.permute.xlu0 %1043
    %1045 = vrot.lane.b32.xlu0 %v884, 16
    %v1046 = vpop.permute.xlu0 %1045
    %1047 = vrot.lane.b32.xlu0 %v896, 16
    %v1048 = vpop.permute.xlu0 %1047
    %1049 = vrot.lane.b32.xlu0 %v908, 16
    %v1050 = vpop.permute.xlu0 %1049
    %1051 = vrot.lane.b32.xlu0 %v920, 16
    %v1052 = vpop.permute.xlu0 %1051
    %1053 = vrot.lane.b32.xlu0 %v932, 16
    %v1054 = vpop.permute.xlu0 %1053
    %1055 = vrot.lane.b32.xlu0 %v944, 16
    %v1056 = vpop.permute.xlu0 %1055
    %1057 = vrot.lane.b32.xlu0 %v956, 16
    %v1058 = vpop.permute.xlu0 %1057
    %1059 = vrot.lane.b32.xlu0 %v968, 16
    %v1060 = vpop.permute.xlu0 %1059
    %1061 = vrot.lane.b32.xlu0 %v980, 16
    %v1062 = vpop.permute.xlu0 %1061
    %1063 = vrot.lane.b32.xlu0 %v992, 16
    %v1064 = vpop.permute.xlu0 %1063
    %1065 = vrot.lane.b32.xlu0 %v1004, 16
    %v1066 = vpop.permute.xlu0 %1065
    %1067 = vrot.lane.b32.xlu0 %v1016, 16
    %v1068 = vpop.permute.xlu0 %1067
    %1069 = vrot.lane.b32.xlu0 %v1028, 16
    %v1070 = vpop.permute.xlu0 %1069
    %1071 = vrot.lane.b32.xlu0 %v1040, 16
    %v1072 = vpop.permute.xlu0 %1071
    %v1089 = vunpack.c.l.b16 %v126
    %v1090 = vunpack.c.l.b16 %v127
    %v1091 = vunpack.c.l.b16 %v128
    %v1092 = vunpack.c.l.b16 %v129
    %v1093 = vunpack.c.l.b16 %v130
    %v1094 = vunpack.c.l.b16 %v131
    %v1095 = vunpack.c.l.b16 %v132
    %v1096 = vunpack.c.l.b16 %v133
    %v1097 = vunpack.c.l.b16 %v134
    %v1098 = vunpack.c.l.b16 %v135
    %v1099 = vunpack.c.l.b16 %v136
    %v1100 = vunpack.c.l.b16 %v137
    %v1101 = vunpack.c.l.b16 %v138
    %v1102 = vunpack.c.l.b16 %v139
    %v1103 = vunpack.c.l.b16 %v140
    %v1104 = vunpack.c.l.b16 %v141
    %v1105 = vpack.c.b16 %v722, %v1089
    %v1106 = vpack.c.b16 %v724, %v1090
    %v1107 = vpack.c.b16 %v726, %v1091
    %v1108 = vpack.c.b16 %v728, %v1092
    %v1109 = vpack.c.b16 %v730, %v1093
    %v1110 = vpack.c.b16 %v732, %v1094
    %v1111 = vpack.c.b16 %v734, %v1095
    %v1112 = vpack.c.b16 %v736, %v1096
    %v1113 = vpack.c.b16 %v738, %v1097
    %v1114 = vpack.c.b16 %v740, %v1098
    %v1115 = vpack.c.b16 %v742, %v1099
    %v1116 = vpack.c.b16 %v744, %v1100
    %v1117 = vpack.c.b16 %v746, %v1101
    %v1118 = vpack.c.b16 %v748, %v1102
    %v1119 = vpack.c.b16 %v750, %v1103
    %v1120 = vpack.c.b16 %v752, %v1104
    %v1121 = vrot.slane %v1105, 1
    %v1122 = vrot.slane %v833, 1
    %v1123 = vsel %vm608, %v1121, %v1122
    %v1124 = vrot.slane %v1106, 1
    %v1125 = vrot.slane %v834, 1
    %v1126 = vsel %vm608, %v1124, %v1125
    %v1127 = vrot.slane %v1107, 1
    %v1128 = vrot.slane %v835, 1
    %v1129 = vsel %vm608, %v1127, %v1128
    %v1130 = vrot.slane %v1108, 1
    %v1131 = vrot.slane %v836, 1
    %v1132 = vsel %vm608, %v1130, %v1131
    %v1133 = vrot.slane %v1109, 1
    %v1134 = vrot.slane %v837, 1
    %v1135 = vsel %vm608, %v1133, %v1134
    %v1136 = vrot.slane %v1110, 1
    %v1137 = vrot.slane %v838, 1
    %v1138 = vsel %vm608, %v1136, %v1137
    %v1139 = vrot.slane %v1111, 1
    %v1140 = vrot.slane %v839, 1
    %v1141 = vsel %vm608, %v1139, %v1140
    %v1142 = vrot.slane %v1112, 1
    %v1143 = vrot.slane %v840, 1
    %v1144 = vsel %vm608, %v1142, %v1143
    %v1145 = vrot.slane %v1113, 1
    %v1146 = vrot.slane %v841, 1
    %v1147 = vsel %vm608, %v1145, %v1146
    %v1148 = vrot.slane %v1114, 1
    %v1149 = vrot.slane %v842, 1
    %v1150 = vsel %vm608, %v1148, %v1149
    %v1151 = vrot.slane %v1115, 1
    %v1152 = vrot.slane %v843, 1
    %v1153 = vsel %vm608, %v1151, %v1152
    %v1154 = vrot.slane %v1116, 1
    %v1155 = vrot.slane %v844, 1
    %v1156 = vsel %vm608, %v1154, %v1155
    %v1157 = vrot.slane %v1117, 1
    %v1158 = vrot.slane %v845, 1
    %v1159 = vsel %vm608, %v1157, %v1158
    %v1160 = vrot.slane %v1118, 1
    %v1161 = vrot.slane %v846, 1
    %v1162 = vsel %vm608, %v1160, %v1161
    %v1163 = vrot.slane %v1119, 1
    %v1164 = vrot.slane %v847, 1
    %v1165 = vsel %vm608, %v1163, %v1164
    %v1166 = vrot.slane %v1120, 1
    %v1167 = vrot.slane %v848, 1
    %v1168 = vsel %vm608, %v1166, %v1167
    %1169 = vrot.lane.b32.xlu0 %v1123, 20
    %v1170 = vpop.permute.xlu0 %1169
    %1171 = vrot.lane.b32.xlu0 %v1126, 20
    %v1172 = vpop.permute.xlu0 %1171
    %1173 = vrot.lane.b32.xlu0 %v1129, 20
    %v1174 = vpop.permute.xlu0 %1173
    %1175 = vrot.lane.b32.xlu0 %v1132, 20
    %v1176 = vpop.permute.xlu0 %1175
    %1177 = vrot.lane.b32.xlu0 %v1135, 20
    %v1178 = vpop.permute.xlu0 %1177
    %1179 = vrot.lane.b32.xlu0 %v1138, 20
    %v1180 = vpop.permute.xlu0 %1179
    %1181 = vrot.lane.b32.xlu0 %v1141, 20
    %v1182 = vpop.permute.xlu0 %1181
    %1183 = vrot.lane.b32.xlu0 %v1144, 20
    %v1184 = vpop.permute.xlu0 %1183
    %1185 = vrot.lane.b32.xlu0 %v1147, 20
    %v1186 = vpop.permute.xlu0 %1185
    %1187 = vrot.lane.b32.xlu0 %v1150, 20
    %v1188 = vpop.permute.xlu0 %1187
    %1189 = vrot.lane.b32.xlu0 %v1153, 20
    %v1190 = vpop.permute.xlu0 %1189
    %1191 = vrot.lane.b32.xlu0 %v1156, 20
    %v1192 = vpop.permute.xlu0 %1191
    %1193 = vrot.lane.b32.xlu0 %v1159, 20
    %v1194 = vpop.permute.xlu0 %1193
    %1195 = vrot.lane.b32.xlu0 %v1162, 20
    %v1196 = vpop.permute.xlu0 %1195
    %1197 = vrot.lane.b32.xlu0 %v1165, 20
    %v1198 = vpop.permute.xlu0 %1197
    %1199 = vrot.lane.b32.xlu0 %v1168, 20
    %v1200 = vpop.permute.xlu0 %1199
    %v1233 = vunpack.c.l.b16 %v143
    %v1234 = vunpack.c.l.b16 %v144
    %v1235 = vunpack.c.l.b16 %v145
    %v1236 = vunpack.c.l.b16 %v146
    %v1237 = vunpack.c.l.b16 %v147
    %v1238 = vunpack.c.l.b16 %v148
    %v1239 = vunpack.c.l.b16 %v149
    %v1240 = vunpack.c.l.b16 %v150
    %v1241 = vunpack.c.l.b16 %v151
    %v1242 = vunpack.c.l.b16 %v152
    %v1243 = vunpack.c.l.b16 %v153
    %v1244 = vunpack.c.l.b16 %v154
    %v1245 = vunpack.c.l.b16 %v155
    %v1246 = vunpack.c.l.b16 %v156
    %v1247 = vunpack.c.l.b16 %v157
    %v1248 = vunpack.c.l.b16 %v158
    %v1249 = vunpack.c.l.b16 %v159
    %v1250 = vunpack.c.l.b16 %v160
    %v1251 = vunpack.c.l.b16 %v161
    %v1252 = vunpack.c.l.b16 %v162
    %v1253 = vunpack.c.l.b16 %v163
    %v1254 = vunpack.c.l.b16 %v164
    %v1255 = vunpack.c.l.b16 %v165
    %v1256 = vunpack.c.l.b16 %v166
    %v1257 = vunpack.c.l.b16 %v167
    %v1258 = vunpack.c.l.b16 %v168
    %v1259 = vunpack.c.l.b16 %v169
    %v1260 = vunpack.c.l.b16 %v170
    %v1261 = vunpack.c.l.b16 %v171
    %v1262 = vunpack.c.l.b16 %v172
    %v1263 = vunpack.c.l.b16 %v173
    %v1264 = vunpack.c.l.b16 %v174
    %v1265 = vpack.c.b16 %v1234, %v1233
    %v1266 = vpack.c.b16 %v1236, %v1235
    %v1267 = vpack.c.b16 %v1238, %v1237
    %v1268 = vpack.c.b16 %v1240, %v1239
    %v1269 = vpack.c.b16 %v1242, %v1241
    %v1270 = vpack.c.b16 %v1244, %v1243
    %v1271 = vpack.c.b16 %v1246, %v1245
    %v1272 = vpack.c.b16 %v1248, %v1247
    %v1273 = vpack.c.b16 %v1250, %v1249
    %v1274 = vpack.c.b16 %v1252, %v1251
    %v1275 = vpack.c.b16 %v1254, %v1253
    %v1276 = vpack.c.b16 %v1256, %v1255
    %v1277 = vpack.c.b16 %v1258, %v1257
    %v1278 = vpack.c.b16 %v1260, %v1259
    %v1279 = vpack.c.b16 %v1262, %v1261
    %v1280 = vpack.c.b16 %v1264, %v1263
    %1281 = vrot.lane.b32.xlu0 %v1265, 24
    %v1282 = vpop.permute.xlu0 %1281
    %1283 = vrot.lane.b32.xlu0 %v1266, 24
    %v1284 = vpop.permute.xlu0 %1283
    %1285 = vrot.lane.b32.xlu0 %v1267, 24
    %v1286 = vpop.permute.xlu0 %1285
    %1287 = vrot.lane.b32.xlu0 %v1268, 24
    %v1288 = vpop.permute.xlu0 %1287
    %1289 = vrot.lane.b32.xlu0 %v1269, 24
    %v1290 = vpop.permute.xlu0 %1289
    %1291 = vrot.lane.b32.xlu0 %v1270, 24
    %v1292 = vpop.permute.xlu0 %1291
    %1293 = vrot.lane.b32.xlu0 %v1271, 24
    %v1294 = vpop.permute.xlu0 %1293
    %1295 = vrot.lane.b32.xlu0 %v1272, 24
    %v1296 = vpop.permute.xlu0 %1295
    %1297 = vrot.lane.b32.xlu0 %v1273, 24
    %v1298 = vpop.permute.xlu0 %1297
    %1299 = vrot.lane.b32.xlu0 %v1274, 24
    %v1300 = vpop.permute.xlu0 %1299
    %1301 = vrot.lane.b32.xlu0 %v1275, 24
    %v1302 = vpop.permute.xlu0 %1301
    %1303 = vrot.lane.b32.xlu0 %v1276, 24
    %v1304 = vpop.permute.xlu0 %1303
    %1305 = vrot.lane.b32.xlu0 %v1277, 24
    %v1306 = vpop.permute.xlu0 %1305
    %1307 = vrot.lane.b32.xlu0 %v1278, 24
    %v1308 = vpop.permute.xlu0 %1307
    %1309 = vrot.lane.b32.xlu0 %v1279, 24
    %v1310 = vpop.permute.xlu0 %1309
    %1311 = vrot.lane.b32.xlu0 %v1280, 24
    %v1312 = vpop.permute.xlu0 %1311
    %v1329 = vunpack.c.l.b16 %v175
    %v1330 = vunpack.c.l.b16 %v176
    %v1331 = vunpack.c.l.b16 %v177
    %v1332 = vunpack.c.l.b16 %v178
    %v1333 = vunpack.c.l.b16 %v179
    %v1334 = vunpack.c.l.b16 %v180
    %v1335 = vunpack.c.l.b16 %v181
    %v1336 = vunpack.c.l.b16 %v182
    %v1337 = vunpack.c.l.b16 %v183
    %v1338 = vunpack.c.l.b16 %v184
    %v1339 = vunpack.c.l.b16 %v185
    %v1340 = vunpack.c.l.b16 %v186
    %v1341 = vunpack.c.l.b16 %v187
    %v1342 = vunpack.c.l.b16 %v188
    %v1343 = vunpack.c.l.b16 %v189
    %v1344 = vunpack.c.l.b16 %v190
    %v1345 = vpack.c.b16 %v1329, %v1329
    %v1346 = vpack.c.b16 %v1330, %v1330
    %v1347 = vpack.c.b16 %v1331, %v1331
    %v1348 = vpack.c.b16 %v1332, %v1332
    %v1349 = vpack.c.b16 %v1333, %v1333
    %v1350 = vpack.c.b16 %v1334, %v1334
    %v1351 = vpack.c.b16 %v1335, %v1335
    %v1352 = vpack.c.b16 %v1336, %v1336
    %v1353 = vpack.c.b16 %v1337, %v1337
    %v1354 = vpack.c.b16 %v1338, %v1338
    %v1355 = vpack.c.b16 %v1339, %v1339
    %v1356 = vpack.c.b16 %v1340, %v1340
    %v1357 = vpack.c.b16 %v1341, %v1341
    %v1358 = vpack.c.b16 %v1342, %v1342
    %v1359 = vpack.c.b16 %v1343, %v1343
    %v1360 = vpack.c.b16 %v1344, %v1344
    %v1362 = vshrl.u32 %v1265, 16
    %v1364 = vshll.u32 %v1265, 16
    %v1366 = vrot.slane %v1364, 1
    %v1367 = vor.u32 %v1362, %v1366
    %v1369 = vshll.u32 %v1345, 16
    %v1371 = vrot.slane %v1369, 1
    %v1372 = vsel %vm335, %v1367, %v1371
    %v1374 = vshrl.u32 %v1266, 16
    %v1376 = vshll.u32 %v1266, 16
    %v1378 = vrot.slane %v1376, 1
    %v1379 = vor.u32 %v1374, %v1378
    %v1381 = vshll.u32 %v1346, 16
    %v1383 = vrot.slane %v1381, 1
    %v1384 = vsel %vm335, %v1379, %v1383
    %v1386 = vshrl.u32 %v1267, 16
    %v1388 = vshll.u32 %v1267, 16
    %v1390 = vrot.slane %v1388, 1
    %v1391 = vor.u32 %v1386, %v1390
    %v1393 = vshll.u32 %v1347, 16
    %v1395 = vrot.slane %v1393, 1
    %v1396 = vsel %vm335, %v1391, %v1395
    %v1398 = vshrl.u32 %v1268, 16
    %v1400 = vshll.u32 %v1268, 16
    %v1402 = vrot.slane %v1400, 1
    %v1403 = vor.u32 %v1398, %v1402
    %v1405 = vshll.u32 %v1348, 16
    %v1407 = vrot.slane %v1405, 1
    %v1408 = vsel %vm335, %v1403, %v1407
    %v1410 = vshrl.u32 %v1269, 16
    %v1412 = vshll.u32 %v1269, 16
    %v1414 = vrot.slane %v1412, 1
    %v1415 = vor.u32 %v1410, %v1414
    %v1417 = vshll.u32 %v1349, 16
    %v1419 = vrot.slane %v1417, 1
    %v1420 = vsel %vm335, %v1415, %v1419
    %v1422 = vshrl.u32 %v1270, 16
    %v1424 = vshll.u32 %v1270, 16
    %v1426 = vrot.slane %v1424, 1
    %v1427 = vor.u32 %v1422, %v1426
    %v1429 = vshll.u32 %v1350, 16
    %v1431 = vrot.slane %v1429, 1
    %v1432 = vsel %vm335, %v1427, %v1431
    %v1434 = vshrl.u32 %v1271, 16
    %v1436 = vshll.u32 %v1271, 16
    %v1438 = vrot.slane %v1436, 1
    %v1439 = vor.u32 %v1434, %v1438
    %v1441 = vshll.u32 %v1351, 16
    %v1443 = vrot.slane %v1441, 1
    %v1444 = vsel %vm335, %v1439, %v1443
    %v1446 = vshrl.u32 %v1272, 16
    %v1448 = vshll.u32 %v1272, 16
    %v1450 = vrot.slane %v1448, 1
    %v1451 = vor.u32 %v1446, %v1450
    %v1453 = vshll.u32 %v1352, 16
    %v1455 = vrot.slane %v1453, 1
    %v1456 = vsel %vm335, %v1451, %v1455
    %v1458 = vshrl.u32 %v1273, 16
    %v1460 = vshll.u32 %v1273, 16
    %v1462 = vrot.slane %v1460, 1
    %v1463 = vor.u32 %v1458, %v1462
    %v1465 = vshll.u32 %v1353, 16
    %v1467 = vrot.slane %v1465, 1
    %v1468 = vsel %vm335, %v1463, %v1467
    %v1470 = vshrl.u32 %v1274, 16
    %v1472 = vshll.u32 %v1274, 16
    %v1474 = vrot.slane %v1472, 1
    %v1475 = vor.u32 %v1470, %v1474
    %v1477 = vshll.u32 %v1354, 16
    %v1479 = vrot.slane %v1477, 1
    %v1480 = vsel %vm335, %v1475, %v1479
    %v1482 = vshrl.u32 %v1275, 16
    %v1484 = vshll.u32 %v1275, 16
    %v1486 = vrot.slane %v1484, 1
    %v1487 = vor.u32 %v1482, %v1486
    %v1489 = vshll.u32 %v1355, 16
    %v1491 = vrot.slane %v1489, 1
    %v1492 = vsel %vm335, %v1487, %v1491
    %v1494 = vshrl.u32 %v1276, 16
    %v1496 = vshll.u32 %v1276, 16
    %v1498 = vrot.slane %v1496, 1
    %v1499 = vor.u32 %v1494, %v1498
    %v1501 = vshll.u32 %v1356, 16
    %v1503 = vrot.slane %v1501, 1
    %v1504 = vsel %vm335, %v1499, %v1503
    %v1506 = vshrl.u32 %v1277, 16
    %v1508 = vshll.u32 %v1277, 16
    %v1510 = vrot.slane %v1508, 1
    %v1511 = vor.u32 %v1506, %v1510
    %v1513 = vshll.u32 %v1357, 16
    %v1515 = vrot.slane %v1513, 1
    %v1516 = vsel %vm335, %v1511, %v1515
    %v1518 = vshrl.u32 %v1278, 16
    %v1520 = vshll.u32 %v1278, 16
    %v1522 = vrot.slane %v1520, 1
    %v1523 = vor.u32 %v1518, %v1522
    %v1525 = vshll.u32 %v1358, 16
    %v1527 = vrot.slane %v1525, 1
    %v1528 = vsel %vm335, %v1523, %v1527
    %v1530 = vshrl.u32 %v1279, 16
    %v1532 = vshll.u32 %v1279, 16
    %v1534 = vrot.slane %v1532, 1
    %v1535 = vor.u32 %v1530, %v1534
    %v1537 = vshll.u32 %v1359, 16
    %v1539 = vrot.slane %v1537, 1
    %v1540 = vsel %vm335, %v1535, %v1539
    %v1542 = vshrl.u32 %v1280, 16
    %v1544 = vshll.u32 %v1280, 16
    %v1546 = vrot.slane %v1544, 1
    %v1547 = vor.u32 %v1542, %v1546
    %v1549 = vshll.u32 %v1360, 16
    %v1551 = vrot.slane %v1549, 1
    %v1552 = vsel %vm335, %v1547, %v1551
    %1553 = vrot.lane.b32.xlu0 %v1372, 28
    %v1554 = vpop.permute.xlu0 %1553
    %1555 = vrot.lane.b32.xlu0 %v1384, 28
    %v1556 = vpop.permute.xlu0 %1555
    %1557 = vrot.lane.b32.xlu0 %v1396, 28
    %v1558 = vpop.permute.xlu0 %1557
    %1559 = vrot.lane.b32.xlu0 %v1408, 28
    %v1560 = vpop.permute.xlu0 %1559
    %1561 = vrot.lane.b32.xlu0 %v1420, 28
    %v1562 = vpop.permute.xlu0 %1561
    %1563 = vrot.lane.b32.xlu0 %v1432, 28
    %v1564 = vpop.permute.xlu0 %1563
    %1565 = vrot.lane.b32.xlu0 %v1444, 28
    %v1566 = vpop.permute.xlu0 %1565
    %1567 = vrot.lane.b32.xlu0 %v1456, 28
    %v1568 = vpop.permute.xlu0 %1567
    %1569 = vrot.lane.b32.xlu0 %v1468, 28
    %v1570 = vpop.permute.xlu0 %1569
    %1571 = vrot.lane.b32.xlu0 %v1480, 28
    %v1572 = vpop.permute.xlu0 %1571
    %1573 = vrot.lane.b32.xlu0 %v1492, 28
    %v1574 = vpop.permute.xlu0 %1573
    %1575 = vrot.lane.b32.xlu0 %v1504, 28
    %v1576 = vpop.permute.xlu0 %1575
    %1577 = vrot.lane.b32.xlu0 %v1516, 28
    %v1578 = vpop.permute.xlu0 %1577
    %1579 = vrot.lane.b32.xlu0 %v1528, 28
    %v1580 = vpop.permute.xlu0 %1579
    %1581 = vrot.lane.b32.xlu0 %v1540, 28
    %v1582 = vpop.permute.xlu0 %1581
    %1583 = vrot.lane.b32.xlu0 %v1552, 28
    %v1584 = vpop.permute.xlu0 %1583
    %v1601 = vunpack.c.l.b16 %v191
    %v1602 = vunpack.c.l.b16 %v192
    %v1603 = vunpack.c.l.b16 %v193
    %v1604 = vunpack.c.l.b16 %v194
    %v1605 = vunpack.c.l.b16 %v195
    %v1606 = vunpack.c.l.b16 %v196
    %v1607 = vunpack.c.l.b16 %v197
    %v1608 = vunpack.c.l.b16 %v198
    %v1609 = vunpack.c.l.b16 %v199
    %v1610 = vunpack.c.l.b16 %v200
    %v1611 = vunpack.c.l.b16 %v201
    %v1612 = vunpack.c.l.b16 %v202
    %v1613 = vunpack.c.l.b16 %v203
    %v1614 = vunpack.c.l.b16 %v204
    %v1615 = vunpack.c.l.b16 %v205
    %v1616 = vunpack.c.l.b16 %v206
    %v1617 = vpack.c.b16 %v1234, %v1601
    %v1618 = vpack.c.b16 %v1236, %v1602
    %v1619 = vpack.c.b16 %v1238, %v1603
    %v1620 = vpack.c.b16 %v1240, %v1604
    %v1621 = vpack.c.b16 %v1242, %v1605
    %v1622 = vpack.c.b16 %v1244, %v1606
    %v1623 = vpack.c.b16 %v1246, %v1607
    %v1624 = vpack.c.b16 %v1248, %v1608
    %v1625 = vpack.c.b16 %v1250, %v1609
    %v1626 = vpack.c.b16 %v1252, %v1610
    %v1627 = vpack.c.b16 %v1254, %v1611
    %v1628 = vpack.c.b16 %v1256, %v1612
    %v1629 = vpack.c.b16 %v1258, %v1613
    %v1630 = vpack.c.b16 %v1260, %v1614
    %v1631 = vpack.c.b16 %v1262, %v1615
    %v1632 = vpack.c.b16 %v1264, %v1616
    %v1633 = vrot.slane %v1617, 1
    %v1634 = vrot.slane %v1345, 1
    %v1635 = vsel %vm608, %v1633, %v1634
    %v1636 = vrot.slane %v1618, 1
    %v1637 = vrot.slane %v1346, 1
    %v1638 = vsel %vm608, %v1636, %v1637
    %v1639 = vrot.slane %v1619, 1
    %v1640 = vrot.slane %v1347, 1
    %v1641 = vsel %vm608, %v1639, %v1640
    %v1642 = vrot.slane %v1620, 1
    %v1643 = vrot.slane %v1348, 1
    %v1644 = vsel %vm608, %v1642, %v1643
    %v1645 = vrot.slane %v1621, 1
    %v1646 = vrot.slane %v1349, 1
    %v1647 = vsel %vm608, %v1645, %v1646
    %v1648 = vrot.slane %v1622, 1
    %v1649 = vrot.slane %v1350, 1
    %v1650 = vsel %vm608, %v1648, %v1649
    %v1651 = vrot.slane %v1623, 1
    %v1652 = vrot.slane %v1351, 1
    %v1653 = vsel %vm608, %v1651, %v1652
    %v1654 = vrot.slane %v1624, 1
    %v1655 = vrot.slane %v1352, 1
    %v1656 = vsel %vm608, %v1654, %v1655
    %v1657 = vrot.slane %v1625, 1
    %v1658 = vrot.slane %v1353, 1
    %v1659 = vsel %vm608, %v1657, %v1658
    %v1660 = vrot.slane %v1626, 1
    %v1661 = vrot.slane %v1354, 1
    %v1662 = vsel %vm608, %v1660, %v1661
    %v1663 = vrot.slane %v1627, 1
    %v1664 = vrot.slane %v1355, 1
    %v1665 = vsel %vm608, %v1663, %v1664
    %v1666 = vrot.slane %v1628, 1
    %v1667 = vrot.slane %v1356, 1
    %v1668 = vsel %vm608, %v1666, %v1667
    %v1669 = vrot.slane %v1629, 1
    %v1670 = vrot.slane %v1357, 1
    %v1671 = vsel %vm608, %v1669, %v1670
    %v1672 = vrot.slane %v1630, 1
    %v1673 = vrot.slane %v1358, 1
    %v1674 = vsel %vm608, %v1672, %v1673
    %v1675 = vrot.slane %v1631, 1
    %v1676 = vrot.slane %v1359, 1
    %v1677 = vsel %vm608, %v1675, %v1676
    %v1678 = vrot.slane %v1632, 1
    %v1679 = vrot.slane %v1360, 1
    %v1680 = vsel %vm608, %v1678, %v1679
    %1681 = vrot.lane.b32.xlu0 %v1635, 32
    %v1682 = vpop.permute.xlu0 %1681
    %1683 = vrot.lane.b32.xlu0 %v1638, 32
    %v1684 = vpop.permute.xlu0 %1683
    %1685 = vrot.lane.b32.xlu0 %v1641, 32
    %v1686 = vpop.permute.xlu0 %1685
    %1687 = vrot.lane.b32.xlu0 %v1644, 32
    %v1688 = vpop.permute.xlu0 %1687
    %1689 = vrot.lane.b32.xlu0 %v1647, 32
    %v1690 = vpop.permute.xlu0 %1689
    %1691 = vrot.lane.b32.xlu0 %v1650, 32
    %v1692 = vpop.permute.xlu0 %1691
    %1693 = vrot.lane.b32.xlu0 %v1653, 32
    %v1694 = vpop.permute.xlu0 %1693
    %1695 = vrot.lane.b32.xlu0 %v1656, 32
    %v1696 = vpop.permute.xlu0 %1695
    %1697 = vrot.lane.b32.xlu0 %v1659, 32
    %v1698 = vpop.permute.xlu0 %1697
    %1699 = vrot.lane.b32.xlu0 %v1662, 32
    %v1700 = vpop.permute.xlu0 %1699
    %1701 = vrot.lane.b32.xlu0 %v1665, 32
    %v1702 = vpop.permute.xlu0 %1701
    %1703 = vrot.lane.b32.xlu0 %v1668, 32
    %v1704 = vpop.permute.xlu0 %1703
    %1705 = vrot.lane.b32.xlu0 %v1671, 32
    %v1706 = vpop.permute.xlu0 %1705
    %1707 = vrot.lane.b32.xlu0 %v1674, 32
    %v1708 = vpop.permute.xlu0 %1707
    %1709 = vrot.lane.b32.xlu0 %v1677, 32
    %v1710 = vpop.permute.xlu0 %1709
    %1711 = vrot.lane.b32.xlu0 %v1680, 32
    %v1712 = vpop.permute.xlu0 %1711
    %vm1713 = vcmask 31744
    %v1715 = vsel %vm1713, %v271, %v529
    %v1717 = vsel %vm1713, %v272, %v531
    %v1719 = vsel %vm1713, %v273, %v533
    %v1721 = vsel %vm1713, %v274, %v535
    %v1723 = vsel %vm1713, %v275, %v537
    %v1725 = vsel %vm1713, %v276, %v539
    %v1727 = vsel %vm1713, %v277, %v541
    %v1729 = vsel %vm1713, %v278, %v543
    %v1731 = vsel %vm1713, %v279, %v545
    %v1733 = vsel %vm1713, %v280, %v547
    %v1735 = vsel %vm1713, %v281, %v549
    %v1737 = vsel %vm1713, %v282, %v551
    %v1739 = vsel %vm1713, %v283, %v553
    %v1741 = vsel %vm1713, %v284, %v555
    %v1743 = vsel %vm1713, %v285, %v557
    %v1745 = vsel %vm1713, %v286, %v559
    %vm1746 = vcmask 64512
    %v1748 = vsel %vm1746, %v1715, %v658
    %v1750 = vsel %vm1746, %v1717, %v660
    %v1752 = vsel %vm1746, %v1719, %v662
    %v1754 = vsel %vm1746, %v1721, %v664
    %v1756 = vsel %vm1746, %v1723, %v666
    %v1758 = vsel %vm1746, %v1725, %v668
    %v1760 = vsel %vm1746, %v1727, %v670
    %v1762 = vsel %vm1746, %v1729, %v672
    %v1764 = vsel %vm1746, %v1731, %v674
    %v1766 = vsel %vm1746, %v1733, %v676
    %v1768 = vsel %vm1746, %v1735, %v678
    %v1770 = vsel %vm1746, %v1737, %v680
    %v1772 = vsel %vm1746, %v1739, %v682
    %v1774 = vsel %vm1746, %v1741, %v684
    %v1776 = vsel %vm1746, %v1743, %v686
    %v1778 = vsel %vm1746, %v1745, %v688
    %vm1779 = vcmask 97280
    %v1781 = vsel %vm1779, %v1748, %v770
    %v1783 = vsel %vm1779, %v1750, %v772
    %v1785 = vsel %vm1779, %v1752, %v774
    %v1787 = vsel %vm1779, %v1754, %v776
    %v1789 = vsel %vm1779, %v1756, %v778
    %v1791 = vsel %vm1779, %v1758, %v780
    %v1793 = vsel %vm1779, %v1760, %v782
    %v1795 = vsel %vm1779, %v1762, %v784
    %v1797 = vsel %vm1779, %v1764, %v786
    %v1799 = vsel %vm1779, %v1766, %v788
    %v1801 = vsel %vm1779, %v1768, %v790
    %v1803 = vsel %vm1779, %v1770, %v792
    %v1805 = vsel %vm1779, %v1772, %v794
    %v1807 = vsel %vm1779, %v1774, %v796
    %v1809 = vsel %vm1779, %v1776, %v798
    %v1811 = vsel %vm1779, %v1778, %v800
    %vm1812 = vcmask 130048
    %v1814 = vsel %vm1812, %v1781, %v1042
    %v1816 = vsel %vm1812, %v1783, %v1044
    %v1818 = vsel %vm1812, %v1785, %v1046
    %v1820 = vsel %vm1812, %v1787, %v1048
    %v1822 = vsel %vm1812, %v1789, %v1050
    %v1824 = vsel %vm1812, %v1791, %v1052
    %v1826 = vsel %vm1812, %v1793, %v1054
    %v1828 = vsel %vm1812, %v1795, %v1056
    %v1830 = vsel %vm1812, %v1797, %v1058
    %v1832 = vsel %vm1812, %v1799, %v1060
    %v1834 = vsel %vm1812, %v1801, %v1062
    %v1836 = vsel %vm1812, %v1803, %v1064
    %v1838 = vsel %vm1812, %v1805, %v1066
    %v1840 = vsel %vm1812, %v1807, %v1068
    %v1842 = vsel %vm1812, %v1809, %v1070
    %v1844 = vsel %vm1812, %v1811, %v1072
    %vm1845 = vcmask 162816
    %v1847 = vsel %vm1845, %v1814, %v1170
    %v1849 = vsel %vm1845, %v1816, %v1172
    %v1851 = vsel %vm1845, %v1818, %v1174
    %v1853 = vsel %vm1845, %v1820, %v1176
    %v1855 = vsel %vm1845, %v1822, %v1178
    %v1857 = vsel %vm1845, %v1824, %v1180
    %v1859 = vsel %vm1845, %v1826, %v1182
    %v1861 = vsel %vm1845, %v1828, %v1184
    %v1863 = vsel %vm1845, %v1830, %v1186
    %v1865 = vsel %vm1845, %v1832, %v1188
    %v1867 = vsel %vm1845, %v1834, %v1190
    %v1869 = vsel %vm1845, %v1836, %v1192
    %v1871 = vsel %vm1845, %v1838, %v1194
    %v1873 = vsel %vm1845, %v1840, %v1196
    %v1875 = vsel %vm1845, %v1842, %v1198
    %v1877 = vsel %vm1845, %v1844, %v1200
    %vm1878 = vcmask 195584
    %v1880 = vsel %vm1878, %v1847, %v1282
    %v1882 = vsel %vm1878, %v1849, %v1284
    %v1884 = vsel %vm1878, %v1851, %v1286
    %v1886 = vsel %vm1878, %v1853, %v1288
    %v1888 = vsel %vm1878, %v1855, %v1290
    %v1890 = vsel %vm1878, %v1857, %v1292
    %v1892 = vsel %vm1878, %v1859, %v1294
    %v1894 = vsel %vm1878, %v1861, %v1296
    %v1896 = vsel %vm1878, %v1863, %v1298
    %v1898 = vsel %vm1878, %v1865, %v1300
    %v1900 = vsel %vm1878, %v1867, %v1302
    %v1902 = vsel %vm1878, %v1869, %v1304
    %v1904 = vsel %vm1878, %v1871, %v1306
    %v1906 = vsel %vm1878, %v1873, %v1308
    %v1908 = vsel %vm1878, %v1875, %v1310
    %v1910 = vsel %vm1878, %v1877, %v1312
    %vm1911 = vcmask 228352
    %v1913 = vsel %vm1911, %v1880, %v1554
    %v1915 = vsel %vm1911, %v1882, %v1556
    %v1917 = vsel %vm1911, %v1884, %v1558
    %v1919 = vsel %vm1911, %v1886, %v1560
    %v1921 = vsel %vm1911, %v1888, %v1562
    %v1923 = vsel %vm1911, %v1890, %v1564
    %v1925 = vsel %vm1911, %v1892, %v1566
    %v1927 = vsel %vm1911, %v1894, %v1568
    %v1929 = vsel %vm1911, %v1896, %v1570
    %v1931 = vsel %vm1911, %v1898, %v1572
    %v1933 = vsel %vm1911, %v1900, %v1574
    %v1935 = vsel %vm1911, %v1902, %v1576
    %v1937 = vsel %vm1911, %v1904, %v1578
    %v1939 = vsel %vm1911, %v1906, %v1580
    %v1941 = vsel %vm1911, %v1908, %v1582
    %v1943 = vsel %vm1911, %v1910, %v1584
    %vm1944 = vcmask 261120
    %v1946 = vsel %vm1944, %v1913, %v1682
    %v1948 = vsel %vm1944, %v1915, %v1684
    %v1950 = vsel %vm1944, %v1917, %v1686
    %v1952 = vsel %vm1944, %v1919, %v1688
    %v1954 = vsel %vm1944, %v1921, %v1690
    %v1956 = vsel %vm1944, %v1923, %v1692
    %v1958 = vsel %vm1944, %v1925, %v1694
    %v1960 = vsel %vm1944, %v1927, %v1696
    %v1962 = vsel %vm1944, %v1929, %v1698
    %v1964 = vsel %vm1944, %v1931, %v1700
    %v1966 = vsel %vm1944, %v1933, %v1702
    %v1968 = vsel %vm1944, %v1935, %v1704
    %v1970 = vsel %vm1944, %v1937, %v1706
    %v1972 = vsel %vm1944, %v1939, %v1708
    %v1974 = vsel %vm1944, %v1941, %v1710
    %v1976 = vsel %vm1944, %v1943, %v1712
    %vm1977 = vcmask 293888
    %v1979 = vsel %vm1977, %v1946, 0
    %v1981 = vsel %vm1977, %v1948, 0
    %v1983 = vsel %vm1977, %v1950, 0
    %v1985 = vsel %vm1977, %v1952, 0
    %v1987 = vsel %vm1977, %v1954, 0
    %v1989 = vsel %vm1977, %v1956, 0
    %v1991 = vsel %vm1977, %v1958, 0
    %v1993 = vsel %vm1977, %v1960, 0
    %v1995 = vsel %vm1977, %v1962, 0
    %v1997 = vsel %vm1977, %v1964, 0
    %v1999 = vsel %vm1977, %v1966, 0
    %v2001 = vsel %vm1977, %v1968, 0
    %v2003 = vsel %vm1977, %v1970, 0
    %v2005 = vsel %vm1977, %v1972, 0
    %v2007 = vsel %vm1977, %v1974, 0
    %v2009 = vsel %vm1977, %v1976, 0
    %v2011 = vld [vmem:[%s1] sm:$0xf]
    %v2012 = vld [vmem:[%s1 + $0x4] sm:$0xf]
    %v2013 = vld [vmem:[%s1 + $0x8] sm:$0xf]
    %v2014 = vld [vmem:[%s1 + $0xc] sm:$0xf]
    %v2015 = vld [vmem:[%s1 + $0x10] sm:$0xf]
    %v2016 = vld [vmem:[%s1 + $0x14] sm:$0xf]
    %v2017 = vld [vmem:[%s1 + $0x18] sm:$0xf]
    %v2018 = vld [vmem:[%s1 + $0x1c] sm:$0xf]
    %v2019 = vld [vmem:[%s1 + $0x20] sm:$0xf]
    %v2020 = vld [vmem:[%s1 + $0x24] sm:$0xf]
    %v2021 = vld [vmem:[%s1 + $0x28] sm:$0xf]
    %v2022 = vld [vmem:[%s1 + $0x2c] sm:$0xf]
    %v2023 = vld [vmem:[%s1 + $0x30] sm:$0xf]
    %v2024 = vld [vmem:[%s1 + $0x34] sm:$0xf]
    %v2025 = vld [vmem:[%s1 + $0x38] sm:$0xf]
    %v2026 = vld [vmem:[%s1 + $0x3c] sm:$0xf]
    %v2043 = vunpack.c.l.b16 %v2011
    %v2044 = vunpack.c.l.b16 %v2012
    %v2045 = vunpack.c.l.b16 %v2013
    %v2046 = vunpack.c.l.b16 %v2014
    %v2047 = vunpack.c.l.b16 %v2015
    %v2048 = vunpack.c.l.b16 %v2016
    %v2049 = vunpack.c.l.b16 %v2017
    %v2050 = vunpack.c.l.b16 %v2018
    %v2051 = vunpack.c.l.b16 %v2019
    %v2052 = vunpack.c.l.b16 %v2020
    %v2053 = vunpack.c.l.b16 %v2021
    %v2054 = vunpack.c.l.b16 %v2022
    %v2055 = vunpack.c.l.b16 %v2023
    %v2056 = vunpack.c.l.b16 %v2024
    %v2057 = vunpack.c.l.b16 %v2025
    %v2058 = vunpack.c.l.b16 %v2026
    %v2059 = vpack.c.b16 %v2044, %v2043
    %v2060 = vpack.c.b16 %v2046, %v2045
    %v2061 = vpack.c.b16 %v2048, %v2047
    %v2062 = vpack.c.b16 %v2050, %v2049
    %v2063 = vpack.c.b16 %v2052, %v2051
    %v2064 = vpack.c.b16 %v2054, %v2053
    %v2065 = vpack.c.b16 %v2056, %v2055
    %v2066 = vpack.c.b16 %v2058, %v2057
    %2075 = vmatpush.bf16.msra.mxu0 %v2066
    %2076 = vmatpush.bf16.msra.mxu0 %v2065
    %2077 = vmatpush.bf16.msra.mxu0 %v2064
    %2078 = vmatpush.bf16.msra.mxu0 %v2063
    %2079 = vmatpush.bf16.msra.mxu0 %v2062
    %2080 = vmatpush.bf16.msra.mxu0 %v2061
    %2081 = vmatpush.bf16.msra.mxu0 %v2060
    %2082 = vmatpush.bf16.msra.mxu0 %v2059
    %2083 = vmatmul.bf16.gmra.mxu0 %v1979
    %v2084 = vpop.f32.mrf.mxu0
    %v2085 = vadd.f32 0.0, %v2084
    %v2086 = vpop.f32.mrf.mxu0
    %v2087 = vadd.f32 0.0, %v2086
    %2088 = vmatmul.bf16.gmra.mxu0 %v1981
    %v2089 = vpop.f32.mrf.mxu0
    %v2090 = vadd.f32 0.0, %v2089
    %v2091 = vpop.f32.mrf.mxu0
    %v2092 = vadd.f32 0.0, %v2091
    %2093 = vmatmul.bf16.gmra.mxu0 %v1983
    %v2094 = vpop.f32.mrf.mxu0
    %v2095 = vadd.f32 0.0, %v2094
    %v2096 = vpop.f32.mrf.mxu0
    %v2097 = vadd.f32 0.0, %v2096
    %2098 = vmatmul.bf16.gmra.mxu0 %v1985
    %v2099 = vpop.f32.mrf.mxu0
    %v2100 = vadd.f32 0.0, %v2099
    %v2101 = vpop.f32.mrf.mxu0
    %v2102 = vadd.f32 0.0, %v2101
    %2103 = vmatmul.bf16.gmra.mxu0 %v1987
    %v2104 = vpop.f32.mrf.mxu0
    %v2105 = vadd.f32 0.0, %v2104
    %v2106 = vpop.f32.mrf.mxu0
    %v2107 = vadd.f32 0.0, %v2106
    %2108 = vmatmul.bf16.gmra.mxu0 %v1989
    %v2109 = vpop.f32.mrf.mxu0
    %v2110 = vadd.f32 0.0, %v2109
    %v2111 = vpop.f32.mrf.mxu0
    %v2112 = vadd.f32 0.0, %v2111
    %2113 = vmatmul.bf16.gmra.mxu0 %v1991
    %v2114 = vpop.f32.mrf.mxu0
    %v2115 = vadd.f32 0.0, %v2114
    %v2116 = vpop.f32.mrf.mxu0
    %v2117 = vadd.f32 0.0, %v2116
    %2118 = vmatmul.bf16.gmra.mxu0 %v1993
    %v2119 = vpop.f32.mrf.mxu0
    %v2120 = vadd.f32 0.0, %v2119
    %v2121 = vpop.f32.mrf.mxu0
    %v2122 = vadd.f32 0.0, %v2121
    %2123 = vmatmul.bf16.gmra.mxu0 %v1995
    %v2124 = vpop.f32.mrf.mxu0
    %v2125 = vadd.f32 0.0, %v2124
    %v2126 = vpop.f32.mrf.mxu0
    %v2127 = vadd.f32 0.0, %v2126
    %2128 = vmatmul.bf16.gmra.mxu0 %v1997
    %v2129 = vpop.f32.mrf.mxu0
    %v2130 = vadd.f32 0.0, %v2129
    %v2131 = vpop.f32.mrf.mxu0
    %v2132 = vadd.f32 0.0, %v2131
    %2133 = vmatmul.bf16.gmra.mxu0 %v1999
    %v2134 = vpop.f32.mrf.mxu0
    %v2135 = vadd.f32 0.0, %v2134
    %v2136 = vpop.f32.mrf.mxu0
    %v2137 = vadd.f32 0.0, %v2136
    %2138 = vmatmul.bf16.gmra.mxu0 %v2001
    %v2139 = vpop.f32.mrf.mxu0
    %v2140 = vadd.f32 0.0, %v2139
    %v2141 = vpop.f32.mrf.mxu0
    %v2142 = vadd.f32 0.0, %v2141
    %2143 = vmatmul.bf16.gmra.mxu0 %v2003
    %v2144 = vpop.f32.mrf.mxu0
    %v2145 = vadd.f32 0.0, %v2144
    %v2146 = vpop.f32.mrf.mxu0
    %v2147 = vadd.f32 0.0, %v2146
    %2148 = vmatmul.bf16.gmra.mxu0 %v2005
    %v2149 = vpop.f32.mrf.mxu0
    %v2150 = vadd.f32 0.0, %v2149
    %v2151 = vpop.f32.mrf.mxu0
    %v2152 = vadd.f32 0.0, %v2151
    %2153 = vmatmul.bf16.gmra.mxu0 %v2007
    %v2154 = vpop.f32.mrf.mxu0
    %v2155 = vadd.f32 0.0, %v2154
    %v2156 = vpop.f32.mrf.mxu0
    %v2157 = vadd.f32 0.0, %v2156
    %2158 = vmatmul.bf16.gmra.mxu0 %v2009
    %v2159 = vpop.f32.mrf.mxu0
    %v2160 = vadd.f32 0.0, %v2159
    %v2161 = vpop.f32.mrf.mxu0
    %v2162 = vadd.f32 0.0, %v2161
    %2163 = vdwg.mxu0
    %2164 = vst [vmem:[#allocation2] sm:$0xff] %v2085
    %2165 = vst [vmem:[#allocation2 + $0x8] sm:$0xff] %v2087
    %2166 = vst [vmem:[#allocation2 + $0x10] sm:$0xff] %v2090
    %2167 = vst [vmem:[#allocation2 + $0x18] sm:$0xff] %v2092
    %2168 = vst [vmem:[#allocation2 + $0x20] sm:$0xff] %v2095
    %2169 = vst [vmem:[#allocation2 + $0x28] sm:$0xff] %v2097
    %2170 = vst [vmem:[#allocation2 + $0x30] sm:$0xff] %v2100
    %2171 = vst [vmem:[#allocation2 + $0x38] sm:$0xff] %v2102
    %2172 = vst [vmem:[#allocation2 + $0x40] sm:$0xff] %v2105
    %2173 = vst [vmem:[#allocation2 + $0x48] sm:$0xff] %v2107
    %2174 = vst [vmem:[#allocation2 + $0x50] sm:$0xff] %v2110
    %2175 = vst [vmem:[#allocation2 + $0x58] sm:$0xff] %v2112
    %2176 = vst [vmem:[#allocation2 + $0x60] sm:$0xff] %v2115
    %2177 = vst [vmem:[#allocation2 + $0x68] sm:$0xff] %v2117
    %2178 = vst [vmem:[#allocation2 + $0x70] sm:$0xff] %v2120
    %2179 = vst [vmem:[#allocation2 + $0x78] sm:$0xff] %v2122
    %2180 = vst [vmem:[#allocation2 + $0x80] sm:$0xff] %v2125
    %2181 = vst [vmem:[#allocation2 + $0x88] sm:$0xff] %v2127
    %2182 = vst [vmem:[#allocation2 + $0x90] sm:$0xff] %v2130
    %2183 = vst [vmem:[#allocation2 + $0x98] sm:$0xff] %v2132
    %2184 = vst [vmem:[#allocation2 + $0xa0] sm:$0xff] %v2135
    %2185 = vst [vmem:[#allocation2 + $0xa8] sm:$0xff] %v2137
    %2186 = vst [vmem:[#allocation2 + $0xb0] sm:$0xff] %v2140
    %2187 = vst [vmem:[#allocation2 + $0xb8] sm:$0xff] %v2142
    %2188 = vst [vmem:[#allocation2 + $0xc0] sm:$0xff] %v2145
    %2189 = vst [vmem:[#allocation2 + $0xc8] sm:$0xff] %v2147
    %2190 = vst [vmem:[#allocation2 + $0xd0] sm:$0xff] %v2150
    %2191 = vst [vmem:[#allocation2 + $0xd8] sm:$0xff] %v2152
    %2192 = vst [vmem:[#allocation2 + $0xe0] sm:$0xff] %v2155
    %2193 = vst [vmem:[#allocation2 + $0xe8] sm:$0xff] %v2157
    %2194 = vst [vmem:[#allocation2 + $0xf0] sm:$0xff] %v2160
    %2195 = vst [vmem:[#allocation2 + $0xf8] sm:$0xff] %v2162
    %v2196 = vld [vmem:[#allocation2] sm:$0xff]
    %v2197 = vld [vmem:[#allocation2 + $0x8] sm:$0xff]
    %v2198 = vld [vmem:[#allocation2 + $0x10] sm:$0xff]
    %v2199 = vld [vmem:[#allocation2 + $0x18] sm:$0xff]
    %v2200 = vld [vmem:[#allocation2 + $0x20] sm:$0xff]
    %v2201 = vld [vmem:[#allocation2 + $0x28] sm:$0xff]
    %v2202 = vld [vmem:[#allocation2 + $0x30] sm:$0xff]
    %v2203 = vld [vmem:[#allocation2 + $0x38] sm:$0xff]
    %v2204 = vld [vmem:[#allocation2 + $0x40] sm:$0xff]
    %v2205 = vld [vmem:[#allocation2 + $0x48] sm:$0xff]
    %v2206 = vld [vmem:[#allocation2 + $0x50] sm:$0xff]
    %v2207 = vld [vmem:[#allocation2 + $0x58] sm:$0xff]
    %v2208 = vld [vmem:[#allocation2 + $0x60] sm:$0xff]
    %v2209 = vld [vmem:[#allocation2 + $0x68] sm:$0xff]
    %v2210 = vld [vmem:[#allocation2 + $0x70] sm:$0xff]
    %v2211 = vld [vmem:[#allocation2 + $0x78] sm:$0xff]
    %v2212 = vmul.f32 %v2196, %v2196
    %v2213 = vmul.f32 %v2197, %v2197
    %v2214 = vmul.f32 %v2198, %v2198
    %v2215 = vmul.f32 %v2199, %v2199
    %v2216 = vmul.f32 %v2200, %v2200
    %v2217 = vmul.f32 %v2201, %v2201
    %v2218 = vmul.f32 %v2202, %v2202
    %v2219 = vmul.f32 %v2203, %v2203
    %v2220 = vmul.f32 %v2204, %v2204
    %v2221 = vmul.f32 %v2205, %v2205
    %v2222 = vmul.f32 %v2206, %v2206
    %v2223 = vmul.f32 %v2207, %v2207
    %v2224 = vmul.f32 %v2208, %v2208
    %v2225 = vmul.f32 %v2209, %v2209
    %v2226 = vmul.f32 %v2210, %v2210
    %v2227 = vmul.f32 %v2211, %v2211
    %v2228 = vadd.f32 %v2212, %v2213
    %v2229 = vadd.f32 %v2228, %v2214
    %v2230 = vadd.f32 %v2229, %v2215
    %v2231 = vadd.f32 %v2230, %v2216
    %v2232 = vadd.f32 %v2231, %v2217
    %v2233 = vadd.f32 %v2232, %v2218
    %v2234 = vadd.f32 %v2233, %v2219
    %v2235 = vadd.f32 %v2234, %v2220
    %v2236 = vadd.f32 %v2235, %v2221
    %v2237 = vadd.f32 %v2236, %v2222
    %v2238 = vadd.f32 %v2237, %v2223
    %v2239 = vadd.f32 %v2238, %v2224
    %v2240 = vadd.f32 %v2239, %v2225
    %v2241 = vadd.f32 %v2240, %v2226
    %v2242 = vadd.f32 %v2241, %v2227
    %v2243 = vrot.slane %v2242, 4
    %v2244 = vadd.f32 %v2242, %v2243
    %v2245 = vrot.slane %v2244, 2
    %v2246 = vadd.f32 %v2244, %v2245
    %v2247 = vrot.slane %v2246, 1
    %v2248 = vadd.f32 %v2246, %v2247
    %v2249 = vadd.f32 %v2248, 0.0
    %v2250 = vld [vmem:[#allocation2 + $0x80] sm:$0xff]
    %v2251 = vld [vmem:[#allocation2 + $0x88] sm:$0xff]
    %v2252 = vld [vmem:[#allocation2 + $0x90] sm:$0xff]
    %v2253 = vld [vmem:[#allocation2 + $0x98] sm:$0xff]
    %v2254 = vld [vmem:[#allocation2 + $0xa0] sm:$0xff]
    %v2255 = vld [vmem:[#allocation2 + $0xa8] sm:$0xff]
    %v2256 = vld [vmem:[#allocation2 + $0xb0] sm:$0xff]
    %v2257 = vld [vmem:[#allocation2 + $0xb8] sm:$0xff]
    %v2258 = vld [vmem:[#allocation2 + $0xc0] sm:$0xff]
    %v2259 = vld [vmem:[#allocation2 + $0xc8] sm:$0xff]
    %v2260 = vld [vmem:[#allocation2 + $0xd0] sm:$0xff]
    %v2261 = vld [vmem:[#allocation2 + $0xd8] sm:$0xff]
    %v2262 = vld [vmem:[#allocation2 + $0xe0] sm:$0xff]
    %v2263 = vld [vmem:[#allocation2 + $0xe8] sm:$0xff]
    %v2264 = vld [vmem:[#allocation2 + $0xf0] sm:$0xff]
    %v2265 = vld [vmem:[#allocation2 + $0xf8] sm:$0xff]
    %v2266 = vmul.f32 %v2196, %v2250
    %v2267 = vmul.f32 %v2197, %v2251
    %v2268 = vmul.f32 %v2198, %v2252
    %v2269 = vmul.f32 %v2199, %v2253
    %v2270 = vmul.f32 %v2200, %v2254
    %v2271 = vmul.f32 %v2201, %v2255
    %v2272 = vmul.f32 %v2202, %v2256
    %v2273 = vmul.f32 %v2203, %v2257
    %v2274 = vmul.f32 %v2204, %v2258
    %v2275 = vmul.f32 %v2205, %v2259
    %v2276 = vmul.f32 %v2206, %v2260
    %v2277 = vmul.f32 %v2207, %v2261
    %v2278 = vmul.f32 %v2208, %v2262
    %v2279 = vmul.f32 %v2209, %v2263
    %v2280 = vmul.f32 %v2210, %v2264
    %v2281 = vmul.f32 %v2211, %v2265
    %v2282 = vadd.f32 %v2266, %v2267
    %v2283 = vadd.f32 %v2282, %v2268
    %v2284 = vadd.f32 %v2283, %v2269
    %v2285 = vadd.f32 %v2284, %v2270
    %v2286 = vadd.f32 %v2285, %v2271
    %v2287 = vadd.f32 %v2286, %v2272
    %v2288 = vadd.f32 %v2287, %v2273
    %v2289 = vadd.f32 %v2288, %v2274
    %v2290 = vadd.f32 %v2289, %v2275
    %v2291 = vadd.f32 %v2290, %v2276
    %v2292 = vadd.f32 %v2291, %v2277
    %v2293 = vadd.f32 %v2292, %v2278
    %v2294 = vadd.f32 %v2293, %v2279
    %v2295 = vadd.f32 %v2294, %v2280
    %v2296 = vadd.f32 %v2295, %v2281
    %v2297 = vrot.slane %v2296, 4
    %v2298 = vadd.f32 %v2296, %v2297
    %v2299 = vrot.slane %v2298, 2
    %v2300 = vadd.f32 %v2298, %v2299
    %v2301 = vrot.slane %v2300, 1
    %v2302 = vadd.f32 %v2300, %v2301
    %v2303 = vadd.f32 %v2302, 0.0
    %v2304 = vmul.f32 %v2250, %v2250
    %v2305 = vmul.f32 %v2251, %v2251
    %v2306 = vmul.f32 %v2252, %v2252
    %v2307 = vmul.f32 %v2253, %v2253
    %v2308 = vmul.f32 %v2254, %v2254
    %v2309 = vmul.f32 %v2255, %v2255
    %v2310 = vmul.f32 %v2256, %v2256
    %v2311 = vmul.f32 %v2257, %v2257
    %v2312 = vmul.f32 %v2258, %v2258
    %v2313 = vmul.f32 %v2259, %v2259
    %v2314 = vmul.f32 %v2260, %v2260
    %v2315 = vmul.f32 %v2261, %v2261
    %v2316 = vmul.f32 %v2262, %v2262
    %v2317 = vmul.f32 %v2263, %v2263
    %v2318 = vmul.f32 %v2264, %v2264
    %v2319 = vmul.f32 %v2265, %v2265
    %v2320 = vadd.f32 %v2304, %v2305
    %v2321 = vadd.f32 %v2320, %v2306
    %v2322 = vadd.f32 %v2321, %v2307
    %v2323 = vadd.f32 %v2322, %v2308
    %v2324 = vadd.f32 %v2323, %v2309
    %v2325 = vadd.f32 %v2324, %v2310
    %v2326 = vadd.f32 %v2325, %v2311
    %v2327 = vadd.f32 %v2326, %v2312
    %v2328 = vadd.f32 %v2327, %v2313
    %v2329 = vadd.f32 %v2328, %v2314
    %v2330 = vadd.f32 %v2329, %v2315
    %v2331 = vadd.f32 %v2330, %v2316
    %v2332 = vadd.f32 %v2331, %v2317
    %v2333 = vadd.f32 %v2332, %v2318
    %v2334 = vadd.f32 %v2333, %v2319
    %v2335 = vrot.slane %v2334, 4
    %v2336 = vadd.f32 %v2334, %v2335
    %v2337 = vrot.slane %v2336, 2
    %v2338 = vadd.f32 %v2336, %v2337
    %v2339 = vrot.slane %v2338, 1
    %v2340 = vadd.f32 %v2338, %v2339
    %v2341 = vadd.f32 %v2340, 0.0
    %s2342 = scalar_lea.vmem %s0, 96
    %v2343 = vld [vmem:[%s2342] sm:$0xf]
    %v2344 = vld [vmem:[%s2342 + $0x4] sm:$0xf]
    %v2345 = vld [vmem:[%s2342 + $0xc] sm:$0xf]
    %v2346 = vld [vmem:[%s2342 + $0x10] sm:$0xf]
    %v2347 = vld [vmem:[%s2342 + $0x18] sm:$0xf]
    %v2348 = vld [vmem:[%s2342 + $0x1c] sm:$0xf]
    %v2349 = vld [vmem:[%s2342 + $0x24] sm:$0xf]
    %v2350 = vld [vmem:[%s2342 + $0x28] sm:$0xf]
    %v2351 = vld [vmem:[%s2342 + $0x30] sm:$0xf]
    %v2352 = vld [vmem:[%s2342 + $0x34] sm:$0xf]
    %v2353 = vld [vmem:[%s2342 + $0x3c] sm:$0xf]
    %v2354 = vld [vmem:[%s2342 + $0x40] sm:$0xf]
    %v2355 = vld [vmem:[%s2342 + $0x48] sm:$0xf]
    %v2356 = vld [vmem:[%s2342 + $0x4c] sm:$0xf]
    %v2357 = vld [vmem:[%s2342 + $0x54] sm:$0xf]
    %v2358 = vld [vmem:[%s2342 + $0x58] sm:$0xf]
    %v2359 = vld [vmem:[%s2342 + $0xd8] sm:$0xf]
    %v2360 = vld [vmem:[%s2342 + $0xdc] sm:$0xf]
    %v2361 = vld [vmem:[%s2342 + $0xe4] sm:$0xf]
    %v2362 = vld [vmem:[%s2342 + $0xe8] sm:$0xf]
    %v2363 = vld [vmem:[%s2342 + $0xf0] sm:$0xf]
    %v2364 = vld [vmem:[%s2342 + $0xf4] sm:$0xf]
    %v2365 = vld [vmem:[%s2342 + $0xfc] sm:$0xf]
    %v2366 = vld [vmem:[%s2342 + $0x100] sm:$0xf]
    %v2367 = vld [vmem:[%s2342 + $0x108] sm:$0xf]
    %v2368 = vld [vmem:[%s2342 + $0x10c] sm:$0xf]
    %v2369 = vld [vmem:[%s2342 + $0x114] sm:$0xf]
    %v2370 = vld [vmem:[%s2342 + $0x118] sm:$0xf]
    %v2371 = vld [vmem:[%s2342 + $0x120] sm:$0xf]
    %v2372 = vld [vmem:[%s2342 + $0x124] sm:$0xf]
    %v2373 = vld [vmem:[%s2342 + $0x12c] sm:$0xf]
    %v2374 = vld [vmem:[%s2342 + $0x130] sm:$0xf]
    %v2375 = vld [vmem:[%s2342 + $0x8] sm:$0x1]
    %v2376 = vld [vmem:[%s2342 + $0x14] sm:$0x1]
    %v2377 = vld [vmem:[%s2342 + $0x20] sm:$0x1]
    %v2378 = vld [vmem:[%s2342 + $0x2c] sm:$0x1]
    %v2379 = vld [vmem:[%s2342 + $0x38] sm:$0x1]
    %v2380 = vld [vmem:[%s2342 + $0x44] sm:$0x1]
    %v2381 = vld [vmem:[%s2342 + $0x50] sm:$0x1]
    %v2382 = vld [vmem:[%s2342 + $0x5c] sm:$0x1]
    %v2383 = vld [vmem:[%s2342 + $0xe0] sm:$0x1]
    %v2384 = vld [vmem:[%s2342 + $0xec] sm:$0x1]
    %v2385 = vld [vmem:[%s2342 + $0xf8] sm:$0x1]
    %v2386 = vld [vmem:[%s2342 + $0x104] sm:$0x1]
    %v2387 = vld [vmem:[%s2342 + $0x110] sm:$0x1]
    %v2388 = vld [vmem:[%s2342 + $0x11c] sm:$0x1]
    %v2389 = vld [vmem:[%s2342 + $0x128] sm:$0x1]
    %v2390 = vld [vmem:[%s2342 + $0x134] sm:$0x1]
    %v2391 = vld [vmem:[%s2342] sm:$0xe]
    %v2392 = vld [vmem:[%s2342 + $0xc] sm:$0xe]
    %v2393 = vld [vmem:[%s2342 + $0x18] sm:$0xe]
    %v2394 = vld [vmem:[%s2342 + $0x24] sm:$0xe]
    %v2395 = vld [vmem:[%s2342 + $0x30] sm:$0xe]
    %v2396 = vld [vmem:[%s2342 + $0x3c] sm:$0xe]
    %v2397 = vld [vmem:[%s2342 + $0x48] sm:$0xe]
    %v2398 = vld [vmem:[%s2342 + $0x54] sm:$0xe]
    %v2399 = vld [vmem:[%s2342 + $0xd8] sm:$0xe]
    %v2400 = vld [vmem:[%s2342 + $0xe4] sm:$0xe]
    %v2401 = vld [vmem:[%s2342 + $0xf0] sm:$0xe]
    %v2402 = vld [vmem:[%s2342 + $0xfc] sm:$0xe]
    %v2403 = vld [vmem:[%s2342 + $0x108] sm:$0xe]
    %v2404 = vld [vmem:[%s2342 + $0x114] sm:$0xe]
    %v2405 = vld [vmem:[%s2342 + $0x120] sm:$0xe]
    %v2406 = vld [vmem:[%s2342 + $0x12c] sm:$0xe]
    %s2407 = scalar_lea.vmem %s0, 108
    %v2408 = vld [vmem:[%s2407] sm:$0xf]
    %v2409 = vld [vmem:[%s2407 + $0x4] sm:$0xf]
    %v2410 = vld [vmem:[%s2407 + $0xc] sm:$0xf]
    %v2411 = vld [vmem:[%s2407 + $0x10] sm:$0xf]
    %v2412 = vld [vmem:[%s2407 + $0x18] sm:$0xf]
    %v2413 = vld [vmem:[%s2407 + $0x1c] sm:$0xf]
    %v2414 = vld [vmem:[%s2407 + $0x24] sm:$0xf]
    %v2415 = vld [vmem:[%s2407 + $0x28] sm:$0xf]
    %v2416 = vld [vmem:[%s2407 + $0x30] sm:$0xf]
    %v2417 = vld [vmem:[%s2407 + $0x34] sm:$0xf]
    %v2418 = vld [vmem:[%s2407 + $0x3c] sm:$0xf]
    %v2419 = vld [vmem:[%s2407 + $0x40] sm:$0xf]
    %v2420 = vld [vmem:[%s2407 + $0x48] sm:$0xf]
    %v2421 = vld [vmem:[%s2407 + $0x4c] sm:$0xf]
    %v2422 = vld [vmem:[%s2407 + $0x54] sm:$0xf]
    %v2423 = vld [vmem:[%s2407 + $0x58] sm:$0xf]
    %v2424 = vld [vmem:[%s2407 + $0xd8] sm:$0xf]
    %v2425 = vld [vmem:[%s2407 + $0xdc] sm:$0xf]
    %v2426 = vld [vmem:[%s2407 + $0xe4] sm:$0xf]
    %v2427 = vld [vmem:[%s2407 + $0xe8] sm:$0xf]
    %v2428 = vld [vmem:[%s2407 + $0xf0] sm:$0xf]
    %v2429 = vld [vmem:[%s2407 + $0xf4] sm:$0xf]
    %v2430 = vld [vmem:[%s2407 + $0xfc] sm:$0xf]
    %v2431 = vld [vmem:[%s2407 + $0x100] sm:$0xf]
    %v2432 = vld [vmem:[%s2407 + $0x108] sm:$0xf]
    %v2433 = vld [vmem:[%s2407 + $0x10c] sm:$0xf]
    %v2434 = vld [vmem:[%s2407 + $0x114] sm:$0xf]
    %v2435 = vld [vmem:[%s2407 + $0x118] sm:$0xf]
    %v2436 = vld [vmem:[%s2407 + $0x120] sm:$0xf]
    %v2437 = vld [vmem:[%s2407 + $0x124] sm:$0xf]
    %v2438 = vld [vmem:[%s2407 + $0x12c] sm:$0xf]
    %v2439 = vld [vmem:[%s2407 + $0x130] sm:$0xf]
    %v2440 = vld [vmem:[%s2407 + $0x8] sm:$0x1]
    %v2441 = vld [vmem:[%s2407 + $0x14] sm:$0x1]
    %v2442 = vld [vmem:[%s2407 + $0x20] sm:$0x1]
    %v2443 = vld [vmem:[%s2407 + $0x2c] sm:$0x1]
    %v2444 = vld [vmem:[%s2407 + $0x38] sm:$0x1]
    %v2445 = vld [vmem:[%s2407 + $0x44] sm:$0x1]
    %v2446 = vld [vmem:[%s2407 + $0x50] sm:$0x1]
    %v2447 = vld [vmem:[%s2407 + $0x5c] sm:$0x1]
    %v2448 = vld [vmem:[%s2407 + $0xe0] sm:$0x1]
    %v2449 = vld [vmem:[%s2407 + $0xec] sm:$0x1]
    %v2450 = vld [vmem:[%s2407 + $0xf8] sm:$0x1]
    %v2451 = vld [vmem:[%s2407 + $0x104] sm:$0x1]
    %v2452 = vld [vmem:[%s2407 + $0x110] sm:$0x1]
    %v2453 = vld [vmem:[%s2407 + $0x11c] sm:$0x1]
    %v2454 = vld [vmem:[%s2407 + $0x128] sm:$0x1]
    %v2455 = vld [vmem:[%s2407 + $0x134] sm:$0x1]
    %v2456 = vld [vmem:[%s2407] sm:$0xe]
    %v2457 = vld [vmem:[%s2407 + $0xc] sm:$0xe]
    %v2458 = vld [vmem:[%s2407 + $0x18] sm:$0xe]
    %v2459 = vld [vmem:[%s2407 + $0x24] sm:$0xe]
    %v2460 = vld [vmem:[%s2407 + $0x30] sm:$0xe]
    %v2461 = vld [vmem:[%s2407 + $0x3c] sm:$0xe]
    %v2462 = vld [vmem:[%s2407 + $0x48] sm:$0xe]
    %v2463 = vld [vmem:[%s2407 + $0x54] sm:$0xe]
    %v2464 = vld [vmem:[%s2407 + $0xd8] sm:$0xe]
    %v2465 = vld [vmem:[%s2407 + $0xe4] sm:$0xe]
    %v2466 = vld [vmem:[%s2407 + $0xf0] sm:$0xe]
    %v2467 = vld [vmem:[%s2407 + $0xfc] sm:$0xe]
    %v2468 = vld [vmem:[%s2407 + $0x108] sm:$0xe]
    %v2469 = vld [vmem:[%s2407 + $0x114] sm:$0xe]
    %v2470 = vld [vmem:[%s2407 + $0x120] sm:$0xe]
    %v2471 = vld [vmem:[%s2407 + $0x12c] sm:$0xe]
    %s2472 = scalar_lea.vmem %s0, 120
    %v2473 = vld [vmem:[%s2472] sm:$0xf]
    %v2474 = vld [vmem:[%s2472 + $0x4] sm:$0xf]
    %v2475 = vld [vmem:[%s2472 + $0xc] sm:$0xf]
    %v2476 = vld [vmem:[%s2472 + $0x10] sm:$0xf]
    %v2477 = vld [vmem:[%s2472 + $0x18] sm:$0xf]
    %v2478 = vld [vmem:[%s2472 + $0x1c] sm:$0xf]
    %v2479 = vld [vmem:[%s2472 + $0x24] sm:$0xf]
    %v2480 = vld [vmem:[%s2472 + $0x28] sm:$0xf]
    %v2481 = vld [vmem:[%s2472 + $0x30] sm:$0xf]
    %v2482 = vld [vmem:[%s2472 + $0x34] sm:$0xf]
    %v2483 = vld [vmem:[%s2472 + $0x3c] sm:$0xf]
    %v2484 = vld [vmem:[%s2472 + $0x40] sm:$0xf]
    %v2485 = vld [vmem:[%s2472 + $0x48] sm:$0xf]
    %v2486 = vld [vmem:[%s2472 + $0x4c] sm:$0xf]
    %v2487 = vld [vmem:[%s2472 + $0x54] sm:$0xf]
    %v2488 = vld [vmem:[%s2472 + $0x58] sm:$0xf]
    %v2489 = vld [vmem:[%s2472 + $0xd8] sm:$0xf]
    %v2490 = vld [vmem:[%s2472 + $0xdc] sm:$0xf]
    %v2491 = vld [vmem:[%s2472 + $0xe4] sm:$0xf]
    %v2492 = vld [vmem:[%s2472 + $0xe8] sm:$0xf]
    %v2493 = vld [vmem:[%s2472 + $0xf0] sm:$0xf]
    %v2494 = vld [vmem:[%s2472 + $0xf4] sm:$0xf]
    %v2495 = vld [vmem:[%s2472 + $0xfc] sm:$0xf]
    %v2496 = vld [vmem:[%s2472 + $0x100] sm:$0xf]
    %v2497 = vld [vmem:[%s2472 + $0x108] sm:$0xf]
    %v2498 = vld [vmem:[%s2472 + $0x10c] sm:$0xf]
    %v2499 = vld [vmem:[%s2472 + $0x114] sm:$0xf]
    %v2500 = vld [vmem:[%s2472 + $0x118] sm:$0xf]
    %v2501 = vld [vmem:[%s2472 + $0x120] sm:$0xf]
    %v2502 = vld [vmem:[%s2472 + $0x124] sm:$0xf]
    %v2503 = vld [vmem:[%s2472 + $0x12c] sm:$0xf]
    %v2504 = vld [vmem:[%s2472 + $0x130] sm:$0xf]
    %v2505 = vld [vmem:[%s2472 + $0x8] sm:$0x1]
    %v2506 = vld [vmem:[%s2472 + $0x14] sm:$0x1]
    %v2507 = vld [vmem:[%s2472 + $0x20] sm:$0x1]
    %v2508 = vld [vmem:[%s2472 + $0x2c] sm:$0x1]
    %v2509 = vld [vmem:[%s2472 + $0x38] sm:$0x1]
    %v2510 = vld [vmem:[%s2472 + $0x44] sm:$0x1]
    %v2511 = vld [vmem:[%s2472 + $0x50] sm:$0x1]
    %v2512 = vld [vmem:[%s2472 + $0x5c] sm:$0x1]
    %v2513 = vld [vmem:[%s2472 + $0xe0] sm:$0x1]
    %v2514 = vld [vmem:[%s2472 + $0xec] sm:$0x1]
    %v2515 = vld [vmem:[%s2472 + $0xf8] sm:$0x1]
    %v2516 = vld [vmem:[%s2472 + $0x104] sm:$0x1]
    %v2517 = vld [vmem:[%s2472 + $0x110] sm:$0x1]
    %v2518 = vld [vmem:[%s2472 + $0x11c] sm:$0x1]
    %v2519 = vld [vmem:[%s2472 + $0x128] sm:$0x1]
    %v2520 = vld [vmem:[%s2472 + $0x134] sm:$0x1]
    %v2521 = vld [vmem:[%s2472] sm:$0xe]
    %v2522 = vld [vmem:[%s2472 + $0xc] sm:$0xe]
    %v2523 = vld [vmem:[%s2472 + $0x18] sm:$0xe]
    %v2524 = vld [vmem:[%s2472 + $0x24] sm:$0xe]
    %v2525 = vld [vmem:[%s2472 + $0x30] sm:$0xe]
    %v2526 = vld [vmem:[%s2472 + $0x3c] sm:$0xe]
    %v2527 = vld [vmem:[%s2472 + $0x48] sm:$0xe]
    %v2528 = vld [vmem:[%s2472 + $0x54] sm:$0xe]
    %v2529 = vld [vmem:[%s2472 + $0xd8] sm:$0xe]
    %v2530 = vld [vmem:[%s2472 + $0xe4] sm:$0xe]
    %v2531 = vld [vmem:[%s2472 + $0xf0] sm:$0xe]
    %v2532 = vld [vmem:[%s2472 + $0xfc] sm:$0xe]
    %v2533 = vld [vmem:[%s2472 + $0x108] sm:$0xe]
    %v2534 = vld [vmem:[%s2472 + $0x114] sm:$0xe]
    %v2535 = vld [vmem:[%s2472 + $0x120] sm:$0xe]
    %v2536 = vld [vmem:[%s2472 + $0x12c] sm:$0xe]
    %v2569 = vunpack.c.l.b16 %v2343
    %v2570 = vunpack.c.l.b16 %v2344
    %v2571 = vunpack.c.l.b16 %v2345
    %v2572 = vunpack.c.l.b16 %v2346
    %v2573 = vunpack.c.l.b16 %v2347
    %v2574 = vunpack.c.l.b16 %v2348
    %v2575 = vunpack.c.l.b16 %v2349
    %v2576 = vunpack.c.l.b16 %v2350
    %v2577 = vunpack.c.l.b16 %v2351
    %v2578 = vunpack.c.l.b16 %v2352
    %v2579 = vunpack.c.l.b16 %v2353
    %v2580 = vunpack.c.l.b16 %v2354
    %v2581 = vunpack.c.l.b16 %v2355
    %v2582 = vunpack.c.l.b16 %v2356
    %v2583 = vunpack.c.l.b16 %v2357
    %v2584 = vunpack.c.l.b16 %v2358
    %v2585 = vunpack.c.l.b16 %v2359
    %v2586 = vunpack.c.l.b16 %v2360
    %v2587 = vunpack.c.l.b16 %v2361
    %v2588 = vunpack.c.l.b16 %v2362
    %v2589 = vunpack.c.l.b16 %v2363
    %v2590 = vunpack.c.l.b16 %v2364
    %v2591 = vunpack.c.l.b16 %v2365
    %v2592 = vunpack.c.l.b16 %v2366
    %v2593 = vunpack.c.l.b16 %v2367
    %v2594 = vunpack.c.l.b16 %v2368
    %v2595 = vunpack.c.l.b16 %v2369
    %v2596 = vunpack.c.l.b16 %v2370
    %v2597 = vunpack.c.l.b16 %v2371
    %v2598 = vunpack.c.l.b16 %v2372
    %v2599 = vunpack.c.l.b16 %v2373
    %v2600 = vunpack.c.l.b16 %v2374
    %v2601 = vpack.c.b16 %v2570, %v2569
    %v2602 = vpack.c.b16 %v2572, %v2571
    %v2603 = vpack.c.b16 %v2574, %v2573
    %v2604 = vpack.c.b16 %v2576, %v2575
    %v2605 = vpack.c.b16 %v2578, %v2577
    %v2606 = vpack.c.b16 %v2580, %v2579
    %v2607 = vpack.c.b16 %v2582, %v2581
    %v2608 = vpack.c.b16 %v2584, %v2583
    %v2609 = vpack.c.b16 %v2586, %v2585
    %v2610 = vpack.c.b16 %v2588, %v2587
    %v2611 = vpack.c.b16 %v2590, %v2589
    %v2612 = vpack.c.b16 %v2592, %v2591
    %v2613 = vpack.c.b16 %v2594, %v2593
    %v2614 = vpack.c.b16 %v2596, %v2595
    %v2615 = vpack.c.b16 %v2598, %v2597
    %v2616 = vpack.c.b16 %v2600, %v2599
    %v2633 = vunpack.c.l.b16 %v2375
    %v2634 = vunpack.c.l.b16 %v2376
    %v2635 = vunpack.c.l.b16 %v2377
    %v2636 = vunpack.c.l.b16 %v2378
    %v2637 = vunpack.c.l.b16 %v2379
    %v2638 = vunpack.c.l.b16 %v2380
    %v2639 = vunpack.c.l.b16 %v2381
    %v2640 = vunpack.c.l.b16 %v2382
    %v2641 = vunpack.c.l.b16 %v2383
    %v2642 = vunpack.c.l.b16 %v2384
    %v2643 = vunpack.c.l.b16 %v2385
    %v2644 = vunpack.c.l.b16 %v2386
    %v2645 = vunpack.c.l.b16 %v2387
    %v2646 = vunpack.c.l.b16 %v2388
    %v2647 = vunpack.c.l.b16 %v2389
    %v2648 = vunpack.c.l.b16 %v2390
    %v2649 = vpack.c.b16 %v2633, %v2633
    %v2650 = vpack.c.b16 %v2634, %v2634
    %v2651 = vpack.c.b16 %v2635, %v2635
    %v2652 = vpack.c.b16 %v2636, %v2636
    %v2653 = vpack.c.b16 %v2637, %v2637
    %v2654 = vpack.c.b16 %v2638, %v2638
    %v2655 = vpack.c.b16 %v2639, %v2639
    %v2656 = vpack.c.b16 %v2640, %v2640
    %v2657 = vpack.c.b16 %v2641, %v2641
    %v2658 = vpack.c.b16 %v2642, %v2642
    %v2659 = vpack.c.b16 %v2643, %v2643
    %v2660 = vpack.c.b16 %v2644, %v2644
    %v2661 = vpack.c.b16 %v2645, %v2645
    %v2662 = vpack.c.b16 %v2646, %v2646
    %v2663 = vpack.c.b16 %v2647, %v2647
    %v2664 = vpack.c.b16 %v2648, %v2648
    %v2666 = vshrl.u32 %v2601, 16
    %v2668 = vshll.u32 %v2601, 16
    %v2670 = vrot.slane %v2668, 1
    %v2671 = vor.u32 %v2666, %v2670
    %v2673 = vshll.u32 %v2649, 16
    %v2675 = vrot.slane %v2673, 1
    %v2676 = vsel %vm335, %v2671, %v2675
    %v2678 = vshrl.u32 %v2602, 16
    %v2680 = vshll.u32 %v2602, 16
    %v2682 = vrot.slane %v2680, 1
    %v2683 = vor.u32 %v2678, %v2682
    %v2685 = vshll.u32 %v2650, 16
    %v2687 = vrot.slane %v2685, 1
    %v2688 = vsel %vm335, %v2683, %v2687
    %v2690 = vshrl.u32 %v2603, 16
    %v2692 = vshll.u32 %v2603, 16
    %v2694 = vrot.slane %v2692, 1
    %v2695 = vor.u32 %v2690, %v2694
    %v2697 = vshll.u32 %v2651, 16
    %v2699 = vrot.slane %v2697, 1
    %v2700 = vsel %vm335, %v2695, %v2699
    %v2702 = vshrl.u32 %v2604, 16
    %v2704 = vshll.u32 %v2604, 16
    %v2706 = vrot.slane %v2704, 1
    %v2707 = vor.u32 %v2702, %v2706
    %v2709 = vshll.u32 %v2652, 16
    %v2711 = vrot.slane %v2709, 1
    %v2712 = vsel %vm335, %v2707, %v2711
    %v2714 = vshrl.u32 %v2605, 16
    %v2716 = vshll.u32 %v2605, 16
    %v2718 = vrot.slane %v2716, 1
    %v2719 = vor.u32 %v2714, %v2718
    %v2721 = vshll.u32 %v2653, 16
    %v2723 = vrot.slane %v2721, 1
    %v2724 = vsel %vm335, %v2719, %v2723
    %v2726 = vshrl.u32 %v2606, 16
    %v2728 = vshll.u32 %v2606, 16
    %v2730 = vrot.slane %v2728, 1
    %v2731 = vor.u32 %v2726, %v2730
    %v2733 = vshll.u32 %v2654, 16
    %v2735 = vrot.slane %v2733, 1
    %v2736 = vsel %vm335, %v2731, %v2735
    %v2738 = vshrl.u32 %v2607, 16
    %v2740 = vshll.u32 %v2607, 16
    %v2742 = vrot.slane %v2740, 1
    %v2743 = vor.u32 %v2738, %v2742
    %v2745 = vshll.u32 %v2655, 16
    %v2747 = vrot.slane %v2745, 1
    %v2748 = vsel %vm335, %v2743, %v2747
    %v2750 = vshrl.u32 %v2608, 16
    %v2752 = vshll.u32 %v2608, 16
    %v2754 = vrot.slane %v2752, 1
    %v2755 = vor.u32 %v2750, %v2754
    %v2757 = vshll.u32 %v2656, 16
    %v2759 = vrot.slane %v2757, 1
    %v2760 = vsel %vm335, %v2755, %v2759
    %v2762 = vshrl.u32 %v2609, 16
    %v2764 = vshll.u32 %v2609, 16
    %v2766 = vrot.slane %v2764, 1
    %v2767 = vor.u32 %v2762, %v2766
    %v2769 = vshll.u32 %v2657, 16
    %v2771 = vrot.slane %v2769, 1
    %v2772 = vsel %vm335, %v2767, %v2771
    %v2774 = vshrl.u32 %v2610, 16
    %v2776 = vshll.u32 %v2610, 16
    %v2778 = vrot.slane %v2776, 1
    %v2779 = vor.u32 %v2774, %v2778
    %v2781 = vshll.u32 %v2658, 16
    %v2783 = vrot.slane %v2781, 1
    %v2784 = vsel %vm335, %v2779, %v2783
    %v2786 = vshrl.u32 %v2611, 16
    %v2788 = vshll.u32 %v2611, 16
    %v2790 = vrot.slane %v2788, 1
    %v2791 = vor.u32 %v2786, %v2790
    %v2793 = vshll.u32 %v2659, 16
    %v2795 = vrot.slane %v2793, 1
    %v2796 = vsel %vm335, %v2791, %v2795
    %v2798 = vshrl.u32 %v2612, 16
    %v2800 = vshll.u32 %v2612, 16
    %v2802 = vrot.slane %v2800, 1
    %v2803 = vor.u32 %v2798, %v2802
    %v2805 = vshll.u32 %v2660, 16
    %v2807 = vrot.slane %v2805, 1
    %v2808 = vsel %vm335, %v2803, %v2807
    %v2810 = vshrl.u32 %v2613, 16
    %v2812 = vshll.u32 %v2613, 16
    %v2814 = vrot.slane %v2812, 1
    %v2815 = vor.u32 %v2810, %v2814
    %v2817 = vshll.u32 %v2661, 16
    %v2819 = vrot.slane %v2817, 1
    %v2820 = vsel %vm335, %v2815, %v2819
    %v2822 = vshrl.u32 %v2614, 16
    %v2824 = vshll.u32 %v2614, 16
    %v2826 = vrot.slane %v2824, 1
    %v2827 = vor.u32 %v2822, %v2826
    %v2829 = vshll.u32 %v2662, 16
    %v2831 = vrot.slane %v2829, 1
    %v2832 = vsel %vm335, %v2827, %v2831
    %v2834 = vshrl.u32 %v2615, 16
    %v2836 = vshll.u32 %v2615, 16
    %v2838 = vrot.slane %v2836, 1
    %v2839 = vor.u32 %v2834, %v2838
    %v2841 = vshll.u32 %v2663, 16
    %v2843 = vrot.slane %v2841, 1
    %v2844 = vsel %vm335, %v2839, %v2843
    %v2846 = vshrl.u32 %v2616, 16
    %v2848 = vshll.u32 %v2616, 16
    %v2850 = vrot.slane %v2848, 1
    %v2851 = vor.u32 %v2846, %v2850
    %v2853 = vshll.u32 %v2664, 16
    %v2855 = vrot.slane %v2853, 1
    %v2856 = vsel %vm335, %v2851, %v2855
    %2857 = vrot.lane.b32.xlu0 %v2676, 4
    %v2858 = vpop.permute.xlu0 %2857
    %2859 = vrot.lane.b32.xlu0 %v2688, 4
    %v2860 = vpop.permute.xlu0 %2859
    %2861 = vrot.lane.b32.xlu0 %v2700, 4
    %v2862 = vpop.permute.xlu0 %2861
    %2863 = vrot.lane.b32.xlu0 %v2712, 4
    %v2864 = vpop.permute.xlu0 %2863
    %2865 = vrot.lane.b32.xlu0 %v2724, 4
    %v2866 = vpop.permute.xlu0 %2865
    %2867 = vrot.lane.b32.xlu0 %v2736, 4
    %v2868 = vpop.permute.xlu0 %2867
    %2869 = vrot.lane.b32.xlu0 %v2748, 4
    %v2870 = vpop.permute.xlu0 %2869
    %2871 = vrot.lane.b32.xlu0 %v2760, 4
    %v2872 = vpop.permute.xlu0 %2871
    %2873 = vrot.lane.b32.xlu0 %v2772, 4
    %v2874 = vpop.permute.xlu0 %2873
    %2875 = vrot.lane.b32.xlu0 %v2784, 4
    %v2876 = vpop.permute.xlu0 %2875
    %2877 = vrot.lane.b32.xlu0 %v2796, 4
    %v2878 = vpop.permute.xlu0 %2877
    %2879 = vrot.lane.b32.xlu0 %v2808, 4
    %v2880 = vpop.permute.xlu0 %2879
    %2881 = vrot.lane.b32.xlu0 %v2820, 4
    %v2882 = vpop.permute.xlu0 %2881
    %2883 = vrot.lane.b32.xlu0 %v2832, 4
    %v2884 = vpop.permute.xlu0 %2883
    %2885 = vrot.lane.b32.xlu0 %v2844, 4
    %v2886 = vpop.permute.xlu0 %2885
    %2887 = vrot.lane.b32.xlu0 %v2856, 4
    %v2888 = vpop.permute.xlu0 %2887
    %v2905 = vunpack.c.l.b16 %v2391
    %v2906 = vunpack.c.l.b16 %v2392
    %v2907 = vunpack.c.l.b16 %v2393
    %v2908 = vunpack.c.l.b16 %v2394
    %v2909 = vunpack.c.l.b16 %v2395
    %v2910 = vunpack.c.l.b16 %v2396
    %v2911 = vunpack.c.l.b16 %v2397
    %v2912 = vunpack.c.l.b16 %v2398
    %v2913 = vunpack.c.l.b16 %v2399
    %v2914 = vunpack.c.l.b16 %v2400
    %v2915 = vunpack.c.l.b16 %v2401
    %v2916 = vunpack.c.l.b16 %v2402
    %v2917 = vunpack.c.l.b16 %v2403
    %v2918 = vunpack.c.l.b16 %v2404
    %v2919 = vunpack.c.l.b16 %v2405
    %v2920 = vunpack.c.l.b16 %v2406
    %v2921 = vpack.c.b16 %v2570, %v2905
    %v2922 = vpack.c.b16 %v2572, %v2906
    %v2923 = vpack.c.b16 %v2574, %v2907
    %v2924 = vpack.c.b16 %v2576, %v2908
    %v2925 = vpack.c.b16 %v2578, %v2909
    %v2926 = vpack.c.b16 %v2580, %v2910
    %v2927 = vpack.c.b16 %v2582, %v2911
    %v2928 = vpack.c.b16 %v2584, %v2912
    %v2929 = vpack.c.b16 %v2586, %v2913
    %v2930 = vpack.c.b16 %v2588, %v2914
    %v2931 = vpack.c.b16 %v2590, %v2915
    %v2932 = vpack.c.b16 %v2592, %v2916
    %v2933 = vpack.c.b16 %v2594, %v2917
    %v2934 = vpack.c.b16 %v2596, %v2918
    %v2935 = vpack.c.b16 %v2598, %v2919
    %v2936 = vpack.c.b16 %v2600, %v2920
    %v2937 = vrot.slane %v2921, 1
    %v2938 = vrot.slane %v2649, 1
    %v2939 = vsel %vm608, %v2937, %v2938
    %v2940 = vrot.slane %v2922, 1
    %v2941 = vrot.slane %v2650, 1
    %v2942 = vsel %vm608, %v2940, %v2941
    %v2943 = vrot.slane %v2923, 1
    %v2944 = vrot.slane %v2651, 1
    %v2945 = vsel %vm608, %v2943, %v2944
    %v2946 = vrot.slane %v2924, 1
    %v2947 = vrot.slane %v2652, 1
    %v2948 = vsel %vm608, %v2946, %v2947
    %v2949 = vrot.slane %v2925, 1
    %v2950 = vrot.slane %v2653, 1
    %v2951 = vsel %vm608, %v2949, %v2950
    %v2952 = vrot.slane %v2926, 1
    %v2953 = vrot.slane %v2654, 1
    %v2954 = vsel %vm608, %v2952, %v2953
    %v2955 = vrot.slane %v2927, 1
    %v2956 = vrot.slane %v2655, 1
    %v2957 = vsel %vm608, %v2955, %v2956
    %v2958 = vrot.slane %v2928, 1
    %v2959 = vrot.slane %v2656, 1
    %v2960 = vsel %vm608, %v2958, %v2959
    %v2961 = vrot.slane %v2929, 1
    %v2962 = vrot.slane %v2657, 1
    %v2963 = vsel %vm608, %v2961, %v2962
    %v2964 = vrot.slane %v2930, 1
    %v2965 = vrot.slane %v2658, 1
    %v2966 = vsel %vm608, %v2964, %v2965
    %v2967 = vrot.slane %v2931, 1
    %v2968 = vrot.slane %v2659, 1
    %v2969 = vsel %vm608, %v2967, %v2968
    %v2970 = vrot.slane %v2932, 1
    %v2971 = vrot.slane %v2660, 1
    %v2972 = vsel %vm608, %v2970, %v2971
    %v2973 = vrot.slane %v2933, 1
    %v2974 = vrot.slane %v2661, 1
    %v2975 = vsel %vm608, %v2973, %v2974
    %v2976 = vrot.slane %v2934, 1
    %v2977 = vrot.slane %v2662, 1
    %v2978 = vsel %vm608, %v2976, %v2977
    %v2979 = vrot.slane %v2935, 1
    %v2980 = vrot.slane %v2663, 1
    %v2981 = vsel %vm608, %v2979, %v2980
    %v2982 = vrot.slane %v2936, 1
    %v2983 = vrot.slane %v2664, 1
    %v2984 = vsel %vm608, %v2982, %v2983
    %2985 = vrot.lane.b32.xlu0 %v2939, 8
    %v2986 = vpop.permute.xlu0 %2985
    %2987 = vrot.lane.b32.xlu0 %v2942, 8
    %v2988 = vpop.permute.xlu0 %2987
    %2989 = vrot.lane.b32.xlu0 %v2945, 8
    %v2990 = vpop.permute.xlu0 %2989
    %2991 = vrot.lane.b32.xlu0 %v2948, 8
    %v2992 = vpop.permute.xlu0 %2991
    %2993 = vrot.lane.b32.xlu0 %v2951, 8
    %v2994 = vpop.permute.xlu0 %2993
    %2995 = vrot.lane.b32.xlu0 %v2954, 8
    %v2996 = vpop.permute.xlu0 %2995
    %2997 = vrot.lane.b32.xlu0 %v2957, 8
    %v2998 = vpop.permute.xlu0 %2997
    %2999 = vrot.lane.b32.xlu0 %v2960, 8
    %v3000 = vpop.permute.xlu0 %2999
    %3001 = vrot.lane.b32.xlu0 %v2963, 8
    %v3002 = vpop.permute.xlu0 %3001
    %3003 = vrot.lane.b32.xlu0 %v2966, 8
    %v3004 = vpop.permute.xlu0 %3003
    %3005 = vrot.lane.b32.xlu0 %v2969, 8
    %v3006 = vpop.permute.xlu0 %3005
    %3007 = vrot.lane.b32.xlu0 %v2972, 8
    %v3008 = vpop.permute.xlu0 %3007
    %3009 = vrot.lane.b32.xlu0 %v2975, 8
    %v3010 = vpop.permute.xlu0 %3009
    %3011 = vrot.lane.b32.xlu0 %v2978, 8
    %v3012 = vpop.permute.xlu0 %3011
    %3013 = vrot.lane.b32.xlu0 %v2981, 8
    %v3014 = vpop.permute.xlu0 %3013
    %3015 = vrot.lane.b32.xlu0 %v2984, 8
    %v3016 = vpop.permute.xlu0 %3015
    %v3049 = vunpack.c.l.b16 %v2408
    %v3050 = vunpack.c.l.b16 %v2409
    %v3051 = vunpack.c.l.b16 %v2410
    %v3052 = vunpack.c.l.b16 %v2411
    %v3053 = vunpack.c.l.b16 %v2412
    %v3054 = vunpack.c.l.b16 %v2413
    %v3055 = vunpack.c.l.b16 %v2414
    %v3056 = vunpack.c.l.b16 %v2415
    %v3057 = vunpack.c.l.b16 %v2416
    %v3058 = vunpack.c.l.b16 %v2417
    %v3059 = vunpack.c.l.b16 %v2418
    %v3060 = vunpack.c.l.b16 %v2419
    %v3061 = vunpack.c.l.b16 %v2420
    %v3062 = vunpack.c.l.b16 %v2421
    %v3063 = vunpack.c.l.b16 %v2422
    %v3064 = vunpack.c.l.b16 %v2423
    %v3065 = vunpack.c.l.b16 %v2424
    %v3066 = vunpack.c.l.b16 %v2425
    %v3067 = vunpack.c.l.b16 %v2426
    %v3068 = vunpack.c.l.b16 %v2427
    %v3069 = vunpack.c.l.b16 %v2428
    %v3070 = vunpack.c.l.b16 %v2429
    %v3071 = vunpack.c.l.b16 %v2430
    %v3072 = vunpack.c.l.b16 %v2431
    %v3073 = vunpack.c.l.b16 %v2432
    %v3074 = vunpack.c.l.b16 %v2433
    %v3075 = vunpack.c.l.b16 %v2434
    %v3076 = vunpack.c.l.b16 %v2435
    %v3077 = vunpack.c.l.b16 %v2436
    %v3078 = vunpack.c.l.b16 %v2437
    %v3079 = vunpack.c.l.b16 %v2438
    %v3080 = vunpack.c.l.b16 %v2439
    %v3081 = vpack.c.b16 %v3050, %v3049
    %v3082 = vpack.c.b16 %v3052, %v3051
    %v3083 = vpack.c.b16 %v3054, %v3053
    %v3084 = vpack.c.b16 %v3056, %v3055
    %v3085 = vpack.c.b16 %v3058, %v3057
    %v3086 = vpack.c.b16 %v3060, %v3059
    %v3087 = vpack.c.b16 %v3062, %v3061
    %v3088 = vpack.c.b16 %v3064, %v3063
    %v3089 = vpack.c.b16 %v3066, %v3065
    %v3090 = vpack.c.b16 %v3068, %v3067
    %v3091 = vpack.c.b16 %v3070, %v3069
    %v3092 = vpack.c.b16 %v3072, %v3071
    %v3093 = vpack.c.b16 %v3074, %v3073
    %v3094 = vpack.c.b16 %v3076, %v3075
    %v3095 = vpack.c.b16 %v3078, %v3077
    %v3096 = vpack.c.b16 %v3080, %v3079
    %3097 = vrot.lane.b32.xlu0 %v3081, 12
    %v3098 = vpop.permute.xlu0 %3097
    %3099 = vrot.lane.b32.xlu0 %v3082, 12
    %v3100 = vpop.permute.xlu0 %3099
    %3101 = vrot.lane.b32.xlu0 %v3083, 12
    %v3102 = vpop.permute.xlu0 %3101
    %3103 = vrot.lane.b32.xlu0 %v3084, 12
    %v3104 = vpop.permute.xlu0 %3103
    %3105 = vrot.lane.b32.xlu0 %v3085, 12
    %v3106 = vpop.permute.xlu0 %3105
    %3107 = vrot.lane.b32.xlu0 %v3086, 12
    %v3108 = vpop.permute.xlu0 %3107
    %3109 = vrot.lane.b32.xlu0 %v3087, 12
    %v3110 = vpop.permute.xlu0 %3109
    %3111 = vrot.lane.b32.xlu0 %v3088, 12
    %v3112 = vpop.permute.xlu0 %3111
    %3113 = vrot.lane.b32.xlu0 %v3089, 12
    %v3114 = vpop.permute.xlu0 %3113
    %3115 = vrot.lane.b32.xlu0 %v3090, 12
    %v3116 = vpop.permute.xlu0 %3115
    %3117 = vrot.lane.b32.xlu0 %v3091, 12
    %v3118 = vpop.permute.xlu0 %3117
    %3119 = vrot.lane.b32.xlu0 %v3092, 12
    %v3120 = vpop.permute.xlu0 %3119
    %3121 = vrot.lane.b32.xlu0 %v3093, 12
    %v3122 = vpop.permute.xlu0 %3121
    %3123 = vrot.lane.b32.xlu0 %v3094, 12
    %v3124 = vpop.permute.xlu0 %3123
    %3125 = vrot.lane.b32.xlu0 %v3095, 12
    %v3126 = vpop.permute.xlu0 %3125
    %3127 = vrot.lane.b32.xlu0 %v3096, 12
    %v3128 = vpop.permute.xlu0 %3127
    %v3145 = vunpack.c.l.b16 %v2440
    %v3146 = vunpack.c.l.b16 %v2441
    %v3147 = vunpack.c.l.b16 %v2442
    %v3148 = vunpack.c.l.b16 %v2443
    %v3149 = vunpack.c.l.b16 %v2444
    %v3150 = vunpack.c.l.b16 %v2445
    %v3151 = vunpack.c.l.b16 %v2446
    %v3152 = vunpack.c.l.b16 %v2447
    %v3153 = vunpack.c.l.b16 %v2448
    %v3154 = vunpack.c.l.b16 %v2449
    %v3155 = vunpack.c.l.b16 %v2450
    %v3156 = vunpack.c.l.b16 %v2451
    %v3157 = vunpack.c.l.b16 %v2452
    %v3158 = vunpack.c.l.b16 %v2453
    %v3159 = vunpack.c.l.b16 %v2454
    %v3160 = vunpack.c.l.b16 %v2455
    %v3161 = vpack.c.b16 %v3145, %v3145
    %v3162 = vpack.c.b16 %v3146, %v3146
    %v3163 = vpack.c.b16 %v3147, %v3147
    %v3164 = vpack.c.b16 %v3148, %v3148
    %v3165 = vpack.c.b16 %v3149, %v3149
    %v3166 = vpack.c.b16 %v3150, %v3150
    %v3167 = vpack.c.b16 %v3151, %v3151
    %v3168 = vpack.c.b16 %v3152, %v3152
    %v3169 = vpack.c.b16 %v3153, %v3153
    %v3170 = vpack.c.b16 %v3154, %v3154
    %v3171 = vpack.c.b16 %v3155, %v3155
    %v3172 = vpack.c.b16 %v3156, %v3156
    %v3173 = vpack.c.b16 %v3157, %v3157
    %v3174 = vpack.c.b16 %v3158, %v3158
    %v3175 = vpack.c.b16 %v3159, %v3159
    %v3176 = vpack.c.b16 %v3160, %v3160
    %v3178 = vshrl.u32 %v3081, 16
    %v3180 = vshll.u32 %v3081, 16
    %v3182 = vrot.slane %v3180, 1
    %v3183 = vor.u32 %v3178, %v3182
    %v3185 = vshll.u32 %v3161, 16
    %v3187 = vrot.slane %v3185, 1
    %v3188 = vsel %vm335, %v3183, %v3187
    %v3190 = vshrl.u32 %v3082, 16
    %v3192 = vshll.u32 %v3082, 16
    %v3194 = vrot.slane %v3192, 1
    %v3195 = vor.u32 %v3190, %v3194
    %v3197 = vshll.u32 %v3162, 16
    %v3199 = vrot.slane %v3197, 1
    %v3200 = vsel %vm335, %v3195, %v3199
    %v3202 = vshrl.u32 %v3083, 16
    %v3204 = vshll.u32 %v3083, 16
    %v3206 = vrot.slane %v3204, 1
    %v3207 = vor.u32 %v3202, %v3206
    %v3209 = vshll.u32 %v3163, 16
    %v3211 = vrot.slane %v3209, 1
    %v3212 = vsel %vm335, %v3207, %v3211
    %v3214 = vshrl.u32 %v3084, 16
    %v3216 = vshll.u32 %v3084, 16
    %v3218 = vrot.slane %v3216, 1
    %v3219 = vor.u32 %v3214, %v3218
    %v3221 = vshll.u32 %v3164, 16
    %v3223 = vrot.slane %v3221, 1
    %v3224 = vsel %vm335, %v3219, %v3223
    %v3226 = vshrl.u32 %v3085, 16
    %v3228 = vshll.u32 %v3085, 16
    %v3230 = vrot.slane %v3228, 1
    %v3231 = vor.u32 %v3226, %v3230
    %v3233 = vshll.u32 %v3165, 16
    %v3235 = vrot.slane %v3233, 1
    %v3236 = vsel %vm335, %v3231, %v3235
    %v3238 = vshrl.u32 %v3086, 16
    %v3240 = vshll.u32 %v3086, 16
    %v3242 = vrot.slane %v3240, 1
    %v3243 = vor.u32 %v3238, %v3242
    %v3245 = vshll.u32 %v3166, 16
    %v3247 = vrot.slane %v3245, 1
    %v3248 = vsel %vm335, %v3243, %v3247
    %v3250 = vshrl.u32 %v3087, 16
    %v3252 = vshll.u32 %v3087, 16
    %v3254 = vrot.slane %v3252, 1
    %v3255 = vor.u32 %v3250, %v3254
    %v3257 = vshll.u32 %v3167, 16
    %v3259 = vrot.slane %v3257, 1
    %v3260 = vsel %vm335, %v3255, %v3259
    %v3262 = vshrl.u32 %v3088, 16
    %v3264 = vshll.u32 %v3088, 16
    %v3266 = vrot.slane %v3264, 1
    %v3267 = vor.u32 %v3262, %v3266
    %v3269 = vshll.u32 %v3168, 16
    %v3271 = vrot.slane %v3269, 1
    %v3272 = vsel %vm335, %v3267, %v3271
    %v3274 = vshrl.u32 %v3089, 16
    %v3276 = vshll.u32 %v3089, 16
    %v3278 = vrot.slane %v3276, 1
    %v3279 = vor.u32 %v3274, %v3278
    %v3281 = vshll.u32 %v3169, 16
    %v3283 = vrot.slane %v3281, 1
    %v3284 = vsel %vm335, %v3279, %v3283
    %v3286 = vshrl.u32 %v3090, 16
    %v3288 = vshll.u32 %v3090, 16
    %v3290 = vrot.slane %v3288, 1
    %v3291 = vor.u32 %v3286, %v3290
    %v3293 = vshll.u32 %v3170, 16
    %v3295 = vrot.slane %v3293, 1
    %v3296 = vsel %vm335, %v3291, %v3295
    %v3298 = vshrl.u32 %v3091, 16
    %v3300 = vshll.u32 %v3091, 16
    %v3302 = vrot.slane %v3300, 1
    %v3303 = vor.u32 %v3298, %v3302
    %v3305 = vshll.u32 %v3171, 16
    %v3307 = vrot.slane %v3305, 1
    %v3308 = vsel %vm335, %v3303, %v3307
    %v3310 = vshrl.u32 %v3092, 16
    %v3312 = vshll.u32 %v3092, 16
    %v3314 = vrot.slane %v3312, 1
    %v3315 = vor.u32 %v3310, %v3314
    %v3317 = vshll.u32 %v3172, 16
    %v3319 = vrot.slane %v3317, 1
    %v3320 = vsel %vm335, %v3315, %v3319
    %v3322 = vshrl.u32 %v3093, 16
    %v3324 = vshll.u32 %v3093, 16
    %v3326 = vrot.slane %v3324, 1
    %v3327 = vor.u32 %v3322, %v3326
    %v3329 = vshll.u32 %v3173, 16
    %v3331 = vrot.slane %v3329, 1
    %v3332 = vsel %vm335, %v3327, %v3331
    %v3334 = vshrl.u32 %v3094, 16
    %v3336 = vshll.u32 %v3094, 16
    %v3338 = vrot.slane %v3336, 1
    %v3339 = vor.u32 %v3334, %v3338
    %v3341 = vshll.u32 %v3174, 16
    %v3343 = vrot.slane %v3341, 1
    %v3344 = vsel %vm335, %v3339, %v3343
    %v3346 = vshrl.u32 %v3095, 16
    %v3348 = vshll.u32 %v3095, 16
    %v3350 = vrot.slane %v3348, 1
    %v3351 = vor.u32 %v3346, %v3350
    %v3353 = vshll.u32 %v3175, 16
    %v3355 = vrot.slane %v3353, 1
    %v3356 = vsel %vm335, %v3351, %v3355
    %v3358 = vshrl.u32 %v3096, 16
    %v3360 = vshll.u32 %v3096, 16
    %v3362 = vrot.slane %v3360, 1
    %v3363 = vor.u32 %v3358, %v3362
    %v3365 = vshll.u32 %v3176, 16
    %v3367 = vrot.slane %v3365, 1
    %v3368 = vsel %vm335, %v3363, %v3367
    %3369 = vrot.lane.b32.xlu0 %v3188, 16
    %v3370 = vpop.permute.xlu0 %3369
    %3371 = vrot.lane.b32.xlu0 %v3200, 16
    %v3372 = vpop.permute.xlu0 %3371
    %3373 = vrot.lane.b32.xlu0 %v3212, 16
    %v3374 = vpop.permute.xlu0 %3373
    %3375 = vrot.lane.b32.xlu0 %v3224, 16
    %v3376 = vpop.permute.xlu0 %3375
    %3377 = vrot.lane.b32.xlu0 %v3236, 16
    %v3378 = vpop.permute.xlu0 %3377
    %3379 = vrot.lane.b32.xlu0 %v3248, 16
    %v3380 = vpop.permute.xlu0 %3379
    %3381 = vrot.lane.b32.xlu0 %v3260, 16
    %v3382 = vpop.permute.xlu0 %3381
    %3383 = vrot.lane.b32.xlu0 %v3272, 16
    %v3384 = vpop.permute.xlu0 %3383
    %3385 = vrot.lane.b32.xlu0 %v3284, 16
    %v3386 = vpop.permute.xlu0 %3385
    %3387 = vrot.lane.b32.xlu0 %v3296, 16
    %v3388 = vpop.permute.xlu0 %3387
    %3389 = vrot.lane.b32.xlu0 %v3308, 16
    %v3390 = vpop.permute.xlu0 %3389
    %3391 = vrot.lane.b32.xlu0 %v3320, 16
    %v3392 = vpop.permute.xlu0 %3391
    %3393 = vrot.lane.b32.xlu0 %v3332, 16
    %v3394 = vpop.permute.xlu0 %3393
    %3395 = vrot.lane.b32.xlu0 %v3344, 16
    %v3396 = vpop.permute.xlu0 %3395
    %3397 = vrot.lane.b32.xlu0 %v3356, 16
    %v3398 = vpop.permute.xlu0 %3397
    %3399 = vrot.lane.b32.xlu0 %v3368, 16
    %v3400 = vpop.permute.xlu0 %3399
    %v3417 = vunpack.c.l.b16 %v2456
    %v3418 = vunpack.c.l.b16 %v2457
    %v3419 = vunpack.c.l.b16 %v2458
    %v3420 = vunpack.c.l.b16 %v2459
    %v3421 = vunpack.c.l.b16 %v2460
    %v3422 = vunpack.c.l.b16 %v2461
    %v3423 = vunpack.c.l.b16 %v2462
    %v3424 = vunpack.c.l.b16 %v2463
    %v3425 = vunpack.c.l.b16 %v2464
    %v3426 = vunpack.c.l.b16 %v2465
    %v3427 = vunpack.c.l.b16 %v2466
    %v3428 = vunpack.c.l.b16 %v2467
    %v3429 = vunpack.c.l.b16 %v2468
    %v3430 = vunpack.c.l.b16 %v2469
    %v3431 = vunpack.c.l.b16 %v2470
    %v3432 = vunpack.c.l.b16 %v2471
    %v3433 = vpack.c.b16 %v3050, %v3417
    %v3434 = vpack.c.b16 %v3052, %v3418
    %v3435 = vpack.c.b16 %v3054, %v3419
    %v3436 = vpack.c.b16 %v3056, %v3420
    %v3437 = vpack.c.b16 %v3058, %v3421
    %v3438 = vpack.c.b16 %v3060, %v3422
    %v3439 = vpack.c.b16 %v3062, %v3423
    %v3440 = vpack.c.b16 %v3064, %v3424
    %v3441 = vpack.c.b16 %v3066, %v3425
    %v3442 = vpack.c.b16 %v3068, %v3426
    %v3443 = vpack.c.b16 %v3070, %v3427
    %v3444 = vpack.c.b16 %v3072, %v3428
    %v3445 = vpack.c.b16 %v3074, %v3429
    %v3446 = vpack.c.b16 %v3076, %v3430
    %v3447 = vpack.c.b16 %v3078, %v3431
    %v3448 = vpack.c.b16 %v3080, %v3432
    %v3449 = vrot.slane %v3433, 1
    %v3450 = vrot.slane %v3161, 1
    %v3451 = vsel %vm608, %v3449, %v3450
    %v3452 = vrot.slane %v3434, 1
    %v3453 = vrot.slane %v3162, 1
    %v3454 = vsel %vm608, %v3452, %v3453
    %v3455 = vrot.slane %v3435, 1
    %v3456 = vrot.slane %v3163, 1
    %v3457 = vsel %vm608, %v3455, %v3456
    %v3458 = vrot.slane %v3436, 1
    %v3459 = vrot.slane %v3164, 1
    %v3460 = vsel %vm608, %v3458, %v3459
    %v3461 = vrot.slane %v3437, 1
    %v3462 = vrot.slane %v3165, 1
    %v3463 = vsel %vm608, %v3461, %v3462
    %v3464 = vrot.slane %v3438, 1
    %v3465 = vrot.slane %v3166, 1
    %v3466 = vsel %vm608, %v3464, %v3465
    %v3467 = vrot.slane %v3439, 1
    %v3468 = vrot.slane %v3167, 1
    %v3469 = vsel %vm608, %v3467, %v3468
    %v3470 = vrot.slane %v3440, 1
    %v3471 = vrot.slane %v3168, 1
    %v3472 = vsel %vm608, %v3470, %v3471
    %v3473 = vrot.slane %v3441, 1
    %v3474 = vrot.slane %v3169, 1
    %v3475 = vsel %vm608, %v3473, %v3474
    %v3476 = vrot.slane %v3442, 1
    %v3477 = vrot.slane %v3170, 1
    %v3478 = vsel %vm608, %v3476, %v3477
    %v3479 = vrot.slane %v3443, 1
    %v3480 = vrot.slane %v3171, 1
    %v3481 = vsel %vm608, %v3479, %v3480
    %v3482 = vrot.slane %v3444, 1
    %v3483 = vrot.slane %v3172, 1
    %v3484 = vsel %vm608, %v3482, %v3483
    %v3485 = vrot.slane %v3445, 1
    %v3486 = vrot.slane %v3173, 1
    %v3487 = vsel %vm608, %v3485, %v3486
    %v3488 = vrot.slane %v3446, 1
    %v3489 = vrot.slane %v3174, 1
    %v3490 = vsel %vm608, %v3488, %v3489
    %v3491 = vrot.slane %v3447, 1
    %v3492 = vrot.slane %v3175, 1
    %v3493 = vsel %vm608, %v3491, %v3492
    %v3494 = vrot.slane %v3448, 1
    %v3495 = vrot.slane %v3176, 1
    %v3496 = vsel %vm608, %v3494, %v3495
    %3497 = vrot.lane.b32.xlu0 %v3451, 20
    %v3498 = vpop.permute.xlu0 %3497
    %3499 = vrot.lane.b32.xlu0 %v3454, 20
    %v3500 = vpop.permute.xlu0 %3499
    %3501 = vrot.lane.b32.xlu0 %v3457, 20
    %v3502 = vpop.permute.xlu0 %3501
    %3503 = vrot.lane.b32.xlu0 %v3460, 20
    %v3504 = vpop.permute.xlu0 %3503
    %3505 = vrot.lane.b32.xlu0 %v3463, 20
    %v3506 = vpop.permute.xlu0 %3505
    %3507 = vrot.lane.b32.xlu0 %v3466, 20
    %v3508 = vpop.permute.xlu0 %3507
    %3509 = vrot.lane.b32.xlu0 %v3469, 20
    %v3510 = vpop.permute.xlu0 %3509
    %3511 = vrot.lane.b32.xlu0 %v3472, 20
    %v3512 = vpop.permute.xlu0 %3511
    %3513 = vrot.lane.b32.xlu0 %v3475, 20
    %v3514 = vpop.permute.xlu0 %3513
    %3515 = vrot.lane.b32.xlu0 %v3478, 20
    %v3516 = vpop.permute.xlu0 %3515
    %3517 = vrot.lane.b32.xlu0 %v3481, 20
    %v3518 = vpop.permute.xlu0 %3517
    %3519 = vrot.lane.b32.xlu0 %v3484, 20
    %v3520 = vpop.permute.xlu0 %3519
    %3521 = vrot.lane.b32.xlu0 %v3487, 20
    %v3522 = vpop.permute.xlu0 %3521
    %3523 = vrot.lane.b32.xlu0 %v3490, 20
    %v3524 = vpop.permute.xlu0 %3523
    %3525 = vrot.lane.b32.xlu0 %v3493, 20
    %v3526 = vpop.permute.xlu0 %3525
    %3527 = vrot.lane.b32.xlu0 %v3496, 20
    %v3528 = vpop.permute.xlu0 %3527
    %v3561 = vunpack.c.l.b16 %v2473
    %v3562 = vunpack.c.l.b16 %v2474
    %v3563 = vunpack.c.l.b16 %v2475
    %v3564 = vunpack.c.l.b16 %v2476
    %v3565 = vunpack.c.l.b16 %v2477
    %v3566 = vunpack.c.l.b16 %v2478
    %v3567 = vunpack.c.l.b16 %v2479
    %v3568 = vunpack.c.l.b16 %v2480
    %v3569 = vunpack.c.l.b16 %v2481
    %v3570 = vunpack.c.l.b16 %v2482
    %v3571 = vunpack.c.l.b16 %v2483
    %v3572 = vunpack.c.l.b16 %v2484
    %v3573 = vunpack.c.l.b16 %v2485
    %v3574 = vunpack.c.l.b16 %v2486
    %v3575 = vunpack.c.l.b16 %v2487
    %v3576 = vunpack.c.l.b16 %v2488
    %v3577 = vunpack.c.l.b16 %v2489
    %v3578 = vunpack.c.l.b16 %v2490
    %v3579 = vunpack.c.l.b16 %v2491
    %v3580 = vunpack.c.l.b16 %v2492
    %v3581 = vunpack.c.l.b16 %v2493
    %v3582 = vunpack.c.l.b16 %v2494
    %v3583 = vunpack.c.l.b16 %v2495
    %v3584 = vunpack.c.l.b16 %v2496
    %v3585 = vunpack.c.l.b16 %v2497
    %v3586 = vunpack.c.l.b16 %v2498
    %v3587 = vunpack.c.l.b16 %v2499
    %v3588 = vunpack.c.l.b16 %v2500
    %v3589 = vunpack.c.l.b16 %v2501
    %v3590 = vunpack.c.l.b16 %v2502
    %v3591 = vunpack.c.l.b16 %v2503
    %v3592 = vunpack.c.l.b16 %v2504
    %v3593 = vpack.c.b16 %v3562, %v3561
    %v3594 = vpack.c.b16 %v3564, %v3563
    %v3595 = vpack.c.b16 %v3566, %v3565
    %v3596 = vpack.c.b16 %v3568, %v3567
    %v3597 = vpack.c.b16 %v3570, %v3569
    %v3598 = vpack.c.b16 %v3572, %v3571
    %v3599 = vpack.c.b16 %v3574, %v3573
    %v3600 = vpack.c.b16 %v3576, %v3575
    %v3601 = vpack.c.b16 %v3578, %v3577
    %v3602 = vpack.c.b16 %v3580, %v3579
    %v3603 = vpack.c.b16 %v3582, %v3581
    %v3604 = vpack.c.b16 %v3584, %v3583
    %v3605 = vpack.c.b16 %v3586, %v3585
    %v3606 = vpack.c.b16 %v3588, %v3587
    %v3607 = vpack.c.b16 %v3590, %v3589
    %v3608 = vpack.c.b16 %v3592, %v3591
    %3609 = vrot.lane.b32.xlu0 %v3593, 24
    %v3610 = vpop.permute.xlu0 %3609
    %3611 = vrot.lane.b32.xlu0 %v3594, 24
    %v3612 = vpop.permute.xlu0 %3611
    %3613 = vrot.lane.b32.xlu0 %v3595, 24
    %v3614 = vpop.permute.xlu0 %3613
    %3615 = vrot.lane.b32.xlu0 %v3596, 24
    %v3616 = vpop.permute.xlu0 %3615
    %3617 = vrot.lane.b32.xlu0 %v3597, 24
    %v3618 = vpop.permute.xlu0 %3617
    %3619 = vrot.lane.b32.xlu0 %v3598, 24
    %v3620 = vpop.permute.xlu0 %3619
    %3621 = vrot.lane.b32.xlu0 %v3599, 24
    %v3622 = vpop.permute.xlu0 %3621
    %3623 = vrot.lane.b32.xlu0 %v3600, 24
    %v3624 = vpop.permute.xlu0 %3623
    %3625 = vrot.lane.b32.xlu0 %v3601, 24
    %v3626 = vpop.permute.xlu0 %3625
    %3627 = vrot.lane.b32.xlu0 %v3602, 24
    %v3628 = vpop.permute.xlu0 %3627
    %3629 = vrot.lane.b32.xlu0 %v3603, 24
    %v3630 = vpop.permute.xlu0 %3629
    %3631 = vrot.lane.b32.xlu0 %v3604, 24
    %v3632 = vpop.permute.xlu0 %3631
    %3633 = vrot.lane.b32.xlu0 %v3605, 24
    %v3634 = vpop.permute.xlu0 %3633
    %3635 = vrot.lane.b32.xlu0 %v3606, 24
    %v3636 = vpop.permute.xlu0 %3635
    %3637 = vrot.lane.b32.xlu0 %v3607, 24
    %v3638 = vpop.permute.xlu0 %3637
    %3639 = vrot.lane.b32.xlu0 %v3608, 24
    %v3640 = vpop.permute.xlu0 %3639
    %v3657 = vunpack.c.l.b16 %v2505
    %v3658 = vunpack.c.l.b16 %v2506
    %v3659 = vunpack.c.l.b16 %v2507
    %v3660 = vunpack.c.l.b16 %v2508
    %v3661 = vunpack.c.l.b16 %v2509
    %v3662 = vunpack.c.l.b16 %v2510
    %v3663 = vunpack.c.l.b16 %v2511
    %v3664 = vunpack.c.l.b16 %v2512
    %v3665 = vunpack.c.l.b16 %v2513
    %v3666 = vunpack.c.l.b16 %v2514
    %v3667 = vunpack.c.l.b16 %v2515
    %v3668 = vunpack.c.l.b16 %v2516
    %v3669 = vunpack.c.l.b16 %v2517
    %v3670 = vunpack.c.l.b16 %v2518
    %v3671 = vunpack.c.l.b16 %v2519
    %v3672 = vunpack.c.l.b16 %v2520
    %v3673 = vpack.c.b16 %v3657, %v3657
    %v3674 = vpack.c.b16 %v3658, %v3658
    %v3675 = vpack.c.b16 %v3659, %v3659
    %v3676 = vpack.c.b16 %v3660, %v3660
    %v3677 = vpack.c.b16 %v3661, %v3661
    %v3678 = vpack.c.b16 %v3662, %v3662
    %v3679 = vpack.c.b16 %v3663, %v3663
    %v3680 = vpack.c.b16 %v3664, %v3664
    %v3681 = vpack.c.b16 %v3665, %v3665
    %v3682 = vpack.c.b16 %v3666, %v3666
    %v3683 = vpack.c.b16 %v3667, %v3667
    %v3684 = vpack.c.b16 %v3668, %v3668
    %v3685 = vpack.c.b16 %v3669, %v3669
    %v3686 = vpack.c.b16 %v3670, %v3670
    %v3687 = vpack.c.b16 %v3671, %v3671
    %v3688 = vpack.c.b16 %v3672, %v3672
    %v3690 = vshrl.u32 %v3593, 16
    %v3692 = vshll.u32 %v3593, 16
    %v3694 = vrot.slane %v3692, 1
    %v3695 = vor.u32 %v3690, %v3694
    %v3697 = vshll.u32 %v3673, 16
    %v3699 = vrot.slane %v3697, 1
    %v3700 = vsel %vm335, %v3695, %v3699
    %v3702 = vshrl.u32 %v3594, 16
    %v3704 = vshll.u32 %v3594, 16
    %v3706 = vrot.slane %v3704, 1
    %v3707 = vor.u32 %v3702, %v3706
    %v3709 = vshll.u32 %v3674, 16
    %v3711 = vrot.slane %v3709, 1
    %v3712 = vsel %vm335, %v3707, %v3711
    %v3714 = vshrl.u32 %v3595, 16
    %v3716 = vshll.u32 %v3595, 16
    %v3718 = vrot.slane %v3716, 1
    %v3719 = vor.u32 %v3714, %v3718
    %v3721 = vshll.u32 %v3675, 16
    %v3723 = vrot.slane %v3721, 1
    %v3724 = vsel %vm335, %v3719, %v3723
    %v3726 = vshrl.u32 %v3596, 16
    %v3728 = vshll.u32 %v3596, 16
    %v3730 = vrot.slane %v3728, 1
    %v3731 = vor.u32 %v3726, %v3730
    %v3733 = vshll.u32 %v3676, 16
    %v3735 = vrot.slane %v3733, 1
    %v3736 = vsel %vm335, %v3731, %v3735
    %v3738 = vshrl.u32 %v3597, 16
    %v3740 = vshll.u32 %v3597, 16
    %v3742 = vrot.slane %v3740, 1
    %v3743 = vor.u32 %v3738, %v3742
    %v3745 = vshll.u32 %v3677, 16
    %v3747 = vrot.slane %v3745, 1
    %v3748 = vsel %vm335, %v3743, %v3747
    %v3750 = vshrl.u32 %v3598, 16
    %v3752 = vshll.u32 %v3598, 16
    %v3754 = vrot.slane %v3752, 1
    %v3755 = vor.u32 %v3750, %v3754
    %v3757 = vshll.u32 %v3678, 16
    %v3759 = vrot.slane %v3757, 1
    %v3760 = vsel %vm335, %v3755, %v3759
    %v3762 = vshrl.u32 %v3599, 16
    %v3764 = vshll.u32 %v3599, 16
    %v3766 = vrot.slane %v3764, 1
    %v3767 = vor.u32 %v3762, %v3766
    %v3769 = vshll.u32 %v3679, 16
    %v3771 = vrot.slane %v3769, 1
    %v3772 = vsel %vm335, %v3767, %v3771
    %v3774 = vshrl.u32 %v3600, 16
    %v3776 = vshll.u32 %v3600, 16
    %v3778 = vrot.slane %v3776, 1
    %v3779 = vor.u32 %v3774, %v3778
    %v3781 = vshll.u32 %v3680, 16
    %v3783 = vrot.slane %v3781, 1
    %v3784 = vsel %vm335, %v3779, %v3783
    %v3786 = vshrl.u32 %v3601, 16
    %v3788 = vshll.u32 %v3601, 16
    %v3790 = vrot.slane %v3788, 1
    %v3791 = vor.u32 %v3786, %v3790
    %v3793 = vshll.u32 %v3681, 16
    %v3795 = vrot.slane %v3793, 1
    %v3796 = vsel %vm335, %v3791, %v3795
    %v3798 = vshrl.u32 %v3602, 16
    %v3800 = vshll.u32 %v3602, 16
    %v3802 = vrot.slane %v3800, 1
    %v3803 = vor.u32 %v3798, %v3802
    %v3805 = vshll.u32 %v3682, 16
    %v3807 = vrot.slane %v3805, 1
    %v3808 = vsel %vm335, %v3803, %v3807
    %v3810 = vshrl.u32 %v3603, 16
    %v3812 = vshll.u32 %v3603, 16
    %v3814 = vrot.slane %v3812, 1
    %v3815 = vor.u32 %v3810, %v3814
    %v3817 = vshll.u32 %v3683, 16
    %v3819 = vrot.slane %v3817, 1
    %v3820 = vsel %vm335, %v3815, %v3819
    %v3822 = vshrl.u32 %v3604, 16
    %v3824 = vshll.u32 %v3604, 16
    %v3826 = vrot.slane %v3824, 1
    %v3827 = vor.u32 %v3822, %v3826
    %v3829 = vshll.u32 %v3684, 16
    %v3831 = vrot.slane %v3829, 1
    %v3832 = vsel %vm335, %v3827, %v3831
    %v3834 = vshrl.u32 %v3605, 16
    %v3836 = vshll.u32 %v3605, 16
    %v3838 = vrot.slane %v3836, 1
    %v3839 = vor.u32 %v3834, %v3838
    %v3841 = vshll.u32 %v3685, 16
    %v3843 = vrot.slane %v3841, 1
    %v3844 = vsel %vm335, %v3839, %v3843
    %v3846 = vshrl.u32 %v3606, 16
    %v3848 = vshll.u32 %v3606, 16
    %v3850 = vrot.slane %v3848, 1
    %v3851 = vor.u32 %v3846, %v3850
    %v3853 = vshll.u32 %v3686, 16
    %v3855 = vrot.slane %v3853, 1
    %v3856 = vsel %vm335, %v3851, %v3855
    %v3858 = vshrl.u32 %v3607, 16
    %v3860 = vshll.u32 %v3607, 16
    %v3862 = vrot.slane %v3860, 1
    %v3863 = vor.u32 %v3858, %v3862
    %v3865 = vshll.u32 %v3687, 16
    %v3867 = vrot.slane %v3865, 1
    %v3868 = vsel %vm335, %v3863, %v3867
    %v3870 = vshrl.u32 %v3608, 16
    %v3872 = vshll.u32 %v3608, 16
    %v3874 = vrot.slane %v3872, 1
    %v3875 = vor.u32 %v3870, %v3874
    %v3877 = vshll.u32 %v3688, 16
    %v3879 = vrot.slane %v3877, 1
    %v3880 = vsel %vm335, %v3875, %v3879
    %3881 = vrot.lane.b32.xlu0 %v3700, 28
    %v3882 = vpop.permute.xlu0 %3881
    %3883 = vrot.lane.b32.xlu0 %v3712, 28
    %v3884 = vpop.permute.xlu0 %3883
    %3885 = vrot.lane.b32.xlu0 %v3724, 28
    %v3886 = vpop.permute.xlu0 %3885
    %3887 = vrot.lane.b32.xlu0 %v3736, 28
    %v3888 = vpop.permute.xlu0 %3887
    %3889 = vrot.lane.b32.xlu0 %v3748, 28
    %v3890 = vpop.permute.xlu0 %3889
    %3891 = vrot.lane.b32.xlu0 %v3760, 28
    %v3892 = vpop.permute.xlu0 %3891
    %3893 = vrot.lane.b32.xlu0 %v3772, 28
    %v3894 = vpop.permute.xlu0 %3893
    %3895 = vrot.lane.b32.xlu0 %v3784, 28
    %v3896 = vpop.permute.xlu0 %3895
    %3897 = vrot.lane.b32.xlu0 %v3796, 28
    %v3898 = vpop.permute.xlu0 %3897
    %3899 = vrot.lane.b32.xlu0 %v3808, 28
    %v3900 = vpop.permute.xlu0 %3899
    %3901 = vrot.lane.b32.xlu0 %v3820, 28
    %v3902 = vpop.permute.xlu0 %3901
    %3903 = vrot.lane.b32.xlu0 %v3832, 28
    %v3904 = vpop.permute.xlu0 %3903
    %3905 = vrot.lane.b32.xlu0 %v3844, 28
    %v3906 = vpop.permute.xlu0 %3905
    %3907 = vrot.lane.b32.xlu0 %v3856, 28
    %v3908 = vpop.permute.xlu0 %3907
    %3909 = vrot.lane.b32.xlu0 %v3868, 28
    %v3910 = vpop.permute.xlu0 %3909
    %3911 = vrot.lane.b32.xlu0 %v3880, 28
    %v3912 = vpop.permute.xlu0 %3911
    %v3929 = vunpack.c.l.b16 %v2521
    %v3930 = vunpack.c.l.b16 %v2522
    %v3931 = vunpack.c.l.b16 %v2523
    %v3932 = vunpack.c.l.b16 %v2524
    %v3933 = vunpack.c.l.b16 %v2525
    %v3934 = vunpack.c.l.b16 %v2526
    %v3935 = vunpack.c.l.b16 %v2527
    %v3936 = vunpack.c.l.b16 %v2528
    %v3937 = vunpack.c.l.b16 %v2529
    %v3938 = vunpack.c.l.b16 %v2530
    %v3939 = vunpack.c.l.b16 %v2531
    %v3940 = vunpack.c.l.b16 %v2532
    %v3941 = vunpack.c.l.b16 %v2533
    %v3942 = vunpack.c.l.b16 %v2534
    %v3943 = vunpack.c.l.b16 %v2535
    %v3944 = vunpack.c.l.b16 %v2536
    %v3945 = vpack.c.b16 %v3562, %v3929
    %v3946 = vpack.c.b16 %v3564, %v3930
    %v3947 = vpack.c.b16 %v3566, %v3931
    %v3948 = vpack.c.b16 %v3568, %v3932
    %v3949 = vpack.c.b16 %v3570, %v3933
    %v3950 = vpack.c.b16 %v3572, %v3934
    %v3951 = vpack.c.b16 %v3574, %v3935
    %v3952 = vpack.c.b16 %v3576, %v3936
    %v3953 = vpack.c.b16 %v3578, %v3937
    %v3954 = vpack.c.b16 %v3580, %v3938
    %v3955 = vpack.c.b16 %v3582, %v3939
    %v3956 = vpack.c.b16 %v3584, %v3940
    %v3957 = vpack.c.b16 %v3586, %v3941
    %v3958 = vpack.c.b16 %v3588, %v3942
    %v3959 = vpack.c.b16 %v3590, %v3943
    %v3960 = vpack.c.b16 %v3592, %v3944
    %v3961 = vrot.slane %v3945, 1
    %v3962 = vrot.slane %v3673, 1
    %v3963 = vsel %vm608, %v3961, %v3962
    %v3964 = vrot.slane %v3946, 1
    %v3965 = vrot.slane %v3674, 1
    %v3966 = vsel %vm608, %v3964, %v3965
    %v3967 = vrot.slane %v3947, 1
    %v3968 = vrot.slane %v3675, 1
    %v3969 = vsel %vm608, %v3967, %v3968
    %v3970 = vrot.slane %v3948, 1
    %v3971 = vrot.slane %v3676, 1
    %v3972 = vsel %vm608, %v3970, %v3971
    %v3973 = vrot.slane %v3949, 1
    %v3974 = vrot.slane %v3677, 1
    %v3975 = vsel %vm608, %v3973, %v3974
    %v3976 = vrot.slane %v3950, 1
    %v3977 = vrot.slane %v3678, 1
    %v3978 = vsel %vm608, %v3976, %v3977
    %v3979 = vrot.slane %v3951, 1
    %v3980 = vrot.slane %v3679, 1
    %v3981 = vsel %vm608, %v3979, %v3980
    %v3982 = vrot.slane %v3952, 1
    %v3983 = vrot.slane %v3680, 1
    %v3984 = vsel %vm608, %v3982, %v3983
    %v3985 = vrot.slane %v3953, 1
    %v3986 = vrot.slane %v3681, 1
    %v3987 = vsel %vm608, %v3985, %v3986
    %v3988 = vrot.slane %v3954, 1
    %v3989 = vrot.slane %v3682, 1
    %v3990 = vsel %vm608, %v3988, %v3989
    %v3991 = vrot.slane %v3955, 1
    %v3992 = vrot.slane %v3683, 1
    %v3993 = vsel %vm608, %v3991, %v3992
    %v3994 = vrot.slane %v3956, 1
    %v3995 = vrot.slane %v3684, 1
    %v3996 = vsel %vm608, %v3994, %v3995
    %v3997 = vrot.slane %v3957, 1
    %v3998 = vrot.slane %v3685, 1
    %v3999 = vsel %vm608, %v3997, %v3998
    %v4000 = vrot.slane %v3958, 1
    %v4001 = vrot.slane %v3686, 1
    %v4002 = vsel %vm608, %v4000, %v4001
    %v4003 = vrot.slane %v3959, 1
    %v4004 = vrot.slane %v3687, 1
    %v4005 = vsel %vm608, %v4003, %v4004
    %v4006 = vrot.slane %v3960, 1
    %v4007 = vrot.slane %v3688, 1
    %v4008 = vsel %vm608, %v4006, %v4007
    %4009 = vrot.lane.b32.xlu0 %v3963, 32
    %v4010 = vpop.permute.xlu0 %4009
    %4011 = vrot.lane.b32.xlu0 %v3966, 32
    %v4012 = vpop.permute.xlu0 %4011
    %4013 = vrot.lane.b32.xlu0 %v3969, 32
    %v4014 = vpop.permute.xlu0 %4013
    %4015 = vrot.lane.b32.xlu0 %v3972, 32
    %v4016 = vpop.permute.xlu0 %4015
    %4017 = vrot.lane.b32.xlu0 %v3975, 32
    %v4018 = vpop.permute.xlu0 %4017
    %4019 = vrot.lane.b32.xlu0 %v3978, 32
    %v4020 = vpop.permute.xlu0 %4019
    %4021 = vrot.lane.b32.xlu0 %v3981, 32
    %v4022 = vpop.permute.xlu0 %4021
    %4023 = vrot.lane.b32.xlu0 %v3984, 32
    %v4024 = vpop.permute.xlu0 %4023
    %4025 = vrot.lane.b32.xlu0 %v3987, 32
    %v4026 = vpop.permute.xlu0 %4025
    %4027 = vrot.lane.b32.xlu0 %v3990, 32
    %v4028 = vpop.permute.xlu0 %4027
    %4029 = vrot.lane.b32.xlu0 %v3993, 32
    %v4030 = vpop.permute.xlu0 %4029
    %4031 = vrot.lane.b32.xlu0 %v3996, 32
    %v4032 = vpop.permute.xlu0 %4031
    %4033 = vrot.lane.b32.xlu0 %v3999, 32
    %v4034 = vpop.permute.xlu0 %4033
    %4035 = vrot.lane.b32.xlu0 %v4002, 32
    %v4036 = vpop.permute.xlu0 %4035
    %4037 = vrot.lane.b32.xlu0 %v4005, 32
    %v4038 = vpop.permute.xlu0 %4037
    %4039 = vrot.lane.b32.xlu0 %v4008, 32
    %v4040 = vpop.permute.xlu0 %4039
    %v4042 = vsel %vm1713, %v2601, %v2858
    %v4044 = vsel %vm1713, %v2602, %v2860
    %v4046 = vsel %vm1713, %v2603, %v2862
    %v4048 = vsel %vm1713, %v2604, %v2864
    %v4050 = vsel %vm1713, %v2605, %v2866
    %v4052 = vsel %vm1713, %v2606, %v2868
    %v4054 = vsel %vm1713, %v2607, %v2870
    %v4056 = vsel %vm1713, %v2608, %v2872
    %v4058 = vsel %vm1713, %v2609, %v2874
    %v4060 = vsel %vm1713, %v2610, %v2876
    %v4062 = vsel %vm1713, %v2611, %v2878
    %v4064 = vsel %vm1713, %v2612, %v2880
    %v4066 = vsel %vm1713, %v2613, %v2882
    %v4068 = vsel %vm1713, %v2614, %v2884
    %v4070 = vsel %vm1713, %v2615, %v2886
    %v4072 = vsel %vm1713, %v2616, %v2888
    %v4074 = vsel %vm1746, %v4042, %v2986
    %v4076 = vsel %vm1746, %v4044, %v2988
    %v4078 = vsel %vm1746, %v4046, %v2990
    %v4080 = vsel %vm1746, %v4048, %v2992
    %v4082 = vsel %vm1746, %v4050, %v2994
    %v4084 = vsel %vm1746, %v4052, %v2996
    %v4086 = vsel %vm1746, %v4054, %v2998
    %v4088 = vsel %vm1746, %v4056, %v3000
    %v4090 = vsel %vm1746, %v4058, %v3002
    %v4092 = vsel %vm1746, %v4060, %v3004
    %v4094 = vsel %vm1746, %v4062, %v3006
    %v4096 = vsel %vm1746, %v4064, %v3008
    %v4098 = vsel %vm1746, %v4066, %v3010
    %v4100 = vsel %vm1746, %v4068, %v3012
    %v4102 = vsel %vm1746, %v4070, %v3014
    %v4104 = vsel %vm1746, %v4072, %v3016
    %v4106 = vsel %vm1779, %v4074, %v3098
    %v4108 = vsel %vm1779, %v4076, %v3100
    %v4110 = vsel %vm1779, %v4078, %v3102
    %v4112 = vsel %vm1779, %v4080, %v3104
    %v4114 = vsel %vm1779, %v4082, %v3106
    %v4116 = vsel %vm1779, %v4084, %v3108
    %v4118 = vsel %vm1779, %v4086, %v3110
    %v4120 = vsel %vm1779, %v4088, %v3112
    %v4122 = vsel %vm1779, %v4090, %v3114
    %v4124 = vsel %vm1779, %v4092, %v3116
    %v4126 = vsel %vm1779, %v4094, %v3118
    %v4128 = vsel %vm1779, %v4096, %v3120
    %v4130 = vsel %vm1779, %v4098, %v3122
    %v4132 = vsel %vm1779, %v4100, %v3124
    %v4134 = vsel %vm1779, %v4102, %v3126
    %v4136 = vsel %vm1779, %v4104, %v3128
    %v4138 = vsel %vm1812, %v4106, %v3370
    %v4140 = vsel %vm1812, %v4108, %v3372
    %v4142 = vsel %vm1812, %v4110, %v3374
    %v4144 = vsel %vm1812, %v4112, %v3376
    %v4146 = vsel %vm1812, %v4114, %v3378
    %v4148 = vsel %vm1812, %v4116, %v3380
    %v4150 = vsel %vm1812, %v4118, %v3382
    %v4152 = vsel %vm1812, %v4120, %v3384
    %v4154 = vsel %vm1812, %v4122, %v3386
    %v4156 = vsel %vm1812, %v4124, %v3388
    %v4158 = vsel %vm1812, %v4126, %v3390
    %v4160 = vsel %vm1812, %v4128, %v3392
    %v4162 = vsel %vm1812, %v4130, %v3394
    %v4164 = vsel %vm1812, %v4132, %v3396
    %v4166 = vsel %vm1812, %v4134, %v3398
    %v4168 = vsel %vm1812, %v4136, %v3400
    %v4170 = vsel %vm1845, %v4138, %v3498
    %v4172 = vsel %vm1845, %v4140, %v3500
    %v4174 = vsel %vm1845, %v4142, %v3502
    %v4176 = vsel %vm1845, %v4144, %v3504
    %v4178 = vsel %vm1845, %v4146, %v3506
    %v4180 = vsel %vm1845, %v4148, %v3508
    %v4182 = vsel %vm1845, %v4150, %v3510
    %v4184 = vsel %vm1845, %v4152, %v3512
    %v4186 = vsel %vm1845, %v4154, %v3514
    %v4188 = vsel %vm1845, %v4156, %v3516
    %v4190 = vsel %vm1845, %v4158, %v3518
    %v4192 = vsel %vm1845, %v4160, %v3520
    %v4194 = vsel %vm1845, %v4162, %v3522
    %v4196 = vsel %vm1845, %v4164, %v3524
    %v4198 = vsel %vm1845, %v4166, %v3526
    %v4200 = vsel %vm1845, %v4168, %v3528
    %v4202 = vsel %vm1878, %v4170, %v3610
    %v4204 = vsel %vm1878, %v4172, %v3612
    %v4206 = vsel %vm1878, %v4174, %v3614
    %v4208 = vsel %vm1878, %v4176, %v3616
    %v4210 = vsel %vm1878, %v4178, %v3618
    %v4212 = vsel %vm1878, %v4180, %v3620
    %v4214 = vsel %vm1878, %v4182, %v3622
    %v4216 = vsel %vm1878, %v4184, %v3624
    %v4218 = vsel %vm1878, %v4186, %v3626
    %v4220 = vsel %vm1878, %v4188, %v3628
    %v4222 = vsel %vm1878, %v4190, %v3630
    %v4224 = vsel %vm1878, %v4192, %v3632
    %v4226 = vsel %vm1878, %v4194, %v3634
    %v4228 = vsel %vm1878, %v4196, %v3636
    %v4230 = vsel %vm1878, %v4198, %v3638
    %v4232 = vsel %vm1878, %v4200, %v3640
    %v4234 = vsel %vm1911, %v4202, %v3882
    %v4236 = vsel %vm1911, %v4204, %v3884
    %v4238 = vsel %vm1911, %v4206, %v3886
    %v4240 = vsel %vm1911, %v4208, %v3888
    %v4242 = vsel %vm1911, %v4210, %v3890
    %v4244 = vsel %vm1911, %v4212, %v3892
    %v4246 = vsel %vm1911, %v4214, %v3894
    %v4248 = vsel %vm1911, %v4216, %v3896
    %v4250 = vsel %vm1911, %v4218, %v3898
    %v4252 = vsel %vm1911, %v4220, %v3900
    %v4254 = vsel %vm1911, %v4222, %v3902
    %v4256 = vsel %vm1911, %v4224, %v3904
    %v4258 = vsel %vm1911, %v4226, %v3906
    %v4260 = vsel %vm1911, %v4228, %v3908
    %v4262 = vsel %vm1911, %v4230, %v3910
    %v4264 = vsel %vm1911, %v4232, %v3912
    %v4266 = vsel %vm1944, %v4234, %v4010
    %v4268 = vsel %vm1944, %v4236, %v4012
    %v4270 = vsel %vm1944, %v4238, %v4014
    %v4272 = vsel %vm1944, %v4240, %v4016
    %v4274 = vsel %vm1944, %v4242, %v4018
    %v4276 = vsel %vm1944, %v4244, %v4020
    %v4278 = vsel %vm1944, %v4246, %v4022
    %v4280 = vsel %vm1944, %v4248, %v4024
    %v4282 = vsel %vm1944, %v4250, %v4026
    %v4284 = vsel %vm1944, %v4252, %v4028
    %v4286 = vsel %vm1944, %v4254, %v4030
    %v4288 = vsel %vm1944, %v4256, %v4032
    %v4290 = vsel %vm1944, %v4258, %v4034
    %v4292 = vsel %vm1944, %v4260, %v4036
    %v4294 = vsel %vm1944, %v4262, %v4038
    %v4296 = vsel %vm1944, %v4264, %v4040
    %v4297 = vsel %vm1977, %v4266, 0
    %v4299 = vsel %vm1977, %v4268, 0
    %v4301 = vsel %vm1977, %v4270, 0
    %v4303 = vsel %vm1977, %v4272, 0
    %v4305 = vsel %vm1977, %v4274, 0
    %v4307 = vsel %vm1977, %v4276, 0
    %v4309 = vsel %vm1977, %v4278, 0
    %v4311 = vsel %vm1977, %v4280, 0
    %v4313 = vsel %vm1977, %v4282, 0
    %v4315 = vsel %vm1977, %v4284, 0
    %v4317 = vsel %vm1977, %v4286, 0
    %v4319 = vsel %vm1977, %v4288, 0
    %v4321 = vsel %vm1977, %v4290, 0
    %v4323 = vsel %vm1977, %v4292, 0
    %v4325 = vsel %vm1977, %v4294, 0
    %v4327 = vsel %vm1977, %v4296, 0
    %v4329 = vld [vmem:[%s1] sm:$0xf]
    %v4330 = vld [vmem:[%s1 + $0x4] sm:$0xf]
    %v4331 = vld [vmem:[%s1 + $0x8] sm:$0xf]
    %v4332 = vld [vmem:[%s1 + $0xc] sm:$0xf]
    %v4333 = vld [vmem:[%s1 + $0x10] sm:$0xf]
    %v4334 = vld [vmem:[%s1 + $0x14] sm:$0xf]
    %v4335 = vld [vmem:[%s1 + $0x18] sm:$0xf]
    %v4336 = vld [vmem:[%s1 + $0x1c] sm:$0xf]
    %v4337 = vld [vmem:[%s1 + $0x20] sm:$0xf]
    %v4338 = vld [vmem:[%s1 + $0x24] sm:$0xf]
    %v4339 = vld [vmem:[%s1 + $0x28] sm:$0xf]
    %v4340 = vld [vmem:[%s1 + $0x2c] sm:$0xf]
    %v4341 = vld [vmem:[%s1 + $0x30] sm:$0xf]
    %v4342 = vld [vmem:[%s1 + $0x34] sm:$0xf]
    %v4343 = vld [vmem:[%s1 + $0x38] sm:$0xf]
    %v4344 = vld [vmem:[%s1 + $0x3c] sm:$0xf]
    %v4361 = vunpack.c.l.b16 %v4329
    %v4362 = vunpack.c.l.b16 %v4330
    %v4363 = vunpack.c.l.b16 %v4331
    %v4364 = vunpack.c.l.b16 %v4332
    %v4365 = vunpack.c.l.b16 %v4333
    %v4366 = vunpack.c.l.b16 %v4334
    %v4367 = vunpack.c.l.b16 %v4335
    %v4368 = vunpack.c.l.b16 %v4336
    %v4369 = vunpack.c.l.b16 %v4337
    %v4370 = vunpack.c.l.b16 %v4338
    %v4371 = vunpack.c.l.b16 %v4339
    %v4372 = vunpack.c.l.b16 %v4340
    %v4373 = vunpack.c.l.b16 %v4341
    %v4374 = vunpack.c.l.b16 %v4342
    %v4375 = vunpack.c.l.b16 %v4343
    %v4376 = vunpack.c.l.b16 %v4344
    %v4377 = vpack.c.b16 %v4362, %v4361
    %v4378 = vpack.c.b16 %v4364, %v4363
    %v4379 = vpack.c.b16 %v4366, %v4365
    %v4380 = vpack.c.b16 %v4368, %v4367
    %v4381 = vpack.c.b16 %v4370, %v4369
    %v4382 = vpack.c.b16 %v4372, %v4371
    %v4383 = vpack.c.b16 %v4374, %v4373
    %v4384 = vpack.c.b16 %v4376, %v4375
    %4393 = vmatpush.bf16.msra.mxu0 %v4384
    %4394 = vmatpush.bf16.msra.mxu0 %v4383
    %4395 = vmatpush.bf16.msra.mxu0 %v4382
    %4396 = vmatpush.bf16.msra.mxu0 %v4381
    %4397 = vmatpush.bf16.msra.mxu0 %v4380
    %4398 = vmatpush.bf16.msra.mxu0 %v4379
    %4399 = vmatpush.bf16.msra.mxu0 %v4378
    %4400 = vmatpush.bf16.msra.mxu0 %v4377
    %4401 = vmatmul.bf16.gmra.mxu0 %v4297
    %v4402 = vpop.f32.mrf.mxu0
    %v4403 = vadd.f32 0.0, %v4402
    %v4404 = vpop.f32.mrf.mxu0
    %v4405 = vadd.f32 0.0, %v4404
    %4406 = vmatmul.bf16.gmra.mxu0 %v4299
    %v4407 = vpop.f32.mrf.mxu0
    %v4408 = vadd.f32 0.0, %v4407
    %v4409 = vpop.f32.mrf.mxu0
    %v4410 = vadd.f32 0.0, %v4409
    %4411 = vmatmul.bf16.gmra.mxu0 %v4301
    %v4412 = vpop.f32.mrf.mxu0
    %v4413 = vadd.f32 0.0, %v4412
    %v4414 = vpop.f32.mrf.mxu0
    %v4415 = vadd.f32 0.0, %v4414
    %4416 = vmatmul.bf16.gmra.mxu0 %v4303
    %v4417 = vpop.f32.mrf.mxu0
    %v4418 = vadd.f32 0.0, %v4417
    %v4419 = vpop.f32.mrf.mxu0
    %v4420 = vadd.f32 0.0, %v4419
    %4421 = vmatmul.bf16.gmra.mxu0 %v4305
    %v4422 = vpop.f32.mrf.mxu0
    %v4423 = vadd.f32 0.0, %v4422
    %v4424 = vpop.f32.mrf.mxu0
    %v4425 = vadd.f32 0.0, %v4424
    %4426 = vmatmul.bf16.gmra.mxu0 %v4307
    %v4427 = vpop.f32.mrf.mxu0
    %v4428 = vadd.f32 0.0, %v4427
    %v4429 = vpop.f32.mrf.mxu0
    %v4430 = vadd.f32 0.0, %v4429
    %4431 = vmatmul.bf16.gmra.mxu0 %v4309
    %v4432 = vpop.f32.mrf.mxu0
    %v4433 = vadd.f32 0.0, %v4432
    %v4434 = vpop.f32.mrf.mxu0
    %v4435 = vadd.f32 0.0, %v4434
    %4436 = vmatmul.bf16.gmra.mxu0 %v4311
    %v4437 = vpop.f32.mrf.mxu0
    %v4438 = vadd.f32 0.0, %v4437
    %v4439 = vpop.f32.mrf.mxu0
    %v4440 = vadd.f32 0.0, %v4439
    %4441 = vmatmul.bf16.gmra.mxu0 %v4313
    %v4442 = vpop.f32.mrf.mxu0
    %v4443 = vadd.f32 0.0, %v4442
    %v4444 = vpop.f32.mrf.mxu0
    %v4445 = vadd.f32 0.0, %v4444
    %4446 = vmatmul.bf16.gmra.mxu0 %v4315
    %v4447 = vpop.f32.mrf.mxu0
    %v4448 = vadd.f32 0.0, %v4447
    %v4449 = vpop.f32.mrf.mxu0
    %v4450 = vadd.f32 0.0, %v4449
    %4451 = vmatmul.bf16.gmra.mxu0 %v4317
    %v4452 = vpop.f32.mrf.mxu0
    %v4453 = vadd.f32 0.0, %v4452
    %v4454 = vpop.f32.mrf.mxu0
    %v4455 = vadd.f32 0.0, %v4454
    %4456 = vmatmul.bf16.gmra.mxu0 %v4319
    %v4457 = vpop.f32.mrf.mxu0
    %v4458 = vadd.f32 0.0, %v4457
    %v4459 = vpop.f32.mrf.mxu0
    %v4460 = vadd.f32 0.0, %v4459
    %4461 = vmatmul.bf16.gmra.mxu0 %v4321
    %v4462 = vpop.f32.mrf.mxu0
    %v4463 = vadd.f32 0.0, %v4462
    %v4464 = vpop.f32.mrf.mxu0
    %v4465 = vadd.f32 0.0, %v4464
    %4466 = vmatmul.bf16.gmra.mxu0 %v4323
    %v4467 = vpop.f32.mrf.mxu0
    %v4468 = vadd.f32 0.0, %v4467
    %v4469 = vpop.f32.mrf.mxu0
    %v4470 = vadd.f32 0.0, %v4469
    %4471 = vmatmul.bf16.gmra.mxu0 %v4325
    %v4472 = vpop.f32.mrf.mxu0
    %v4473 = vadd.f32 0.0, %v4472
    %v4474 = vpop.f32.mrf.mxu0
    %v4475 = vadd.f32 0.0, %v4474
    %4476 = vmatmul.bf16.gmra.mxu0 %v4327
    %v4477 = vpop.f32.mrf.mxu0
    %v4478 = vadd.f32 0.0, %v4477
    %v4479 = vpop.f32.mrf.mxu0
    %v4480 = vadd.f32 0.0, %v4479
    %4481 = vdwg.mxu0
    %4482 = vst [vmem:[#allocation2] sm:$0xff] %v4403
    %4483 = vst [vmem:[#allocation2 + $0x8] sm:$0xff] %v4405
    %4484 = vst [vmem:[#allocation2 + $0x10] sm:$0xff] %v4408
    %4485 = vst [vmem:[#allocation2 + $0x18] sm:$0xff] %v4410
    %4486 = vst [vmem:[#allocation2 + $0x20] sm:$0xff] %v4413
    %4487 = vst [vmem:[#allocation2 + $0x28] sm:$0xff] %v4415
    %4488 = vst [vmem:[#allocation2 + $0x30] sm:$0xff] %v4418
    %4489 = vst [vmem:[#allocation2 + $0x38] sm:$0xff] %v4420
    %4490 = vst [vmem:[#allocation2 + $0x40] sm:$0xff] %v4423
    %4491 = vst [vmem:[#allocation2 + $0x48] sm:$0xff] %v4425
    %4492 = vst [vmem:[#allocation2 + $0x50] sm:$0xff] %v4428
    %4493 = vst [vmem:[#allocation2 + $0x58] sm:$0xff] %v4430
    %4494 = vst [vmem:[#allocation2 + $0x60] sm:$0xff] %v4433
    %4495 = vst [vmem:[#allocation2 + $0x68] sm:$0xff] %v4435
    %4496 = vst [vmem:[#allocation2 + $0x70] sm:$0xff] %v4438
    %4497 = vst [vmem:[#allocation2 + $0x78] sm:$0xff] %v4440
    %4498 = vst [vmem:[#allocation2 + $0x80] sm:$0xff] %v4443
    %4499 = vst [vmem:[#allocation2 + $0x88] sm:$0xff] %v4445
    %4500 = vst [vmem:[#allocation2 + $0x90] sm:$0xff] %v4448
    %4501 = vst [vmem:[#allocation2 + $0x98] sm:$0xff] %v4450
    %4502 = vst [vmem:[#allocation2 + $0xa0] sm:$0xff] %v4453
    %4503 = vst [vmem:[#allocation2 + $0xa8] sm:$0xff] %v4455
    %4504 = vst [vmem:[#allocation2 + $0xb0] sm:$0xff] %v4458
    %4505 = vst [vmem:[#allocation2 + $0xb8] sm:$0xff] %v4460
    %4506 = vst [vmem:[#allocation2 + $0xc0] sm:$0xff] %v4463
    %4507 = vst [vmem:[#allocation2 + $0xc8] sm:$0xff] %v4465
    %4508 = vst [vmem:[#allocation2 + $0xd0] sm:$0xff] %v4468
    %4509 = vst [vmem:[#allocation2 + $0xd8] sm:$0xff] %v4470
    %4510 = vst [vmem:[#allocation2 + $0xe0] sm:$0xff] %v4473
    %4511 = vst [vmem:[#allocation2 + $0xe8] sm:$0xff] %v4475
    %4512 = vst [vmem:[#allocation2 + $0xf0] sm:$0xff] %v4478
    %4513 = vst [vmem:[#allocation2 + $0xf8] sm:$0xff] %v4480
    %v4514 = vld [vmem:[#allocation2] sm:$0xff]
    %v4515 = vld [vmem:[#allocation2 + $0x8] sm:$0xff]
    %v4516 = vld [vmem:[#allocation2 + $0x10] sm:$0xff]
    %v4517 = vld [vmem:[#allocation2 + $0x18] sm:$0xff]
    %v4518 = vld [vmem:[#allocation2 + $0x20] sm:$0xff]
    %v4519 = vld [vmem:[#allocation2 + $0x28] sm:$0xff]
    %v4520 = vld [vmem:[#allocation2 + $0x30] sm:$0xff]
    %v4521 = vld [vmem:[#allocation2 + $0x38] sm:$0xff]
    %v4522 = vld [vmem:[#allocation2 + $0x40] sm:$0xff]
    %v4523 = vld [vmem:[#allocation2 + $0x48] sm:$0xff]
    %v4524 = vld [vmem:[#allocation2 + $0x50] sm:$0xff]
    %v4525 = vld [vmem:[#allocation2 + $0x58] sm:$0xff]
    %v4526 = vld [vmem:[#allocation2 + $0x60] sm:$0xff]
    %v4527 = vld [vmem:[#allocation2 + $0x68] sm:$0xff]
    %v4528 = vld [vmem:[#allocation2 + $0x70] sm:$0xff]
    %v4529 = vld [vmem:[#allocation2 + $0x78] sm:$0xff]
    %v4530 = vmul.f32 %v4514, %v4514
    %v4531 = vmul.f32 %v4515, %v4515
    %v4532 = vmul.f32 %v4516, %v4516
    %v4533 = vmul.f32 %v4517, %v4517
    %v4534 = vmul.f32 %v4518, %v4518
    %v4535 = vmul.f32 %v4519, %v4519
    %v4536 = vmul.f32 %v4520, %v4520
    %v4537 = vmul.f32 %v4521, %v4521
    %v4538 = vmul.f32 %v4522, %v4522
    %v4539 = vmul.f32 %v4523, %v4523
    %v4540 = vmul.f32 %v4524, %v4524
    %v4541 = vmul.f32 %v4525, %v4525
    %v4542 = vmul.f32 %v4526, %v4526
    %v4543 = vmul.f32 %v4527, %v4527
    %v4544 = vmul.f32 %v4528, %v4528
    %v4545 = vmul.f32 %v4529, %v4529
    %v4546 = vadd.f32 %v4530, %v4531
    %v4547 = vadd.f32 %v4546, %v4532
    %v4548 = vadd.f32 %v4547, %v4533
    %v4549 = vadd.f32 %v4548, %v4534
    %v4550 = vadd.f32 %v4549, %v4535
    %v4551 = vadd.f32 %v4550, %v4536
    %v4552 = vadd.f32 %v4551, %v4537
    %v4553 = vadd.f32 %v4552, %v4538
    %v4554 = vadd.f32 %v4553, %v4539
    %v4555 = vadd.f32 %v4554, %v4540
    %v4556 = vadd.f32 %v4555, %v4541
    %v4557 = vadd.f32 %v4556, %v4542
    %v4558 = vadd.f32 %v4557, %v4543
    %v4559 = vadd.f32 %v4558, %v4544
    %v4560 = vadd.f32 %v4559, %v4545
    %v4561 = vrot.slane %v4560, 4
    %v4562 = vadd.f32 %v4560, %v4561
    %v4563 = vrot.slane %v4562, 2
    %v4564 = vadd.f32 %v4562, %v4563
    %v4565 = vrot.slane %v4564, 1
    %v4566 = vadd.f32 %v4564, %v4565
    %v4567 = vadd.f32 %v2249, %v4566
    %v4568 = vld [vmem:[#allocation2 + $0x80] sm:$0xff]
    %v4569 = vld [vmem:[#allocation2 + $0x88] sm:$0xff]
    %v4570 = vld [vmem:[#allocation2 + $0x90] sm:$0xff]
    %v4571 = vld [vmem:[#allocation2 + $0x98] sm:$0xff]
    %v4572 = vld [vmem:[#allocation2 + $0xa0] sm:$0xff]
    %v4573 = vld [vmem:[#allocation2 + $0xa8] sm:$0xff]
    %v4574 = vld [vmem:[#allocation2 + $0xb0] sm:$0xff]
    %v4575 = vld [vmem:[#allocation2 + $0xb8] sm:$0xff]
    %v4576 = vld [vmem:[#allocation2 + $0xc0] sm:$0xff]
    %v4577 = vld [vmem:[#allocation2 + $0xc8] sm:$0xff]
    %v4578 = vld [vmem:[#allocation2 + $0xd0] sm:$0xff]
    %v4579 = vld [vmem:[#allocation2 + $0xd8] sm:$0xff]
    %v4580 = vld [vmem:[#allocation2 + $0xe0] sm:$0xff]
    %v4581 = vld [vmem:[#allocation2 + $0xe8] sm:$0xff]
    %v4582 = vld [vmem:[#allocation2 + $0xf0] sm:$0xff]
    %v4583 = vld [vmem:[#allocation2 + $0xf8] sm:$0xff]
    %v4584 = vmul.f32 %v4514, %v4568
    %v4585 = vmul.f32 %v4515, %v4569
    %v4586 = vmul.f32 %v4516, %v4570
    %v4587 = vmul.f32 %v4517, %v4571
    %v4588 = vmul.f32 %v4518, %v4572
    %v4589 = vmul.f32 %v4519, %v4573
    %v4590 = vmul.f32 %v4520, %v4574
    %v4591 = vmul.f32 %v4521, %v4575
    %v4592 = vmul.f32 %v4522, %v4576
    %v4593 = vmul.f32 %v4523, %v4577
    %v4594 = vmul.f32 %v4524, %v4578
    %v4595 = vmul.f32 %v4525, %v4579
    %v4596 = vmul.f32 %v4526, %v4580
    %v4597 = vmul.f32 %v4527, %v4581
    %v4598 = vmul.f32 %v4528, %v4582
    %v4599 = vmul.f32 %v4529, %v4583
    %v4600 = vadd.f32 %v4584, %v4585
    %v4601 = vadd.f32 %v4600, %v4586
    %v4602 = vadd.f32 %v4601, %v4587
    %v4603 = vadd.f32 %v4602, %v4588
    %v4604 = vadd.f32 %v4603, %v4589
    %v4605 = vadd.f32 %v4604, %v4590
    %v4606 = vadd.f32 %v4605, %v4591
    %v4607 = vadd.f32 %v4606, %v4592
    %v4608 = vadd.f32 %v4607, %v4593
    %v4609 = vadd.f32 %v4608, %v4594
    %v4610 = vadd.f32 %v4609, %v4595
    %v4611 = vadd.f32 %v4610, %v4596
    %v4612 = vadd.f32 %v4611, %v4597
    %v4613 = vadd.f32 %v4612, %v4598
    %v4614 = vadd.f32 %v4613, %v4599
    %v4615 = vrot.slane %v4614, 4
    %v4616 = vadd.f32 %v4614, %v4615
    %v4617 = vrot.slane %v4616, 2
    %v4618 = vadd.f32 %v4616, %v4617
    %v4619 = vrot.slane %v4618, 1
    %v4620 = vadd.f32 %v4618, %v4619
    %v4621 = vadd.f32 %v2303, %v4620
    %v4622 = vmul.f32 %v4568, %v4568
    %v4623 = vmul.f32 %v4569, %v4569
    %v4624 = vmul.f32 %v4570, %v4570
    %v4625 = vmul.f32 %v4571, %v4571
    %v4626 = vmul.f32 %v4572, %v4572
    %v4627 = vmul.f32 %v4573, %v4573
    %v4628 = vmul.f32 %v4574, %v4574
    %v4629 = vmul.f32 %v4575, %v4575
    %v4630 = vmul.f32 %v4576, %v4576
    %v4631 = vmul.f32 %v4577, %v4577
    %v4632 = vmul.f32 %v4578, %v4578
    %v4633 = vmul.f32 %v4579, %v4579
    %v4634 = vmul.f32 %v4580, %v4580
    %v4635 = vmul.f32 %v4581, %v4581
    %v4636 = vmul.f32 %v4582, %v4582
    %v4637 = vmul.f32 %v4583, %v4583
    %v4638 = vadd.f32 %v4622, %v4623
    %v4639 = vadd.f32 %v4638, %v4624
    %v4640 = vadd.f32 %v4639, %v4625
    %v4641 = vadd.f32 %v4640, %v4626
    %v4642 = vadd.f32 %v4641, %v4627
    %v4643 = vadd.f32 %v4642, %v4628
    %v4644 = vadd.f32 %v4643, %v4629
    %v4645 = vadd.f32 %v4644, %v4630
    %v4646 = vadd.f32 %v4645, %v4631
    %v4647 = vadd.f32 %v4646, %v4632
    %v4648 = vadd.f32 %v4647, %v4633
    %v4649 = vadd.f32 %v4648, %v4634
    %v4650 = vadd.f32 %v4649, %v4635
    %v4651 = vadd.f32 %v4650, %v4636
    %v4652 = vadd.f32 %v4651, %v4637
    %v4653 = vrot.slane %v4652, 4
    %v4654 = vadd.f32 %v4652, %v4653
    %v4655 = vrot.slane %v4654, 2
    %v4656 = vadd.f32 %v4654, %v4655
    %v4657 = vrot.slane %v4656, 1
    %v4658 = vadd.f32 %v4656, %v4657
    %v4659 = vadd.f32 %v2341, %v4658
    %4660 = vadd.xlane.f32.xlu0 %v4567
    %v4661 = vpop.xlane.xlu0 %4660
    %4662 = vadd.xlane.f32.xlu0 %v4621
    %v4663 = vpop.xlane.xlu0 %4662
    %4664 = vadd.xlane.f32.xlu0 %v4659
    %v4665 = vpop.xlane.xlu0 %4664
    %v4666 = vmax.f32 %v4661, 1e-24
    %v4667 = vrsqrt.pop %v4666
    %v4668 = vmul.f32 %v4667, %v4666
    %v4669 = vmul.f32 %v4668, %v4667
    %v4670 = vmul.f32 0.5, %v4669
    %v4671 = vsub.f32 1.5, %v4670
    %v4672 = vmul.f32 %v4667, %v4671
    %vm4673 = vweird.f32 %v4666
    %vm4674 = vweird.f32 %v4667
    %vm4675 = vmor %vm4673, %vm4674
    %v4676 = vsel %vm4675, %v4667, %v4672
    %v4677 = vmax.f32 %v4665, 1e-24
    %v4678 = vrsqrt.pop %v4677
    %v4679 = vmul.f32 %v4678, %v4677
    %v4680 = vmul.f32 %v4679, %v4678
    %v4681 = vmul.f32 0.5, %v4680
    %v4682 = vsub.f32 1.5, %v4681
    %v4683 = vmul.f32 %v4678, %v4682
    %vm4684 = vweird.f32 %v4677
    %vm4685 = vweird.f32 %v4678
    %vm4686 = vmor %vm4684, %vm4685
    %v4687 = vsel %vm4686, %v4678, %v4683
    %v4688 = vmul.f32 %v4661, %v4676
    %v4689 = vmul.f32 %v4688, %v4676
    %v4690 = vadd.f32 %v4689, 0.0
    %v4691 = vmul.f32 %v4663, %v4676
    %v4692 = vmul.f32 %v4691, %v4687
    %v4693 = vadd.f32 %v4690, %v4692
    %v4694 = vsub.f32 2.0, %v4693
    %v4695 = vadd.f32 %v4694, 0.0
    %v4696 = vmul.f32 %v4663, %v4687
    %v4697 = vmul.f32 %v4696, %v4676
    %v4698 = vadd.f32 %v4697, 0.0
    %v4699 = vmul.f32 %v4665, %v4687
    %v4700 = vmul.f32 %v4699, %v4687
    %v4701 = vadd.f32 %v4698, %v4700
    %v4702 = vsub.f32 2.0, %v4701
    %v4703 = vadd.f32 %v4695, %v4702
    %v4704 = vrcp.pop 2.0
    %v4705 = vmul.f32 2.0, %v4704
    %v4706 = vsub.f32 1.0, %v4705
    %v4707 = vmul.f32 %v4704, %v4706
    %v4708 = vadd.f32 %v4704, %v4707
    %vm4709 = vweird.f32 %v4704
    %v4710 = vsel %vm4709, %v4704, %v4708
    %v4711 = vmul.f32 %v4703, %v4710
    %vm4712 = vcmp.lt.f32.partialorder %v4711, 0.1
    %v4713 = vadd.f32 %v4711, 0.0001
    %v4714 = vlog2.pop %v4713
    %v4715 = vmul.f32 %v4714, 0.6931472
    %v4716 = vsel %vm4712, %v4715, %v4711
    %vm4717 = vcmask 0
    %4718 = vst.msk [vmem:[#allocation3] sm:$0x1] %vm4717, %v4716
    // Predicated region
    $region10: #{tpu_custom_call.1} parent=1 // pred_check
      _
    $region11: #{tpu_custom_call.1} parent=1 // pred_check_branch
      %4720 = sbr.rel (0) target = $region13
    $region12: #{tpu_custom_call.1} parent=1 // pred_region
      %4722 = vsyncadd [#allocation4], 0
      %s4724 = sshll.u32 [#allocation3], 4
      %s4725 = int_to_ptr.vmem [resolvable:$true] %s4724
      %s4726 = sshll.u32 %s2, 4
      %s4727 = int_to_ptr.hbm [resolvable:$true] %s4726
      %4729 = dma.vmem_to_hbm [thread:$0]  %s4725, 16, %s4727, [#allocation4]
    $region13: #{tpu_custom_call.1} parent=1 // pred_fallthru
      _
    // Predicated region
    $region14: #{tpu_custom_call.1} parent=1 // pred_check
      _
    $region15: #{tpu_custom_call.1} parent=1 // pred_check_branch
      %4731 = sbr.rel (0) target = $region17
    $region16: #{tpu_custom_call.1} parent=1 // pred_region
      %4733 = dma.done [#allocation4], 16
    $region17: #{tpu_custom_call.1} parent=1 // pred_fallthru
      _
    %4734 = vsyncpa [#allocation4], 1

// kernel: tpu_custom_call.1
$region0: #{tpu_custom_call.1}
  #allocation0 [shape = 'u32[]', space=smem, size = 0x4, offset = 0x4, fixed_abs, tag = 'smem constant byte address 0x4 - core index']
  #allocation1 [shape = 'u32[72,128]{1,0:T(1,128)}', space=vmem, size = 0x9000, scoped, tag = 'internal scratch']
  #allocation2 [shape = 'f32[256,128]{1,0:T(8,128)}', space=vmem, size = 0x20000, scoped, tag = 'scratch operand']
  %s0 = inlined_call_operand.vmem [shape: bf16[2,18,18,4], index: 0, kind: input, shape index: {}]
  %s1 = inlined_call_operand.vmem [shape: bf16[9,4,128], index: 1, kind: input, shape index: {}]
  %s2 = inlined_call_operand.hbm [shape: f32[1,1], index: 2, kind: output, shape index: {}]
  %s3 = sld [smem:[#allocation0]]
  $region18: #{tpu_custom_call.1} parent=0
    _
  %s5 = ssub.s32 1, %s3
  %s6 = scalar_select 0, %s5, %s3
  $region1: #{tpu_custom_call.1} parent=0
    #allocation3 [shape = 'u8[512]{0}', space=vmem, size = 0x400, scoped, tag = 'output window, operand 0, single buffered']
    #allocation4 [shape = 's32[1]{0}', space=sflag, size = 0x4, scoped, tag = 'scoped memory for tpu_custom_call.1']
    %7 = vsyncpa [#allocation4], 0
    // Predicated region
    $region2: #{tpu_custom_call.1} parent=1 // pred_check
      _
    $region3: #{tpu_custom_call.1} parent=1 // pred_check_branch
      %9 = sbr.rel (0) target = $region5
    $region4: #{tpu_custom_call.1} parent=1 // pred_region
      _
    $region5: #{tpu_custom_call.1} parent=1 // pred_fallthru
      _
    // Predicated region
    $region6: #{tpu_custom_call.1} parent=1 // pred_check
      _
    $region7: #{tpu_custom_call.1} parent=1 // pred_check_branch
      %11 = sbr.rel (0) target = $region9
    $region8: #{tpu_custom_call.1} parent=1 // pred_region
      _
    $region9: #{tpu_custom_call.1} parent=1 // pred_fallthru
      _
    %v13 = vld [vmem:[%s0] sm:$0xf]
    %v14 = vld [vmem:[%s0 + $0x4] sm:$0xf]
    %v15 = vld [vmem:[%s0 + $0xc] sm:$0xf]
    %v16 = vld [vmem:[%s0 + $0x10] sm:$0xf]
    %v17 = vld [vmem:[%s0 + $0x18] sm:$0xf]
    %v18 = vld [vmem:[%s0 + $0x1c] sm:$0xf]
    %v19 = vld [vmem:[%s0 + $0x24] sm:$0xf]
    %v20 = vld [vmem:[%s0 + $0x28] sm:$0xf]
    %v21 = vld [vmem:[%s0 + $0x30] sm:$0xf]
    %v22 = vld [vmem:[%s0 + $0x34] sm:$0xf]
    %v23 = vld [vmem:[%s0 + $0x3c] sm:$0xf]
    %v24 = vld [vmem:[%s0 + $0x40] sm:$0xf]
    %v25 = vld [vmem:[%s0 + $0x48] sm:$0xf]
    %v26 = vld [vmem:[%s0 + $0x4c] sm:$0xf]
    %v27 = vld [vmem:[%s0 + $0x54] sm:$0xf]
    %v28 = vld [vmem:[%s0 + $0x58] sm:$0xf]
    %v29 = vld [vmem:[%s0 + $0xd8] sm:$0xf]
    %v30 = vld [vmem:[%s0 + $0xdc] sm:$0xf]
    %v31 = vld [vmem:[%s0 + $0xe4] sm:$0xf]
    %v32 = vld [vmem:[%s0 + $0xe8] sm:$0xf]
    %v33 = vld [vmem:[%s0 + $0xf0] sm:$0xf]
    %v34 = vld [vmem:[%s0 + $0xf4] sm:$0xf]
    %v35 = vld [vmem:[%s0 + $0xfc] sm:$0xf]
    %v36 = vld [vmem:[%s0 + $0x100] sm:$0xf]
    %v37 = vld [vmem:[%s0 + $0x108] sm:$0xf]
    %v38 = vld [vmem:[%s0 + $0x10c] sm:$0xf]
    %v39 = vld [vmem:[%s0 + $0x114] sm:$0xf]
    %v40 = vld [vmem:[%s0 + $0x118] sm:$0xf]
    %v41 = vld [vmem:[%s0 + $0x120] sm:$0xf]
    %v42 = vld [vmem:[%s0 + $0x124] sm:$0xf]
    %v43 = vld [vmem:[%s0 + $0x12c] sm:$0xf]
    %v44 = vld [vmem:[%s0 + $0x130] sm:$0xf]
    %v45 = vld [vmem:[%s1] sm:$0x3]
    %v46 = vld [vmem:[%s0 + $0x8] sm:$0x1]
    %v47 = vld [vmem:[%s0 + $0x14] sm:$0x1]
    %v48 = vld [vmem:[%s0 + $0x20] sm:$0x1]
    %v49 = vld [vmem:[%s0 + $0x2c] sm:$0x1]
    %v50 = vld [vmem:[%s0 + $0x38] sm:$0x1]
    %v51 = vld [vmem:[%s0 + $0x44] sm:$0x1]
    %v52 = vld [vmem:[%s0 + $0x50] sm:$0x1]
    %v53 = vld [vmem:[%s0 + $0x5c] sm:$0x1]
    %v54 = vld [vmem:[%s0 + $0xe0] sm:$0x1]
    %v55 = vld [vmem:[%s0 + $0xec] sm:$0x1]
    %v56 = vld [vmem:[%s0 + $0xf8] sm:$0x1]
    %v57 = vld [vmem:[%s0 + $0x104] sm:$0x1]
    %v58 = vld [vmem:[%s0 + $0x110] sm:$0x1]
    %v59 = vld [vmem:[%s0 + $0x11c] sm:$0x1]
    %v60 = vld [vmem:[%s0 + $0x128] sm:$0x1]
    %v61 = vld [vmem:[%s0 + $0x134] sm:$0x1]
    %vm62 = vsmask.f32 3328
    %vm63 = vsmask.f32 7440
    %vm64 = vmor %vm62, %vm63
    %v66 = vshrl.u32 %v13, 16
    %v68 = vrot.slane %v66, 4
    %v69 = vshll.u32 %v13, 16
    %v71 = vrot.slane %v69, 5
    %v72 = vor.u32 %v68, %v71
    %v73 = vrot.slane %v72, 4
    %v75 = vshll.u32 %v14, 16
    %v77 = vrot.slane %v75, 5
    %v78 = vsel %vm64, %v73, %v77
    %v79 = vshrl.u32 %v14, 16
    %v81 = vrot.slane %v79, 4
    %v82 = vor.u32 %v81, %v77
    %v83 = vrot.slane %v82, 4
    %v85 = vshll.u32 %v46, 16
    %v87 = vrot.slane %v85, 5
    %v88 = vsel %vm64, %v83, %v87
    %v90 = vshrl.u32 %v15, 16
    %v92 = vrot.slane %v90, 4
    %v93 = vshll.u32 %v15, 16
    %v95 = vrot.slane %v93, 5
    %v96 = vor.u32 %v92, %v95
    %v97 = vrot.slane %v96, 4
    %v99 = vshll.u32 %v16, 16
    %v101 = vrot.slane %v99, 5
    %v102 = vsel %vm64, %v97, %v101
    %v103 = vshrl.u32 %v16, 16
    %v105 = vrot.slane %v103, 4
    %v106 = vor.u32 %v105, %v101
    %v107 = vrot.slane %v106, 4
    %v109 = vshll.u32 %v47, 16
    %v111 = vrot.slane %v109, 5
    %v112 = vsel %vm64, %v107, %v111
    %v114 = vshrl.u32 %v17, 16
    %v116 = vrot.slane %v114, 4
    %v117 = vshll.u32 %v17, 16
    %v119 = vrot.slane %v117, 5
    %v120 = vor.u32 %v116, %v119
    %v121 = vrot.slane %v120, 4
    %v123 = vshll.u32 %v18, 16
    %v125 = vrot.slane %v123, 5
    %v126 = vsel %vm64, %v121, %v125
    %v127 = vshrl.u32 %v18, 16
    %v129 = vrot.slane %v127, 4
    %v130 = vor.u32 %v129, %v125
    %v131 = vrot.slane %v130, 4
    %v133 = vshll.u32 %v48, 16
    %v135 = vrot.slane %v133, 5
    %v136 = vsel %vm64, %v131, %v135
    %v138 = vshrl.u32 %v19, 16
    %v140 = vrot.slane %v138, 4
    %v141 = vshll.u32 %v19, 16
    %v143 = vrot.slane %v141, 5
    %v144 = vor.u32 %v140, %v143
    %v145 = vrot.slane %v144, 4
    %v147 = vshll.u32 %v20, 16
    %v149 = vrot.slane %v147, 5
    %v150 = vsel %vm64, %v145, %v149
    %v151 = vshrl.u32 %v20, 16
    %v153 = vrot.slane %v151, 4
    %v154 = vor.u32 %v153, %v149
    %v155 = vrot.slane %v154, 4
    %v157 = vshll.u32 %v49, 16
    %v159 = vrot.slane %v157, 5
    %v160 = vsel %vm64, %v155, %v159
    %v162 = vshrl.u32 %v21, 16
    %v164 = vrot.slane %v162, 4
    %v165 = vshll.u32 %v21, 16
    %v167 = vrot.slane %v165, 5
    %v168 = vor.u32 %v164, %v167
    %v169 = vrot.slane %v168, 4
    %v171 = vshll.u32 %v22, 16
    %v173 = vrot.slane %v171, 5
    %v174 = vsel %vm64, %v169, %v173
    %v175 = vshrl.u32 %v22, 16
    %v177 = vrot.slane %v175, 4
    %v178 = vor.u32 %v177, %v173
    %v179 = vrot.slane %v178, 4
    %v181 = vshll.u32 %v50, 16
    %v183 = vrot.slane %v181, 5
    %v184 = vsel %vm64, %v179, %v183
    %v186 = vshrl.u32 %v23, 16
    %v188 = vrot.slane %v186, 4
    %v189 = vshll.u32 %v23, 16
    %v191 = vrot.slane %v189, 5
    %v192 = vor.u32 %v188, %v191
    %v193 = vrot.slane %v192, 4
    %v195 = vshll.u32 %v24, 16
    %v197 = vrot.slane %v195, 5
    %v198 = vsel %vm64, %v193, %v197
    %v199 = vshrl.u32 %v24, 16
    %v201 = vrot.slane %v199, 4
    %v202 = vor.u32 %v201, %v197
    %v203 = vrot.slane %v202, 4
    %v205 = vshll.u32 %v51, 16
    %v207 = vrot.slane %v205, 5
    %v208 = vsel %vm64, %v203, %v207
    %v210 = vshrl.u32 %v25, 16
    %v212 = vrot.slane %v210, 4
    %v213 = vshll.u32 %v25, 16
    %v215 = vrot.slane %v213, 5
    %v216 = vor.u32 %v212, %v215
    %v217 = vrot.slane %v216, 4
    %v219 = vshll.u32 %v26, 16
    %v221 = vrot.slane %v219, 5
    %v222 = vsel %vm64, %v217, %v221
    %v223 = vshrl.u32 %v26, 16
    %v225 = vrot.slane %v223, 4
    %v226 = vor.u32 %v225, %v221
    %v227 = vrot.slane %v226, 4
    %v229 = vshll.u32 %v52, 16
    %v231 = vrot.slane %v229, 5
    %v232 = vsel %vm64, %v227, %v231
    %v234 = vshrl.u32 %v27, 16
    %v236 = vrot.slane %v234, 4
    %v237 = vshll.u32 %v27, 16
    %v239 = vrot.slane %v237, 5
    %v240 = vor.u32 %v236, %v239
    %v241 = vrot.slane %v240, 4
    %v243 = vshll.u32 %v28, 16
    %v245 = vrot.slane %v243, 5
    %v246 = vsel %vm64, %v241, %v245
    %v247 = vshrl.u32 %v28, 16
    %v249 = vrot.slane %v247, 4
    %v250 = vor.u32 %v249, %v245
    %v251 = vrot.slane %v250, 4
    %v253 = vshll.u32 %v53, 16
    %v255 = vrot.slane %v253, 5
    %v256 = vsel %vm64, %v251, %v255
    %v258 = vshrl.u32 %v29, 16
    %v260 = vrot.slane %v258, 4
    %v261 = vshll.u32 %v29, 16
    %v263 = vrot.slane %v261, 5
    %v264 = vor.u32 %v260, %v263
    %v265 = vrot.slane %v264, 4
    %v267 = vshll.u32 %v30, 16
    %v269 = vrot.slane %v267, 5
    %v270 = vsel %vm64, %v265, %v269
    %v271 = vshrl.u32 %v30, 16
    %v273 = vrot.slane %v271, 4
    %v274 = vor.u32 %v273, %v269
    %v275 = vrot.slane %v274, 4
    %v277 = vshll.u32 %v54, 16
    %v279 = vrot.slane %v277, 5
    %v280 = vsel %vm64, %v275, %v279
    %v282 = vshrl.u32 %v31, 16
    %v284 = vrot.slane %v282, 4
    %v285 = vshll.u32 %v31, 16
    %v287 = vrot.slane %v285, 5
    %v288 = vor.u32 %v284, %v287
    %v289 = vrot.slane %v288, 4
    %v291 = vshll.u32 %v32, 16
    %v293 = vrot.slane %v291, 5
    %v294 = vsel %vm64, %v289, %v293
    %v295 = vshrl.u32 %v32, 16
    %v297 = vrot.slane %v295, 4
    %v298 = vor.u32 %v297, %v293
    %v299 = vrot.slane %v298, 4
    %v301 = vshll.u32 %v55, 16
    %v303 = vrot.slane %v301, 5
    %v304 = vsel %vm64, %v299, %v303
    %v306 = vshrl.u32 %v33, 16
    %v308 = vrot.slane %v306, 4
    %v309 = vshll.u32 %v33, 16
    %v311 = vrot.slane %v309, 5
    %v312 = vor.u32 %v308, %v311
    %v313 = vrot.slane %v312, 4
    %v315 = vshll.u32 %v34, 16
    %v317 = vrot.slane %v315, 5
    %v318 = vsel %vm64, %v313, %v317
    %v319 = vshrl.u32 %v34, 16
    %v321 = vrot.slane %v319, 4
    %v322 = vor.u32 %v321, %v317
    %v323 = vrot.slane %v322, 4
    %v325 = vshll.u32 %v56, 16
    %v327 = vrot.slane %v325, 5
    %v328 = vsel %vm64, %v323, %v327
    %v330 = vshrl.u32 %v35, 16
    %v332 = vrot.slane %v330, 4
    %v333 = vshll.u32 %v35, 16
    %v335 = vrot.slane %v333, 5
    %v336 = vor.u32 %v332, %v335
    %v337 = vrot.slane %v336, 4
    %v339 = vshll.u32 %v36, 16
    %v341 = vrot.slane %v339, 5
    %v342 = vsel %vm64, %v337, %v341
    %v343 = vshrl.u32 %v36, 16
    %v345 = vrot.slane %v343, 4
    %v346 = vor.u32 %v345, %v341
    %v347 = vrot.slane %v346, 4
    %v349 = vshll.u32 %v57, 16
    %v351 = vrot.slane %v349, 5
    %v352 = vsel %vm64, %v347, %v351
    %v354 = vshrl.u32 %v37, 16
    %v356 = vrot.slane %v354, 4
    %v357 = vshll.u32 %v37, 16
    %v359 = vrot.slane %v357, 5
    %v360 = vor.u32 %v356, %v359
    %v361 = vrot.slane %v360, 4
    %v363 = vshll.u32 %v38, 16
    %v365 = vrot.slane %v363, 5
    %v366 = vsel %vm64, %v361, %v365
    %v367 = vshrl.u32 %v38, 16
    %v369 = vrot.slane %v367, 4
    %v370 = vor.u32 %v369, %v365
    %v371 = vrot.slane %v370, 4
    %v373 = vshll.u32 %v58, 16
    %v375 = vrot.slane %v373, 5
    %v376 = vsel %vm64, %v371, %v375
    %v378 = vshrl.u32 %v39, 16
    %v380 = vrot.slane %v378, 4
    %v381 = vshll.u32 %v39, 16
    %v383 = vrot.slane %v381, 5
    %v384 = vor.u32 %v380, %v383
    %v385 = vrot.slane %v384, 4
    %v387 = vshll.u32 %v40, 16
    %v389 = vrot.slane %v387, 5
    %v390 = vsel %vm64, %v385, %v389
    %v391 = vshrl.u32 %v40, 16
    %v393 = vrot.slane %v391, 4
    %v394 = vor.u32 %v393, %v389
    %v395 = vrot.slane %v394, 4
    %v397 = vshll.u32 %v59, 16
    %v399 = vrot.slane %v397, 5
    %v400 = vsel %vm64, %v395, %v399
    %v402 = vshrl.u32 %v41, 16
    %v404 = vrot.slane %v402, 4
    %v405 = vshll.u32 %v41, 16
    %v407 = vrot.slane %v405, 5
    %v408 = vor.u32 %v404, %v407
    %v409 = vrot.slane %v408, 4
    %v411 = vshll.u32 %v42, 16
    %v413 = vrot.slane %v411, 5
    %v414 = vsel %vm64, %v409, %v413
    %v415 = vshrl.u32 %v42, 16
    %v417 = vrot.slane %v415, 4
    %v418 = vor.u32 %v417, %v413
    %v419 = vrot.slane %v418, 4
    %v421 = vshll.u32 %v60, 16
    %v423 = vrot.slane %v421, 5
    %v424 = vsel %vm64, %v419, %v423
    %v426 = vshrl.u32 %v43, 16
    %v428 = vrot.slane %v426, 4
    %v429 = vshll.u32 %v43, 16
    %v431 = vrot.slane %v429, 5
    %v432 = vor.u32 %v428, %v431
    %v433 = vrot.slane %v432, 4
    %v435 = vshll.u32 %v44, 16
    %v437 = vrot.slane %v435, 5
    %v438 = vsel %vm64, %v433, %v437
    %v439 = vshrl.u32 %v44, 16
    %v441 = vrot.slane %v439, 4
    %v442 = vor.u32 %v441, %v437
    %v443 = vrot.slane %v442, 4
    %v445 = vshll.u32 %v61, 16
    %v447 = vrot.slane %v445, 5
    %v448 = vsel %vm64, %v443, %v447
    %s449 = scalar_lea.vmem %s1, 2
    %v450 = vld [vmem:[%s449] sm:$0x3]
    %v451 = vunpack.c.l.b16 %v78
    %v452 = vunpack.c.l.b16 %v88
    %v453 = vunpack.c.l.b16 %v102
    %v454 = vunpack.c.l.b16 %v112
    %v455 = vunpack.c.l.b16 %v126
    %v456 = vunpack.c.l.b16 %v136
    %v457 = vunpack.c.l.b16 %v150
    %v458 = vunpack.c.l.b16 %v160
    %v459 = vunpack.c.l.b16 %v174
    %v460 = vunpack.c.l.b16 %v184
    %v461 = vunpack.c.l.b16 %v198
    %v462 = vunpack.c.l.b16 %v208
    %v463 = vunpack.c.l.b16 %v222
    %v464 = vunpack.c.l.b16 %v232
    %v465 = vunpack.c.l.b16 %v246
    %v466 = vunpack.c.l.b16 %v256
    %v467 = vunpack.c.l.b16 %v270
    %v468 = vunpack.c.l.b16 %v280
    %v469 = vunpack.c.l.b16 %v294
    %v470 = vunpack.c.l.b16 %v304
    %v471 = vunpack.c.l.b16 %v318
    %v472 = vunpack.c.l.b16 %v328
    %v473 = vunpack.c.l.b16 %v342
    %v474 = vunpack.c.l.b16 %v352
    %v475 = vunpack.c.l.b16 %v366
    %v476 = vunpack.c.l.b16 %v376
    %v477 = vunpack.c.l.b16 %v390
    %v478 = vunpack.c.l.b16 %v400
    %v479 = vunpack.c.l.b16 %v414
    %v480 = vunpack.c.l.b16 %v424
    %v481 = vunpack.c.l.b16 %v438
    %v482 = vunpack.c.l.b16 %v448
    %v483 = vpack.c.b16 %v452, %v451
    %v484 = vpack.c.b16 %v454, %v453
    %v485 = vpack.c.b16 %v456, %v455
    %v486 = vpack.c.b16 %v458, %v457
    %v487 = vpack.c.b16 %v460, %v459
    %v488 = vpack.c.b16 %v462, %v461
    %v489 = vpack.c.b16 %v464, %v463
    %v490 = vpack.c.b16 %v466, %v465
    %v491 = vpack.c.b16 %v468, %v467
    %v492 = vpack.c.b16 %v470, %v469
    %v493 = vpack.c.b16 %v472, %v471
    %v494 = vpack.c.b16 %v474, %v473
    %v495 = vpack.c.b16 %v476, %v475
    %v496 = vpack.c.b16 %v478, %v477
    %v497 = vpack.c.b16 %v480, %v479
    %v498 = vpack.c.b16 %v482, %v481
    %vm499 = vcmask 31744
    %v501 = vsel %vm499, %v483, 0
    %v504 = vsel %vm499, %v484, 0
    %v507 = vsel %vm499, %v485, 0
    %v510 = vsel %vm499, %v486, 0
    %v513 = vsel %vm499, %v487, 0
    %v516 = vsel %vm499, %v488, 0
    %v519 = vsel %vm499, %v489, 0
    %v522 = vsel %vm499, %v490, 0
    %v525 = vsel %vm499, %v491, 0
    %v528 = vsel %vm499, %v492, 0
    %v531 = vsel %vm499, %v493, 0
    %v534 = vsel %vm499, %v494, 0
    %v537 = vsel %vm499, %v495, 0
    %v540 = vsel %vm499, %v496, 0
    %v543 = vsel %vm499, %v497, 0
    %v546 = vsel %vm499, %v498, 0
    %vm548 = vcmask 1041408
    %v550 = vsel %vm548, %v450, 0
    %552 = vmatpush.bf16.msra.mxu0 0
    %553 = vmatpush.bf16.msra.mxu0 0
    %554 = vmatpush.bf16.msra.mxu0 0
    %555 = vmatpush.bf16.msra.mxu0 0
    %556 = vmatpush.bf16.msra.mxu0 0
    %557 = vmatpush.bf16.msra.mxu0 0
    %558 = vmatpush.bf16.msra.mxu0 0
    %559 = vmatpush.bf16.msra.mxu0 %v550
    %560 = vmatmul.bf16.gmra.mxu0 %v501
    %v561 = vpop.f32.mrf.mxu0
    %v562 = vadd.f32 0.0, %v561
    %v563 = vpop.f32.mrf.mxu0
    %v564 = vadd.f32 0.0, %v563
    %565 = vmatmul.bf16.gmra.mxu0 %v504
    %v566 = vpop.f32.mrf.mxu0
    %v567 = vadd.f32 0.0, %v566
    %v568 = vpop.f32.mrf.mxu0
    %v569 = vadd.f32 0.0, %v568
    %570 = vmatmul.bf16.gmra.mxu0 %v507
    %v571 = vpop.f32.mrf.mxu0
    %v572 = vadd.f32 0.0, %v571
    %v573 = vpop.f32.mrf.mxu0
    %v574 = vadd.f32 0.0, %v573
    %575 = vmatmul.bf16.gmra.mxu0 %v510
    %v576 = vpop.f32.mrf.mxu0
    %v577 = vadd.f32 0.0, %v576
    %v578 = vpop.f32.mrf.mxu0
    %v579 = vadd.f32 0.0, %v578
    %580 = vmatmul.bf16.gmra.mxu0 %v513
    %v581 = vpop.f32.mrf.mxu0
    %v582 = vadd.f32 0.0, %v581
    %v583 = vpop.f32.mrf.mxu0
    %v584 = vadd.f32 0.0, %v583
    %585 = vmatmul.bf16.gmra.mxu0 %v516
    %v586 = vpop.f32.mrf.mxu0
    %v587 = vadd.f32 0.0, %v586
    %v588 = vpop.f32.mrf.mxu0
    %v589 = vadd.f32 0.0, %v588
    %590 = vmatmul.bf16.gmra.mxu0 %v519
    %v591 = vpop.f32.mrf.mxu0
    %v592 = vadd.f32 0.0, %v591
    %v593 = vpop.f32.mrf.mxu0
    %v594 = vadd.f32 0.0, %v593
    %595 = vmatmul.bf16.gmra.mxu0 %v522
    %v596 = vpop.f32.mrf.mxu0
    %v597 = vadd.f32 0.0, %v596
    %v598 = vpop.f32.mrf.mxu0
    %v599 = vadd.f32 0.0, %v598
    %600 = vmatmul.bf16.gmra.mxu0 %v525
    %v601 = vpop.f32.mrf.mxu0
    %v602 = vadd.f32 0.0, %v601
    %v603 = vpop.f32.mrf.mxu0
    %v604 = vadd.f32 0.0, %v603
    %605 = vmatmul.bf16.gmra.mxu0 %v528
    %v606 = vpop.f32.mrf.mxu0
    %v607 = vadd.f32 0.0, %v606
    %v608 = vpop.f32.mrf.mxu0
    %v609 = vadd.f32 0.0, %v608
    %610 = vmatmul.bf16.gmra.mxu0 %v531
    %v611 = vpop.f32.mrf.mxu0
    %v612 = vadd.f32 0.0, %v611
    %v613 = vpop.f32.mrf.mxu0
    %v614 = vadd.f32 0.0, %v613
    %615 = vmatmul.bf16.gmra.mxu0 %v534
    %v616 = vpop.f32.mrf.mxu0
    %v617 = vadd.f32 0.0, %v616
    %v618 = vpop.f32.mrf.mxu0
    %v619 = vadd.f32 0.0, %v618
    %620 = vmatmul.bf16.gmra.mxu0 %v537
    %v621 = vpop.f32.mrf.mxu0
    %v622 = vadd.f32 0.0, %v621
    %v623 = vpop.f32.mrf.mxu0
    %v624 = vadd.f32 0.0, %v623
    %625 = vmatmul.bf16.gmra.mxu0 %v540
    %v626 = vpop.f32.mrf.mxu0
    %v627 = vadd.f32 0.0, %v626
    %v628 = vpop.f32.mrf.mxu0
    %v629 = vadd.f32 0.0, %v628
    %630 = vmatmul.bf16.gmra.mxu0 %v543
    %v631 = vpop.f32.mrf.mxu0
    %v632 = vadd.f32 0.0, %v631
    %v633 = vpop.f32.mrf.mxu0
    %v634 = vadd.f32 0.0, %v633
    %635 = vmatmul.bf16.gmra.mxu0 %v546
    %v636 = vpop.f32.mrf.mxu0
    %v637 = vadd.f32 0.0, %v636
    %v638 = vpop.f32.mrf.mxu0
    %v639 = vadd.f32 0.0, %v638
    %640 = vdwg.mxu0
    %v673 = vunpack.c.l.b16 %v13
    %v674 = vunpack.c.l.b16 %v14
    %v675 = vunpack.c.l.b16 %v15
    %v676 = vunpack.c.l.b16 %v16
    %v677 = vunpack.c.l.b16 %v17
    %v678 = vunpack.c.l.b16 %v18
    %v679 = vunpack.c.l.b16 %v19
    %v680 = vunpack.c.l.b16 %v20
    %v681 = vunpack.c.l.b16 %v21
    %v682 = vunpack.c.l.b16 %v22
    %v683 = vunpack.c.l.b16 %v23
    %v684 = vunpack.c.l.b16 %v24
    %v685 = vunpack.c.l.b16 %v25
    %v686 = vunpack.c.l.b16 %v26
    %v687 = vunpack.c.l.b16 %v27
    %v688 = vunpack.c.l.b16 %v28
    %v689 = vunpack.c.l.b16 %v29
    %v690 = vunpack.c.l.b16 %v30
    %v691 = vunpack.c.l.b16 %v31
    %v692 = vunpack.c.l.b16 %v32
    %v693 = vunpack.c.l.b16 %v33
    %v694 = vunpack.c.l.b16 %v34
    %v695 = vunpack.c.l.b16 %v35
    %v696 = vunpack.c.l.b16 %v36
    %v697 = vunpack.c.l.b16 %v37
    %v698 = vunpack.c.l.b16 %v38
    %v699 = vunpack.c.l.b16 %v39
    %v700 = vunpack.c.l.b16 %v40
    %v701 = vunpack.c.l.b16 %v41
    %v702 = vunpack.c.l.b16 %v42
    %v703 = vunpack.c.l.b16 %v43
    %v704 = vunpack.c.l.b16 %v44
    %v705 = vpack.c.b16 %v674, %v673
    %v706 = vpack.c.b16 %v676, %v675
    %v707 = vpack.c.b16 %v678, %v677
    %v708 = vpack.c.b16 %v680, %v679
    %v709 = vpack.c.b16 %v682, %v681
    %v710 = vpack.c.b16 %v684, %v683
    %v711 = vpack.c.b16 %v686, %v685
    %v712 = vpack.c.b16 %v688, %v687
    %v713 = vpack.c.b16 %v690, %v689
    %v714 = vpack.c.b16 %v692, %v691
    %v715 = vpack.c.b16 %v694, %v693
    %v716 = vpack.c.b16 %v696, %v695
    %v717 = vpack.c.b16 %v698, %v697
    %v718 = vpack.c.b16 %v700, %v699
    %v719 = vpack.c.b16 %v702, %v701
    %v720 = vpack.c.b16 %v704, %v703
    %v722 = vsel %vm499, %v705, 0
    %v725 = vsel %vm499, %v706, 0
    %v728 = vsel %vm499, %v707, 0
    %v731 = vsel %vm499, %v708, 0
    %v734 = vsel %vm499, %v709, 0
    %v737 = vsel %vm499, %v710, 0
    %v740 = vsel %vm499, %v711, 0
    %v743 = vsel %vm499, %v712, 0
    %v746 = vsel %vm499, %v713, 0
    %v749 = vsel %vm499, %v714, 0
    %v752 = vsel %vm499, %v715, 0
    %v755 = vsel %vm499, %v716, 0
    %v758 = vsel %vm499, %v717, 0
    %v761 = vsel %vm499, %v718, 0
    %v764 = vsel %vm499, %v719, 0
    %v767 = vsel %vm499, %v720, 0
    %v770 = vsel %vm548, %v45, 0
    %772 = vmatpush.bf16.msra.mxu0 0
    %773 = vmatpush.bf16.msra.mxu0 0
    %774 = vmatpush.bf16.msra.mxu0 0
    %775 = vmatpush.bf16.msra.mxu0 0
    %776 = vmatpush.bf16.msra.mxu0 0
    %777 = vmatpush.bf16.msra.mxu0 0
    %778 = vmatpush.bf16.msra.mxu0 0
    %779 = vmatpush.bf16.msra.mxu0 %v770
    %780 = vmatmul.bf16.gmra.mxu0 %v722
    %v781 = vpop.f32.mrf.mxu0
    %v782 = vadd.f32 %v562, %v781
    %v783 = vpop.f32.mrf.mxu0
    %v784 = vadd.f32 %v564, %v783
    %785 = vmatmul.bf16.gmra.mxu0 %v725
    %v786 = vpop.f32.mrf.mxu0
    %v787 = vadd.f32 %v567, %v786
    %v788 = vpop.f32.mrf.mxu0
    %v789 = vadd.f32 %v569, %v788
    %790 = vmatmul.bf16.gmra.mxu0 %v728
    %v791 = vpop.f32.mrf.mxu0
    %v792 = vadd.f32 %v572, %v791
    %v793 = vpop.f32.mrf.mxu0
    %v794 = vadd.f32 %v574, %v793
    %795 = vmatmul.bf16.gmra.mxu0 %v731
    %v796 = vpop.f32.mrf.mxu0
    %v797 = vadd.f32 %v577, %v796
    %v798 = vpop.f32.mrf.mxu0
    %v799 = vadd.f32 %v579, %v798
    %800 = vmatmul.bf16.gmra.mxu0 %v734
    %v801 = vpop.f32.mrf.mxu0
    %v802 = vadd.f32 %v582, %v801
    %v803 = vpop.f32.mrf.mxu0
    %v804 = vadd.f32 %v584, %v803
    %805 = vmatmul.bf16.gmra.mxu0 %v737
    %v806 = vpop.f32.mrf.mxu0
    %v807 = vadd.f32 %v587, %v806
    %v808 = vpop.f32.mrf.mxu0
    %v809 = vadd.f32 %v589, %v808
    %810 = vmatmul.bf16.gmra.mxu0 %v740
    %v811 = vpop.f32.mrf.mxu0
    %v812 = vadd.f32 %v592, %v811
    %v813 = vpop.f32.mrf.mxu0
    %v814 = vadd.f32 %v594, %v813
    %815 = vmatmul.bf16.gmra.mxu0 %v743
    %v816 = vpop.f32.mrf.mxu0
    %v817 = vadd.f32 %v597, %v816
    %v818 = vpop.f32.mrf.mxu0
    %v819 = vadd.f32 %v599, %v818
    %820 = vmatmul.bf16.gmra.mxu0 %v746
    %v821 = vpop.f32.mrf.mxu0
    %v822 = vadd.f32 %v602, %v821
    %v823 = vpop.f32.mrf.mxu0
    %v824 = vadd.f32 %v604, %v823
    %825 = vmatmul.bf16.gmra.mxu0 %v749
    %v826 = vpop.f32.mrf.mxu0
    %v827 = vadd.f32 %v607, %v826
    %v828 = vpop.f32.mrf.mxu0
    %v829 = vadd.f32 %v609, %v828
    %830 = vmatmul.bf16.gmra.mxu0 %v752
    %v831 = vpop.f32.mrf.mxu0
    %v832 = vadd.f32 %v612, %v831
    %v833 = vpop.f32.mrf.mxu0
    %v834 = vadd.f32 %v614, %v833
    %835 = vmatmul.bf16.gmra.mxu0 %v755
    %v836 = vpop.f32.mrf.mxu0
    %v837 = vadd.f32 %v617, %v836
    %v838 = vpop.f32.mrf.mxu0
    %v839 = vadd.f32 %v619, %v838
    %840 = vmatmul.bf16.gmra.mxu0 %v758
    %v841 = vpop.f32.mrf.mxu0
    %v842 = vadd.f32 %v622, %v841
    %v843 = vpop.f32.mrf.mxu0
    %v844 = vadd.f32 %v624, %v843
    %845 = vmatmul.bf16.gmra.mxu0 %v761
    %v846 = vpop.f32.mrf.mxu0
    %v847 = vadd.f32 %v627, %v846
    %v848 = vpop.f32.mrf.mxu0
    %v849 = vadd.f32 %v629, %v848
    %850 = vmatmul.bf16.gmra.mxu0 %v764
    %v851 = vpop.f32.mrf.mxu0
    %v852 = vadd.f32 %v632, %v851
    %v853 = vpop.f32.mrf.mxu0
    %v854 = vadd.f32 %v634, %v853
    %855 = vmatmul.bf16.gmra.mxu0 %v767
    %v856 = vpop.f32.mrf.mxu0
    %v857 = vadd.f32 %v637, %v856
    %v858 = vpop.f32.mrf.mxu0
    %v859 = vadd.f32 %v639, %v858
    %860 = vdwg.mxu0
    %v861 = vld [vmem:[%s0] sm:$0xe]
    %v862 = vld [vmem:[%s0 + $0xc] sm:$0xe]
    %v863 = vld [vmem:[%s0 + $0x18] sm:$0xe]
    %v864 = vld [vmem:[%s0 + $0x24] sm:$0xe]
    %v865 = vld [vmem:[%s0 + $0x30] sm:$0xe]
    %v866 = vld [vmem:[%s0 + $0x3c] sm:$0xe]
    %v867 = vld [vmem:[%s0 + $0x48] sm:$0xe]
    %v868 = vld [vmem:[%s0 + $0x54] sm:$0xe]
    %v869 = vld [vmem:[%s0 + $0xd8] sm:$0xe]
    %v870 = vld [vmem:[%s0 + $0xe4] sm:$0xe]
    %v871 = vld [vmem:[%s0 + $0xf0] sm:$0xe]
    %v872 = vld [vmem:[%s0 + $0xfc] sm:$0xe]
    %v873 = vld [vmem:[%s0 + $0x108] sm:$0xe]
    %v874 = vld [vmem:[%s0 + $0x114] sm:$0xe]
    %v875 = vld [vmem:[%s0 + $0x120] sm:$0xe]
    %v876 = vld [vmem:[%s0 + $0x12c] sm:$0xe]
    %vm909 = vcmask 1042432
    %vm910 = vcmask 1046532
    %vm911 = vmor %vm909, %vm910
    %v912 = vrot.slane %v861, 5
    %v913 = vrot.slane %v912, 4
    %v914 = vrot.slane %v14, 5
    %v915 = vsel %vm911, %v913, %v914
    %v916 = vrot.slane %v914, 4
    %v917 = vrot.slane %v46, 5
    %v918 = vsel %vm911, %v916, %v917
    %v919 = vrot.slane %v862, 5
    %v920 = vrot.slane %v919, 4
    %v921 = vrot.slane %v16, 5
    %v922 = vsel %vm911, %v920, %v921
    %v923 = vrot.slane %v921, 4
    %v924 = vrot.slane %v47, 5
    %v925 = vsel %vm911, %v923, %v924
    %v926 = vrot.slane %v863, 5
    %v927 = vrot.slane %v926, 4
    %v928 = vrot.slane %v18, 5
    %v929 = vsel %vm911, %v927, %v928
    %v930 = vrot.slane %v928, 4
    %v931 = vrot.slane %v48, 5
    %v932 = vsel %vm911, %v930, %v931
    %v933 = vrot.slane %v864, 5
    %v934 = vrot.slane %v933, 4
    %v935 = vrot.slane %v20, 5
    %v936 = vsel %vm911, %v934, %v935
    %v937 = vrot.slane %v935, 4
    %v938 = vrot.slane %v49, 5
    %v939 = vsel %vm911, %v937, %v938
    %v940 = vrot.slane %v865, 5
    %v941 = vrot.slane %v940, 4
    %v942 = vrot.slane %v22, 5
    %v943 = vsel %vm911, %v941, %v942
    %v944 = vrot.slane %v942, 4
    %v945 = vrot.slane %v50, 5
    %v946 = vsel %vm911, %v944, %v945
    %v947 = vrot.slane %v866, 5
    %v948 = vrot.slane %v947, 4
    %v949 = vrot.slane %v24, 5
    %v950 = vsel %vm911, %v948, %v949
    %v951 = vrot.slane %v949, 4
    %v952 = vrot.slane %v51, 5
    %v953 = vsel %vm911, %v951, %v952
    %v954 = vrot.slane %v867, 5
    %v955 = vrot.slane %v954, 4
    %v956 = vrot.slane %v26, 5
    %v957 = vsel %vm911, %v955, %v956
    %v958 = vrot.slane %v956, 4
    %v959 = vrot.slane %v52, 5
    %v960 = vsel %vm911, %v958, %v959
    %v961 = vrot.slane %v868, 5
    %v962 = vrot.slane %v961, 4
    %v963 = vrot.slane %v28, 5
    %v964 = vsel %vm911, %v962, %v963
    %v965 = vrot.slane %v963, 4
    %v966 = vrot.slane %v53, 5
    %v967 = vsel %vm911, %v965, %v966
    %v968 = vrot.slane %v869, 5
    %v969 = vrot.slane %v968, 4
    %v970 = vrot.slane %v30, 5
    %v971 = vsel %vm911, %v969, %v970
    %v972 = vrot.slane %v970, 4
    %v973 = vrot.slane %v54, 5
    %v974 = vsel %vm911, %v972, %v973
    %v975 = vrot.slane %v870, 5
    %v976 = vrot.slane %v975, 4
    %v977 = vrot.slane %v32, 5
    %v978 = vsel %vm911, %v976, %v977
    %v979 = vrot.slane %v977, 4
    %v980 = vrot.slane %v55, 5
    %v981 = vsel %vm911, %v979, %v980
    %v982 = vrot.slane %v871, 5
    %v983 = vrot.slane %v982, 4
    %v984 = vrot.slane %v34, 5
    %v985 = vsel %vm911, %v983, %v984
    %v986 = vrot.slane %v984, 4
    %v987 = vrot.slane %v56, 5
    %v988 = vsel %vm911, %v986, %v987
    %v989 = vrot.slane %v872, 5
    %v990 = vrot.slane %v989, 4
    %v991 = vrot.slane %v36, 5
    %v992 = vsel %vm911, %v990, %v991
    %v993 = vrot.slane %v991, 4
    %v994 = vrot.slane %v57, 5
    %v995 = vsel %vm911, %v993, %v994
    %v996 = vrot.slane %v873, 5
    %v997 = vrot.slane %v996, 4
    %v998 = vrot.slane %v38, 5
    %v999 = vsel %vm911, %v997, %v998
    %v1000 = vrot.slane %v998, 4
    %v1001 = vrot.slane %v58, 5
    %v1002 = vsel %vm911, %v1000, %v1001
    %v1003 = vrot.slane %v874, 5
    %v1004 = vrot.slane %v1003, 4
    %v1005 = vrot.slane %v40, 5
    %v1006 = vsel %vm911, %v1004, %v1005
    %v1007 = vrot.slane %v1005, 4
    %v1008 = vrot.slane %v59, 5
    %v1009 = vsel %vm911, %v1007, %v1008
    %v1010 = vrot.slane %v875, 5
    %v1011 = vrot.slane %v1010, 4
    %v1012 = vrot.slane %v42, 5
    %v1013 = vsel %vm911, %v1011, %v1012
    %v1014 = vrot.slane %v1012, 4
    %v1015 = vrot.slane %v60, 5
    %v1016 = vsel %vm911, %v1014, %v1015
    %v1017 = vrot.slane %v876, 5
    %v1018 = vrot.slane %v1017, 4
    %v1019 = vrot.slane %v44, 5
    %v1020 = vsel %vm911, %v1018, %v1019
    %v1021 = vrot.slane %v1019, 4
    %v1022 = vrot.slane %v61, 5
    %v1023 = vsel %vm911, %v1021, %v1022
    %s1024 = scalar_lea.vmem %s1, 4
    %v1025 = vld [vmem:[%s1024] sm:$0x3]
    %v1026 = vunpack.c.l.b16 %v915
    %v1027 = vunpack.c.l.b16 %v918
    %v1028 = vunpack.c.l.b16 %v922
    %v1029 = vunpack.c.l.b16 %v925
    %v1030 = vunpack.c.l.b16 %v929
    %v1031 = vunpack.c.l.b16 %v932
    %v1032 = vunpack.c.l.b16 %v936
    %v1033 = vunpack.c.l.b16 %v939
    %v1034 = vunpack.c.l.b16 %v943
    %v1035 = vunpack.c.l.b16 %v946
    %v1036 = vunpack.c.l.b16 %v950
    %v1037 = vunpack.c.l.b16 %v953
    %v1038 = vunpack.c.l.b16 %v957
    %v1039 = vunpack.c.l.b16 %v960
    %v1040 = vunpack.c.l.b16 %v964
    %v1041 = vunpack.c.l.b16 %v967
    %v1042 = vunpack.c.l.b16 %v971
    %v1043 = vunpack.c.l.b16 %v974
    %v1044 = vunpack.c.l.b16 %v978
    %v1045 = vunpack.c.l.b16 %v981
    %v1046 = vunpack.c.l.b16 %v985
    %v1047 = vunpack.c.l.b16 %v988
    %v1048 = vunpack.c.l.b16 %v992
    %v1049 = vunpack.c.l.b16 %v995
    %v1050 = vunpack.c.l.b16 %v999
    %v1051 = vunpack.c.l.b16 %v1002
    %v1052 = vunpack.c.l.b16 %v1006
    %v1053 = vunpack.c.l.b16 %v1009
    %v1054 = vunpack.c.l.b16 %v1013
    %v1055 = vunpack.c.l.b16 %v1016
    %v1056 = vunpack.c.l.b16 %v1020
    %v1057 = vunpack.c.l.b16 %v1023
    %v1058 = vpack.c.b16 %v1027, %v1026
    %v1059 = vpack.c.b16 %v1029, %v1028
    %v1060 = vpack.c.b16 %v1031, %v1030
    %v1061 = vpack.c.b16 %v1033, %v1032
    %v1062 = vpack.c.b16 %v1035, %v1034
    %v1063 = vpack.c.b16 %v1037, %v1036
    %v1064 = vpack.c.b16 %v1039, %v1038
    %v1065 = vpack.c.b16 %v1041, %v1040
    %v1066 = vpack.c.b16 %v1043, %v1042
    %v1067 = vpack.c.b16 %v1045, %v1044
    %v1068 = vpack.c.b16 %v1047, %v1046
    %v1069 = vpack.c.b16 %v1049, %v1048
    %v1070 = vpack.c.b16 %v1051, %v1050
    %v1071 = vpack.c.b16 %v1053, %v1052
    %v1072 = vpack.c.b16 %v1055, %v1054
    %v1073 = vpack.c.b16 %v1057, %v1056
    %v1075 = vsel %vm499, %v1058, 0
    %v1078 = vsel %vm499, %v1059, 0
    %v1081 = vsel %vm499, %v1060, 0
    %v1084 = vsel %vm499, %v1061, 0
    %v1087 = vsel %vm499, %v1062, 0
    %v1090 = vsel %vm499, %v1063, 0
    %v1093 = vsel %vm499, %v1064, 0
    %v1096 = vsel %vm499, %v1065, 0
    %v1099 = vsel %vm499, %v1066, 0
    %v1102 = vsel %vm499, %v1067, 0
    %v1105 = vsel %vm499, %v1068, 0
    %v1108 = vsel %vm499, %v1069, 0
    %v1111 = vsel %vm499, %v1070, 0
    %v1114 = vsel %vm499, %v1071, 0
    %v1117 = vsel %vm499, %v1072, 0
    %v1120 = vsel %vm499, %v1073, 0
    %v1123 = vsel %vm548, %v1025, 0
    %1125 = vmatpush.bf16.msra.mxu0 0
    %1126 = vmatpush.bf16.msra.mxu0 0
    %1127 = vmatpush.bf16.msra.mxu0 0
    %1128 = vmatpush.bf16.msra.mxu0 0
    %1129 = vmatpush.bf16.msra.mxu0 0
    %1130 = vmatpush.bf16.msra.mxu0 0
    %1131 = vmatpush.bf16.msra.mxu0 0
    %1132 = vmatpush.bf16.msra.mxu0 %v1123
    %1133 = vmatmul.bf16.gmra.mxu0 %v1075
    %v1134 = vpop.f32.mrf.mxu0
    %v1135 = vadd.f32 0.0, %v1134
    %v1136 = vpop.f32.mrf.mxu0
    %v1137 = vadd.f32 0.0, %v1136
    %1138 = vmatmul.bf16.gmra.mxu0 %v1078
    %v1139 = vpop.f32.mrf.mxu0
    %v1140 = vadd.f32 0.0, %v1139
    %v1141 = vpop.f32.mrf.mxu0
    %v1142 = vadd.f32 0.0, %v1141
    %1143 = vmatmul.bf16.gmra.mxu0 %v1081
    %v1144 = vpop.f32.mrf.mxu0
    %v1145 = vadd.f32 0.0, %v1144
    %v1146 = vpop.f32.mrf.mxu0
    %v1147 = vadd.f32 0.0, %v1146
    %1148 = vmatmul.bf16.gmra.mxu0 %v1084
    %v1149 = vpop.f32.mrf.mxu0
    %v1150 = vadd.f32 0.0, %v1149
    %v1151 = vpop.f32.mrf.mxu0
    %v1152 = vadd.f32 0.0, %v1151
    %1153 = vmatmul.bf16.gmra.mxu0 %v1087
    %v1154 = vpop.f32.mrf.mxu0
    %v1155 = vadd.f32 0.0, %v1154
    %v1156 = vpop.f32.mrf.mxu0
    %v1157 = vadd.f32 0.0, %v1156
    %1158 = vmatmul.bf16.gmra.mxu0 %v1090
    %v1159 = vpop.f32.mrf.mxu0
    %v1160 = vadd.f32 0.0, %v1159
    %v1161 = vpop.f32.mrf.mxu0
    %v1162 = vadd.f32 0.0, %v1161
    %1163 = vmatmul.bf16.gmra.mxu0 %v1093
    %v1164 = vpop.f32.mrf.mxu0
    %v1165 = vadd.f32 0.0, %v1164
    %v1166 = vpop.f32.mrf.mxu0
    %v1167 = vadd.f32 0.0, %v1166
    %1168 = vmatmul.bf16.gmra.mxu0 %v1096
    %v1169 = vpop.f32.mrf.mxu0
    %v1170 = vadd.f32 0.0, %v1169
    %v1171 = vpop.f32.mrf.mxu0
    %v1172 = vadd.f32 0.0, %v1171
    %1173 = vmatmul.bf16.gmra.mxu0 %v1099
    %v1174 = vpop.f32.mrf.mxu0
    %v1175 = vadd.f32 0.0, %v1174
    %v1176 = vpop.f32.mrf.mxu0
    %v1177 = vadd.f32 0.0, %v1176
    %1178 = vmatmul.bf16.gmra.mxu0 %v1102
    %v1179 = vpop.f32.mrf.mxu0
    %v1180 = vadd.f32 0.0, %v1179
    %v1181 = vpop.f32.mrf.mxu0
    %v1182 = vadd.f32 0.0, %v1181
    %1183 = vmatmul.bf16.gmra.mxu0 %v1105
    %v1184 = vpop.f32.mrf.mxu0
    %v1185 = vadd.f32 0.0, %v1184
    %v1186 = vpop.f32.mrf.mxu0
    %v1187 = vadd.f32 0.0, %v1186
    %1188 = vmatmul.bf16.gmra.mxu0 %v1108
    %v1189 = vpop.f32.mrf.mxu0
    %v1190 = vadd.f32 0.0, %v1189
    %v1191 = vpop.f32.mrf.mxu0
    %v1192 = vadd.f32 0.0, %v1191
    %1193 = vmatmul.bf16.gmra.mxu0 %v1111
    %v1194 = vpop.f32.mrf.mxu0
    %v1195 = vadd.f32 0.0, %v1194
    %v1196 = vpop.f32.mrf.mxu0
    %v1197 = vadd.f32 0.0, %v1196
    %1198 = vmatmul.bf16.gmra.mxu0 %v1114
    %v1199 = vpop.f32.mrf.mxu0
    %v1200 = vadd.f32 0.0, %v1199
    %v1201 = vpop.f32.mrf.mxu0
    %v1202 = vadd.f32 0.0, %v1201
    %1203 = vmatmul.bf16.gmra.mxu0 %v1117
    %v1204 = vpop.f32.mrf.mxu0
    %v1205 = vadd.f32 0.0, %v1204
    %v1206 = vpop.f32.mrf.mxu0
    %v1207 = vadd.f32 0.0, %v1206
    %1208 = vmatmul.bf16.gmra.mxu0 %v1120
    %v1209 = vpop.f32.mrf.mxu0
    %v1210 = vadd.f32 0.0, %v1209
    %v1211 = vpop.f32.mrf.mxu0
    %v1212 = vadd.f32 0.0, %v1211
    %1213 = vdwg.mxu0
    %v1214 = vadd.f32 %v782, %v1135
    %v1215 = vadd.f32 %v784, %v1137
    %v1216 = vadd.f32 %v787, %v1140
    %v1217 = vadd.f32 %v789, %v1142
    %v1218 = vadd.f32 %v792, %v1145
    %v1219 = vadd.f32 %v794, %v1147
    %v1220 = vadd.f32 %v797, %v1150
    %v1221 = vadd.f32 %v799, %v1152
    %v1222 = vadd.f32 %v802, %v1155
    %v1223 = vadd.f32 %v804, %v1157
    %v1224 = vadd.f32 %v807, %v1160
    %v1225 = vadd.f32 %v809, %v1162
    %v1226 = vadd.f32 %v812, %v1165
    %v1227 = vadd.f32 %v814, %v1167
    %v1228 = vadd.f32 %v817, %v1170
    %v1229 = vadd.f32 %v819, %v1172
    %v1230 = vadd.f32 %v822, %v1175
    %v1231 = vadd.f32 %v824, %v1177
    %v1232 = vadd.f32 %v827, %v1180
    %v1233 = vadd.f32 %v829, %v1182
    %v1234 = vadd.f32 %v832, %v1185
    %v1235 = vadd.f32 %v834, %v1187
    %v1236 = vadd.f32 %v837, %v1190
    %v1237 = vadd.f32 %v839, %v1192
    %v1238 = vadd.f32 %v842, %v1195
    %v1239 = vadd.f32 %v844, %v1197
    %v1240 = vadd.f32 %v847, %v1200
    %v1241 = vadd.f32 %v849, %v1202
    %v1242 = vadd.f32 %v852, %v1205
    %v1243 = vadd.f32 %v854, %v1207
    %v1244 = vadd.f32 %v857, %v1210
    %v1245 = vadd.f32 %v859, %v1212
    %s1246 = scalar_lea.vmem %s0, 12
    %v1247 = vld [vmem:[%s1246] sm:$0xf]
    %v1248 = vld [vmem:[%s1246 + $0x4] sm:$0xf]
    %v1249 = vld [vmem:[%s1246 + $0xc] sm:$0xf]
    %v1250 = vld [vmem:[%s1246 + $0x10] sm:$0xf]
    %v1251 = vld [vmem:[%s1246 + $0x18] sm:$0xf]
    %v1252 = vld [vmem:[%s1246 + $0x1c] sm:$0xf]
    %v1253 = vld [vmem:[%s1246 + $0x24] sm:$0xf]
    %v1254 = vld [vmem:[%s1246 + $0x28] sm:$0xf]
    %v1255 = vld [vmem:[%s1246 + $0x30] sm:$0xf]
    %v1256 = vld [vmem:[%s1246 + $0x34] sm:$0xf]
    %v1257 = vld [vmem:[%s1246 + $0x3c] sm:$0xf]
    %v1258 = vld [vmem:[%s1246 + $0x40] sm:$0xf]
    %v1259 = vld [vmem:[%s1246 + $0x48] sm:$0xf]
    %v1260 = vld [vmem:[%s1246 + $0x4c] sm:$0xf]
    %v1261 = vld [vmem:[%s1246 + $0x54] sm:$0xf]
    %v1262 = vld [vmem:[%s1246 + $0x58] sm:$0xf]
    %v1263 = vld [vmem:[%s1246 + $0xd8] sm:$0xf]
    %v1264 = vld [vmem:[%s1246 + $0xdc] sm:$0xf]
    %v1265 = vld [vmem:[%s1246 + $0xe4] sm:$0xf]
    %v1266 = vld [vmem:[%s1246 + $0xe8] sm:$0xf]
    %v1267 = vld [vmem:[%s1246 + $0xf0] sm:$0xf]
    %v1268 = vld [vmem:[%s1246 + $0xf4] sm:$0xf]
    %v1269 = vld [vmem:[%s1246 + $0xfc] sm:$0xf]
    %v1270 = vld [vmem:[%s1246 + $0x100] sm:$0xf]
    %v1271 = vld [vmem:[%s1246 + $0x108] sm:$0xf]
    %v1272 = vld [vmem:[%s1246 + $0x10c] sm:$0xf]
    %v1273 = vld [vmem:[%s1246 + $0x114] sm:$0xf]
    %v1274 = vld [vmem:[%s1246 + $0x118] sm:$0xf]
    %v1275 = vld [vmem:[%s1246 + $0x120] sm:$0xf]
    %v1276 = vld [vmem:[%s1246 + $0x124] sm:$0xf]
    %v1277 = vld [vmem:[%s1246 + $0x12c] sm:$0xf]
    %v1278 = vld [vmem:[%s1246 + $0x130] sm:$0xf]
    %s1279 = scalar_lea.vmem %s1, 6
    %v1280 = vld [vmem:[%s1279] sm:$0x3]
    %v1313 = vunpack.c.l.b16 %v1247
    %v1314 = vunpack.c.l.b16 %v1248
    %v1315 = vunpack.c.l.b16 %v1249
    %v1316 = vunpack.c.l.b16 %v1250
    %v1317 = vunpack.c.l.b16 %v1251
    %v1318 = vunpack.c.l.b16 %v1252
    %v1319 = vunpack.c.l.b16 %v1253
    %v1320 = vunpack.c.l.b16 %v1254
    %v1321 = vunpack.c.l.b16 %v1255
    %v1322 = vunpack.c.l.b16 %v1256
    %v1323 = vunpack.c.l.b16 %v1257
    %v1324 = vunpack.c.l.b16 %v1258
    %v1325 = vunpack.c.l.b16 %v1259
    %v1326 = vunpack.c.l.b16 %v1260
    %v1327 = vunpack.c.l.b16 %v1261
    %v1328 = vunpack.c.l.b16 %v1262
    %v1329 = vunpack.c.l.b16 %v1263
    %v1330 = vunpack.c.l.b16 %v1264
    %v1331 = vunpack.c.l.b16 %v1265
    %v1332 = vunpack.c.l.b16 %v1266
    %v1333 = vunpack.c.l.b16 %v1267
    %v1334 = vunpack.c.l.b16 %v1268
    %v1335 = vunpack.c.l.b16 %v1269
    %v1336 = vunpack.c.l.b16 %v1270
    %v1337 = vunpack.c.l.b16 %v1271
    %v1338 = vunpack.c.l.b16 %v1272
    %v1339 = vunpack.c.l.b16 %v1273
    %v1340 = vunpack.c.l.b16 %v1274
    %v1341 = vunpack.c.l.b16 %v1275
    %v1342 = vunpack.c.l.b16 %v1276
    %v1343 = vunpack.c.l.b16 %v1277
    %v1344 = vunpack.c.l.b16 %v1278
    %v1345 = vpack.c.b16 %v1314, %v1313
    %v1346 = vpack.c.b16 %v1316, %v1315
    %v1347 = vpack.c.b16 %v1318, %v1317
    %v1348 = vpack.c.b16 %v1320, %v1319
    %v1349 = vpack.c.b16 %v1322, %v1321
    %v1350 = vpack.c.b16 %v1324, %v1323
    %v1351 = vpack.c.b16 %v1326, %v1325
    %v1352 = vpack.c.b16 %v1328, %v1327
    %v1353 = vpack.c.b16 %v1330, %v1329
    %v1354 = vpack.c.b16 %v1332, %v1331
    %v1355 = vpack.c.b16 %v1334, %v1333
    %v1356 = vpack.c.b16 %v1336, %v1335
    %v1357 = vpack.c.b16 %v1338, %v1337
    %v1358 = vpack.c.b16 %v1340, %v1339
    %v1359 = vpack.c.b16 %v1342, %v1341
    %v1360 = vpack.c.b16 %v1344, %v1343
    %v1362 = vsel %vm499, %v1345, 0
    %v1365 = vsel %vm499, %v1346, 0
    %v1368 = vsel %vm499, %v1347, 0
    %v1371 = vsel %vm499, %v1348, 0
    %v1374 = vsel %vm499, %v1349, 0
    %v1377 = vsel %vm499, %v1350, 0
    %v1380 = vsel %vm499, %v1351, 0
    %v1383 = vsel %vm499, %v1352, 0
    %v1386 = vsel %vm499, %v1353, 0
    %v1389 = vsel %vm499, %v1354, 0
    %v1392 = vsel %vm499, %v1355, 0
    %v1395 = vsel %vm499, %v1356, 0
    %v1398 = vsel %vm499, %v1357, 0
    %v1401 = vsel %vm499, %v1358, 0
    %v1404 = vsel %vm499, %v1359, 0
    %v1407 = vsel %vm499, %v1360, 0
    %v1410 = vsel %vm548, %v1280, 0
    %1412 = vmatpush.bf16.msra.mxu0 0
    %1413 = vmatpush.bf16.msra.mxu0 0
    %1414 = vmatpush.bf16.msra.mxu0 0
    %1415 = vmatpush.bf16.msra.mxu0 0
    %1416 = vmatpush.bf16.msra.mxu0 0
    %1417 = vmatpush.bf16.msra.mxu0 0
    %1418 = vmatpush.bf16.msra.mxu0 0
    %1419 = vmatpush.bf16.msra.mxu0 %v1410
    %1420 = vmatmul.bf16.gmra.mxu0 %v1362
    %v1421 = vpop.f32.mrf.mxu0
    %v1422 = vadd.f32 0.0, %v1421
    %v1423 = vpop.f32.mrf.mxu0
    %v1424 = vadd.f32 0.0, %v1423
    %1425 = vmatmul.bf16.gmra.mxu0 %v1365
    %v1426 = vpop.f32.mrf.mxu0
    %v1427 = vadd.f32 0.0, %v1426
    %v1428 = vpop.f32.mrf.mxu0
    %v1429 = vadd.f32 0.0, %v1428
    %1430 = vmatmul.bf16.gmra.mxu0 %v1368
    %v1431 = vpop.f32.mrf.mxu0
    %v1432 = vadd.f32 0.0, %v1431
    %v1433 = vpop.f32.mrf.mxu0
    %v1434 = vadd.f32 0.0, %v1433
    %1435 = vmatmul.bf16.gmra.mxu0 %v1371
    %v1436 = vpop.f32.mrf.mxu0
    %v1437 = vadd.f32 0.0, %v1436
    %v1438 = vpop.f32.mrf.mxu0
    %v1439 = vadd.f32 0.0, %v1438
    %1440 = vmatmul.bf16.gmra.mxu0 %v1374
    %v1441 = vpop.f32.mrf.mxu0
    %v1442 = vadd.f32 0.0, %v1441
    %v1443 = vpop.f32.mrf.mxu0
    %v1444 = vadd.f32 0.0, %v1443
    %1445 = vmatmul.bf16.gmra.mxu0 %v1377
    %v1446 = vpop.f32.mrf.mxu0
    %v1447 = vadd.f32 0.0, %v1446
    %v1448 = vpop.f32.mrf.mxu0
    %v1449 = vadd.f32 0.0, %v1448
    %1450 = vmatmul.bf16.gmra.mxu0 %v1380
    %v1451 = vpop.f32.mrf.mxu0
    %v1452 = vadd.f32 0.0, %v1451
    %v1453 = vpop.f32.mrf.mxu0
    %v1454 = vadd.f32 0.0, %v1453
    %1455 = vmatmul.bf16.gmra.mxu0 %v1383
    %v1456 = vpop.f32.mrf.mxu0
    %v1457 = vadd.f32 0.0, %v1456
    %v1458 = vpop.f32.mrf.mxu0
    %v1459 = vadd.f32 0.0, %v1458
    %1460 = vmatmul.bf16.gmra.mxu0 %v1386
    %v1461 = vpop.f32.mrf.mxu0
    %v1462 = vadd.f32 0.0, %v1461
    %v1463 = vpop.f32.mrf.mxu0
    %v1464 = vadd.f32 0.0, %v1463
    %1465 = vmatmul.bf16.gmra.mxu0 %v1389
    %v1466 = vpop.f32.mrf.mxu0
    %v1467 = vadd.f32 0.0, %v1466
    %v1468 = vpop.f32.mrf.mxu0
    %v1469 = vadd.f32 0.0, %v1468
    %1470 = vmatmul.bf16.gmra.mxu0 %v1392
    %v1471 = vpop.f32.mrf.mxu0
    %v1472 = vadd.f32 0.0, %v1471
    %v1473 = vpop.f32.mrf.mxu0
    %v1474 = vadd.f32 0.0, %v1473
    %1475 = vmatmul.bf16.gmra.mxu0 %v1395
    %v1476 = vpop.f32.mrf.mxu0
    %v1477 = vadd.f32 0.0, %v1476
    %v1478 = vpop.f32.mrf.mxu0
    %v1479 = vadd.f32 0.0, %v1478
    %1480 = vmatmul.bf16.gmra.mxu0 %v1398
    %v1481 = vpop.f32.mrf.mxu0
    %v1482 = vadd.f32 0.0, %v1481
    %v1483 = vpop.f32.mrf.mxu0
    %v1484 = vadd.f32 0.0, %v1483
    %1485 = vmatmul.bf16.gmra.mxu0 %v1401
    %v1486 = vpop.f32.mrf.mxu0
    %v1487 = vadd.f32 0.0, %v1486
    %v1488 = vpop.f32.mrf.mxu0
    %v1489 = vadd.f32 0.0, %v1488
    %1490 = vmatmul.bf16.gmra.mxu0 %v1404
    %v1491 = vpop.f32.mrf.mxu0
    %v1492 = vadd.f32 0.0, %v1491
    %v1493 = vpop.f32.mrf.mxu0
    %v1494 = vadd.f32 0.0, %v1493
    %1495 = vmatmul.bf16.gmra.mxu0 %v1407
    %v1496 = vpop.f32.mrf.mxu0
    %v1497 = vadd.f32 0.0, %v1496
    %v1498 = vpop.f32.mrf.mxu0
    %v1499 = vadd.f32 0.0, %v1498
    %1500 = vdwg.mxu0
    %v1501 = vadd.f32 %v1214, %v1422
    %v1502 = vadd.f32 %v1215, %v1424
    %v1503 = vadd.f32 %v1216, %v1427
    %v1504 = vadd.f32 %v1217, %v1429
    %v1505 = vadd.f32 %v1218, %v1432
    %v1506 = vadd.f32 %v1219, %v1434
    %v1507 = vadd.f32 %v1220, %v1437
    %v1508 = vadd.f32 %v1221, %v1439
    %v1509 = vadd.f32 %v1222, %v1442
    %v1510 = vadd.f32 %v1223, %v1444
    %v1511 = vadd.f32 %v1224, %v1447
    %v1512 = vadd.f32 %v1225, %v1449
    %v1513 = vadd.f32 %v1226, %v1452
    %v1514 = vadd.f32 %v1227, %v1454
    %v1515 = vadd.f32 %v1228, %v1457
    %v1516 = vadd.f32 %v1229, %v1459
    %v1517 = vadd.f32 %v1230, %v1462
    %v1518 = vadd.f32 %v1231, %v1464
    %v1519 = vadd.f32 %v1232, %v1467
    %v1520 = vadd.f32 %v1233, %v1469
    %v1521 = vadd.f32 %v1234, %v1472
    %v1522 = vadd.f32 %v1235, %v1474
    %v1523 = vadd.f32 %v1236, %v1477
    %v1524 = vadd.f32 %v1237, %v1479
    %v1525 = vadd.f32 %v1238, %v1482
    %v1526 = vadd.f32 %v1239, %v1484
    %v1527 = vadd.f32 %v1240, %v1487
    %v1528 = vadd.f32 %v1241, %v1489
    %v1529 = vadd.f32 %v1242, %v1492
    %v1530 = vadd.f32 %v1243, %v1494
    %v1531 = vadd.f32 %v1244, %v1497
    %v1532 = vadd.f32 %v1245, %v1499
    %v1533 = vld [vmem:[%s1246] sm:$0xf]
    %v1534 = vld [vmem:[%s1246 + $0x4] sm:$0xf]
    %v1535 = vld [vmem:[%s1246 + $0x8] sm:$0x1]
    %v1536 = vld [vmem:[%s1246 + $0xc] sm:$0xf]
    %v1537 = vld [vmem:[%s1246 + $0x10] sm:$0xf]
    %v1538 = vld [vmem:[%s1246 + $0x14] sm:$0x1]
    %v1539 = vld [vmem:[%s1246 + $0x18] sm:$0xf]
    %v1540 = vld [vmem:[%s1246 + $0x1c] sm:$0xf]
    %v1541 = vld [vmem:[%s1246 + $0x20] sm:$0x1]
    %v1542 = vld [vmem:[%s1246 + $0x24] sm:$0xf]
    %v1543 = vld [vmem:[%s1246 + $0x28] sm:$0xf]
    %v1544 = vld [vmem:[%s1246 + $0x2c] sm:$0x1]
    %v1545 = vld [vmem:[%s1246 + $0x30] sm:$0xf]
    %v1546 = vld [vmem:[%s1246 + $0x34] sm:$0xf]
    %v1547 = vld [vmem:[%s1246 + $0x38] sm:$0x1]
    %v1548 = vld [vmem:[%s1246 + $0x3c] sm:$0xf]
    %v1549 = vld [vmem:[%s1246 + $0x40] sm:$0xf]
    %v1550 = vld [vmem:[%s1246 + $0x44] sm:$0x1]
    %v1551 = vld [vmem:[%s1246 + $0x48] sm:$0xf]
    %v1552 = vld [vmem:[%s1246 + $0x4c] sm:$0xf]
    %v1553 = vld [vmem:[%s1246 + $0x50] sm:$0x1]
    %v1554 = vld [vmem:[%s1246 + $0x54] sm:$0xf]
    %v1555 = vld [vmem:[%s1246 + $0x58] sm:$0xf]
    %v1556 = vld [vmem:[%s1246 + $0x5c] sm:$0x1]
    %v1557 = vld [vmem:[%s1246 + $0xd8] sm:$0xf]
    %v1558 = vld [vmem:[%s1246 + $0xdc] sm:$0xf]
    %v1559 = vld [vmem:[%s1246 + $0xe0] sm:$0x1]
    %v1560 = vld [vmem:[%s1246 + $0xe4] sm:$0xf]
    %v1561 = vld [vmem:[%s1246 + $0xe8] sm:$0xf]
    %v1562 = vld [vmem:[%s1246 + $0xec] sm:$0x1]
    %v1563 = vld [vmem:[%s1246 + $0xf0] sm:$0xf]
    %v1564 = vld [vmem:[%s1246 + $0xf4] sm:$0xf]
    %v1565 = vld [vmem:[%s1246 + $0xf8] sm:$0x1]
    %v1566 = vld [vmem:[%s1246 + $0xfc] sm:$0xf]
    %v1567 = vld [vmem:[%s1246 + $0x100] sm:$0xf]
    %v1568 = vld [vmem:[%s1246 + $0x104] sm:$0x1]
    %v1569 = vld [vmem:[%s1246 + $0x108] sm:$0xf]
    %v1570 = vld [vmem:[%s1246 + $0x10c] sm:$0xf]
    %v1571 = vld [vmem:[%s1246 + $0x110] sm:$0x1]
    %v1572 = vld [vmem:[%s1246 + $0x114] sm:$0xf]
    %v1573 = vld [vmem:[%s1246 + $0x118] sm:$0xf]
    %v1574 = vld [vmem:[%s1246 + $0x11c] sm:$0x1]
    %v1575 = vld [vmem:[%s1246 + $0x120] sm:$0xf]
    %v1576 = vld [vmem:[%s1246 + $0x124] sm:$0xf]
    %v1577 = vld [vmem:[%s1246 + $0x128] sm:$0x1]
    %v1578 = vld [vmem:[%s1246 + $0x12c] sm:$0xf]
    %v1579 = vld [vmem:[%s1246 + $0x130] sm:$0xf]
    %v1580 = vld [vmem:[%s1246 + $0x134] sm:$0x1]
    %v1582 = vshrl.u32 %v1533, 16
    %v1584 = vrot.slane %v1582, 4
    %v1585 = vshll.u32 %v1533, 16
    %v1587 = vrot.slane %v1585, 5
    %v1588 = vor.u32 %v1584, %v1587
    %v1589 = vrot.slane %v1588, 4
    %v1591 = vshll.u32 %v1534, 16
    %v1593 = vrot.slane %v1591, 5
    %v1594 = vsel %vm64, %v1589, %v1593
    %v1595 = vshrl.u32 %v1534, 16
    %v1597 = vrot.slane %v1595, 4
    %v1598 = vor.u32 %v1597, %v1593
    %v1599 = vrot.slane %v1598, 4
    %v1601 = vshll.u32 %v1535, 16
    %v1603 = vrot.slane %v1601, 5
    %v1604 = vsel %vm64, %v1599, %v1603
    %v1606 = vshrl.u32 %v1536, 16
    %v1608 = vrot.slane %v1606, 4
    %v1609 = vshll.u32 %v1536, 16
    %v1611 = vrot.slane %v1609, 5
    %v1612 = vor.u32 %v1608, %v1611
    %v1613 = vrot.slane %v1612, 4
    %v1615 = vshll.u32 %v1537, 16
    %v1617 = vrot.slane %v1615, 5
    %v1618 = vsel %vm64, %v1613, %v1617
    %v1619 = vshrl.u32 %v1537, 16
    %v1621 = vrot.slane %v1619, 4
    %v1622 = vor.u32 %v1621, %v1617
    %v1623 = vrot.slane %v1622, 4
    %v1625 = vshll.u32 %v1538, 16
    %v1627 = vrot.slane %v1625, 5
    %v1628 = vsel %vm64, %v1623, %v1627
    %v1630 = vshrl.u32 %v1539, 16
    %v1632 = vrot.slane %v1630, 4
    %v1633 = vshll.u32 %v1539, 16
    %v1635 = vrot.slane %v1633, 5
    %v1636 = vor.u32 %v1632, %v1635
    %v1637 = vrot.slane %v1636, 4
    %v1639 = vshll.u32 %v1540, 16
    %v1641 = vrot.slane %v1639, 5
    %v1642 = vsel %vm64, %v1637, %v1641
    %v1643 = vshrl.u32 %v1540, 16
    %v1645 = vrot.slane %v1643, 4
    %v1646 = vor.u32 %v1645, %v1641
    %v1647 = vrot.slane %v1646, 4
    %v1649 = vshll.u32 %v1541, 16
    %v1651 = vrot.slane %v1649, 5
    %v1652 = vsel %vm64, %v1647, %v1651
    %v1654 = vshrl.u32 %v1542, 16
    %v1656 = vrot.slane %v1654, 4
    %v1657 = vshll.u32 %v1542, 16
    %v1659 = vrot.slane %v1657, 5
    %v1660 = vor.u32 %v1656, %v1659
    %v1661 = vrot.slane %v1660, 4
    %v1663 = vshll.u32 %v1543, 16
    %v1665 = vrot.slane %v1663, 5
    %v1666 = vsel %vm64, %v1661, %v1665
    %v1667 = vshrl.u32 %v1543, 16
    %v1669 = vrot.slane %v1667, 4
    %v1670 = vor.u32 %v1669, %v1665
    %v1671 = vrot.slane %v1670, 4
    %v1673 = vshll.u32 %v1544, 16
    %v1675 = vrot.slane %v1673, 5
    %v1676 = vsel %vm64, %v1671, %v1675
    %v1678 = vshrl.u32 %v1545, 16
    %v1680 = vrot.slane %v1678, 4
    %v1681 = vshll.u32 %v1545, 16
    %v1683 = vrot.slane %v1681, 5
    %v1684 = vor.u32 %v1680, %v1683
    %v1685 = vrot.slane %v1684, 4
    %v1687 = vshll.u32 %v1546, 16
    %v1689 = vrot.slane %v1687, 5
    %v1690 = vsel %vm64, %v1685, %v1689
    %v1691 = vshrl.u32 %v1546, 16
    %v1693 = vrot.slane %v1691, 4
    %v1694 = vor.u32 %v1693, %v1689
    %v1695 = vrot.slane %v1694, 4
    %v1697 = vshll.u32 %v1547, 16
    %v1699 = vrot.slane %v1697, 5
    %v1700 = vsel %vm64, %v1695, %v1699
    %v1702 = vshrl.u32 %v1548, 16
    %v1704 = vrot.slane %v1702, 4
    %v1705 = vshll.u32 %v1548, 16
    %v1707 = vrot.slane %v1705, 5
    %v1708 = vor.u32 %v1704, %v1707
    %v1709 = vrot.slane %v1708, 4
    %v1711 = vshll.u32 %v1549, 16
    %v1713 = vrot.slane %v1711, 5
    %v1714 = vsel %vm64, %v1709, %v1713
    %v1715 = vshrl.u32 %v1549, 16
    %v1717 = vrot.slane %v1715, 4
    %v1718 = vor.u32 %v1717, %v1713
    %v1719 = vrot.slane %v1718, 4
    %v1721 = vshll.u32 %v1550, 16
    %v1723 = vrot.slane %v1721, 5
    %v1724 = vsel %vm64, %v1719, %v1723
    %v1726 = vshrl.u32 %v1551, 16
    %v1728 = vrot.slane %v1726, 4
    %v1729 = vshll.u32 %v1551, 16
    %v1731 = vrot.slane %v1729, 5
    %v1732 = vor.u32 %v1728, %v1731
    %v1733 = vrot.slane %v1732, 4
    %v1735 = vshll.u32 %v1552, 16
    %v1737 = vrot.slane %v1735, 5
    %v1738 = vsel %vm64, %v1733, %v1737
    %v1739 = vshrl.u32 %v1552, 16
    %v1741 = vrot.slane %v1739, 4
    %v1742 = vor.u32 %v1741, %v1737
    %v1743 = vrot.slane %v1742, 4
    %v1745 = vshll.u32 %v1553, 16
    %v1747 = vrot.slane %v1745, 5
    %v1748 = vsel %vm64, %v1743, %v1747
    %v1750 = vshrl.u32 %v1554, 16
    %v1752 = vrot.slane %v1750, 4
    %v1753 = vshll.u32 %v1554, 16
    %v1755 = vrot.slane %v1753, 5
    %v1756 = vor.u32 %v1752, %v1755
    %v1757 = vrot.slane %v1756, 4
    %v1759 = vshll.u32 %v1555, 16
    %v1761 = vrot.slane %v1759, 5
    %v1762 = vsel %vm64, %v1757, %v1761
    %v1763 = vshrl.u32 %v1555, 16
    %v1765 = vrot.slane %v1763, 4
    %v1766 = vor.u32 %v1765, %v1761
    %v1767 = vrot.slane %v1766, 4
    %v1769 = vshll.u32 %v1556, 16
    %v1771 = vrot.slane %v1769, 5
    %v1772 = vsel %vm64, %v1767, %v1771
    %v1774 = vshrl.u32 %v1557, 16
    %v1776 = vrot.slane %v1774, 4
    %v1777 = vshll.u32 %v1557, 16
    %v1779 = vrot.slane %v1777, 5
    %v1780 = vor.u32 %v1776, %v1779
    %v1781 = vrot.slane %v1780, 4
    %v1783 = vshll.u32 %v1558, 16
    %v1785 = vrot.slane %v1783, 5
    %v1786 = vsel %vm64, %v1781, %v1785
    %v1787 = vshrl.u32 %v1558, 16
    %v1789 = vrot.slane %v1787, 4
    %v1790 = vor.u32 %v1789, %v1785
    %v1791 = vrot.slane %v1790, 4
    %v1793 = vshll.u32 %v1559, 16
    %v1795 = vrot.slane %v1793, 5
    %v1796 = vsel %vm64, %v1791, %v1795
    %v1798 = vshrl.u32 %v1560, 16
    %v1800 = vrot.slane %v1798, 4
    %v1801 = vshll.u32 %v1560, 16
    %v1803 = vrot.slane %v1801, 5
    %v1804 = vor.u32 %v1800, %v1803
    %v1805 = vrot.slane %v1804, 4
    %v1807 = vshll.u32 %v1561, 16
    %v1809 = vrot.slane %v1807, 5
    %v1810 = vsel %vm64, %v1805, %v1809
    %v1811 = vshrl.u32 %v1561, 16
    %v1813 = vrot.slane %v1811, 4
    %v1814 = vor.u32 %v1813, %v1809
    %v1815 = vrot.slane %v1814, 4
    %v1817 = vshll.u32 %v1562, 16
    %v1819 = vrot.slane %v1817, 5
    %v1820 = vsel %vm64, %v1815, %v1819
    %v1822 = vshrl.u32 %v1563, 16
    %v1824 = vrot.slane %v1822, 4
    %v1825 = vshll.u32 %v1563, 16
    %v1827 = vrot.slane %v1825, 5
    %v1828 = vor.u32 %v1824, %v1827
    %v1829 = vrot.slane %v1828, 4
    %v1831 = vshll.u32 %v1564, 16
    %v1833 = vrot.slane %v1831, 5
    %v1834 = vsel %vm64, %v1829, %v1833
    %v1835 = vshrl.u32 %v1564, 16
    %v1837 = vrot.slane %v1835, 4
    %v1838 = vor.u32 %v1837, %v1833
    %v1839 = vrot.slane %v1838, 4
    %v1841 = vshll.u32 %v1565, 16
    %v1843 = vrot.slane %v1841, 5
    %v1844 = vsel %vm64, %v1839, %v1843
    %v1846 = vshrl.u32 %v1566, 16
    %v1848 = vrot.slane %v1846, 4
    %v1849 = vshll.u32 %v1566, 16
    %v1851 = vrot.slane %v1849, 5
    %v1852 = vor.u32 %v1848, %v1851
    %v1853 = vrot.slane %v1852, 4
    %v1855 = vshll.u32 %v1567, 16
    %v1857 = vrot.slane %v1855, 5
    %v1858 = vsel %vm64, %v1853, %v1857
    %v1859 = vshrl.u32 %v1567, 16
    %v1861 = vrot.slane %v1859, 4
    %v1862 = vor.u32 %v1861, %v1857
    %v1863 = vrot.slane %v1862, 4
    %v1865 = vshll.u32 %v1568, 16
    %v1867 = vrot.slane %v1865, 5
    %v1868 = vsel %vm64, %v1863, %v1867
    %v1870 = vshrl.u32 %v1569, 16
    %v1872 = vrot.slane %v1870, 4
    %v1873 = vshll.u32 %v1569, 16
    %v1875 = vrot.slane %v1873, 5
    %v1876 = vor.u32 %v1872, %v1875
    %v1877 = vrot.slane %v1876, 4
    %v1879 = vshll.u32 %v1570, 16
    %v1881 = vrot.slane %v1879, 5
    %v1882 = vsel %vm64, %v1877, %v1881
    %v1883 = vshrl.u32 %v1570, 16
    %v1885 = vrot.slane %v1883, 4
    %v1886 = vor.u32 %v1885, %v1881
    %v1887 = vrot.slane %v1886, 4
    %v1889 = vshll.u32 %v1571, 16
    %v1891 = vrot.slane %v1889, 5
    %v1892 = vsel %vm64, %v1887, %v1891
    %v1894 = vshrl.u32 %v1572, 16
    %v1896 = vrot.slane %v1894, 4
    %v1897 = vshll.u32 %v1572, 16
    %v1899 = vrot.slane %v1897, 5
    %v1900 = vor.u32 %v1896, %v1899
    %v1901 = vrot.slane %v1900, 4
    %v1903 = vshll.u32 %v1573, 16
    %v1905 = vrot.slane %v1903, 5
    %v1906 = vsel %vm64, %v1901, %v1905
    %v1907 = vshrl.u32 %v1573, 16
    %v1909 = vrot.slane %v1907, 4
    %v1910 = vor.u32 %v1909, %v1905
    %v1911 = vrot.slane %v1910, 4
    %v1913 = vshll.u32 %v1574, 16
    %v1915 = vrot.slane %v1913, 5
    %v1916 = vsel %vm64, %v1911, %v1915
    %v1918 = vshrl.u32 %v1575, 16
    %v1920 = vrot.slane %v1918, 4
    %v1921 = vshll.u32 %v1575, 16
    %v1923 = vrot.slane %v1921, 5
    %v1924 = vor.u32 %v1920, %v1923
    %v1925 = vrot.slane %v1924, 4
    %v1927 = vshll.u32 %v1576, 16
    %v1929 = vrot.slane %v1927, 5
    %v1930 = vsel %vm64, %v1925, %v1929
    %v1931 = vshrl.u32 %v1576, 16
    %v1933 = vrot.slane %v1931, 4
    %v1934 = vor.u32 %v1933, %v1929
    %v1935 = vrot.slane %v1934, 4
    %v1937 = vshll.u32 %v1577, 16
    %v1939 = vrot.slane %v1937, 5
    %v1940 = vsel %vm64, %v1935, %v1939
    %v1942 = vshrl.u32 %v1578, 16
    %v1944 = vrot.slane %v1942, 4
    %v1945 = vshll.u32 %v1578, 16
    %v1947 = vrot.slane %v1945, 5
    %v1948 = vor.u32 %v1944, %v1947
    %v1949 = vrot.slane %v1948, 4
    %v1951 = vshll.u32 %v1579, 16
    %v1953 = vrot.slane %v1951, 5
    %v1954 = vsel %vm64, %v1949, %v1953
    %v1955 = vshrl.u32 %v1579, 16
    %v1957 = vrot.slane %v1955, 4
    %v1958 = vor.u32 %v1957, %v1953
    %v1959 = vrot.slane %v1958, 4
    %v1961 = vshll.u32 %v1580, 16
    %v1963 = vrot.slane %v1961, 5
    %v1964 = vsel %vm64, %v1959, %v1963
    %s1965 = scalar_lea.vmem %s1, 8
    %v1966 = vld [vmem:[%s1965] sm:$0x3]
    %v1967 = vunpack.c.l.b16 %v1594
    %v1968 = vunpack.c.l.b16 %v1604
    %v1969 = vunpack.c.l.b16 %v1618
    %v1970 = vunpack.c.l.b16 %v1628
    %v1971 = vunpack.c.l.b16 %v1642
    %v1972 = vunpack.c.l.b16 %v1652
    %v1973 = vunpack.c.l.b16 %v1666
    %v1974 = vunpack.c.l.b16 %v1676
    %v1975 = vunpack.c.l.b16 %v1690
    %v1976 = vunpack.c.l.b16 %v1700
    %v1977 = vunpack.c.l.b16 %v1714
    %v1978 = vunpack.c.l.b16 %v1724
    %v1979 = vunpack.c.l.b16 %v1738
    %v1980 = vunpack.c.l.b16 %v1748
    %v1981 = vunpack.c.l.b16 %v1762
    %v1982 = vunpack.c.l.b16 %v1772
    %v1983 = vunpack.c.l.b16 %v1786
    %v1984 = vunpack.c.l.b16 %v1796
    %v1985 = vunpack.c.l.b16 %v1810
    %v1986 = vunpack.c.l.b16 %v1820
    %v1987 = vunpack.c.l.b16 %v1834
    %v1988 = vunpack.c.l.b16 %v1844
    %v1989 = vunpack.c.l.b16 %v1858
    %v1990 = vunpack.c.l.b16 %v1868
    %v1991 = vunpack.c.l.b16 %v1882
    %v1992 = vunpack.c.l.b16 %v1892
    %v1993 = vunpack.c.l.b16 %v1906
    %v1994 = vunpack.c.l.b16 %v1916
    %v1995 = vunpack.c.l.b16 %v1930
    %v1996 = vunpack.c.l.b16 %v1940
    %v1997 = vunpack.c.l.b16 %v1954
    %v1998 = vunpack.c.l.b16 %v1964
    %v1999 = vpack.c.b16 %v1968, %v1967
    %v2000 = vpack.c.b16 %v1970, %v1969
    %v2001 = vpack.c.b16 %v1972, %v1971
    %v2002 = vpack.c.b16 %v1974, %v1973
    %v2003 = vpack.c.b16 %v1976, %v1975
    %v2004 = vpack.c.b16 %v1978, %v1977
    %v2005 = vpack.c.b16 %v1980, %v1979
    %v2006 = vpack.c.b16 %v1982, %v1981
    %v2007 = vpack.c.b16 %v1984, %v1983
    %v2008 = vpack.c.b16 %v1986, %v1985
    %v2009 = vpack.c.b16 %v1988, %v1987
    %v2010 = vpack.c.b16 %v1990, %v1989
    %v2011 = vpack.c.b16 %v1992, %v1991
    %v2012 = vpack.c.b16 %v1994, %v1993
    %v2013 = vpack.c.b16 %v1996, %v1995
    %v2014 = vpack.c.b16 %v1998, %v1997
    %v2016 = vsel %vm499, %v1999, 0
    %v2019 = vsel %vm499, %v2000, 0
    %v2022 = vsel %vm499, %v2001, 0
    %v2025 = vsel %vm499, %v2002, 0
    %v2028 = vsel %vm499, %v2003, 0
    %v2031 = vsel %vm499, %v2004, 0
    %v2034 = vsel %vm499, %v2005, 0
    %v2037 = vsel %vm499, %v2006, 0
    %v2040 = vsel %vm499, %v2007, 0
    %v2043 = vsel %vm499, %v2008, 0
    %v2046 = vsel %vm499, %v2009, 0
    %v2049 = vsel %vm499, %v2010, 0
    %v2052 = vsel %vm499, %v2011, 0
    %v2055 = vsel %vm499, %v2012, 0
    %v2058 = vsel %vm499, %v2013, 0
    %v2061 = vsel %vm499, %v2014, 0
    %v2064 = vsel %vm548, %v1966, 0
    %2066 = vmatpush.bf16.msra.mxu0 0
    %2067 = vmatpush.bf16.msra.mxu0 0
    %2068 = vmatpush.bf16.msra.mxu0 0
    %2069 = vmatpush.bf16.msra.mxu0 0
    %2070 = vmatpush.bf16.msra.mxu0 0
    %2071 = vmatpush.bf16.msra.mxu0 0
    %2072 = vmatpush.bf16.msra.mxu0 0
    %2073 = vmatpush.bf16.msra.mxu0 %v2064
    %2074 = vmatmul.bf16.gmra.mxu0 %v2016
    %v2075 = vpop.f32.mrf.mxu0
    %v2076 = vadd.f32 0.0, %v2075
    %v2077 = vpop.f32.mrf.mxu0
    %v2078 = vadd.f32 0.0, %v2077
    %2079 = vmatmul.bf16.gmra.mxu0 %v2019
    %v2080 = vpop.f32.mrf.mxu0
    %v2081 = vadd.f32 0.0, %v2080
    %v2082 = vpop.f32.mrf.mxu0
    %v2083 = vadd.f32 0.0, %v2082
    %2084 = vmatmul.bf16.gmra.mxu0 %v2022
    %v2085 = vpop.f32.mrf.mxu0
    %v2086 = vadd.f32 0.0, %v2085
    %v2087 = vpop.f32.mrf.mxu0
    %v2088 = vadd.f32 0.0, %v2087
    %2089 = vmatmul.bf16.gmra.mxu0 %v2025
    %v2090 = vpop.f32.mrf.mxu0
    %v2091 = vadd.f32 0.0, %v2090
    %v2092 = vpop.f32.mrf.mxu0
    %v2093 = vadd.f32 0.0, %v2092
    %2094 = vmatmul.bf16.gmra.mxu0 %v2028
    %v2095 = vpop.f32.mrf.mxu0
    %v2096 = vadd.f32 0.0, %v2095
    %v2097 = vpop.f32.mrf.mxu0
    %v2098 = vadd.f32 0.0, %v2097
    %2099 = vmatmul.bf16.gmra.mxu0 %v2031
    %v2100 = vpop.f32.mrf.mxu0
    %v2101 = vadd.f32 0.0, %v2100
    %v2102 = vpop.f32.mrf.mxu0
    %v2103 = vadd.f32 0.0, %v2102
    %2104 = vmatmul.bf16.gmra.mxu0 %v2034
    %v2105 = vpop.f32.mrf.mxu0
    %v2106 = vadd.f32 0.0, %v2105
    %v2107 = vpop.f32.mrf.mxu0
    %v2108 = vadd.f32 0.0, %v2107
    %2109 = vmatmul.bf16.gmra.mxu0 %v2037
    %v2110 = vpop.f32.mrf.mxu0
    %v2111 = vadd.f32 0.0, %v2110
    %v2112 = vpop.f32.mrf.mxu0
    %v2113 = vadd.f32 0.0, %v2112
    %2114 = vmatmul.bf16.gmra.mxu0 %v2040
    %v2115 = vpop.f32.mrf.mxu0
    %v2116 = vadd.f32 0.0, %v2115
    %v2117 = vpop.f32.mrf.mxu0
    %v2118 = vadd.f32 0.0, %v2117
    %2119 = vmatmul.bf16.gmra.mxu0 %v2043
    %v2120 = vpop.f32.mrf.mxu0
    %v2121 = vadd.f32 0.0, %v2120
    %v2122 = vpop.f32.mrf.mxu0
    %v2123 = vadd.f32 0.0, %v2122
    %2124 = vmatmul.bf16.gmra.mxu0 %v2046
    %v2125 = vpop.f32.mrf.mxu0
    %v2126 = vadd.f32 0.0, %v2125
    %v2127 = vpop.f32.mrf.mxu0
    %v2128 = vadd.f32 0.0, %v2127
    %2129 = vmatmul.bf16.gmra.mxu0 %v2049
    %v2130 = vpop.f32.mrf.mxu0
    %v2131 = vadd.f32 0.0, %v2130
    %v2132 = vpop.f32.mrf.mxu0
    %v2133 = vadd.f32 0.0, %v2132
    %2134 = vmatmul.bf16.gmra.mxu0 %v2052
    %v2135 = vpop.f32.mrf.mxu0
    %v2136 = vadd.f32 0.0, %v2135
    %v2137 = vpop.f32.mrf.mxu0
    %v2138 = vadd.f32 0.0, %v2137
    %2139 = vmatmul.bf16.gmra.mxu0 %v2055
    %v2140 = vpop.f32.mrf.mxu0
    %v2141 = vadd.f32 0.0, %v2140
    %v2142 = vpop.f32.mrf.mxu0
    %v2143 = vadd.f32 0.0, %v2142
    %2144 = vmatmul.bf16.gmra.mxu0 %v2058
    %v2145 = vpop.f32.mrf.mxu0
    %v2146 = vadd.f32 0.0, %v2145
    %v2147 = vpop.f32.mrf.mxu0
    %v2148 = vadd.f32 0.0, %v2147
    %2149 = vmatmul.bf16.gmra.mxu0 %v2061
    %v2150 = vpop.f32.mrf.mxu0
    %v2151 = vadd.f32 0.0, %v2150
    %v2152 = vpop.f32.mrf.mxu0
    %v2153 = vadd.f32 0.0, %v2152
    %2154 = vdwg.mxu0
    %v2155 = vadd.f32 %v1501, %v2076
    %v2156 = vadd.f32 %v1502, %v2078
    %v2157 = vadd.f32 %v1503, %v2081
    %v2158 = vadd.f32 %v1504, %v2083
    %v2159 = vadd.f32 %v1505, %v2086
    %v2160 = vadd.f32 %v1506, %v2088
    %v2161 = vadd.f32 %v1507, %v2091
    %v2162 = vadd.f32 %v1508, %v2093
    %v2163 = vadd.f32 %v1509, %v2096
    %v2164 = vadd.f32 %v1510, %v2098
    %v2165 = vadd.f32 %v1511, %v2101
    %v2166 = vadd.f32 %v1512, %v2103
    %v2167 = vadd.f32 %v1513, %v2106
    %v2168 = vadd.f32 %v1514, %v2108
    %v2169 = vadd.f32 %v1515, %v2111
    %v2170 = vadd.f32 %v1516, %v2113
    %v2171 = vadd.f32 %v1517, %v2116
    %v2172 = vadd.f32 %v1518, %v2118
    %v2173 = vadd.f32 %v1519, %v2121
    %v2174 = vadd.f32 %v1520, %v2123
    %v2175 = vadd.f32 %v1521, %v2126
    %v2176 = vadd.f32 %v1522, %v2128
    %v2177 = vadd.f32 %v1523, %v2131
    %v2178 = vadd.f32 %v1524, %v2133
    %v2179 = vadd.f32 %v1525, %v2136
    %v2180 = vadd.f32 %v1526, %v2138
    %v2181 = vadd.f32 %v1527, %v2141
    %v2182 = vadd.f32 %v1528, %v2143
    %v2183 = vadd.f32 %v1529, %v2146
    %v2184 = vadd.f32 %v1530, %v2148
    %v2185 = vadd.f32 %v1531, %v2151
    %v2186 = vadd.f32 %v1532, %v2153
    %v2187 = vld [vmem:[%s1246] sm:$0xe]
    %v2188 = vld [vmem:[%s1246 + $0xc] sm:$0xe]
    %v2189 = vld [vmem:[%s1246 + $0x18] sm:$0xe]
    %v2190 = vld [vmem:[%s1246 + $0x24] sm:$0xe]
    %v2191 = vld [vmem:[%s1246 + $0x30] sm:$0xe]
    %v2192 = vld [vmem:[%s1246 + $0x3c] sm:$0xe]
    %v2193 = vld [vmem:[%s1246 + $0x48] sm:$0xe]
    %v2194 = vld [vmem:[%s1246 + $0x54] sm:$0xe]
    %v2195 = vld [vmem:[%s1246 + $0xd8] sm:$0xe]
    %v2196 = vld [vmem:[%s1246 + $0xe4] sm:$0xe]
    %v2197 = vld [vmem:[%s1246 + $0xf0] sm:$0xe]
    %v2198 = vld [vmem:[%s1246 + $0xfc] sm:$0xe]
    %v2199 = vld [vmem:[%s1246 + $0x108] sm:$0xe]
    %v2200 = vld [vmem:[%s1246 + $0x114] sm:$0xe]
    %v2201 = vld [vmem:[%s1246 + $0x120] sm:$0xe]
    %v2202 = vld [vmem:[%s1246 + $0x12c] sm:$0xe]
    %v2251 = vrot.slane %v2187, 5
    %v2252 = vrot.slane %v2251, 4
    %v2253 = vrot.slane %v1534, 5
    %v2254 = vsel %vm911, %v2252, %v2253
    %v2255 = vrot.slane %v2253, 4
    %v2256 = vrot.slane %v1535, 5
    %v2257 = vsel %vm911, %v2255, %v2256
    %v2258 = vrot.slane %v2188, 5
    %v2259 = vrot.slane %v2258, 4
    %v2260 = vrot.slane %v1537, 5
    %v2261 = vsel %vm911, %v2259, %v2260
    %v2262 = vrot.slane %v2260, 4
    %v2263 = vrot.slane %v1538, 5
    %v2264 = vsel %vm911, %v2262, %v2263
    %v2265 = vrot.slane %v2189, 5
    %v2266 = vrot.slane %v2265, 4
    %v2267 = vrot.slane %v1540, 5
    %v2268 = vsel %vm911, %v2266, %v2267
    %v2269 = vrot.slane %v2267, 4
    %v2270 = vrot.slane %v1541, 5
    %v2271 = vsel %vm911, %v2269, %v2270
    %v2272 = vrot.slane %v2190, 5
    %v2273 = vrot.slane %v2272, 4
    %v2274 = vrot.slane %v1543, 5
    %v2275 = vsel %vm911, %v2273, %v2274
    %v2276 = vrot.slane %v2274, 4
    %v2277 = vrot.slane %v1544, 5
    %v2278 = vsel %vm911, %v2276, %v2277
    %v2279 = vrot.slane %v2191, 5
    %v2280 = vrot.slane %v2279, 4
    %v2281 = vrot.slane %v1546, 5
    %v2282 = vsel %vm911, %v2280, %v2281
    %v2283 = vrot.slane %v2281, 4
    %v2284 = vrot.slane %v1547, 5
    %v2285 = vsel %vm911, %v2283, %v2284
    %v2286 = vrot.slane %v2192, 5
    %v2287 = vrot.slane %v2286, 4
    %v2288 = vrot.slane %v1549, 5
    %v2289 = vsel %vm911, %v2287, %v2288
    %v2290 = vrot.slane %v2288, 4
    %v2291 = vrot.slane %v1550, 5
    %v2292 = vsel %vm911, %v2290, %v2291
    %v2293 = vrot.slane %v2193, 5
    %v2294 = vrot.slane %v2293, 4
    %v2295 = vrot.slane %v1552, 5
    %v2296 = vsel %vm911, %v2294, %v2295
    %v2297 = vrot.slane %v2295, 4
    %v2298 = vrot.slane %v1553, 5
    %v2299 = vsel %vm911, %v2297, %v2298
    %v2300 = vrot.slane %v2194, 5
    %v2301 = vrot.slane %v2300, 4
    %v2302 = vrot.slane %v1555, 5
    %v2303 = vsel %vm911, %v2301, %v2302
    %v2304 = vrot.slane %v2302, 4
    %v2305 = vrot.slane %v1556, 5
    %v2306 = vsel %vm911, %v2304, %v2305
    %v2307 = vrot.slane %v2195, 5
    %v2308 = vrot.slane %v2307, 4
    %v2309 = vrot.slane %v1558, 5
    %v2310 = vsel %vm911, %v2308, %v2309
    %v2311 = vrot.slane %v2309, 4
    %v2312 = vrot.slane %v1559, 5
    %v2313 = vsel %vm911, %v2311, %v2312
    %v2314 = vrot.slane %v2196, 5
    %v2315 = vrot.slane %v2314, 4
    %v2316 = vrot.slane %v1561, 5
    %v2317 = vsel %vm911, %v2315, %v2316
    %v2318 = vrot.slane %v2316, 4
    %v2319 = vrot.slane %v1562, 5
    %v2320 = vsel %vm911, %v2318, %v2319
    %v2321 = vrot.slane %v2197, 5
    %v2322 = vrot.slane %v2321, 4
    %v2323 = vrot.slane %v1564, 5
    %v2324 = vsel %vm911, %v2322, %v2323
    %v2325 = vrot.slane %v2323, 4
    %v2326 = vrot.slane %v1565, 5
    %v2327 = vsel %vm911, %v2325, %v2326
    %v2328 = vrot.slane %v2198, 5
    %v2329 = vrot.slane %v2328, 4
    %v2330 = vrot.slane %v1567, 5
    %v2331 = vsel %vm911, %v2329, %v2330
    %v2332 = vrot.slane %v2330, 4
    %v2333 = vrot.slane %v1568, 5
    %v2334 = vsel %vm911, %v2332, %v2333
    %v2335 = vrot.slane %v2199, 5
    %v2336 = vrot.slane %v2335, 4
    %v2337 = vrot.slane %v1570, 5
    %v2338 = vsel %vm911, %v2336, %v2337
    %v2339 = vrot.slane %v2337, 4
    %v2340 = vrot.slane %v1571, 5
    %v2341 = vsel %vm911, %v2339, %v2340
    %v2342 = vrot.slane %v2200, 5
    %v2343 = vrot.slane %v2342, 4
    %v2344 = vrot.slane %v1573, 5
    %v2345 = vsel %vm911, %v2343, %v2344
    %v2346 = vrot.slane %v2344, 4
    %v2347 = vrot.slane %v1574, 5
    %v2348 = vsel %vm911, %v2346, %v2347
    %v2349 = vrot.slane %v2201, 5
    %v2350 = vrot.slane %v2349, 4
    %v2351 = vrot.slane %v1576, 5
    %v2352 = vsel %vm911, %v2350, %v2351
    %v2353 = vrot.slane %v2351, 4
    %v2354 = vrot.slane %v1577, 5
    %v2355 = vsel %vm911, %v2353, %v2354
    %v2356 = vrot.slane %v2202, 5
    %v2357 = vrot.slane %v2356, 4
    %v2358 = vrot.slane %v1579, 5
    %v2359 = vsel %vm911, %v2357, %v2358
    %v2360 = vrot.slane %v2358, 4
    %v2361 = vrot.slane %v1580, 5
    %v2362 = vsel %vm911, %v2360, %v2361
    %s2363 = scalar_lea.vmem %s1, 10
    %v2364 = vld [vmem:[%s2363] sm:$0x3]
    %v2365 = vunpack.c.l.b16 %v2254
    %v2366 = vunpack.c.l.b16 %v2257
    %v2367 = vunpack.c.l.b16 %v2261
    %v2368 = vunpack.c.l.b16 %v2264
    %v2369 = vunpack.c.l.b16 %v2268
    %v2370 = vunpack.c.l.b16 %v2271
    %v2371 = vunpack.c.l.b16 %v2275
    %v2372 = vunpack.c.l.b16 %v2278
    %v2373 = vunpack.c.l.b16 %v2282
    %v2374 = vunpack.c.l.b16 %v2285
    %v2375 = vunpack.c.l.b16 %v2289
    %v2376 = vunpack.c.l.b16 %v2292
    %v2377 = vunpack.c.l.b16 %v2296
    %v2378 = vunpack.c.l.b16 %v2299
    %v2379 = vunpack.c.l.b16 %v2303
    %v2380 = vunpack.c.l.b16 %v2306
    %v2381 = vunpack.c.l.b16 %v2310
    %v2382 = vunpack.c.l.b16 %v2313
    %v2383 = vunpack.c.l.b16 %v2317
    %v2384 = vunpack.c.l.b16 %v2320
    %v2385 = vunpack.c.l.b16 %v2324
    %v2386 = vunpack.c.l.b16 %v2327
    %v2387 = vunpack.c.l.b16 %v2331
    %v2388 = vunpack.c.l.b16 %v2334
    %v2389 = vunpack.c.l.b16 %v2338
    %v2390 = vunpack.c.l.b16 %v2341
    %v2391 = vunpack.c.l.b16 %v2345
    %v2392 = vunpack.c.l.b16 %v2348
    %v2393 = vunpack.c.l.b16 %v2352
    %v2394 = vunpack.c.l.b16 %v2355
    %v2395 = vunpack.c.l.b16 %v2359
    %v2396 = vunpack.c.l.b16 %v2362
    %v2397 = vpack.c.b16 %v2366, %v2365
    %v2398 = vpack.c.b16 %v2368, %v2367
    %v2399 = vpack.c.b16 %v2370, %v2369
    %v2400 = vpack.c.b16 %v2372, %v2371
    %v2401 = vpack.c.b16 %v2374, %v2373
    %v2402 = vpack.c.b16 %v2376, %v2375
    %v2403 = vpack.c.b16 %v2378, %v2377
    %v2404 = vpack.c.b16 %v2380, %v2379
    %v2405 = vpack.c.b16 %v2382, %v2381
    %v2406 = vpack.c.b16 %v2384, %v2383
    %v2407 = vpack.c.b16 %v2386, %v2385
    %v2408 = vpack.c.b16 %v2388, %v2387
    %v2409 = vpack.c.b16 %v2390, %v2389
    %v2410 = vpack.c.b16 %v2392, %v2391
    %v2411 = vpack.c.b16 %v2394, %v2393
    %v2412 = vpack.c.b16 %v2396, %v2395
    %v2414 = vsel %vm499, %v2397, 0
    %v2417 = vsel %vm499, %v2398, 0
    %v2420 = vsel %vm499, %v2399, 0
    %v2423 = vsel %vm499, %v2400, 0
    %v2426 = vsel %vm499, %v2401, 0
    %v2429 = vsel %vm499, %v2402, 0
    %v2432 = vsel %vm499, %v2403, 0
    %v2435 = vsel %vm499, %v2404, 0
    %v2438 = vsel %vm499, %v2405, 0
    %v2441 = vsel %vm499, %v2406, 0
    %v2444 = vsel %vm499, %v2407, 0
    %v2447 = vsel %vm499, %v2408, 0
    %v2450 = vsel %vm499, %v2409, 0
    %v2453 = vsel %vm499, %v2410, 0
    %v2456 = vsel %vm499, %v2411, 0
    %v2459 = vsel %vm499, %v2412, 0
    %v2462 = vsel %vm548, %v2364, 0
    %2464 = vmatpush.bf16.msra.mxu0 0
    %2465 = vmatpush.bf16.msra.mxu0 0
    %2466 = vmatpush.bf16.msra.mxu0 0
    %2467 = vmatpush.bf16.msra.mxu0 0
    %2468 = vmatpush.bf16.msra.mxu0 0
    %2469 = vmatpush.bf16.msra.mxu0 0
    %2470 = vmatpush.bf16.msra.mxu0 0
    %2471 = vmatpush.bf16.msra.mxu0 %v2462
    %2472 = vmatmul.bf16.gmra.mxu0 %v2414
    %v2473 = vpop.f32.mrf.mxu0
    %v2474 = vadd.f32 0.0, %v2473
    %v2475 = vpop.f32.mrf.mxu0
    %v2476 = vadd.f32 0.0, %v2475
    %2477 = vmatmul.bf16.gmra.mxu0 %v2417
    %v2478 = vpop.f32.mrf.mxu0
    %v2479 = vadd.f32 0.0, %v2478
    %v2480 = vpop.f32.mrf.mxu0
    %v2481 = vadd.f32 0.0, %v2480
    %2482 = vmatmul.bf16.gmra.mxu0 %v2420
    %v2483 = vpop.f32.mrf.mxu0
    %v2484 = vadd.f32 0.0, %v2483
    %v2485 = vpop.f32.mrf.mxu0
    %v2486 = vadd.f32 0.0, %v2485
    %2487 = vmatmul.bf16.gmra.mxu0 %v2423
    %v2488 = vpop.f32.mrf.mxu0
    %v2489 = vadd.f32 0.0, %v2488
    %v2490 = vpop.f32.mrf.mxu0
    %v2491 = vadd.f32 0.0, %v2490
    %2492 = vmatmul.bf16.gmra.mxu0 %v2426
    %v2493 = vpop.f32.mrf.mxu0
    %v2494 = vadd.f32 0.0, %v2493
    %v2495 = vpop.f32.mrf.mxu0
    %v2496 = vadd.f32 0.0, %v2495
    %2497 = vmatmul.bf16.gmra.mxu0 %v2429
    %v2498 = vpop.f32.mrf.mxu0
    %v2499 = vadd.f32 0.0, %v2498
    %v2500 = vpop.f32.mrf.mxu0
    %v2501 = vadd.f32 0.0, %v2500
    %2502 = vmatmul.bf16.gmra.mxu0 %v2432
    %v2503 = vpop.f32.mrf.mxu0
    %v2504 = vadd.f32 0.0, %v2503
    %v2505 = vpop.f32.mrf.mxu0
    %v2506 = vadd.f32 0.0, %v2505
    %2507 = vmatmul.bf16.gmra.mxu0 %v2435
    %v2508 = vpop.f32.mrf.mxu0
    %v2509 = vadd.f32 0.0, %v2508
    %v2510 = vpop.f32.mrf.mxu0
    %v2511 = vadd.f32 0.0, %v2510
    %2512 = vmatmul.bf16.gmra.mxu0 %v2438
    %v2513 = vpop.f32.mrf.mxu0
    %v2514 = vadd.f32 0.0, %v2513
    %v2515 = vpop.f32.mrf.mxu0
    %v2516 = vadd.f32 0.0, %v2515
    %2517 = vmatmul.bf16.gmra.mxu0 %v2441
    %v2518 = vpop.f32.mrf.mxu0
    %v2519 = vadd.f32 0.0, %v2518
    %v2520 = vpop.f32.mrf.mxu0
    %v2521 = vadd.f32 0.0, %v2520
    %2522 = vmatmul.bf16.gmra.mxu0 %v2444
    %v2523 = vpop.f32.mrf.mxu0
    %v2524 = vadd.f32 0.0, %v2523
    %v2525 = vpop.f32.mrf.mxu0
    %v2526 = vadd.f32 0.0, %v2525
    %2527 = vmatmul.bf16.gmra.mxu0 %v2447
    %v2528 = vpop.f32.mrf.mxu0
    %v2529 = vadd.f32 0.0, %v2528
    %v2530 = vpop.f32.mrf.mxu0
    %v2531 = vadd.f32 0.0, %v2530
    %2532 = vmatmul.bf16.gmra.mxu0 %v2450
    %v2533 = vpop.f32.mrf.mxu0
    %v2534 = vadd.f32 0.0, %v2533
    %v2535 = vpop.f32.mrf.mxu0
    %v2536 = vadd.f32 0.0, %v2535
    %2537 = vmatmul.bf16.gmra.mxu0 %v2453
    %v2538 = vpop.f32.mrf.mxu0
    %v2539 = vadd.f32 0.0, %v2538
    %v2540 = vpop.f32.mrf.mxu0
    %v2541 = vadd.f32 0.0, %v2540
    %2542 = vmatmul.bf16.gmra.mxu0 %v2456
    %v2543 = vpop.f32.mrf.mxu0
    %v2544 = vadd.f32 0.0, %v2543
    %v2545 = vpop.f32.mrf.mxu0
    %v2546 = vadd.f32 0.0, %v2545
    %2547 = vmatmul.bf16.gmra.mxu0 %v2459
    %v2548 = vpop.f32.mrf.mxu0
    %v2549 = vadd.f32 0.0, %v2548
    %v2550 = vpop.f32.mrf.mxu0
    %v2551 = vadd.f32 0.0, %v2550
    %2552 = vdwg.mxu0
    %v2553 = vadd.f32 %v2155, %v2474
    %v2554 = vadd.f32 %v2156, %v2476
    %v2555 = vadd.f32 %v2157, %v2479
    %v2556 = vadd.f32 %v2158, %v2481
    %v2557 = vadd.f32 %v2159, %v2484
    %v2558 = vadd.f32 %v2160, %v2486
    %v2559 = vadd.f32 %v2161, %v2489
    %v2560 = vadd.f32 %v2162, %v2491
    %v2561 = vadd.f32 %v2163, %v2494
    %v2562 = vadd.f32 %v2164, %v2496
    %v2563 = vadd.f32 %v2165, %v2499
    %v2564 = vadd.f32 %v2166, %v2501
    %v2565 = vadd.f32 %v2167, %v2504
    %v2566 = vadd.f32 %v2168, %v2506
    %v2567 = vadd.f32 %v2169, %v2509
    %v2568 = vadd.f32 %v2170, %v2511
    %v2569 = vadd.f32 %v2171, %v2514
    %v2570 = vadd.f32 %v2172, %v2516
    %v2571 = vadd.f32 %v2173, %v2519
    %v2572 = vadd.f32 %v2174, %v2521
    %v2573 = vadd.f32 %v2175, %v2524
    %v2574 = vadd.f32 %v2176, %v2526
    %v2575 = vadd.f32 %v2177, %v2529
    %v2576 = vadd.f32 %v2178, %v2531
    %v2577 = vadd.f32 %v2179, %v2534
    %v2578 = vadd.f32 %v2180, %v2536
    %v2579 = vadd.f32 %v2181, %v2539
    %v2580 = vadd.f32 %v2182, %v2541
    %v2581 = vadd.f32 %v2183, %v2544
    %v2582 = vadd.f32 %v2184, %v2546
    %v2583 = vadd.f32 %v2185, %v2549
    %v2584 = vadd.f32 %v2186, %v2551
    %s2585 = scalar_lea.vmem %s0, 24
    %v2586 = vld [vmem:[%s2585] sm:$0xf]
    %v2587 = vld [vmem:[%s2585 + $0x4] sm:$0xf]
    %v2588 = vld [vmem:[%s2585 + $0xc] sm:$0xf]
    %v2589 = vld [vmem:[%s2585 + $0x10] sm:$0xf]
    %v2590 = vld [vmem:[%s2585 + $0x18] sm:$0xf]
    %v2591 = vld [vmem:[%s2585 + $0x1c] sm:$0xf]
    %v2592 = vld [vmem:[%s2585 + $0x24] sm:$0xf]
    %v2593 = vld [vmem:[%s2585 + $0x28] sm:$0xf]
    %v2594 = vld [vmem:[%s2585 + $0x30] sm:$0xf]
    %v2595 = vld [vmem:[%s2585 + $0x34] sm:$0xf]
    %v2596 = vld [vmem:[%s2585 + $0x3c] sm:$0xf]
    %v2597 = vld [vmem:[%s2585 + $0x40] sm:$0xf]
    %v2598 = vld [vmem:[%s2585 + $0x48] sm:$0xf]
    %v2599 = vld [vmem:[%s2585 + $0x4c] sm:$0xf]
    %v2600 = vld [vmem:[%s2585 + $0x54] sm:$0xf]
    %v2601 = vld [vmem:[%s2585 + $0x58] sm:$0xf]
    %v2602 = vld [vmem:[%s2585 + $0xd8] sm:$0xf]
    %v2603 = vld [vmem:[%s2585 + $0xdc] sm:$0xf]
    %v2604 = vld [vmem:[%s2585 + $0xe4] sm:$0xf]
    %v2605 = vld [vmem:[%s2585 + $0xe8] sm:$0xf]
    %v2606 = vld [vmem:[%s2585 + $0xf0] sm:$0xf]
    %v2607 = vld [vmem:[%s2585 + $0xf4] sm:$0xf]
    %v2608 = vld [vmem:[%s2585 + $0xfc] sm:$0xf]
    %v2609 = vld [vmem:[%s2585 + $0x100] sm:$0xf]
    %v2610 = vld [vmem:[%s2585 + $0x108] sm:$0xf]
    %v2611 = vld [vmem:[%s2585 + $0x10c] sm:$0xf]
    %v2612 = vld [vmem:[%s2585 + $0x114] sm:$0xf]
    %v2613 = vld [vmem:[%s2585 + $0x118] sm:$0xf]
    %v2614 = vld [vmem:[%s2585 + $0x120] sm:$0xf]
    %v2615 = vld [vmem:[%s2585 + $0x124] sm:$0xf]
    %v2616 = vld [vmem:[%s2585 + $0x12c] sm:$0xf]
    %v2617 = vld [vmem:[%s2585 + $0x130] sm:$0xf]
    %s2618 = scalar_lea.vmem %s1, 12
    %v2619 = vld [vmem:[%s2618] sm:$0x3]
    %v2652 = vunpack.c.l.b16 %v2586
    %v2653 = vunpack.c.l.b16 %v2587
    %v2654 = vunpack.c.l.b16 %v2588
    %v2655 = vunpack.c.l.b16 %v2589
    %v2656 = vunpack.c.l.b16 %v2590
    %v2657 = vunpack.c.l.b16 %v2591
    %v2658 = vunpack.c.l.b16 %v2592
    %v2659 = vunpack.c.l.b16 %v2593
    %v2660 = vunpack.c.l.b16 %v2594
    %v2661 = vunpack.c.l.b16 %v2595
    %v2662 = vunpack.c.l.b16 %v2596
    %v2663 = vunpack.c.l.b16 %v2597
    %v2664 = vunpack.c.l.b16 %v2598
    %v2665 = vunpack.c.l.b16 %v2599
    %v2666 = vunpack.c.l.b16 %v2600
    %v2667 = vunpack.c.l.b16 %v2601
    %v2668 = vunpack.c.l.b16 %v2602
    %v2669 = vunpack.c.l.b16 %v2603
    %v2670 = vunpack.c.l.b16 %v2604
    %v2671 = vunpack.c.l.b16 %v2605
    %v2672 = vunpack.c.l.b16 %v2606
    %v2673 = vunpack.c.l.b16 %v2607
    %v2674 = vunpack.c.l.b16 %v2608
    %v2675 = vunpack.c.l.b16 %v2609
    %v2676 = vunpack.c.l.b16 %v2610
    %v2677 = vunpack.c.l.b16 %v2611
    %v2678 = vunpack.c.l.b16 %v2612
    %v2679 = vunpack.c.l.b16 %v2613
    %v2680 = vunpack.c.l.b16 %v2614
    %v2681 = vunpack.c.l.b16 %v2615
    %v2682 = vunpack.c.l.b16 %v2616
    %v2683 = vunpack.c.l.b16 %v2617
    %v2684 = vpack.c.b16 %v2653, %v2652
    %v2685 = vpack.c.b16 %v2655, %v2654
    %v2686 = vpack.c.b16 %v2657, %v2656
    %v2687 = vpack.c.b16 %v2659, %v2658
    %v2688 = vpack.c.b16 %v2661, %v2660
    %v2689 = vpack.c.b16 %v2663, %v2662
    %v2690 = vpack.c.b16 %v2665, %v2664
    %v2691 = vpack.c.b16 %v2667, %v2666
    %v2692 = vpack.c.b16 %v2669, %v2668
    %v2693 = vpack.c.b16 %v2671, %v2670
    %v2694 = vpack.c.b16 %v2673, %v2672
    %v2695 = vpack.c.b16 %v2675, %v2674
    %v2696 = vpack.c.b16 %v2677, %v2676
    %v2697 = vpack.c.b16 %v2679, %v2678
    %v2698 = vpack.c.b16 %v2681, %v2680
    %v2699 = vpack.c.b16 %v2683, %v2682
    %v2701 = vsel %vm499, %v2684, 0
    %v2704 = vsel %vm499, %v2685, 0
    %v2707 = vsel %vm499, %v2686, 0
    %v2710 = vsel %vm499, %v2687, 0
    %v2713 = vsel %vm499, %v2688, 0
    %v2716 = vsel %vm499, %v2689, 0
    %v2719 = vsel %vm499, %v2690, 0
    %v2722 = vsel %vm499, %v2691, 0
    %v2725 = vsel %vm499, %v2692, 0
    %v2728 = vsel %vm499, %v2693, 0
    %v2731 = vsel %vm499, %v2694, 0
    %v2734 = vsel %vm499, %v2695, 0
    %v2737 = vsel %vm499, %v2696, 0
    %v2740 = vsel %vm499, %v2697, 0
    %v2743 = vsel %vm499, %v2698, 0
    %v2746 = vsel %vm499, %v2699, 0
    %v2749 = vsel %vm548, %v2619, 0
    %2751 = vmatpush.bf16.msra.mxu0 0
    %2752 = vmatpush.bf16.msra.mxu0 0
    %2753 = vmatpush.bf16.msra.mxu0 0
    %2754 = vmatpush.bf16.msra.mxu0 0
    %2755 = vmatpush.bf16.msra.mxu0 0
    %2756 = vmatpush.bf16.msra.mxu0 0
    %2757 = vmatpush.bf16.msra.mxu0 0
    %2758 = vmatpush.bf16.msra.mxu0 %v2749
    %2759 = vmatmul.bf16.gmra.mxu0 %v2701
    %v2760 = vpop.f32.mrf.mxu0
    %v2761 = vadd.f32 0.0, %v2760
    %v2762 = vpop.f32.mrf.mxu0
    %v2763 = vadd.f32 0.0, %v2762
    %2764 = vmatmul.bf16.gmra.mxu0 %v2704
    %v2765 = vpop.f32.mrf.mxu0
    %v2766 = vadd.f32 0.0, %v2765
    %v2767 = vpop.f32.mrf.mxu0
    %v2768 = vadd.f32 0.0, %v2767
    %2769 = vmatmul.bf16.gmra.mxu0 %v2707
    %v2770 = vpop.f32.mrf.mxu0
    %v2771 = vadd.f32 0.0, %v2770
    %v2772 = vpop.f32.mrf.mxu0
    %v2773 = vadd.f32 0.0, %v2772
    %2774 = vmatmul.bf16.gmra.mxu0 %v2710
    %v2775 = vpop.f32.mrf.mxu0
    %v2776 = vadd.f32 0.0, %v2775
    %v2777 = vpop.f32.mrf.mxu0
    %v2778 = vadd.f32 0.0, %v2777
    %2779 = vmatmul.bf16.gmra.mxu0 %v2713
    %v2780 = vpop.f32.mrf.mxu0
    %v2781 = vadd.f32 0.0, %v2780
    %v2782 = vpop.f32.mrf.mxu0
    %v2783 = vadd.f32 0.0, %v2782
    %2784 = vmatmul.bf16.gmra.mxu0 %v2716
    %v2785 = vpop.f32.mrf.mxu0
    %v2786 = vadd.f32 0.0, %v2785
    %v2787 = vpop.f32.mrf.mxu0
    %v2788 = vadd.f32 0.0, %v2787
    %2789 = vmatmul.bf16.gmra.mxu0 %v2719
    %v2790 = vpop.f32.mrf.mxu0
    %v2791 = vadd.f32 0.0, %v2790
    %v2792 = vpop.f32.mrf.mxu0
    %v2793 = vadd.f32 0.0, %v2792
    %2794 = vmatmul.bf16.gmra.mxu0 %v2722
    %v2795 = vpop.f32.mrf.mxu0
    %v2796 = vadd.f32 0.0, %v2795
    %v2797 = vpop.f32.mrf.mxu0
    %v2798 = vadd.f32 0.0, %v2797
    %2799 = vmatmul.bf16.gmra.mxu0 %v2725
    %v2800 = vpop.f32.mrf.mxu0
    %v2801 = vadd.f32 0.0, %v2800
    %v2802 = vpop.f32.mrf.mxu0
    %v2803 = vadd.f32 0.0, %v2802
    %2804 = vmatmul.bf16.gmra.mxu0 %v2728
    %v2805 = vpop.f32.mrf.mxu0
    %v2806 = vadd.f32 0.0, %v2805
    %v2807 = vpop.f32.mrf.mxu0
    %v2808 = vadd.f32 0.0, %v2807
    %2809 = vmatmul.bf16.gmra.mxu0 %v2731
    %v2810 = vpop.f32.mrf.mxu0
    %v2811 = vadd.f32 0.0, %v2810
    %v2812 = vpop.f32.mrf.mxu0
    %v2813 = vadd.f32 0.0, %v2812
    %2814 = vmatmul.bf16.gmra.mxu0 %v2734
    %v2815 = vpop.f32.mrf.mxu0
    %v2816 = vadd.f32 0.0, %v2815
    %v2817 = vpop.f32.mrf.mxu0
    %v2818 = vadd.f32 0.0, %v2817
    %2819 = vmatmul.bf16.gmra.mxu0 %v2737
    %v2820 = vpop.f32.mrf.mxu0
    %v2821 = vadd.f32 0.0, %v2820
    %v2822 = vpop.f32.mrf.mxu0
    %v2823 = vadd.f32 0.0, %v2822
    %2824 = vmatmul.bf16.gmra.mxu0 %v2740
    %v2825 = vpop.f32.mrf.mxu0
    %v2826 = vadd.f32 0.0, %v2825
    %v2827 = vpop.f32.mrf.mxu0
    %v2828 = vadd.f32 0.0, %v2827
    %2829 = vmatmul.bf16.gmra.mxu0 %v2743
    %v2830 = vpop.f32.mrf.mxu0
    %v2831 = vadd.f32 0.0, %v2830
    %v2832 = vpop.f32.mrf.mxu0
    %v2833 = vadd.f32 0.0, %v2832
    %2834 = vmatmul.bf16.gmra.mxu0 %v2746
    %v2835 = vpop.f32.mrf.mxu0
    %v2836 = vadd.f32 0.0, %v2835
    %v2837 = vpop.f32.mrf.mxu0
    %v2838 = vadd.f32 0.0, %v2837
    %2839 = vdwg.mxu0
    %v2840 = vadd.f32 %v2553, %v2761
    %v2841 = vadd.f32 %v2554, %v2763
    %v2842 = vadd.f32 %v2555, %v2766
    %v2843 = vadd.f32 %v2556, %v2768
    %v2844 = vadd.f32 %v2557, %v2771
    %v2845 = vadd.f32 %v2558, %v2773
    %v2846 = vadd.f32 %v2559, %v2776
    %v2847 = vadd.f32 %v2560, %v2778
    %v2848 = vadd.f32 %v2561, %v2781
    %v2849 = vadd.f32 %v2562, %v2783
    %v2850 = vadd.f32 %v2563, %v2786
    %v2851 = vadd.f32 %v2564, %v2788
    %v2852 = vadd.f32 %v2565, %v2791
    %v2853 = vadd.f32 %v2566, %v2793
    %v2854 = vadd.f32 %v2567, %v2796
    %v2855 = vadd.f32 %v2568, %v2798
    %v2856 = vadd.f32 %v2569, %v2801
    %v2857 = vadd.f32 %v2570, %v2803
    %v2858 = vadd.f32 %v2571, %v2806
    %v2859 = vadd.f32 %v2572, %v2808
    %v2860 = vadd.f32 %v2573, %v2811
    %v2861 = vadd.f32 %v2574, %v2813
    %v2862 = vadd.f32 %v2575, %v2816
    %v2863 = vadd.f32 %v2576, %v2818
    %v2864 = vadd.f32 %v2577, %v2821
    %v2865 = vadd.f32 %v2578, %v2823
    %v2866 = vadd.f32 %v2579, %v2826
    %v2867 = vadd.f32 %v2580, %v2828
    %v2868 = vadd.f32 %v2581, %v2831
    %v2869 = vadd.f32 %v2582, %v2833
    %v2870 = vadd.f32 %v2583, %v2836
    %v2871 = vadd.f32 %v2584, %v2838
    %v2872 = vld [vmem:[%s2585] sm:$0xf]
    %v2873 = vld [vmem:[%s2585 + $0x4] sm:$0xf]
    %v2874 = vld [vmem:[%s2585 + $0x8] sm:$0x1]
    %v2875 = vld [vmem:[%s2585 + $0xc] sm:$0xf]
    %v2876 = vld [vmem:[%s2585 + $0x10] sm:$0xf]
    %v2877 = vld [vmem:[%s2585 + $0x14] sm:$0x1]
    %v2878 = vld [vmem:[%s2585 + $0x18] sm:$0xf]
    %v2879 = vld [vmem:[%s2585 + $0x1c] sm:$0xf]
    %v2880 = vld [vmem:[%s2585 + $0x20] sm:$0x1]
    %v2881 = vld [vmem:[%s2585 + $0x24] sm:$0xf]
    %v2882 = vld [vmem:[%s2585 + $0x28] sm:$0xf]
    %v2883 = vld [vmem:[%s2585 + $0x2c] sm:$0x1]
    %v2884 = vld [vmem:[%s2585 + $0x30] sm:$0xf]
    %v2885 = vld [vmem:[%s2585 + $0x34] sm:$0xf]
    %v2886 = vld [vmem:[%s2585 + $0x38] sm:$0x1]
    %v2887 = vld [vmem:[%s2585 + $0x3c] sm:$0xf]
    %v2888 = vld [vmem:[%s2585 + $0x40] sm:$0xf]
    %v2889 = vld [vmem:[%s2585 + $0x44] sm:$0x1]
    %v2890 = vld [vmem:[%s2585 + $0x48] sm:$0xf]
    %v2891 = vld [vmem:[%s2585 + $0x4c] sm:$0xf]
    %v2892 = vld [vmem:[%s2585 + $0x50] sm:$0x1]
    %v2893 = vld [vmem:[%s2585 + $0x54] sm:$0xf]
    %v2894 = vld [vmem:[%s2585 + $0x58] sm:$0xf]
    %v2895 = vld [vmem:[%s2585 + $0x5c] sm:$0x1]
    %v2896 = vld [vmem:[%s2585 + $0xd8] sm:$0xf]
    %v2897 = vld [vmem:[%s2585 + $0xdc] sm:$0xf]
    %v2898 = vld [vmem:[%s2585 + $0xe0] sm:$0x1]
    %v2899 = vld [vmem:[%s2585 + $0xe4] sm:$0xf]
    %v2900 = vld [vmem:[%s2585 + $0xe8] sm:$0xf]
    %v2901 = vld [vmem:[%s2585 + $0xec] sm:$0x1]
    %v2902 = vld [vmem:[%s2585 + $0xf0] sm:$0xf]
    %v2903 = vld [vmem:[%s2585 + $0xf4] sm:$0xf]
    %v2904 = vld [vmem:[%s2585 + $0xf8] sm:$0x1]
    %v2905 = vld [vmem:[%s2585 + $0xfc] sm:$0xf]
    %v2906 = vld [vmem:[%s2585 + $0x100] sm:$0xf]
    %v2907 = vld [vmem:[%s2585 + $0x104] sm:$0x1]
    %v2908 = vld [vmem:[%s2585 + $0x108] sm:$0xf]
    %v2909 = vld [vmem:[%s2585 + $0x10c] sm:$0xf]
    %v2910 = vld [vmem:[%s2585 + $0x110] sm:$0x1]
    %v2911 = vld [vmem:[%s2585 + $0x114] sm:$0xf]
    %v2912 = vld [vmem:[%s2585 + $0x118] sm:$0xf]
    %v2913 = vld [vmem:[%s2585 + $0x11c] sm:$0x1]
    %v2914 = vld [vmem:[%s2585 + $0x120] sm:$0xf]
    %v2915 = vld [vmem:[%s2585 + $0x124] sm:$0xf]
    %v2916 = vld [vmem:[%s2585 + $0x128] sm:$0x1]
    %v2917 = vld [vmem:[%s2585 + $0x12c] sm:$0xf]
    %v2918 = vld [vmem:[%s2585 + $0x130] sm:$0xf]
    %v2919 = vld [vmem:[%s2585 + $0x134] sm:$0x1]
    %v2921 = vshrl.u32 %v2872, 16
    %v2923 = vrot.slane %v2921, 4
    %v2924 = vshll.u32 %v2872, 16
    %v2926 = vrot.slane %v2924, 5
    %v2927 = vor.u32 %v2923, %v2926
    %v2928 = vrot.slane %v2927, 4
    %v2930 = vshll.u32 %v2873, 16
    %v2932 = vrot.slane %v2930, 5
    %v2933 = vsel %vm64, %v2928, %v2932
    %v2934 = vshrl.u32 %v2873, 16
    %v2936 = vrot.slane %v2934, 4
    %v2937 = vor.u32 %v2936, %v2932
    %v2938 = vrot.slane %v2937, 4
    %v2940 = vshll.u32 %v2874, 16
    %v2942 = vrot.slane %v2940, 5
    %v2943 = vsel %vm64, %v2938, %v2942
    %v2945 = vshrl.u32 %v2875, 16
    %v2947 = vrot.slane %v2945, 4
    %v2948 = vshll.u32 %v2875, 16
    %v2950 = vrot.slane %v2948, 5
    %v2951 = vor.u32 %v2947, %v2950
    %v2952 = vrot.slane %v2951, 4
    %v2954 = vshll.u32 %v2876, 16
    %v2956 = vrot.slane %v2954, 5
    %v2957 = vsel %vm64, %v2952, %v2956
    %v2958 = vshrl.u32 %v2876, 16
    %v2960 = vrot.slane %v2958, 4
    %v2961 = vor.u32 %v2960, %v2956
    %v2962 = vrot.slane %v2961, 4
    %v2964 = vshll.u32 %v2877, 16
    %v2966 = vrot.slane %v2964, 5
    %v2967 = vsel %vm64, %v2962, %v2966
    %v2969 = vshrl.u32 %v2878, 16
    %v2971 = vrot.slane %v2969, 4
    %v2972 = vshll.u32 %v2878, 16
    %v2974 = vrot.slane %v2972, 5
    %v2975 = vor.u32 %v2971, %v2974
    %v2976 = vrot.slane %v2975, 4
    %v2978 = vshll.u32 %v2879, 16
    %v2980 = vrot.slane %v2978, 5
    %v2981 = vsel %vm64, %v2976, %v2980
    %v2982 = vshrl.u32 %v2879, 16
    %v2984 = vrot.slane %v2982, 4
    %v2985 = vor.u32 %v2984, %v2980
    %v2986 = vrot.slane %v2985, 4
    %v2988 = vshll.u32 %v2880, 16
    %v2990 = vrot.slane %v2988, 5
    %v2991 = vsel %vm64, %v2986, %v2990
    %v2993 = vshrl.u32 %v2881, 16
    %v2995 = vrot.slane %v2993, 4
    %v2996 = vshll.u32 %v2881, 16
    %v2998 = vrot.slane %v2996, 5
    %v2999 = vor.u32 %v2995, %v2998
    %v3000 = vrot.slane %v2999, 4
    %v3002 = vshll.u32 %v2882, 16
    %v3004 = vrot.slane %v3002, 5
    %v3005 = vsel %vm64, %v3000, %v3004
    %v3006 = vshrl.u32 %v2882, 16
    %v3008 = vrot.slane %v3006, 4
    %v3009 = vor.u32 %v3008, %v3004
    %v3010 = vrot.slane %v3009, 4
    %v3012 = vshll.u32 %v2883, 16
    %v3014 = vrot.slane %v3012, 5
    %v3015 = vsel %vm64, %v3010, %v3014
    %v3017 = vshrl.u32 %v2884, 16
    %v3019 = vrot.slane %v3017, 4
    %v3020 = vshll.u32 %v2884, 16
    %v3022 = vrot.slane %v3020, 5
    %v3023 = vor.u32 %v3019, %v3022
    %v3024 = vrot.slane %v3023, 4
    %v3026 = vshll.u32 %v2885, 16
    %v3028 = vrot.slane %v3026, 5
    %v3029 = vsel %vm64, %v3024, %v3028
    %v3030 = vshrl.u32 %v2885, 16
    %v3032 = vrot.slane %v3030, 4
    %v3033 = vor.u32 %v3032, %v3028
    %v3034 = vrot.slane %v3033, 4
    %v3036 = vshll.u32 %v2886, 16
    %v3038 = vrot.slane %v3036, 5
    %v3039 = vsel %vm64, %v3034, %v3038
    %v3041 = vshrl.u32 %v2887, 16
    %v3043 = vrot.slane %v3041, 4
    %v3044 = vshll.u32 %v2887, 16
    %v3046 = vrot.slane %v3044, 5
    %v3047 = vor.u32 %v3043, %v3046
    %v3048 = vrot.slane %v3047, 4
    %v3050 = vshll.u32 %v2888, 16
    %v3052 = vrot.slane %v3050, 5
    %v3053 = vsel %vm64, %v3048, %v3052
    %v3054 = vshrl.u32 %v2888, 16
    %v3056 = vrot.slane %v3054, 4
    %v3057 = vor.u32 %v3056, %v3052
    %v3058 = vrot.slane %v3057, 4
    %v3060 = vshll.u32 %v2889, 16
    %v3062 = vrot.slane %v3060, 5
    %v3063 = vsel %vm64, %v3058, %v3062
    %v3065 = vshrl.u32 %v2890, 16
    %v3067 = vrot.slane %v3065, 4
    %v3068 = vshll.u32 %v2890, 16
    %v3070 = vrot.slane %v3068, 5
    %v3071 = vor.u32 %v3067, %v3070
    %v3072 = vrot.slane %v3071, 4
    %v3074 = vshll.u32 %v2891, 16
    %v3076 = vrot.slane %v3074, 5
    %v3077 = vsel %vm64, %v3072, %v3076
    %v3078 = vshrl.u32 %v2891, 16
    %v3080 = vrot.slane %v3078, 4
    %v3081 = vor.u32 %v3080, %v3076
    %v3082 = vrot.slane %v3081, 4
    %v3084 = vshll.u32 %v2892, 16
    %v3086 = vrot.slane %v3084, 5
    %v3087 = vsel %vm64, %v3082, %v3086
    %v3089 = vshrl.u32 %v2893, 16
    %v3091 = vrot.slane %v3089, 4
    %v3092 = vshll.u32 %v2893, 16
    %v3094 = vrot.slane %v3092, 5
    %v3095 = vor.u32 %v3091, %v3094
    %v3096 = vrot.slane %v3095, 4
    %v3098 = vshll.u32 %v2894, 16
    %v3100 = vrot.slane %v3098, 5
    %v3101 = vsel %vm64, %v3096, %v3100
    %v3102 = vshrl.u32 %v2894, 16
    %v3104 = vrot.slane %v3102, 4
    %v3105 = vor.u32 %v3104, %v3100
    %v3106 = vrot.slane %v3105, 4
    %v3108 = vshll.u32 %v2895, 16
    %v3110 = vrot.slane %v3108, 5
    %v3111 = vsel %vm64, %v3106, %v3110
    %v3113 = vshrl.u32 %v2896, 16
    %v3115 = vrot.slane %v3113, 4
    %v3116 = vshll.u32 %v2896, 16
    %v3118 = vrot.slane %v3116, 5
    %v3119 = vor.u32 %v3115, %v3118
    %v3120 = vrot.slane %v3119, 4
    %v3122 = vshll.u32 %v2897, 16
    %v3124 = vrot.slane %v3122, 5
    %v3125 = vsel %vm64, %v3120, %v3124
    %v3126 = vshrl.u32 %v2897, 16
    %v3128 = vrot.slane %v3126, 4
    %v3129 = vor.u32 %v3128, %v3124
    %v3130 = vrot.slane %v3129, 4
    %v3132 = vshll.u32 %v2898, 16
    %v3134 = vrot.slane %v3132, 5
    %v3135 = vsel %vm64, %v3130, %v3134
    %v3137 = vshrl.u32 %v2899, 16
    %v3139 = vrot.slane %v3137, 4
    %v3140 = vshll.u32 %v2899, 16
    %v3142 = vrot.slane %v3140, 5
    %v3143 = vor.u32 %v3139, %v3142
    %v3144 = vrot.slane %v3143, 4
    %v3146 = vshll.u32 %v2900, 16
    %v3148 = vrot.slane %v3146, 5
    %v3149 = vsel %vm64, %v3144, %v3148
    %v3150 = vshrl.u32 %v2900, 16
    %v3152 = vrot.slane %v3150, 4
    %v3153 = vor.u32 %v3152, %v3148
    %v3154 = vrot.slane %v3153, 4
    %v3156 = vshll.u32 %v2901, 16
    %v3158 = vrot.slane %v3156, 5
    %v3159 = vsel %vm64, %v3154, %v3158
    %v3161 = vshrl.u32 %v2902, 16
    %v3163 = vrot.slane %v3161, 4
    %v3164 = vshll.u32 %v2902, 16
    %v3166 = vrot.slane %v3164, 5
    %v3167 = vor.u32 %v3163, %v3166
    %v3168 = vrot.slane %v3167, 4
    %v3170 = vshll.u32 %v2903, 16
    %v3172 = vrot.slane %v3170, 5
    %v3173 = vsel %vm64, %v3168, %v3172
    %v3174 = vshrl.u32 %v2903, 16
    %v3176 = vrot.slane %v3174, 4
    %v3177 = vor.u32 %v3176, %v3172
    %v3178 = vrot.slane %v3177, 4
    %v3180 = vshll.u32 %v2904, 16
    %v3182 = vrot.slane %v3180, 5
    %v3183 = vsel %vm64, %v3178, %v3182
    %v3185 = vshrl.u32 %v2905, 16
    %v3187 = vrot.slane %v3185, 4
    %v3188 = vshll.u32 %v2905, 16
    %v3190 = vrot.slane %v3188, 5
    %v3191 = vor.u32 %v3187, %v3190
    %v3192 = vrot.slane %v3191, 4
    %v3194 = vshll.u32 %v2906, 16
    %v3196 = vrot.slane %v3194, 5
    %v3197 = vsel %vm64, %v3192, %v3196
    %v3198 = vshrl.u32 %v2906, 16
    %v3200 = vrot.slane %v3198, 4
    %v3201 = vor.u32 %v3200, %v3196
    %v3202 = vrot.slane %v3201, 4
    %v3204 = vshll.u32 %v2907, 16
    %v3206 = vrot.slane %v3204, 5
    %v3207 = vsel %vm64, %v3202, %v3206
    %v3209 = vshrl.u32 %v2908, 16
    %v3211 = vrot.slane %v3209, 4
    %v3212 = vshll.u32 %v2908, 16
    %v3214 = vrot.slane %v3212, 5
    %v3215 = vor.u32 %v3211, %v3214
    %v3216 = vrot.slane %v3215, 4
    %v3218 = vshll.u32 %v2909, 16
    %v3220 = vrot.slane %v3218, 5
    %v3221 = vsel %vm64, %v3216, %v3220
    %v3222 = vshrl.u32 %v2909, 16
    %v3224 = vrot.slane %v3222, 4
    %v3225 = vor.u32 %v3224, %v3220
    %v3226 = vrot.slane %v3225, 4
    %v3228 = vshll.u32 %v2910, 16
    %v3230 = vrot.slane %v3228, 5
    %v3231 = vsel %vm64, %v3226, %v3230
    %v3233 = vshrl.u32 %v2911, 16
    %v3235 = vrot.slane %v3233, 4
    %v3236 = vshll.u32 %v2911, 16
    %v3238 = vrot.slane %v3236, 5
    %v3239 = vor.u32 %v3235, %v3238
    %v3240 = vrot.slane %v3239, 4
    %v3242 = vshll.u32 %v2912, 16
    %v3244 = vrot.slane %v3242, 5
    %v3245 = vsel %vm64, %v3240, %v3244
    %v3246 = vshrl.u32 %v2912, 16
    %v3248 = vrot.slane %v3246, 4
    %v3249 = vor.u32 %v3248, %v3244
    %v3250 = vrot.slane %v3249, 4
    %v3252 = vshll.u32 %v2913, 16
    %v3254 = vrot.slane %v3252, 5
    %v3255 = vsel %vm64, %v3250, %v3254
    %v3257 = vshrl.u32 %v2914, 16
    %v3259 = vrot.slane %v3257, 4
    %v3260 = vshll.u32 %v2914, 16
    %v3262 = vrot.slane %v3260, 5
    %v3263 = vor.u32 %v3259, %v3262
    %v3264 = vrot.slane %v3263, 4
    %v3266 = vshll.u32 %v2915, 16
    %v3268 = vrot.slane %v3266, 5
    %v3269 = vsel %vm64, %v3264, %v3268
    %v3270 = vshrl.u32 %v2915, 16
    %v3272 = vrot.slane %v3270, 4
    %v3273 = vor.u32 %v3272, %v3268
    %v3274 = vrot.slane %v3273, 4
    %v3276 = vshll.u32 %v2916, 16
    %v3278 = vrot.slane %v3276, 5
    %v3279 = vsel %vm64, %v3274, %v3278
    %v3281 = vshrl.u32 %v2917, 16
    %v3283 = vrot.slane %v3281, 4
    %v3284 = vshll.u32 %v2917, 16
    %v3286 = vrot.slane %v3284, 5
    %v3287 = vor.u32 %v3283, %v3286
    %v3288 = vrot.slane %v3287, 4
    %v3290 = vshll.u32 %v2918, 16
    %v3292 = vrot.slane %v3290, 5
    %v3293 = vsel %vm64, %v3288, %v3292
    %v3294 = vshrl.u32 %v2918, 16
    %v3296 = vrot.slane %v3294, 4
    %v3297 = vor.u32 %v3296, %v3292
    %v3298 = vrot.slane %v3297, 4
    %v3300 = vshll.u32 %v2919, 16
    %v3302 = vrot.slane %v3300, 5
    %v3303 = vsel %vm64, %v3298, %v3302
    %s3304 = scalar_lea.vmem %s1, 14
    %v3305 = vld [vmem:[%s3304] sm:$0x3]
    %v3306 = vunpack.c.l.b16 %v2933
    %v3307 = vunpack.c.l.b16 %v2943
    %v3308 = vunpack.c.l.b16 %v2957
    %v3309 = vunpack.c.l.b16 %v2967
    %v3310 = vunpack.c.l.b16 %v2981
    %v3311 = vunpack.c.l.b16 %v2991
    %v3312 = vunpack.c.l.b16 %v3005
    %v3313 = vunpack.c.l.b16 %v3015
    %v3314 = vunpack.c.l.b16 %v3029
    %v3315 = vunpack.c.l.b16 %v3039
    %v3316 = vunpack.c.l.b16 %v3053
    %v3317 = vunpack.c.l.b16 %v3063
    %v3318 = vunpack.c.l.b16 %v3077
    %v3319 = vunpack.c.l.b16 %v3087
    %v3320 = vunpack.c.l.b16 %v3101
    %v3321 = vunpack.c.l.b16 %v3111
    %v3322 = vunpack.c.l.b16 %v3125
    %v3323 = vunpack.c.l.b16 %v3135
    %v3324 = vunpack.c.l.b16 %v3149
    %v3325 = vunpack.c.l.b16 %v3159
    %v3326 = vunpack.c.l.b16 %v3173
    %v3327 = vunpack.c.l.b16 %v3183
    %v3328 = vunpack.c.l.b16 %v3197
    %v3329 = vunpack.c.l.b16 %v3207
    %v3330 = vunpack.c.l.b16 %v3221
    %v3331 = vunpack.c.l.b16 %v3231
    %v3332 = vunpack.c.l.b16 %v3245
    %v3333 = vunpack.c.l.b16 %v3255
    %v3334 = vunpack.c.l.b16 %v3269
    %v3335 = vunpack.c.l.b16 %v3279
    %v3336 = vunpack.c.l.b16 %v3293
    %v3337 = vunpack.c.l.b16 %v3303
    %v3338 = vpack.c.b16 %v3307, %v3306
    %v3339 = vpack.c.b16 %v3309, %v3308
    %v3340 = vpack.c.b16 %v3311, %v3310
    %v3341 = vpack.c.b16 %v3313, %v3312
    %v3342 = vpack.c.b16 %v3315, %v3314
    %v3343 = vpack.c.b16 %v3317, %v3316
    %v3344 = vpack.c.b16 %v3319, %v3318
    %v3345 = vpack.c.b16 %v3321, %v3320
    %v3346 = vpack.c.b16 %v3323, %v3322
    %v3347 = vpack.c.b16 %v3325, %v3324
    %v3348 = vpack.c.b16 %v3327, %v3326
    %v3349 = vpack.c.b16 %v3329, %v3328
    %v3350 = vpack.c.b16 %v3331, %v3330
    %v3351 = vpack.c.b16 %v3333, %v3332
    %v3352 = vpack.c.b16 %v3335, %v3334
    %v3353 = vpack.c.b16 %v3337, %v3336
    %v3355 = vsel %vm499, %v3338, 0
    %v3358 = vsel %vm499, %v3339, 0
    %v3361 = vsel %vm499, %v3340, 0
    %v3364 = vsel %vm499, %v3341, 0
    %v3367 = vsel %vm499, %v3342, 0
    %v3370 = vsel %vm499, %v3343, 0
    %v3373 = vsel %vm499, %v3344, 0
    %v3376 = vsel %vm499, %v3345, 0
    %v3379 = vsel %vm499, %v3346, 0
    %v3382 = vsel %vm499, %v3347, 0
    %v3385 = vsel %vm499, %v3348, 0
    %v3388 = vsel %vm499, %v3349, 0
    %v3391 = vsel %vm499, %v3350, 0
    %v3394 = vsel %vm499, %v3351, 0
    %v3397 = vsel %vm499, %v3352, 0
    %v3400 = vsel %vm499, %v3353, 0
    %v3403 = vsel %vm548, %v3305, 0
    %3405 = vmatpush.bf16.msra.mxu0 0
    %3406 = vmatpush.bf16.msra.mxu0 0
    %3407 = vmatpush.bf16.msra.mxu0 0
    %3408 = vmatpush.bf16.msra.mxu0 0
    %3409 = vmatpush.bf16.msra.mxu0 0
    %3410 = vmatpush.bf16.msra.mxu0 0
    %3411 = vmatpush.bf16.msra.mxu0 0
    %3412 = vmatpush.bf16.msra.mxu0 %v3403
    %3413 = vmatmul.bf16.gmra.mxu0 %v3355
    %v3414 = vpop.f32.mrf.mxu0
    %v3415 = vadd.f32 0.0, %v3414
    %v3416 = vpop.f32.mrf.mxu0
    %v3417 = vadd.f32 0.0, %v3416
    %3418 = vmatmul.bf16.gmra.mxu0 %v3358
    %v3419 = vpop.f32.mrf.mxu0
    %v3420 = vadd.f32 0.0, %v3419
    %v3421 = vpop.f32.mrf.mxu0
    %v3422 = vadd.f32 0.0, %v3421
    %3423 = vmatmul.bf16.gmra.mxu0 %v3361
    %v3424 = vpop.f32.mrf.mxu0
    %v3425 = vadd.f32 0.0, %v3424
    %v3426 = vpop.f32.mrf.mxu0
    %v3427 = vadd.f32 0.0, %v3426
    %3428 = vmatmul.bf16.gmra.mxu0 %v3364
    %v3429 = vpop.f32.mrf.mxu0
    %v3430 = vadd.f32 0.0, %v3429
    %v3431 = vpop.f32.mrf.mxu0
    %v3432 = vadd.f32 0.0, %v3431
    %3433 = vmatmul.bf16.gmra.mxu0 %v3367
    %v3434 = vpop.f32.mrf.mxu0
    %v3435 = vadd.f32 0.0, %v3434
    %v3436 = vpop.f32.mrf.mxu0
    %v3437 = vadd.f32 0.0, %v3436
    %3438 = vmatmul.bf16.gmra.mxu0 %v3370
    %v3439 = vpop.f32.mrf.mxu0
    %v3440 = vadd.f32 0.0, %v3439
    %v3441 = vpop.f32.mrf.mxu0
    %v3442 = vadd.f32 0.0, %v3441
    %3443 = vmatmul.bf16.gmra.mxu0 %v3373
    %v3444 = vpop.f32.mrf.mxu0
    %v3445 = vadd.f32 0.0, %v3444
    %v3446 = vpop.f32.mrf.mxu0
    %v3447 = vadd.f32 0.0, %v3446
    %3448 = vmatmul.bf16.gmra.mxu0 %v3376
    %v3449 = vpop.f32.mrf.mxu0
    %v3450 = vadd.f32 0.0, %v3449
    %v3451 = vpop.f32.mrf.mxu0
    %v3452 = vadd.f32 0.0, %v3451
    %3453 = vmatmul.bf16.gmra.mxu0 %v3379
    %v3454 = vpop.f32.mrf.mxu0
    %v3455 = vadd.f32 0.0, %v3454
    %v3456 = vpop.f32.mrf.mxu0
    %v3457 = vadd.f32 0.0, %v3456
    %3458 = vmatmul.bf16.gmra.mxu0 %v3382
    %v3459 = vpop.f32.mrf.mxu0
    %v3460 = vadd.f32 0.0, %v3459
    %v3461 = vpop.f32.mrf.mxu0
    %v3462 = vadd.f32 0.0, %v3461
    %3463 = vmatmul.bf16.gmra.mxu0 %v3385
    %v3464 = vpop.f32.mrf.mxu0
    %v3465 = vadd.f32 0.0, %v3464
    %v3466 = vpop.f32.mrf.mxu0
    %v3467 = vadd.f32 0.0, %v3466
    %3468 = vmatmul.bf16.gmra.mxu0 %v3388
    %v3469 = vpop.f32.mrf.mxu0
    %v3470 = vadd.f32 0.0, %v3469
    %v3471 = vpop.f32.mrf.mxu0
    %v3472 = vadd.f32 0.0, %v3471
    %3473 = vmatmul.bf16.gmra.mxu0 %v3391
    %v3474 = vpop.f32.mrf.mxu0
    %v3475 = vadd.f32 0.0, %v3474
    %v3476 = vpop.f32.mrf.mxu0
    %v3477 = vadd.f32 0.0, %v3476
    %3478 = vmatmul.bf16.gmra.mxu0 %v3394
    %v3479 = vpop.f32.mrf.mxu0
    %v3480 = vadd.f32 0.0, %v3479
    %v3481 = vpop.f32.mrf.mxu0
    %v3482 = vadd.f32 0.0, %v3481
    %3483 = vmatmul.bf16.gmra.mxu0 %v3397
    %v3484 = vpop.f32.mrf.mxu0
    %v3485 = vadd.f32 0.0, %v3484
    %v3486 = vpop.f32.mrf.mxu0
    %v3487 = vadd.f32 0.0, %v3486
    %3488 = vmatmul.bf16.gmra.mxu0 %v3400
    %v3489 = vpop.f32.mrf.mxu0
    %v3490 = vadd.f32 0.0, %v3489
    %v3491 = vpop.f32.mrf.mxu0
    %v3492 = vadd.f32 0.0, %v3491
    %3493 = vdwg.mxu0
    %v3494 = vadd.f32 %v2840, %v3415
    %v3495 = vadd.f32 %v2841, %v3417
    %v3496 = vadd.f32 %v2842, %v3420
    %v3497 = vadd.f32 %v2843, %v3422
    %v3498 = vadd.f32 %v2844, %v3425
    %v3499 = vadd.f32 %v2845, %v3427
    %v3500 = vadd.f32 %v2846, %v3430
    %v3501 = vadd.f32 %v2847, %v3432
    %v3502 = vadd.f32 %v2848, %v3435
    %v3503 = vadd.f32 %v2849, %v3437
    %v3504 = vadd.f32 %v2850, %v3440
    %v3505 = vadd.f32 %v2851, %v3442
    %v3506 = vadd.f32 %v2852, %v3445
    %v3507 = vadd.f32 %v2853, %v3447
    %v3508 = vadd.f32 %v2854, %v3450
    %v3509 = vadd.f32 %v2855, %v3452
    %v3510 = vadd.f32 %v2856, %v3455
    %v3511 = vadd.f32 %v2857, %v3457
    %v3512 = vadd.f32 %v2858, %v3460
    %v3513 = vadd.f32 %v2859, %v3462
    %v3514 = vadd.f32 %v2860, %v3465
    %v3515 = vadd.f32 %v2861, %v3467
    %v3516 = vadd.f32 %v2862, %v3470
    %v3517 = vadd.f32 %v2863, %v3472
    %v3518 = vadd.f32 %v2864, %v3475
    %v3519 = vadd.f32 %v2865, %v3477
    %v3520 = vadd.f32 %v2866, %v3480
    %v3521 = vadd.f32 %v2867, %v3482
    %v3522 = vadd.f32 %v2868, %v3485
    %v3523 = vadd.f32 %v2869, %v3487
    %v3524 = vadd.f32 %v2870, %v3490
    %v3525 = vadd.f32 %v2871, %v3492
    %v3526 = vld [vmem:[%s2585] sm:$0xe]
    %v3527 = vld [vmem:[%s2585 + $0xc] sm:$0xe]
    %v3528 = vld [vmem:[%s2585 + $0x18] sm:$0xe]
    %v3529 = vld [vmem:[%s2585 + $0x24] sm:$0xe]
    %v3530 = vld [vmem:[%s2585 + $0x30] sm:$0xe]
    %v3531 = vld [vmem:[%s2585 + $0x3c] sm:$0xe]
    %v3532 = vld [vmem:[%s2585 + $0x48] sm:$0xe]
    %v3533 = vld [vmem:[%s2585 + $0x54] sm:$0xe]
    %v3534 = vld [vmem:[%s2585 + $0xd8] sm:$0xe]
    %v3535 = vld [vmem:[%s2585 + $0xe4] sm:$0xe]
    %v3536 = vld [vmem:[%s2585 + $0xf0] sm:$0xe]
    %v3537 = vld [vmem:[%s2585 + $0xfc] sm:$0xe]
    %v3538 = vld [vmem:[%s2585 + $0x108] sm:$0xe]
    %v3539 = vld [vmem:[%s2585 + $0x114] sm:$0xe]
    %v3540 = vld [vmem:[%s2585 + $0x120] sm:$0xe]
    %v3541 = vld [vmem:[%s2585 + $0x12c] sm:$0xe]
    %v3590 = vrot.slane %v3526, 5
    %v3591 = vrot.slane %v3590, 4
    %v3592 = vrot.slane %v2873, 5
    %v3593 = vsel %vm911, %v3591, %v3592
    %v3594 = vrot.slane %v3592, 4
    %v3595 = vrot.slane %v2874, 5
    %v3596 = vsel %vm911, %v3594, %v3595
    %v3597 = vrot.slane %v3527, 5
    %v3598 = vrot.slane %v3597, 4
    %v3599 = vrot.slane %v2876, 5
    %v3600 = vsel %vm911, %v3598, %v3599
    %v3601 = vrot.slane %v3599, 4
    %v3602 = vrot.slane %v2877, 5
    %v3603 = vsel %vm911, %v3601, %v3602
    %v3604 = vrot.slane %v3528, 5
    %v3605 = vrot.slane %v3604, 4
    %v3606 = vrot.slane %v2879, 5
    %v3607 = vsel %vm911, %v3605, %v3606
    %v3608 = vrot.slane %v3606, 4
    %v3609 = vrot.slane %v2880, 5
    %v3610 = vsel %vm911, %v3608, %v3609
    %v3611 = vrot.slane %v3529, 5
    %v3612 = vrot.slane %v3611, 4
    %v3613 = vrot.slane %v2882, 5
    %v3614 = vsel %vm911, %v3612, %v3613
    %v3615 = vrot.slane %v3613, 4
    %v3616 = vrot.slane %v2883, 5
    %v3617 = vsel %vm911, %v3615, %v3616
    %v3618 = vrot.slane %v3530, 5
    %v3619 = vrot.slane %v3618, 4
    %v3620 = vrot.slane %v2885, 5
    %v3621 = vsel %vm911, %v3619, %v3620
    %v3622 = vrot.slane %v3620, 4
    %v3623 = vrot.slane %v2886, 5
    %v3624 = vsel %vm911, %v3622, %v3623
    %v3625 = vrot.slane %v3531, 5
    %v3626 = vrot.slane %v3625, 4
    %v3627 = vrot.slane %v2888, 5
    %v3628 = vsel %vm911, %v3626, %v3627
    %v3629 = vrot.slane %v3627, 4
    %v3630 = vrot.slane %v2889, 5
    %v3631 = vsel %vm911, %v3629, %v3630
    %v3632 = vrot.slane %v3532, 5
    %v3633 = vrot.slane %v3632, 4
    %v3634 = vrot.slane %v2891, 5
    %v3635 = vsel %vm911, %v3633, %v3634
    %v3636 = vrot.slane %v3634, 4
    %v3637 = vrot.slane %v2892, 5
    %v3638 = vsel %vm911, %v3636, %v3637
    %v3639 = vrot.slane %v3533, 5
    %v3640 = vrot.slane %v3639, 4
    %v3641 = vrot.slane %v2894, 5
    %v3642 = vsel %vm911, %v3640, %v3641
    %v3643 = vrot.slane %v3641, 4
    %v3644 = vrot.slane %v2895, 5
    %v3645 = vsel %vm911, %v3643, %v3644
    %v3646 = vrot.slane %v3534, 5
    %v3647 = vrot.slane %v3646, 4
    %v3648 = vrot.slane %v2897, 5
    %v3649 = vsel %vm911, %v3647, %v3648
    %v3650 = vrot.slane %v3648, 4
    %v3651 = vrot.slane %v2898, 5
    %v3652 = vsel %vm911, %v3650, %v3651
    %v3653 = vrot.slane %v3535, 5
    %v3654 = vrot.slane %v3653, 4
    %v3655 = vrot.slane %v2900, 5
    %v3656 = vsel %vm911, %v3654, %v3655
    %v3657 = vrot.slane %v3655, 4
    %v3658 = vrot.slane %v2901, 5
    %v3659 = vsel %vm911, %v3657, %v3658
    %v3660 = vrot.slane %v3536, 5
    %v3661 = vrot.slane %v3660, 4
    %v3662 = vrot.slane %v2903, 5
    %v3663 = vsel %vm911, %v3661, %v3662
    %v3664 = vrot.slane %v3662, 4
    %v3665 = vrot.slane %v2904, 5
    %v3666 = vsel %vm911, %v3664, %v3665
    %v3667 = vrot.slane %v3537, 5
    %v3668 = vrot.slane %v3667, 4
    %v3669 = vrot.slane %v2906, 5
    %v3670 = vsel %vm911, %v3668, %v3669
    %v3671 = vrot.slane %v3669, 4
    %v3672 = vrot.slane %v2907, 5
    %v3673 = vsel %vm911, %v3671, %v3672
    %v3674 = vrot.slane %v3538, 5
    %v3675 = vrot.slane %v3674, 4
    %v3676 = vrot.slane %v2909, 5
    %v3677 = vsel %vm911, %v3675, %v3676
    %v3678 = vrot.slane %v3676, 4
    %v3679 = vrot.slane %v2910, 5
    %v3680 = vsel %vm911, %v3678, %v3679
    %v3681 = vrot.slane %v3539, 5
    %v3682 = vrot.slane %v3681, 4
    %v3683 = vrot.slane %v2912, 5
    %v3684 = vsel %vm911, %v3682, %v3683
    %v3685 = vrot.slane %v3683, 4
    %v3686 = vrot.slane %v2913, 5
    %v3687 = vsel %vm911, %v3685, %v3686
    %v3688 = vrot.slane %v3540, 5
    %v3689 = vrot.slane %v3688, 4
    %v3690 = vrot.slane %v2915, 5
    %v3691 = vsel %vm911, %v3689, %v3690
    %v3692 = vrot.slane %v3690, 4
    %v3693 = vrot.slane %v2916, 5
    %v3694 = vsel %vm911, %v3692, %v3693
    %v3695 = vrot.slane %v3541, 5
    %v3696 = vrot.slane %v3695, 4
    %v3697 = vrot.slane %v2918, 5
    %v3698 = vsel %vm911, %v3696, %v3697
    %v3699 = vrot.slane %v3697, 4
    %v3700 = vrot.slane %v2919, 5
    %v3701 = vsel %vm911, %v3699, %v3700
    %s3702 = scalar_lea.vmem %s1, 16
    %v3703 = vld [vmem:[%s3702] sm:$0x3]
    %v3704 = vunpack.c.l.b16 %v3593
    %v3705 = vunpack.c.l.b16 %v3596
    %v3706 = vunpack.c.l.b16 %v3600
    %v3707 = vunpack.c.l.b16 %v3603
    %v3708 = vunpack.c.l.b16 %v3607
    %v3709 = vunpack.c.l.b16 %v3610
    %v3710 = vunpack.c.l.b16 %v3614
    %v3711 = vunpack.c.l.b16 %v3617
    %v3712 = vunpack.c.l.b16 %v3621
    %v3713 = vunpack.c.l.b16 %v3624
    %v3714 = vunpack.c.l.b16 %v3628
    %v3715 = vunpack.c.l.b16 %v3631
    %v3716 = vunpack.c.l.b16 %v3635
    %v3717 = vunpack.c.l.b16 %v3638
    %v3718 = vunpack.c.l.b16 %v3642
    %v3719 = vunpack.c.l.b16 %v3645
    %v3720 = vunpack.c.l.b16 %v3649
    %v3721 = vunpack.c.l.b16 %v3652
    %v3722 = vunpack.c.l.b16 %v3656
    %v3723 = vunpack.c.l.b16 %v3659
    %v3724 = vunpack.c.l.b16 %v3663
    %v3725 = vunpack.c.l.b16 %v3666
    %v3726 = vunpack.c.l.b16 %v3670
    %v3727 = vunpack.c.l.b16 %v3673
    %v3728 = vunpack.c.l.b16 %v3677
    %v3729 = vunpack.c.l.b16 %v3680
    %v3730 = vunpack.c.l.b16 %v3684
    %v3731 = vunpack.c.l.b16 %v3687
    %v3732 = vunpack.c.l.b16 %v3691
    %v3733 = vunpack.c.l.b16 %v3694
    %v3734 = vunpack.c.l.b16 %v3698
    %v3735 = vunpack.c.l.b16 %v3701
    %v3736 = vpack.c.b16 %v3705, %v3704
    %v3737 = vpack.c.b16 %v3707, %v3706
    %v3738 = vpack.c.b16 %v3709, %v3708
    %v3739 = vpack.c.b16 %v3711, %v3710
    %v3740 = vpack.c.b16 %v3713, %v3712
    %v3741 = vpack.c.b16 %v3715, %v3714
    %v3742 = vpack.c.b16 %v3717, %v3716
    %v3743 = vpack.c.b16 %v3719, %v3718
    %v3744 = vpack.c.b16 %v3721, %v3720
    %v3745 = vpack.c.b16 %v3723, %v3722
    %v3746 = vpack.c.b16 %v3725, %v3724
    %v3747 = vpack.c.b16 %v3727, %v3726
    %v3748 = vpack.c.b16 %v3729, %v3728
    %v3749 = vpack.c.b16 %v3731, %v3730
    %v3750 = vpack.c.b16 %v3733, %v3732
    %v3751 = vpack.c.b16 %v3735, %v3734
    %v3753 = vsel %vm499, %v3736, 0
    %v3756 = vsel %vm499, %v3737, 0
    %v3759 = vsel %vm499, %v3738, 0
    %v3762 = vsel %vm499, %v3739, 0
    %v3765 = vsel %vm499, %v3740, 0
    %v3768 = vsel %vm499, %v3741, 0
    %v3771 = vsel %vm499, %v3742, 0
    %v3774 = vsel %vm499, %v3743, 0
    %v3777 = vsel %vm499, %v3744, 0
    %v3780 = vsel %vm499, %v3745, 0
    %v3783 = vsel %vm499, %v3746, 0
    %v3786 = vsel %vm499, %v3747, 0
    %v3789 = vsel %vm499, %v3748, 0
    %v3792 = vsel %vm499, %v3749, 0
    %v3795 = vsel %vm499, %v3750, 0
    %v3798 = vsel %vm499, %v3751, 0
    %v3801 = vsel %vm548, %v3703, 0
    %3803 = vmatpush.bf16.msra.mxu0 0
    %3804 = vmatpush.bf16.msra.mxu0 0
    %3805 = vmatpush.bf16.msra.mxu0 0
    %3806 = vmatpush.bf16.msra.mxu0 0
    %3807 = vmatpush.bf16.msra.mxu0 0
    %3808 = vmatpush.bf16.msra.mxu0 0
    %3809 = vmatpush.bf16.msra.mxu0 0
    %3810 = vmatpush.bf16.msra.mxu0 %v3801
    %3811 = vmatmul.bf16.gmra.mxu0 %v3753
    %v3812 = vpop.f32.mrf.mxu0
    %v3813 = vadd.f32 0.0, %v3812
    %v3814 = vpop.f32.mrf.mxu0
    %v3815 = vadd.f32 0.0, %v3814
    %3816 = vmatmul.bf16.gmra.mxu0 %v3756
    %v3817 = vpop.f32.mrf.mxu0
    %v3818 = vadd.f32 0.0, %v3817
    %v3819 = vpop.f32.mrf.mxu0
    %v3820 = vadd.f32 0.0, %v3819
    %3821 = vmatmul.bf16.gmra.mxu0 %v3759
    %v3822 = vpop.f32.mrf.mxu0
    %v3823 = vadd.f32 0.0, %v3822
    %v3824 = vpop.f32.mrf.mxu0
    %v3825 = vadd.f32 0.0, %v3824
    %3826 = vmatmul.bf16.gmra.mxu0 %v3762
    %v3827 = vpop.f32.mrf.mxu0
    %v3828 = vadd.f32 0.0, %v3827
    %v3829 = vpop.f32.mrf.mxu0
    %v3830 = vadd.f32 0.0, %v3829
    %3831 = vmatmul.bf16.gmra.mxu0 %v3765
    %v3832 = vpop.f32.mrf.mxu0
    %v3833 = vadd.f32 0.0, %v3832
    %v3834 = vpop.f32.mrf.mxu0
    %v3835 = vadd.f32 0.0, %v3834
    %3836 = vmatmul.bf16.gmra.mxu0 %v3768
    %v3837 = vpop.f32.mrf.mxu0
    %v3838 = vadd.f32 0.0, %v3837
    %v3839 = vpop.f32.mrf.mxu0
    %v3840 = vadd.f32 0.0, %v3839
    %3841 = vmatmul.bf16.gmra.mxu0 %v3771
    %v3842 = vpop.f32.mrf.mxu0
    %v3843 = vadd.f32 0.0, %v3842
    %v3844 = vpop.f32.mrf.mxu0
    %v3845 = vadd.f32 0.0, %v3844
    %3846 = vmatmul.bf16.gmra.mxu0 %v3774
    %v3847 = vpop.f32.mrf.mxu0
    %v3848 = vadd.f32 0.0, %v3847
    %v3849 = vpop.f32.mrf.mxu0
    %v3850 = vadd.f32 0.0, %v3849
    %3851 = vmatmul.bf16.gmra.mxu0 %v3777
    %v3852 = vpop.f32.mrf.mxu0
    %v3853 = vadd.f32 0.0, %v3852
    %v3854 = vpop.f32.mrf.mxu0
    %v3855 = vadd.f32 0.0, %v3854
    %3856 = vmatmul.bf16.gmra.mxu0 %v3780
    %v3857 = vpop.f32.mrf.mxu0
    %v3858 = vadd.f32 0.0, %v3857
    %v3859 = vpop.f32.mrf.mxu0
    %v3860 = vadd.f32 0.0, %v3859
    %3861 = vmatmul.bf16.gmra.mxu0 %v3783
    %v3862 = vpop.f32.mrf.mxu0
    %v3863 = vadd.f32 0.0, %v3862
    %v3864 = vpop.f32.mrf.mxu0
    %v3865 = vadd.f32 0.0, %v3864
    %3866 = vmatmul.bf16.gmra.mxu0 %v3786
    %v3867 = vpop.f32.mrf.mxu0
    %v3868 = vadd.f32 0.0, %v3867
    %v3869 = vpop.f32.mrf.mxu0
    %v3870 = vadd.f32 0.0, %v3869
    %3871 = vmatmul.bf16.gmra.mxu0 %v3789
    %v3872 = vpop.f32.mrf.mxu0
    %v3873 = vadd.f32 0.0, %v3872
    %v3874 = vpop.f32.mrf.mxu0
    %v3875 = vadd.f32 0.0, %v3874
    %3876 = vmatmul.bf16.gmra.mxu0 %v3792
    %v3877 = vpop.f32.mrf.mxu0
    %v3878 = vadd.f32 0.0, %v3877
    %v3879 = vpop.f32.mrf.mxu0
    %v3880 = vadd.f32 0.0, %v3879
    %3881 = vmatmul.bf16.gmra.mxu0 %v3795
    %v3882 = vpop.f32.mrf.mxu0
    %v3883 = vadd.f32 0.0, %v3882
    %v3884 = vpop.f32.mrf.mxu0
    %v3885 = vadd.f32 0.0, %v3884
    %3886 = vmatmul.bf16.gmra.mxu0 %v3798
    %v3887 = vpop.f32.mrf.mxu0
    %v3888 = vadd.f32 0.0, %v3887
    %v3889 = vpop.f32.mrf.mxu0
    %v3890 = vadd.f32 0.0, %v3889
    %3891 = vdwg.mxu0
    %v3892 = vadd.f32 %v3494, %v3813
    %v3893 = vadd.f32 %v3495, %v3815
    %v3894 = vadd.f32 %v3496, %v3818
    %v3895 = vadd.f32 %v3497, %v3820
    %v3896 = vadd.f32 %v3498, %v3823
    %v3897 = vadd.f32 %v3499, %v3825
    %v3898 = vadd.f32 %v3500, %v3828
    %v3899 = vadd.f32 %v3501, %v3830
    %v3900 = vadd.f32 %v3502, %v3833
    %v3901 = vadd.f32 %v3503, %v3835
    %v3902 = vadd.f32 %v3504, %v3838
    %v3903 = vadd.f32 %v3505, %v3840
    %v3904 = vadd.f32 %v3506, %v3843
    %v3905 = vadd.f32 %v3507, %v3845
    %v3906 = vadd.f32 %v3508, %v3848
    %v3907 = vadd.f32 %v3509, %v3850
    %v3908 = vadd.f32 %v3510, %v3853
    %v3909 = vadd.f32 %v3511, %v3855
    %v3910 = vadd.f32 %v3512, %v3858
    %v3911 = vadd.f32 %v3513, %v3860
    %v3912 = vadd.f32 %v3514, %v3863
    %v3913 = vadd.f32 %v3515, %v3865
    %v3914 = vadd.f32 %v3516, %v3868
    %v3915 = vadd.f32 %v3517, %v3870
    %v3916 = vadd.f32 %v3518, %v3873
    %v3917 = vadd.f32 %v3519, %v3875
    %v3918 = vadd.f32 %v3520, %v3878
    %v3919 = vadd.f32 %v3521, %v3880
    %v3920 = vadd.f32 %v3522, %v3883
    %v3921 = vadd.f32 %v3523, %v3885
    %v3922 = vadd.f32 %v3524, %v3888
    %v3923 = vadd.f32 %v3525, %v3890
    %3924 = vst [vmem:[#allocation2] sm:$0xff] %v3892
    %3925 = vst [vmem:[#allocation2 + $0x8] sm:$0xff] %v3893
    %3926 = vst [vmem:[#allocation2 + $0x10] sm:$0xff] %v3894
    %3927 = vst [vmem:[#allocation2 + $0x18] sm:$0xff] %v3895
    %3928 = vst [vmem:[#allocation2 + $0x20] sm:$0xff] %v3896
    %3929 = vst [vmem:[#allocation2 + $0x28] sm:$0xff] %v3897
    %3930 = vst [vmem:[#allocation2 + $0x30] sm:$0xff] %v3898
    %3931 = vst [vmem:[#allocation2 + $0x38] sm:$0xff] %v3899
    %3932 = vst [vmem:[#allocation2 + $0x40] sm:$0xff] %v3900
    %3933 = vst [vmem:[#allocation2 + $0x48] sm:$0xff] %v3901
    %3934 = vst [vmem:[#allocation2 + $0x50] sm:$0xff] %v3902
    %3935 = vst [vmem:[#allocation2 + $0x58] sm:$0xff] %v3903
    %3936 = vst [vmem:[#allocation2 + $0x60] sm:$0xff] %v3904
    %3937 = vst [vmem:[#allocation2 + $0x68] sm:$0xff] %v3905
    %3938 = vst [vmem:[#allocation2 + $0x70] sm:$0xff] %v3906
    %3939 = vst [vmem:[#allocation2 + $0x78] sm:$0xff] %v3907
    %3940 = vst [vmem:[#allocation2 + $0x80] sm:$0xff] %v3908
    %3941 = vst [vmem:[#allocation2 + $0x88] sm:$0xff] %v3909
    %3942 = vst [vmem:[#allocation2 + $0x90] sm:$0xff] %v3910
    %3943 = vst [vmem:[#allocation2 + $0x98] sm:$0xff] %v3911
    %3944 = vst [vmem:[#allocation2 + $0xa0] sm:$0xff] %v3912
    %3945 = vst [vmem:[#allocation2 + $0xa8] sm:$0xff] %v3913
    %3946 = vst [vmem:[#allocation2 + $0xb0] sm:$0xff] %v3914
    %3947 = vst [vmem:[#allocation2 + $0xb8] sm:$0xff] %v3915
    %3948 = vst [vmem:[#allocation2 + $0xc0] sm:$0xff] %v3916
    %3949 = vst [vmem:[#allocation2 + $0xc8] sm:$0xff] %v3917
    %3950 = vst [vmem:[#allocation2 + $0xd0] sm:$0xff] %v3918
    %3951 = vst [vmem:[#allocation2 + $0xd8] sm:$0xff] %v3919
    %3952 = vst [vmem:[#allocation2 + $0xe0] sm:$0xff] %v3920
    %3953 = vst [vmem:[#allocation2 + $0xe8] sm:$0xff] %v3921
    %3954 = vst [vmem:[#allocation2 + $0xf0] sm:$0xff] %v3922
    %3955 = vst [vmem:[#allocation2 + $0xf8] sm:$0xff] %v3923
    %v3956 = vld [vmem:[#allocation2] sm:$0xff]
    %v3957 = vld [vmem:[#allocation2 + $0x8] sm:$0xff]
    %v3958 = vld [vmem:[#allocation2 + $0x10] sm:$0xff]
    %v3959 = vld [vmem:[#allocation2 + $0x18] sm:$0xff]
    %v3960 = vld [vmem:[#allocation2 + $0x20] sm:$0xff]
    %v3961 = vld [vmem:[#allocation2 + $0x28] sm:$0xff]
    %v3962 = vld [vmem:[#allocation2 + $0x30] sm:$0xff]
    %v3963 = vld [vmem:[#allocation2 + $0x38] sm:$0xff]
    %v3964 = vld [vmem:[#allocation2 + $0x40] sm:$0xff]
    %v3965 = vld [vmem:[#allocation2 + $0x48] sm:$0xff]
    %v3966 = vld [vmem:[#allocation2 + $0x50] sm:$0xff]
    %v3967 = vld [vmem:[#allocation2 + $0x58] sm:$0xff]
    %v3968 = vld [vmem:[#allocation2 + $0x60] sm:$0xff]
    %v3969 = vld [vmem:[#allocation2 + $0x68] sm:$0xff]
    %v3970 = vld [vmem:[#allocation2 + $0x70] sm:$0xff]
    %v3971 = vld [vmem:[#allocation2 + $0x78] sm:$0xff]
    %v3972 = vmul.f32 %v3956, %v3956
    %v3973 = vmul.f32 %v3957, %v3957
    %v3974 = vmul.f32 %v3958, %v3958
    %v3975 = vmul.f32 %v3959, %v3959
    %v3976 = vmul.f32 %v3960, %v3960
    %v3977 = vmul.f32 %v3961, %v3961
    %v3978 = vmul.f32 %v3962, %v3962
    %v3979 = vmul.f32 %v3963, %v3963
    %v3980 = vmul.f32 %v3964, %v3964
    %v3981 = vmul.f32 %v3965, %v3965
    %v3982 = vmul.f32 %v3966, %v3966
    %v3983 = vmul.f32 %v3967, %v3967
    %v3984 = vmul.f32 %v3968, %v3968
    %v3985 = vmul.f32 %v3969, %v3969
    %v3986 = vmul.f32 %v3970, %v3970
    %v3987 = vmul.f32 %v3971, %v3971
    %v3988 = vadd.f32 %v3972, %v3973
    %v3989 = vadd.f32 %v3988, %v3974
    %v3990 = vadd.f32 %v3989, %v3975
    %v3991 = vadd.f32 %v3990, %v3976
    %v3992 = vadd.f32 %v3991, %v3977
    %v3993 = vadd.f32 %v3992, %v3978
    %v3994 = vadd.f32 %v3993, %v3979
    %v3995 = vadd.f32 %v3994, %v3980
    %v3996 = vadd.f32 %v3995, %v3981
    %v3997 = vadd.f32 %v3996, %v3982
    %v3998 = vadd.f32 %v3997, %v3983
    %v3999 = vadd.f32 %v3998, %v3984
    %v4000 = vadd.f32 %v3999, %v3985
    %v4001 = vadd.f32 %v4000, %v3986
    %v4002 = vadd.f32 %v4001, %v3987
    %v4003 = vrot.slane %v4002, 4
    %v4004 = vadd.f32 %v4002, %v4003
    %v4005 = vrot.slane %v4004, 2
    %v4006 = vadd.f32 %v4004, %v4005
    %v4007 = vrot.slane %v4006, 1
    %v4008 = vadd.f32 %v4006, %v4007
    %v4009 = vadd.f32 %v4008, 0.0
    %v4010 = vld [vmem:[#allocation2 + $0x80] sm:$0xff]
    %v4011 = vld [vmem:[#allocation2 + $0x88] sm:$0xff]
    %v4012 = vld [vmem:[#allocation2 + $0x90] sm:$0xff]
    %v4013 = vld [vmem:[#allocation2 + $0x98] sm:$0xff]
    %v4014 = vld [vmem:[#allocation2 + $0xa0] sm:$0xff]
    %v4015 = vld [vmem:[#allocation2 + $0xa8] sm:$0xff]
    %v4016 = vld [vmem:[#allocation2 + $0xb0] sm:$0xff]
    %v4017 = vld [vmem:[#allocation2 + $0xb8] sm:$0xff]
    %v4018 = vld [vmem:[#allocation2 + $0xc0] sm:$0xff]
    %v4019 = vld [vmem:[#allocation2 + $0xc8] sm:$0xff]
    %v4020 = vld [vmem:[#allocation2 + $0xd0] sm:$0xff]
    %v4021 = vld [vmem:[#allocation2 + $0xd8] sm:$0xff]
    %v4022 = vld [vmem:[#allocation2 + $0xe0] sm:$0xff]
    %v4023 = vld [vmem:[#allocation2 + $0xe8] sm:$0xff]
    %v4024 = vld [vmem:[#allocation2 + $0xf0] sm:$0xff]
    %v4025 = vld [vmem:[#allocation2 + $0xf8] sm:$0xff]
    %v4026 = vmul.f32 %v3956, %v4010
    %v4027 = vmul.f32 %v3957, %v4011
    %v4028 = vmul.f32 %v3958, %v4012
    %v4029 = vmul.f32 %v3959, %v4013
    %v4030 = vmul.f32 %v3960, %v4014
    %v4031 = vmul.f32 %v3961, %v4015
    %v4032 = vmul.f32 %v3962, %v4016
    %v4033 = vmul.f32 %v3963, %v4017
    %v4034 = vmul.f32 %v3964, %v4018
    %v4035 = vmul.f32 %v3965, %v4019
    %v4036 = vmul.f32 %v3966, %v4020
    %v4037 = vmul.f32 %v3967, %v4021
    %v4038 = vmul.f32 %v3968, %v4022
    %v4039 = vmul.f32 %v3969, %v4023
    %v4040 = vmul.f32 %v3970, %v4024
    %v4041 = vmul.f32 %v3971, %v4025
    %v4042 = vadd.f32 %v4026, %v4027
    %v4043 = vadd.f32 %v4042, %v4028
    %v4044 = vadd.f32 %v4043, %v4029
    %v4045 = vadd.f32 %v4044, %v4030
    %v4046 = vadd.f32 %v4045, %v4031
    %v4047 = vadd.f32 %v4046, %v4032
    %v4048 = vadd.f32 %v4047, %v4033
    %v4049 = vadd.f32 %v4048, %v4034
    %v4050 = vadd.f32 %v4049, %v4035
    %v4051 = vadd.f32 %v4050, %v4036
    %v4052 = vadd.f32 %v4051, %v4037
    %v4053 = vadd.f32 %v4052, %v4038
    %v4054 = vadd.f32 %v4053, %v4039
    %v4055 = vadd.f32 %v4054, %v4040
    %v4056 = vadd.f32 %v4055, %v4041
    %v4057 = vrot.slane %v4056, 4
    %v4058 = vadd.f32 %v4056, %v4057
    %v4059 = vrot.slane %v4058, 2
    %v4060 = vadd.f32 %v4058, %v4059
    %v4061 = vrot.slane %v4060, 1
    %v4062 = vadd.f32 %v4060, %v4061
    %v4063 = vadd.f32 %v4062, 0.0
    %v4064 = vmul.f32 %v4010, %v4010
    %v4065 = vmul.f32 %v4011, %v4011
    %v4066 = vmul.f32 %v4012, %v4012
    %v4067 = vmul.f32 %v4013, %v4013
    %v4068 = vmul.f32 %v4014, %v4014
    %v4069 = vmul.f32 %v4015, %v4015
    %v4070 = vmul.f32 %v4016, %v4016
    %v4071 = vmul.f32 %v4017, %v4017
    %v4072 = vmul.f32 %v4018, %v4018
    %v4073 = vmul.f32 %v4019, %v4019
    %v4074 = vmul.f32 %v4020, %v4020
    %v4075 = vmul.f32 %v4021, %v4021
    %v4076 = vmul.f32 %v4022, %v4022
    %v4077 = vmul.f32 %v4023, %v4023
    %v4078 = vmul.f32 %v4024, %v4024
    %v4079 = vmul.f32 %v4025, %v4025
    %v4080 = vadd.f32 %v4064, %v4065
    %v4081 = vadd.f32 %v4080, %v4066
    %v4082 = vadd.f32 %v4081, %v4067
    %v4083 = vadd.f32 %v4082, %v4068
    %v4084 = vadd.f32 %v4083, %v4069
    %v4085 = vadd.f32 %v4084, %v4070
    %v4086 = vadd.f32 %v4085, %v4071
    %v4087 = vadd.f32 %v4086, %v4072
    %v4088 = vadd.f32 %v4087, %v4073
    %v4089 = vadd.f32 %v4088, %v4074
    %v4090 = vadd.f32 %v4089, %v4075
    %v4091 = vadd.f32 %v4090, %v4076
    %v4092 = vadd.f32 %v4091, %v4077
    %v4093 = vadd.f32 %v4092, %v4078
    %v4094 = vadd.f32 %v4093, %v4079
    %v4095 = vrot.slane %v4094, 4
    %v4096 = vadd.f32 %v4094, %v4095
    %v4097 = vrot.slane %v4096, 2
    %v4098 = vadd.f32 %v4096, %v4097
    %v4099 = vrot.slane %v4098, 1
    %v4100 = vadd.f32 %v4098, %v4099
    %v4101 = vadd.f32 %v4100, 0.0
    %s4102 = scalar_lea.vmem %s0, 96
    %v4103 = vld [vmem:[%s4102] sm:$0xf]
    %v4104 = vld [vmem:[%s4102 + $0x4] sm:$0xf]
    %v4105 = vld [vmem:[%s4102 + $0xc] sm:$0xf]
    %v4106 = vld [vmem:[%s4102 + $0x10] sm:$0xf]
    %v4107 = vld [vmem:[%s4102 + $0x18] sm:$0xf]
    %v4108 = vld [vmem:[%s4102 + $0x1c] sm:$0xf]
    %v4109 = vld [vmem:[%s4102 + $0x24] sm:$0xf]
    %v4110 = vld [vmem:[%s4102 + $0x28] sm:$0xf]
    %v4111 = vld [vmem:[%s4102 + $0x30] sm:$0xf]
    %v4112 = vld [vmem:[%s4102 + $0x34] sm:$0xf]
    %v4113 = vld [vmem:[%s4102 + $0x3c] sm:$0xf]
    %v4114 = vld [vmem:[%s4102 + $0x40] sm:$0xf]
    %v4115 = vld [vmem:[%s4102 + $0x48] sm:$0xf]
    %v4116 = vld [vmem:[%s4102 + $0x4c] sm:$0xf]
    %v4117 = vld [vmem:[%s4102 + $0x54] sm:$0xf]
    %v4118 = vld [vmem:[%s4102 + $0x58] sm:$0xf]
    %v4119 = vld [vmem:[%s4102 + $0xd8] sm:$0xf]
    %v4120 = vld [vmem:[%s4102 + $0xdc] sm:$0xf]
    %v4121 = vld [vmem:[%s4102 + $0xe4] sm:$0xf]
    %v4122 = vld [vmem:[%s4102 + $0xe8] sm:$0xf]
    %v4123 = vld [vmem:[%s4102 + $0xf0] sm:$0xf]
    %v4124 = vld [vmem:[%s4102 + $0xf4] sm:$0xf]
    %v4125 = vld [vmem:[%s4102 + $0xfc] sm:$0xf]
    %v4126 = vld [vmem:[%s4102 + $0x100] sm:$0xf]
    %v4127 = vld [vmem:[%s4102 + $0x108] sm:$0xf]
    %v4128 = vld [vmem:[%s4102 + $0x10c] sm:$0xf]
    %v4129 = vld [vmem:[%s4102 + $0x114] sm:$0xf]
    %v4130 = vld [vmem:[%s4102 + $0x118] sm:$0xf]
    %v4131 = vld [vmem:[%s4102 + $0x120] sm:$0xf]
    %v4132 = vld [vmem:[%s4102 + $0x124] sm:$0xf]
    %v4133 = vld [vmem:[%s4102 + $0x12c] sm:$0xf]
    %v4134 = vld [vmem:[%s4102 + $0x130] sm:$0xf]
    %v4135 = vld [vmem:[%s1] sm:$0x3]
    %v4136 = vld [vmem:[%s4102 + $0x8] sm:$0x1]
    %v4137 = vld [vmem:[%s4102 + $0x14] sm:$0x1]
    %v4138 = vld [vmem:[%s4102 + $0x20] sm:$0x1]
    %v4139 = vld [vmem:[%s4102 + $0x2c] sm:$0x1]
    %v4140 = vld [vmem:[%s4102 + $0x38] sm:$0x1]
    %v4141 = vld [vmem:[%s4102 + $0x44] sm:$0x1]
    %v4142 = vld [vmem:[%s4102 + $0x50] sm:$0x1]
    %v4143 = vld [vmem:[%s4102 + $0x5c] sm:$0x1]
    %v4144 = vld [vmem:[%s4102 + $0xe0] sm:$0x1]
    %v4145 = vld [vmem:[%s4102 + $0xec] sm:$0x1]
    %v4146 = vld [vmem:[%s4102 + $0xf8] sm:$0x1]
    %v4147 = vld [vmem:[%s4102 + $0x104] sm:$0x1]
    %v4148 = vld [vmem:[%s4102 + $0x110] sm:$0x1]
    %v4149 = vld [vmem:[%s4102 + $0x11c] sm:$0x1]
    %v4150 = vld [vmem:[%s4102 + $0x128] sm:$0x1]
    %v4151 = vld [vmem:[%s4102 + $0x134] sm:$0x1]
    %v4153 = vshrl.u32 %v4103, 16
    %v4155 = vrot.slane %v4153, 4
    %v4156 = vshll.u32 %v4103, 16
    %v4158 = vrot.slane %v4156, 5
    %v4159 = vor.u32 %v4155, %v4158
    %v4160 = vrot.slane %v4159, 4
    %v4162 = vshll.u32 %v4104, 16
    %v4164 = vrot.slane %v4162, 5
    %v4165 = vsel %vm64, %v4160, %v4164
    %v4166 = vshrl.u32 %v4104, 16
    %v4168 = vrot.slane %v4166, 4
    %v4169 = vor.u32 %v4168, %v4164
    %v4170 = vrot.slane %v4169, 4
    %v4172 = vshll.u32 %v4136, 16
    %v4174 = vrot.slane %v4172, 5
    %v4175 = vsel %vm64, %v4170, %v4174
    %v4177 = vshrl.u32 %v4105, 16
    %v4179 = vrot.slane %v4177, 4
    %v4180 = vshll.u32 %v4105, 16
    %v4182 = vrot.slane %v4180, 5
    %v4183 = vor.u32 %v4179, %v4182
    %v4184 = vrot.slane %v4183, 4
    %v4186 = vshll.u32 %v4106, 16
    %v4188 = vrot.slane %v4186, 5
    %v4189 = vsel %vm64, %v4184, %v4188
    %v4190 = vshrl.u32 %v4106, 16
    %v4192 = vrot.slane %v4190, 4
    %v4193 = vor.u32 %v4192, %v4188
    %v4194 = vrot.slane %v4193, 4
    %v4196 = vshll.u32 %v4137, 16
    %v4198 = vrot.slane %v4196, 5
    %v4199 = vsel %vm64, %v4194, %v4198
    %v4201 = vshrl.u32 %v4107, 16
    %v4203 = vrot.slane %v4201, 4
    %v4204 = vshll.u32 %v4107, 16
    %v4206 = vrot.slane %v4204, 5
    %v4207 = vor.u32 %v4203, %v4206
    %v4208 = vrot.slane %v4207, 4
    %v4210 = vshll.u32 %v4108, 16
    %v4212 = vrot.slane %v4210, 5
    %v4213 = vsel %vm64, %v4208, %v4212
    %v4214 = vshrl.u32 %v4108, 16
    %v4216 = vrot.slane %v4214, 4
    %v4217 = vor.u32 %v4216, %v4212
    %v4218 = vrot.slane %v4217, 4
    %v4220 = vshll.u32 %v4138, 16
    %v4222 = vrot.slane %v4220, 5
    %v4223 = vsel %vm64, %v4218, %v4222
    %v4225 = vshrl.u32 %v4109, 16
    %v4227 = vrot.slane %v4225, 4
    %v4228 = vshll.u32 %v4109, 16
    %v4230 = vrot.slane %v4228, 5
    %v4231 = vor.u32 %v4227, %v4230
    %v4232 = vrot.slane %v4231, 4
    %v4234 = vshll.u32 %v4110, 16
    %v4236 = vrot.slane %v4234, 5
    %v4237 = vsel %vm64, %v4232, %v4236
    %v4238 = vshrl.u32 %v4110, 16
    %v4240 = vrot.slane %v4238, 4
    %v4241 = vor.u32 %v4240, %v4236
    %v4242 = vrot.slane %v4241, 4
    %v4244 = vshll.u32 %v4139, 16
    %v4246 = vrot.slane %v4244, 5
    %v4247 = vsel %vm64, %v4242, %v4246
    %v4249 = vshrl.u32 %v4111, 16
    %v4251 = vrot.slane %v4249, 4
    %v4252 = vshll.u32 %v4111, 16
    %v4254 = vrot.slane %v4252, 5
    %v4255 = vor.u32 %v4251, %v4254
    %v4256 = vrot.slane %v4255, 4
    %v4258 = vshll.u32 %v4112, 16
    %v4260 = vrot.slane %v4258, 5
    %v4261 = vsel %vm64, %v4256, %v4260
    %v4262 = vshrl.u32 %v4112, 16
    %v4264 = vrot.slane %v4262, 4
    %v4265 = vor.u32 %v4264, %v4260
    %v4266 = vrot.slane %v4265, 4
    %v4268 = vshll.u32 %v4140, 16
    %v4270 = vrot.slane %v4268, 5
    %v4271 = vsel %vm64, %v4266, %v4270
    %v4273 = vshrl.u32 %v4113, 16
    %v4275 = vrot.slane %v4273, 4
    %v4276 = vshll.u32 %v4113, 16
    %v4278 = vrot.slane %v4276, 5
    %v4279 = vor.u32 %v4275, %v4278
    %v4280 = vrot.slane %v4279, 4
    %v4282 = vshll.u32 %v4114, 16
    %v4284 = vrot.slane %v4282, 5
    %v4285 = vsel %vm64, %v4280, %v4284
    %v4286 = vshrl.u32 %v4114, 16
    %v4288 = vrot.slane %v4286, 4
    %v4289 = vor.u32 %v4288, %v4284
    %v4290 = vrot.slane %v4289, 4
    %v4292 = vshll.u32 %v4141, 16
    %v4294 = vrot.slane %v4292, 5
    %v4295 = vsel %vm64, %v4290, %v4294
    %v4297 = vshrl.u32 %v4115, 16
    %v4299 = vrot.slane %v4297, 4
    %v4300 = vshll.u32 %v4115, 16
    %v4302 = vrot.slane %v4300, 5
    %v4303 = vor.u32 %v4299, %v4302
    %v4304 = vrot.slane %v4303, 4
    %v4306 = vshll.u32 %v4116, 16
    %v4308 = vrot.slane %v4306, 5
    %v4309 = vsel %vm64, %v4304, %v4308
    %v4310 = vshrl.u32 %v4116, 16
    %v4312 = vrot.slane %v4310, 4
    %v4313 = vor.u32 %v4312, %v4308
    %v4314 = vrot.slane %v4313, 4
    %v4316 = vshll.u32 %v4142, 16
    %v4318 = vrot.slane %v4316, 5
    %v4319 = vsel %vm64, %v4314, %v4318
    %v4321 = vshrl.u32 %v4117, 16
    %v4323 = vrot.slane %v4321, 4
    %v4324 = vshll.u32 %v4117, 16
    %v4326 = vrot.slane %v4324, 5
    %v4327 = vor.u32 %v4323, %v4326
    %v4328 = vrot.slane %v4327, 4
    %v4330 = vshll.u32 %v4118, 16
    %v4332 = vrot.slane %v4330, 5
    %v4333 = vsel %vm64, %v4328, %v4332
    %v4334 = vshrl.u32 %v4118, 16
    %v4336 = vrot.slane %v4334, 4
    %v4337 = vor.u32 %v4336, %v4332
    %v4338 = vrot.slane %v4337, 4
    %v4340 = vshll.u32 %v4143, 16
    %v4342 = vrot.slane %v4340, 5
    %v4343 = vsel %vm64, %v4338, %v4342
    %v4345 = vshrl.u32 %v4119, 16
    %v4347 = vrot.slane %v4345, 4
    %v4348 = vshll.u32 %v4119, 16
    %v4350 = vrot.slane %v4348, 5
    %v4351 = vor.u32 %v4347, %v4350
    %v4352 = vrot.slane %v4351, 4
    %v4354 = vshll.u32 %v4120, 16
    %v4356 = vrot.slane %v4354, 5
    %v4357 = vsel %vm64, %v4352, %v4356
    %v4358 = vshrl.u32 %v4120, 16
    %v4360 = vrot.slane %v4358, 4
    %v4361 = vor.u32 %v4360, %v4356
    %v4362 = vrot.slane %v4361, 4
    %v4364 = vshll.u32 %v4144, 16
    %v4366 = vrot.slane %v4364, 5
    %v4367 = vsel %vm64, %v4362, %v4366
    %v4369 = vshrl.u32 %v4121, 16
    %v4371 = vrot.slane %v4369, 4
    %v4372 = vshll.u32 %v4121, 16
    %v4374 = vrot.slane %v4372, 5
    %v4375 = vor.u32 %v4371, %v4374
    %v4376 = vrot.slane %v4375, 4
    %v4378 = vshll.u32 %v4122, 16
    %v4380 = vrot.slane %v4378, 5
    %v4381 = vsel %vm64, %v4376, %v4380
    %v4382 = vshrl.u32 %v4122, 16
    %v4384 = vrot.slane %v4382, 4
    %v4385 = vor.u32 %v4384, %v4380
    %v4386 = vrot.slane %v4385, 4
    %v4388 = vshll.u32 %v4145, 16
    %v4390 = vrot.slane %v4388, 5
    %v4391 = vsel %vm64, %v4386, %v4390
    %v4393 = vshrl.u32 %v4123, 16
    %v4395 = vrot.slane %v4393, 4
    %v4396 = vshll.u32 %v4123, 16
    %v4398 = vrot.slane %v4396, 5
    %v4399 = vor.u32 %v4395, %v4398
    %v4400 = vrot.slane %v4399, 4
    %v4402 = vshll.u32 %v4124, 16
    %v4404 = vrot.slane %v4402, 5
    %v4405 = vsel %vm64, %v4400, %v4404
    %v4406 = vshrl.u32 %v4124, 16
    %v4408 = vrot.slane %v4406, 4
    %v4409 = vor.u32 %v4408, %v4404
    %v4410 = vrot.slane %v4409, 4
    %v4412 = vshll.u32 %v4146, 16
    %v4414 = vrot.slane %v4412, 5
    %v4415 = vsel %vm64, %v4410, %v4414
    %v4417 = vshrl.u32 %v4125, 16
    %v4419 = vrot.slane %v4417, 4
    %v4420 = vshll.u32 %v4125, 16
    %v4422 = vrot.slane %v4420, 5
    %v4423 = vor.u32 %v4419, %v4422
    %v4424 = vrot.slane %v4423, 4
    %v4426 = vshll.u32 %v4126, 16
    %v4428 = vrot.slane %v4426, 5
    %v4429 = vsel %vm64, %v4424, %v4428
    %v4430 = vshrl.u32 %v4126, 16
    %v4432 = vrot.slane %v4430, 4
    %v4433 = vor.u32 %v4432, %v4428
    %v4434 = vrot.slane %v4433, 4
    %v4436 = vshll.u32 %v4147, 16
    %v4438 = vrot.slane %v4436, 5
    %v4439 = vsel %vm64, %v4434, %v4438
    %v4441 = vshrl.u32 %v4127, 16
    %v4443 = vrot.slane %v4441, 4
    %v4444 = vshll.u32 %v4127, 16
    %v4446 = vrot.slane %v4444, 5
    %v4447 = vor.u32 %v4443, %v4446
    %v4448 = vrot.slane %v4447, 4
    %v4450 = vshll.u32 %v4128, 16
    %v4452 = vrot.slane %v4450, 5
    %v4453 = vsel %vm64, %v4448, %v4452
    %v4454 = vshrl.u32 %v4128, 16
    %v4456 = vrot.slane %v4454, 4
    %v4457 = vor.u32 %v4456, %v4452
    %v4458 = vrot.slane %v4457, 4
    %v4460 = vshll.u32 %v4148, 16
    %v4462 = vrot.slane %v4460, 5
    %v4463 = vsel %vm64, %v4458, %v4462
    %v4465 = vshrl.u32 %v4129, 16
    %v4467 = vrot.slane %v4465, 4
    %v4468 = vshll.u32 %v4129, 16
    %v4470 = vrot.slane %v4468, 5
    %v4471 = vor.u32 %v4467, %v4470
    %v4472 = vrot.slane %v4471, 4
    %v4474 = vshll.u32 %v4130, 16
    %v4476 = vrot.slane %v4474, 5
    %v4477 = vsel %vm64, %v4472, %v4476
    %v4478 = vshrl.u32 %v4130, 16
    %v4480 = vrot.slane %v4478, 4
    %v4481 = vor.u32 %v4480, %v4476
    %v4482 = vrot.slane %v4481, 4
    %v4484 = vshll.u32 %v4149, 16
    %v4486 = vrot.slane %v4484, 5
    %v4487 = vsel %vm64, %v4482, %v4486
    %v4489 = vshrl.u32 %v4131, 16
    %v4491 = vrot.slane %v4489, 4
    %v4492 = vshll.u32 %v4131, 16
    %v4494 = vrot.slane %v4492, 5
    %v4495 = vor.u32 %v4491, %v4494
    %v4496 = vrot.slane %v4495, 4
    %v4498 = vshll.u32 %v4132, 16
    %v4500 = vrot.slane %v4498, 5
    %v4501 = vsel %vm64, %v4496, %v4500
    %v4502 = vshrl.u32 %v4132, 16
    %v4504 = vrot.slane %v4502, 4
    %v4505 = vor.u32 %v4504, %v4500
    %v4506 = vrot.slane %v4505, 4
    %v4508 = vshll.u32 %v4150, 16
    %v4510 = vrot.slane %v4508, 5
    %v4511 = vsel %vm64, %v4506, %v4510
    %v4513 = vshrl.u32 %v4133, 16
    %v4515 = vrot.slane %v4513, 4
    %v4516 = vshll.u32 %v4133, 16
    %v4518 = vrot.slane %v4516, 5
    %v4519 = vor.u32 %v4515, %v4518
    %v4520 = vrot.slane %v4519, 4
    %v4522 = vshll.u32 %v4134, 16
    %v4524 = vrot.slane %v4522, 5
    %v4525 = vsel %vm64, %v4520, %v4524
    %v4526 = vshrl.u32 %v4134, 16
    %v4528 = vrot.slane %v4526, 4
    %v4529 = vor.u32 %v4528, %v4524
    %v4530 = vrot.slane %v4529, 4
    %v4532 = vshll.u32 %v4151, 16
    %v4534 = vrot.slane %v4532, 5
    %v4535 = vsel %vm64, %v4530, %v4534
    %v4536 = vld [vmem:[%s449] sm:$0x3]
    %v4537 = vunpack.c.l.b16 %v4165
    %v4538 = vunpack.c.l.b16 %v4175
    %v4539 = vunpack.c.l.b16 %v4189
    %v4540 = vunpack.c.l.b16 %v4199
    %v4541 = vunpack.c.l.b16 %v4213
    %v4542 = vunpack.c.l.b16 %v4223
    %v4543 = vunpack.c.l.b16 %v4237
    %v4544 = vunpack.c.l.b16 %v4247
    %v4545 = vunpack.c.l.b16 %v4261
    %v4546 = vunpack.c.l.b16 %v4271
    %v4547 = vunpack.c.l.b16 %v4285
    %v4548 = vunpack.c.l.b16 %v4295
    %v4549 = vunpack.c.l.b16 %v4309
    %v4550 = vunpack.c.l.b16 %v4319
    %v4551 = vunpack.c.l.b16 %v4333
    %v4552 = vunpack.c.l.b16 %v4343
    %v4553 = vunpack.c.l.b16 %v4357
    %v4554 = vunpack.c.l.b16 %v4367
    %v4555 = vunpack.c.l.b16 %v4381
    %v4556 = vunpack.c.l.b16 %v4391
    %v4557 = vunpack.c.l.b16 %v4405
    %v4558 = vunpack.c.l.b16 %v4415
    %v4559 = vunpack.c.l.b16 %v4429
    %v4560 = vunpack.c.l.b16 %v4439
    %v4561 = vunpack.c.l.b16 %v4453
    %v4562 = vunpack.c.l.b16 %v4463
    %v4563 = vunpack.c.l.b16 %v4477
    %v4564 = vunpack.c.l.b16 %v4487
    %v4565 = vunpack.c.l.b16 %v4501
    %v4566 = vunpack.c.l.b16 %v4511
    %v4567 = vunpack.c.l.b16 %v4525
    %v4568 = vunpack.c.l.b16 %v4535
    %v4569 = vpack.c.b16 %v4538, %v4537
    %v4570 = vpack.c.b16 %v4540, %v4539
    %v4571 = vpack.c.b16 %v4542, %v4541
    %v4572 = vpack.c.b16 %v4544, %v4543
    %v4573 = vpack.c.b16 %v4546, %v4545
    %v4574 = vpack.c.b16 %v4548, %v4547
    %v4575 = vpack.c.b16 %v4550, %v4549
    %v4576 = vpack.c.b16 %v4552, %v4551
    %v4577 = vpack.c.b16 %v4554, %v4553
    %v4578 = vpack.c.b16 %v4556, %v4555
    %v4579 = vpack.c.b16 %v4558, %v4557
    %v4580 = vpack.c.b16 %v4560, %v4559
    %v4581 = vpack.c.b16 %v4562, %v4561
    %v4582 = vpack.c.b16 %v4564, %v4563
    %v4583 = vpack.c.b16 %v4566, %v4565
    %v4584 = vpack.c.b16 %v4568, %v4567
    %v4586 = vsel %vm499, %v4569, 0
    %v4589 = vsel %vm499, %v4570, 0
    %v4592 = vsel %vm499, %v4571, 0
    %v4595 = vsel %vm499, %v4572, 0
    %v4598 = vsel %vm499, %v4573, 0
    %v4601 = vsel %vm499, %v4574, 0
    %v4604 = vsel %vm499, %v4575, 0
    %v4607 = vsel %vm499, %v4576, 0
    %v4610 = vsel %vm499, %v4577, 0
    %v4613 = vsel %vm499, %v4578, 0
    %v4616 = vsel %vm499, %v4579, 0
    %v4619 = vsel %vm499, %v4580, 0
    %v4622 = vsel %vm499, %v4581, 0
    %v4625 = vsel %vm499, %v4582, 0
    %v4628 = vsel %vm499, %v4583, 0
    %v4631 = vsel %vm499, %v4584, 0
    %v4634 = vsel %vm548, %v4536, 0
    %4636 = vmatpush.bf16.msra.mxu0 0
    %4637 = vmatpush.bf16.msra.mxu0 0
    %4638 = vmatpush.bf16.msra.mxu0 0
    %4639 = vmatpush.bf16.msra.mxu0 0
    %4640 = vmatpush.bf16.msra.mxu0 0
    %4641 = vmatpush.bf16.msra.mxu0 0
    %4642 = vmatpush.bf16.msra.mxu0 0
    %4643 = vmatpush.bf16.msra.mxu0 %v4634
    %4644 = vmatmul.bf16.gmra.mxu0 %v4586
    %v4645 = vpop.f32.mrf.mxu0
    %v4646 = vadd.f32 0.0, %v4645
    %v4647 = vpop.f32.mrf.mxu0
    %v4648 = vadd.f32 0.0, %v4647
    %4649 = vmatmul.bf16.gmra.mxu0 %v4589
    %v4650 = vpop.f32.mrf.mxu0
    %v4651 = vadd.f32 0.0, %v4650
    %v4652 = vpop.f32.mrf.mxu0
    %v4653 = vadd.f32 0.0, %v4652
    %4654 = vmatmul.bf16.gmra.mxu0 %v4592
    %v4655 = vpop.f32.mrf.mxu0
    %v4656 = vadd.f32 0.0, %v4655
    %v4657 = vpop.f32.mrf.mxu0
    %v4658 = vadd.f32 0.0, %v4657
    %4659 = vmatmul.bf16.gmra.mxu0 %v4595
    %v4660 = vpop.f32.mrf.mxu0
    %v4661 = vadd.f32 0.0, %v4660
    %v4662 = vpop.f32.mrf.mxu0
    %v4663 = vadd.f32 0.0, %v4662
    %4664 = vmatmul.bf16.gmra.mxu0 %v4598
    %v4665 = vpop.f32.mrf.mxu0
    %v4666 = vadd.f32 0.0, %v4665
    %v4667 = vpop.f32.mrf.mxu0
    %v4668 = vadd.f32 0.0, %v4667
    %4669 = vmatmul.bf16.gmra.mxu0 %v4601
    %v4670 = vpop.f32.mrf.mxu0
    %v4671 = vadd.f32 0.0, %v4670
    %v4672 = vpop.f32.mrf.mxu0
    %v4673 = vadd.f32 0.0, %v4672
    %4674 = vmatmul.bf16.gmra.mxu0 %v4604
    %v4675 = vpop.f32.mrf.mxu0
    %v4676 = vadd.f32 0.0, %v4675
    %v4677 = vpop.f32.mrf.mxu0
    %v4678 = vadd.f32 0.0, %v4677
    %4679 = vmatmul.bf16.gmra.mxu0 %v4607
    %v4680 = vpop.f32.mrf.mxu0
    %v4681 = vadd.f32 0.0, %v4680
    %v4682 = vpop.f32.mrf.mxu0
    %v4683 = vadd.f32 0.0, %v4682
    %4684 = vmatmul.bf16.gmra.mxu0 %v4610
    %v4685 = vpop.f32.mrf.mxu0
    %v4686 = vadd.f32 0.0, %v4685
    %v4687 = vpop.f32.mrf.mxu0
    %v4688 = vadd.f32 0.0, %v4687
    %4689 = vmatmul.bf16.gmra.mxu0 %v4613
    %v4690 = vpop.f32.mrf.mxu0
    %v4691 = vadd.f32 0.0, %v4690
    %v4692 = vpop.f32.mrf.mxu0
    %v4693 = vadd.f32 0.0, %v4692
    %4694 = vmatmul.bf16.gmra.mxu0 %v4616
    %v4695 = vpop.f32.mrf.mxu0
    %v4696 = vadd.f32 0.0, %v4695
    %v4697 = vpop.f32.mrf.mxu0
    %v4698 = vadd.f32 0.0, %v4697
    %4699 = vmatmul.bf16.gmra.mxu0 %v4619
    %v4700 = vpop.f32.mrf.mxu0
    %v4701 = vadd.f32 0.0, %v4700
    %v4702 = vpop.f32.mrf.mxu0
    %v4703 = vadd.f32 0.0, %v4702
    %4704 = vmatmul.bf16.gmra.mxu0 %v4622
    %v4705 = vpop.f32.mrf.mxu0
    %v4706 = vadd.f32 0.0, %v4705
    %v4707 = vpop.f32.mrf.mxu0
    %v4708 = vadd.f32 0.0, %v4707
    %4709 = vmatmul.bf16.gmra.mxu0 %v4625
    %v4710 = vpop.f32.mrf.mxu0
    %v4711 = vadd.f32 0.0, %v4710
    %v4712 = vpop.f32.mrf.mxu0
    %v4713 = vadd.f32 0.0, %v4712
    %4714 = vmatmul.bf16.gmra.mxu0 %v4628
    %v4715 = vpop.f32.mrf.mxu0
    %v4716 = vadd.f32 0.0, %v4715
    %v4717 = vpop.f32.mrf.mxu0
    %v4718 = vadd.f32 0.0, %v4717
    %4719 = vmatmul.bf16.gmra.mxu0 %v4631
    %v4720 = vpop.f32.mrf.mxu0
    %v4721 = vadd.f32 0.0, %v4720
    %v4722 = vpop.f32.mrf.mxu0
    %v4723 = vadd.f32 0.0, %v4722
    %4724 = vdwg.mxu0
    %v4757 = vunpack.c.l.b16 %v4103
    %v4758 = vunpack.c.l.b16 %v4104
    %v4759 = vunpack.c.l.b16 %v4105
    %v4760 = vunpack.c.l.b16 %v4106
    %v4761 = vunpack.c.l.b16 %v4107
    %v4762 = vunpack.c.l.b16 %v4108
    %v4763 = vunpack.c.l.b16 %v4109
    %v4764 = vunpack.c.l.b16 %v4110
    %v4765 = vunpack.c.l.b16 %v4111
    %v4766 = vunpack.c.l.b16 %v4112
    %v4767 = vunpack.c.l.b16 %v4113
    %v4768 = vunpack.c.l.b16 %v4114
    %v4769 = vunpack.c.l.b16 %v4115
    %v4770 = vunpack.c.l.b16 %v4116
    %v4771 = vunpack.c.l.b16 %v4117
    %v4772 = vunpack.c.l.b16 %v4118
    %v4773 = vunpack.c.l.b16 %v4119
    %v4774 = vunpack.c.l.b16 %v4120
    %v4775 = vunpack.c.l.b16 %v4121
    %v4776 = vunpack.c.l.b16 %v4122
    %v4777 = vunpack.c.l.b16 %v4123
    %v4778 = vunpack.c.l.b16 %v4124
    %v4779 = vunpack.c.l.b16 %v4125
    %v4780 = vunpack.c.l.b16 %v4126
    %v4781 = vunpack.c.l.b16 %v4127
    %v4782 = vunpack.c.l.b16 %v4128
    %v4783 = vunpack.c.l.b16 %v4129
    %v4784 = vunpack.c.l.b16 %v4130
    %v4785 = vunpack.c.l.b16 %v4131
    %v4786 = vunpack.c.l.b16 %v4132
    %v4787 = vunpack.c.l.b16 %v4133
    %v4788 = vunpack.c.l.b16 %v4134
    %v4789 = vpack.c.b16 %v4758, %v4757
    %v4790 = vpack.c.b16 %v4760, %v4759
    %v4791 = vpack.c.b16 %v4762, %v4761
    %v4792 = vpack.c.b16 %v4764, %v4763
    %v4793 = vpack.c.b16 %v4766, %v4765
    %v4794 = vpack.c.b16 %v4768, %v4767
    %v4795 = vpack.c.b16 %v4770, %v4769
    %v4796 = vpack.c.b16 %v4772, %v4771
    %v4797 = vpack.c.b16 %v4774, %v4773
    %v4798 = vpack.c.b16 %v4776, %v4775
    %v4799 = vpack.c.b16 %v4778, %v4777
    %v4800 = vpack.c.b16 %v4780, %v4779
    %v4801 = vpack.c.b16 %v4782, %v4781
    %v4802 = vpack.c.b16 %v4784, %v4783
    %v4803 = vpack.c.b16 %v4786, %v4785
    %v4804 = vpack.c.b16 %v4788, %v4787
    %v4806 = vsel %vm499, %v4789, 0
    %v4809 = vsel %vm499, %v4790, 0
    %v4812 = vsel %vm499, %v4791, 0
    %v4815 = vsel %vm499, %v4792, 0
    %v4818 = vsel %vm499, %v4793, 0
    %v4821 = vsel %vm499, %v4794, 0
    %v4824 = vsel %vm499, %v4795, 0
    %v4827 = vsel %vm499, %v4796, 0
    %v4830 = vsel %vm499, %v4797, 0
    %v4833 = vsel %vm499, %v4798, 0
    %v4836 = vsel %vm499, %v4799, 0
    %v4839 = vsel %vm499, %v4800, 0
    %v4842 = vsel %vm499, %v4801, 0
    %v4845 = vsel %vm499, %v4802, 0
    %v4848 = vsel %vm499, %v4803, 0
    %v4851 = vsel %vm499, %v4804, 0
    %v4854 = vsel %vm548, %v4135, 0
    %4856 = vmatpush.bf16.msra.mxu0 0
    %4857 = vmatpush.bf16.msra.mxu0 0
    %4858 = vmatpush.bf16.msra.mxu0 0
    %4859 = vmatpush.bf16.msra.mxu0 0
    %4860 = vmatpush.bf16.msra.mxu0 0
    %4861 = vmatpush.bf16.msra.mxu0 0
    %4862 = vmatpush.bf16.msra.mxu0 0
    %4863 = vmatpush.bf16.msra.mxu0 %v4854
    %4864 = vmatmul.bf16.gmra.mxu0 %v4806
    %v4865 = vpop.f32.mrf.mxu0
    %v4866 = vadd.f32 %v4646, %v4865
    %v4867 = vpop.f32.mrf.mxu0
    %v4868 = vadd.f32 %v4648, %v4867
    %4869 = vmatmul.bf16.gmra.mxu0 %v4809
    %v4870 = vpop.f32.mrf.mxu0
    %v4871 = vadd.f32 %v4651, %v4870
    %v4872 = vpop.f32.mrf.mxu0
    %v4873 = vadd.f32 %v4653, %v4872
    %4874 = vmatmul.bf16.gmra.mxu0 %v4812
    %v4875 = vpop.f32.mrf.mxu0
    %v4876 = vadd.f32 %v4656, %v4875
    %v4877 = vpop.f32.mrf.mxu0
    %v4878 = vadd.f32 %v4658, %v4877
    %4879 = vmatmul.bf16.gmra.mxu0 %v4815
    %v4880 = vpop.f32.mrf.mxu0
    %v4881 = vadd.f32 %v4661, %v4880
    %v4882 = vpop.f32.mrf.mxu0
    %v4883 = vadd.f32 %v4663, %v4882
    %4884 = vmatmul.bf16.gmra.mxu0 %v4818
    %v4885 = vpop.f32.mrf.mxu0
    %v4886 = vadd.f32 %v4666, %v4885
    %v4887 = vpop.f32.mrf.mxu0
    %v4888 = vadd.f32 %v4668, %v4887
    %4889 = vmatmul.bf16.gmra.mxu0 %v4821
    %v4890 = vpop.f32.mrf.mxu0
    %v4891 = vadd.f32 %v4671, %v4890
    %v4892 = vpop.f32.mrf.mxu0
    %v4893 = vadd.f32 %v4673, %v4892
    %4894 = vmatmul.bf16.gmra.mxu0 %v4824
    %v4895 = vpop.f32.mrf.mxu0
    %v4896 = vadd.f32 %v4676, %v4895
    %v4897 = vpop.f32.mrf.mxu0
    %v4898 = vadd.f32 %v4678, %v4897
    %4899 = vmatmul.bf16.gmra.mxu0 %v4827
    %v4900 = vpop.f32.mrf.mxu0
    %v4901 = vadd.f32 %v4681, %v4900
    %v4902 = vpop.f32.mrf.mxu0
    %v4903 = vadd.f32 %v4683, %v4902
    %4904 = vmatmul.bf16.gmra.mxu0 %v4830
    %v4905 = vpop.f32.mrf.mxu0
    %v4906 = vadd.f32 %v4686, %v4905
    %v4907 = vpop.f32.mrf.mxu0
    %v4908 = vadd.f32 %v4688, %v4907
    %4909 = vmatmul.bf16.gmra.mxu0 %v4833
    %v4910 = vpop.f32.mrf.mxu0
    %v4911 = vadd.f32 %v4691, %v4910
    %v4912 = vpop.f32.mrf.mxu0
    %v4913 = vadd.f32 %v4693, %v4912
    %4914 = vmatmul.bf16.gmra.mxu0 %v4836
    %v4915 = vpop.f32.mrf.mxu0
    %v4916 = vadd.f32 %v4696, %v4915
    %v4917 = vpop.f32.mrf.mxu0
    %v4918 = vadd.f32 %v4698, %v4917
    %4919 = vmatmul.bf16.gmra.mxu0 %v4839
    %v4920 = vpop.f32.mrf.mxu0
    %v4921 = vadd.f32 %v4701, %v4920
    %v4922 = vpop.f32.mrf.mxu0
    %v4923 = vadd.f32 %v4703, %v4922
    %4924 = vmatmul.bf16.gmra.mxu0 %v4842
    %v4925 = vpop.f32.mrf.mxu0
    %v4926 = vadd.f32 %v4706, %v4925
    %v4927 = vpop.f32.mrf.mxu0
    %v4928 = vadd.f32 %v4708, %v4927
    %4929 = vmatmul.bf16.gmra.mxu0 %v4845
    %v4930 = vpop.f32.mrf.mxu0
    %v4931 = vadd.f32 %v4711, %v4930
    %v4932 = vpop.f32.mrf.mxu0
    %v4933 = vadd.f32 %v4713, %v4932
    %4934 = vmatmul.bf16.gmra.mxu0 %v4848
    %v4935 = vpop.f32.mrf.mxu0
    %v4936 = vadd.f32 %v4716, %v4935
    %v4937 = vpop.f32.mrf.mxu0
    %v4938 = vadd.f32 %v4718, %v4937
    %4939 = vmatmul.bf16.gmra.mxu0 %v4851
    %v4940 = vpop.f32.mrf.mxu0
    %v4941 = vadd.f32 %v4721, %v4940
    %v4942 = vpop.f32.mrf.mxu0
    %v4943 = vadd.f32 %v4723, %v4942
    %4944 = vdwg.mxu0
    %v4945 = vld [vmem:[%s4102] sm:$0xe]
    %v4946 = vld [vmem:[%s4102 + $0xc] sm:$0xe]
    %v4947 = vld [vmem:[%s4102 + $0x18] sm:$0xe]
    %v4948 = vld [vmem:[%s4102 + $0x24] sm:$0xe]
    %v4949 = vld [vmem:[%s4102 + $0x30] sm:$0xe]
    %v4950 = vld [vmem:[%s4102 + $0x3c] sm:$0xe]
    %v4951 = vld [vmem:[%s4102 + $0x48] sm:$0xe]
    %v4952 = vld [vmem:[%s4102 + $0x54] sm:$0xe]
    %v4953 = vld [vmem:[%s4102 + $0xd8] sm:$0xe]
    %v4954 = vld [vmem:[%s4102 + $0xe4] sm:$0xe]
    %v4955 = vld [vmem:[%s4102 + $0xf0] sm:$0xe]
    %v4956 = vld [vmem:[%s4102 + $0xfc] sm:$0xe]
    %v4957 = vld [vmem:[%s4102 + $0x108] sm:$0xe]
    %v4958 = vld [vmem:[%s4102 + $0x114] sm:$0xe]
    %v4959 = vld [vmem:[%s4102 + $0x120] sm:$0xe]
    %v4960 = vld [vmem:[%s4102 + $0x12c] sm:$0xe]
    %v4993 = vrot.slane %v4945, 5
    %v4994 = vrot.slane %v4993, 4
    %v4995 = vrot.slane %v4104, 5
    %v4996 = vsel %vm911, %v4994, %v4995
    %v4997 = vrot.slane %v4995, 4
    %v4998 = vrot.slane %v4136, 5
    %v4999 = vsel %vm911, %v4997, %v4998
    %v5000 = vrot.slane %v4946, 5
    %v5001 = vrot.slane %v5000, 4
    %v5002 = vrot.slane %v4106, 5
    %v5003 = vsel %vm911, %v5001, %v5002
    %v5004 = vrot.slane %v5002, 4
    %v5005 = vrot.slane %v4137, 5
    %v5006 = vsel %vm911, %v5004, %v5005
    %v5007 = vrot.slane %v4947, 5
    %v5008 = vrot.slane %v5007, 4
    %v5009 = vrot.slane %v4108, 5
    %v5010 = vsel %vm911, %v5008, %v5009
    %v5011 = vrot.slane %v5009, 4
    %v5012 = vrot.slane %v4138, 5
    %v5013 = vsel %vm911, %v5011, %v5012
    %v5014 = vrot.slane %v4948, 5
    %v5015 = vrot.slane %v5014, 4
    %v5016 = vrot.slane %v4110, 5
    %v5017 = vsel %vm911, %v5015, %v5016
    %v5018 = vrot.slane %v5016, 4
    %v5019 = vrot.slane %v4139, 5
    %v5020 = vsel %vm911, %v5018, %v5019
    %v5021 = vrot.slane %v4949, 5
    %v5022 = vrot.slane %v5021, 4
    %v5023 = vrot.slane %v4112, 5
    %v5024 = vsel %vm911, %v5022, %v5023
    %v5025 = vrot.slane %v5023, 4
    %v5026 = vrot.slane %v4140, 5
    %v5027 = vsel %vm911, %v5025, %v5026
    %v5028 = vrot.slane %v4950, 5
    %v5029 = vrot.slane %v5028, 4
    %v5030 = vrot.slane %v4114, 5
    %v5031 = vsel %vm911, %v5029, %v5030
    %v5032 = vrot.slane %v5030, 4
    %v5033 = vrot.slane %v4141, 5
    %v5034 = vsel %vm911, %v5032, %v5033
    %v5035 = vrot.slane %v4951, 5
    %v5036 = vrot.slane %v5035, 4
    %v5037 = vrot.slane %v4116, 5
    %v5038 = vsel %vm911, %v5036, %v5037
    %v5039 = vrot.slane %v5037, 4
    %v5040 = vrot.slane %v4142, 5
    %v5041 = vsel %vm911, %v5039, %v5040
    %v5042 = vrot.slane %v4952, 5
    %v5043 = vrot.slane %v5042, 4
    %v5044 = vrot.slane %v4118, 5
    %v5045 = vsel %vm911, %v5043, %v5044
    %v5046 = vrot.slane %v5044, 4
    %v5047 = vrot.slane %v4143, 5
    %v5048 = vsel %vm911, %v5046, %v5047
    %v5049 = vrot.slane %v4953, 5
    %v5050 = vrot.slane %v5049, 4
    %v5051 = vrot.slane %v4120, 5
    %v5052 = vsel %vm911, %v5050, %v5051
    %v5053 = vrot.slane %v5051, 4
    %v5054 = vrot.slane %v4144, 5
    %v5055 = vsel %vm911, %v5053, %v5054
    %v5056 = vrot.slane %v4954, 5
    %v5057 = vrot.slane %v5056, 4
    %v5058 = vrot.slane %v4122, 5
    %v5059 = vsel %vm911, %v5057, %v5058
    %v5060 = vrot.slane %v5058, 4
    %v5061 = vrot.slane %v4145, 5
    %v5062 = vsel %vm911, %v5060, %v5061
    %v5063 = vrot.slane %v4955, 5
    %v5064 = vrot.slane %v5063, 4
    %v5065 = vrot.slane %v4124, 5
    %v5066 = vsel %vm911, %v5064, %v5065
    %v5067 = vrot.slane %v5065, 4
    %v5068 = vrot.slane %v4146, 5
    %v5069 = vsel %vm911, %v5067, %v5068
    %v5070 = vrot.slane %v4956, 5
    %v5071 = vrot.slane %v5070, 4
    %v5072 = vrot.slane %v4126, 5
    %v5073 = vsel %vm911, %v5071, %v5072
    %v5074 = vrot.slane %v5072, 4
    %v5075 = vrot.slane %v4147, 5
    %v5076 = vsel %vm911, %v5074, %v5075
    %v5077 = vrot.slane %v4957, 5
    %v5078 = vrot.slane %v5077, 4
    %v5079 = vrot.slane %v4128, 5
    %v5080 = vsel %vm911, %v5078, %v5079
    %v5081 = vrot.slane %v5079, 4
    %v5082 = vrot.slane %v4148, 5
    %v5083 = vsel %vm911, %v5081, %v5082
    %v5084 = vrot.slane %v4958, 5
    %v5085 = vrot.slane %v5084, 4
    %v5086 = vrot.slane %v4130, 5
    %v5087 = vsel %vm911, %v5085, %v5086
    %v5088 = vrot.slane %v5086, 4
    %v5089 = vrot.slane %v4149, 5
    %v5090 = vsel %vm911, %v5088, %v5089
    %v5091 = vrot.slane %v4959, 5
    %v5092 = vrot.slane %v5091, 4
    %v5093 = vrot.slane %v4132, 5
    %v5094 = vsel %vm911, %v5092, %v5093
    %v5095 = vrot.slane %v5093, 4
    %v5096 = vrot.slane %v4150, 5
    %v5097 = vsel %vm911, %v5095, %v5096
    %v5098 = vrot.slane %v4960, 5
    %v5099 = vrot.slane %v5098, 4
    %v5100 = vrot.slane %v4134, 5
    %v5101 = vsel %vm911, %v5099, %v5100
    %v5102 = vrot.slane %v5100, 4
    %v5103 = vrot.slane %v4151, 5
    %v5104 = vsel %vm911, %v5102, %v5103
    %v5105 = vld [vmem:[%s1024] sm:$0x3]
    %v5106 = vunpack.c.l.b16 %v4996
    %v5107 = vunpack.c.l.b16 %v4999
    %v5108 = vunpack.c.l.b16 %v5003
    %v5109 = vunpack.c.l.b16 %v5006
    %v5110 = vunpack.c.l.b16 %v5010
    %v5111 = vunpack.c.l.b16 %v5013
    %v5112 = vunpack.c.l.b16 %v5017
    %v5113 = vunpack.c.l.b16 %v5020
    %v5114 = vunpack.c.l.b16 %v5024
    %v5115 = vunpack.c.l.b16 %v5027
    %v5116 = vunpack.c.l.b16 %v5031
    %v5117 = vunpack.c.l.b16 %v5034
    %v5118 = vunpack.c.l.b16 %v5038
    %v5119 = vunpack.c.l.b16 %v5041
    %v5120 = vunpack.c.l.b16 %v5045
    %v5121 = vunpack.c.l.b16 %v5048
    %v5122 = vunpack.c.l.b16 %v5052
    %v5123 = vunpack.c.l.b16 %v5055
    %v5124 = vunpack.c.l.b16 %v5059
    %v5125 = vunpack.c.l.b16 %v5062
    %v5126 = vunpack.c.l.b16 %v5066
    %v5127 = vunpack.c.l.b16 %v5069
    %v5128 = vunpack.c.l.b16 %v5073
    %v5129 = vunpack.c.l.b16 %v5076
    %v5130 = vunpack.c.l.b16 %v5080
    %v5131 = vunpack.c.l.b16 %v5083
    %v5132 = vunpack.c.l.b16 %v5087
    %v5133 = vunpack.c.l.b16 %v5090
    %v5134 = vunpack.c.l.b16 %v5094
    %v5135 = vunpack.c.l.b16 %v5097
    %v5136 = vunpack.c.l.b16 %v5101
    %v5137 = vunpack.c.l.b16 %v5104
    %v5138 = vpack.c.b16 %v5107, %v5106
    %v5139 = vpack.c.b16 %v5109, %v5108
    %v5140 = vpack.c.b16 %v5111, %v5110
    %v5141 = vpack.c.b16 %v5113, %v5112
    %v5142 = vpack.c.b16 %v5115, %v5114
    %v5143 = vpack.c.b16 %v5117, %v5116
    %v5144 = vpack.c.b16 %v5119, %v5118
    %v5145 = vpack.c.b16 %v5121, %v5120
    %v5146 = vpack.c.b16 %v5123, %v5122
    %v5147 = vpack.c.b16 %v5125, %v5124
    %v5148 = vpack.c.b16 %v5127, %v5126
    %v5149 = vpack.c.b16 %v5129, %v5128
    %v5150 = vpack.c.b16 %v5131, %v5130
    %v5151 = vpack.c.b16 %v5133, %v5132
    %v5152 = vpack.c.b16 %v5135, %v5134
    %v5153 = vpack.c.b16 %v5137, %v5136
    %v5155 = vsel %vm499, %v5138, 0
    %v5158 = vsel %vm499, %v5139, 0
    %v5161 = vsel %vm499, %v5140, 0
    %v5164 = vsel %vm499, %v5141, 0
    %v5167 = vsel %vm499, %v5142, 0
    %v5170 = vsel %vm499, %v5143, 0
    %v5173 = vsel %vm499, %v5144, 0
    %v5176 = vsel %vm499, %v5145, 0
    %v5179 = vsel %vm499, %v5146, 0
    %v5182 = vsel %vm499, %v5147, 0
    %v5185 = vsel %vm499, %v5148, 0
    %v5188 = vsel %vm499, %v5149, 0
    %v5191 = vsel %vm499, %v5150, 0
    %v5194 = vsel %vm499, %v5151, 0
    %v5197 = vsel %vm499, %v5152, 0
    %v5200 = vsel %vm499, %v5153, 0
    %v5203 = vsel %vm548, %v5105, 0
    %5205 = vmatpush.bf16.msra.mxu0 0
    %5206 = vmatpush.bf16.msra.mxu0 0
    %5207 = vmatpush.bf16.msra.mxu0 0
    %5208 = vmatpush.bf16.msra.mxu0 0
    %5209 = vmatpush.bf16.msra.mxu0 0
    %5210 = vmatpush.bf16.msra.mxu0 0
    %5211 = vmatpush.bf16.msra.mxu0 0
    %5212 = vmatpush.bf16.msra.mxu0 %v5203
    %5213 = vmatmul.bf16.gmra.mxu0 %v5155
    %v5214 = vpop.f32.mrf.mxu0
    %v5215 = vadd.f32 0.0, %v5214
    %v5216 = vpop.f32.mrf.mxu0
    %v5217 = vadd.f32 0.0, %v5216
    %5218 = vmatmul.bf16.gmra.mxu0 %v5158
    %v5219 = vpop.f32.mrf.mxu0
    %v5220 = vadd.f32 0.0, %v5219
    %v5221 = vpop.f32.mrf.mxu0
    %v5222 = vadd.f32 0.0, %v5221
    %5223 = vmatmul.bf16.gmra.mxu0 %v5161
    %v5224 = vpop.f32.mrf.mxu0
    %v5225 = vadd.f32 0.0, %v5224
    %v5226 = vpop.f32.mrf.mxu0
    %v5227 = vadd.f32 0.0, %v5226
    %5228 = vmatmul.bf16.gmra.mxu0 %v5164
    %v5229 = vpop.f32.mrf.mxu0
    %v5230 = vadd.f32 0.0, %v5229
    %v5231 = vpop.f32.mrf.mxu0
    %v5232 = vadd.f32 0.0, %v5231
    %5233 = vmatmul.bf16.gmra.mxu0 %v5167
    %v5234 = vpop.f32.mrf.mxu0
    %v5235 = vadd.f32 0.0, %v5234
    %v5236 = vpop.f32.mrf.mxu0
    %v5237 = vadd.f32 0.0, %v5236
    %5238 = vmatmul.bf16.gmra.mxu0 %v5170
    %v5239 = vpop.f32.mrf.mxu0
    %v5240 = vadd.f32 0.0, %v5239
    %v5241 = vpop.f32.mrf.mxu0
    %v5242 = vadd.f32 0.0, %v5241
    %5243 = vmatmul.bf16.gmra.mxu0 %v5173
    %v5244 = vpop.f32.mrf.mxu0
    %v5245 = vadd.f32 0.0, %v5244
    %v5246 = vpop.f32.mrf.mxu0
    %v5247 = vadd.f32 0.0, %v5246
    %5248 = vmatmul.bf16.gmra.mxu0 %v5176
    %v5249 = vpop.f32.mrf.mxu0
    %v5250 = vadd.f32 0.0, %v5249
    %v5251 = vpop.f32.mrf.mxu0
    %v5252 = vadd.f32 0.0, %v5251
    %5253 = vmatmul.bf16.gmra.mxu0 %v5179
    %v5254 = vpop.f32.mrf.mxu0
    %v5255 = vadd.f32 0.0, %v5254
    %v5256 = vpop.f32.mrf.mxu0
    %v5257 = vadd.f32 0.0, %v5256
    %5258 = vmatmul.bf16.gmra.mxu0 %v5182
    %v5259 = vpop.f32.mrf.mxu0
    %v5260 = vadd.f32 0.0, %v5259
    %v5261 = vpop.f32.mrf.mxu0
    %v5262 = vadd.f32 0.0, %v5261
    %5263 = vmatmul.bf16.gmra.mxu0 %v5185
    %v5264 = vpop.f32.mrf.mxu0
    %v5265 = vadd.f32 0.0, %v5264
    %v5266 = vpop.f32.mrf.mxu0
    %v5267 = vadd.f32 0.0, %v5266
    %5268 = vmatmul.bf16.gmra.mxu0 %v5188
    %v5269 = vpop.f32.mrf.mxu0
    %v5270 = vadd.f32 0.0, %v5269
    %v5271 = vpop.f32.mrf.mxu0
    %v5272 = vadd.f32 0.0, %v5271
    %5273 = vmatmul.bf16.gmra.mxu0 %v5191
    %v5274 = vpop.f32.mrf.mxu0
    %v5275 = vadd.f32 0.0, %v5274
    %v5276 = vpop.f32.mrf.mxu0
    %v5277 = vadd.f32 0.0, %v5276
    %5278 = vmatmul.bf16.gmra.mxu0 %v5194
    %v5279 = vpop.f32.mrf.mxu0
    %v5280 = vadd.f32 0.0, %v5279
    %v5281 = vpop.f32.mrf.mxu0
    %v5282 = vadd.f32 0.0, %v5281
    %5283 = vmatmul.bf16.gmra.mxu0 %v5197
    %v5284 = vpop.f32.mrf.mxu0
    %v5285 = vadd.f32 0.0, %v5284
    %v5286 = vpop.f32.mrf.mxu0
    %v5287 = vadd.f32 0.0, %v5286
    %5288 = vmatmul.bf16.gmra.mxu0 %v5200
    %v5289 = vpop.f32.mrf.mxu0
    %v5290 = vadd.f32 0.0, %v5289
    %v5291 = vpop.f32.mrf.mxu0
    %v5292 = vadd.f32 0.0, %v5291
    %5293 = vdwg.mxu0
    %v5294 = vadd.f32 %v4866, %v5215
    %v5295 = vadd.f32 %v4868, %v5217
    %v5296 = vadd.f32 %v4871, %v5220
    %v5297 = vadd.f32 %v4873, %v5222
    %v5298 = vadd.f32 %v4876, %v5225
    %v5299 = vadd.f32 %v4878, %v5227
    %v5300 = vadd.f32 %v4881, %v5230
    %v5301 = vadd.f32 %v4883, %v5232
    %v5302 = vadd.f32 %v4886, %v5235
    %v5303 = vadd.f32 %v4888, %v5237
    %v5304 = vadd.f32 %v4891, %v5240
    %v5305 = vadd.f32 %v4893, %v5242
    %v5306 = vadd.f32 %v4896, %v5245
    %v5307 = vadd.f32 %v4898, %v5247
    %v5308 = vadd.f32 %v4901, %v5250
    %v5309 = vadd.f32 %v4903, %v5252
    %v5310 = vadd.f32 %v4906, %v5255
    %v5311 = vadd.f32 %v4908, %v5257
    %v5312 = vadd.f32 %v4911, %v5260
    %v5313 = vadd.f32 %v4913, %v5262
    %v5314 = vadd.f32 %v4916, %v5265
    %v5315 = vadd.f32 %v4918, %v5267
    %v5316 = vadd.f32 %v4921, %v5270
    %v5317 = vadd.f32 %v4923, %v5272
    %v5318 = vadd.f32 %v4926, %v5275
    %v5319 = vadd.f32 %v4928, %v5277
    %v5320 = vadd.f32 %v4931, %v5280
    %v5321 = vadd.f32 %v4933, %v5282
    %v5322 = vadd.f32 %v4936, %v5285
    %v5323 = vadd.f32 %v4938, %v5287
    %v5324 = vadd.f32 %v4941, %v5290
    %v5325 = vadd.f32 %v4943, %v5292
    %s5326 = scalar_lea.vmem %s0, 108
    %v5327 = vld [vmem:[%s5326] sm:$0xf]
    %v5328 = vld [vmem:[%s5326 + $0x4] sm:$0xf]
    %v5329 = vld [vmem:[%s5326 + $0xc] sm:$0xf]
    %v5330 = vld [vmem:[%s5326 + $0x10] sm:$0xf]
    %v5331 = vld [vmem:[%s5326 + $0x18] sm:$0xf]
    %v5332 = vld [vmem:[%s5326 + $0x1c] sm:$0xf]
    %v5333 = vld [vmem:[%s5326 + $0x24] sm:$0xf]
    %v5334 = vld [vmem:[%s5326 + $0x28] sm:$0xf]
    %v5335 = vld [vmem:[%s5326 + $0x30] sm:$0xf]
    %v5336 = vld [vmem:[%s5326 + $0x34] sm:$0xf]
    %v5337 = vld [vmem:[%s5326 + $0x3c] sm:$0xf]
    %v5338 = vld [vmem:[%s5326 + $0x40] sm:$0xf]
    %v5339 = vld [vmem:[%s5326 + $0x48] sm:$0xf]
    %v5340 = vld [vmem:[%s5326 + $0x4c] sm:$0xf]
    %v5341 = vld [vmem:[%s5326 + $0x54] sm:$0xf]
    %v5342 = vld [vmem:[%s5326 + $0x58] sm:$0xf]
    %v5343 = vld [vmem:[%s5326 + $0xd8] sm:$0xf]
    %v5344 = vld [vmem:[%s5326 + $0xdc] sm:$0xf]
    %v5345 = vld [vmem:[%s5326 + $0xe4] sm:$0xf]
    %v5346 = vld [vmem:[%s5326 + $0xe8] sm:$0xf]
    %v5347 = vld [vmem:[%s5326 + $0xf0] sm:$0xf]
    %v5348 = vld [vmem:[%s5326 + $0xf4] sm:$0xf]
    %v5349 = vld [vmem:[%s5326 + $0xfc] sm:$0xf]
    %v5350 = vld [vmem:[%s5326 + $0x100] sm:$0xf]
    %v5351 = vld [vmem:[%s5326 + $0x108] sm:$0xf]
    %v5352 = vld [vmem:[%s5326 + $0x10c] sm:$0xf]
    %v5353 = vld [vmem:[%s5326 + $0x114] sm:$0xf]
    %v5354 = vld [vmem:[%s5326 + $0x118] sm:$0xf]
    %v5355 = vld [vmem:[%s5326 + $0x120] sm:$0xf]
    %v5356 = vld [vmem:[%s5326 + $0x124] sm:$0xf]
    %v5357 = vld [vmem:[%s5326 + $0x12c] sm:$0xf]
    %v5358 = vld [vmem:[%s5326 + $0x130] sm:$0xf]
    %v5359 = vld [vmem:[%s1279] sm:$0x3]
    %v5392 = vunpack.c.l.b16 %v5327
    %v5393 = vunpack.c.l.b16 %v5328
    %v5394 = vunpack.c.l.b16 %v5329
    %v5395 = vunpack.c.l.b16 %v5330
    %v5396 = vunpack.c.l.b16 %v5331
    %v5397 = vunpack.c.l.b16 %v5332
    %v5398 = vunpack.c.l.b16 %v5333
    %v5399 = vunpack.c.l.b16 %v5334
    %v5400 = vunpack.c.l.b16 %v5335
    %v5401 = vunpack.c.l.b16 %v5336
    %v5402 = vunpack.c.l.b16 %v5337
    %v5403 = vunpack.c.l.b16 %v5338
    %v5404 = vunpack.c.l.b16 %v5339
    %v5405 = vunpack.c.l.b16 %v5340
    %v5406 = vunpack.c.l.b16 %v5341
    %v5407 = vunpack.c.l.b16 %v5342
    %v5408 = vunpack.c.l.b16 %v5343
    %v5409 = vunpack.c.l.b16 %v5344
    %v5410 = vunpack.c.l.b16 %v5345
    %v5411 = vunpack.c.l.b16 %v5346
    %v5412 = vunpack.c.l.b16 %v5347
    %v5413 = vunpack.c.l.b16 %v5348
    %v5414 = vunpack.c.l.b16 %v5349
    %v5415 = vunpack.c.l.b16 %v5350
    %v5416 = vunpack.c.l.b16 %v5351
    %v5417 = vunpack.c.l.b16 %v5352
    %v5418 = vunpack.c.l.b16 %v5353
    %v5419 = vunpack.c.l.b16 %v5354
    %v5420 = vunpack.c.l.b16 %v5355
    %v5421 = vunpack.c.l.b16 %v5356
    %v5422 = vunpack.c.l.b16 %v5357
    %v5423 = vunpack.c.l.b16 %v5358
    %v5424 = vpack.c.b16 %v5393, %v5392
    %v5425 = vpack.c.b16 %v5395, %v5394
    %v5426 = vpack.c.b16 %v5397, %v5396
    %v5427 = vpack.c.b16 %v5399, %v5398
    %v5428 = vpack.c.b16 %v5401, %v5400
    %v5429 = vpack.c.b16 %v5403, %v5402
    %v5430 = vpack.c.b16 %v5405, %v5404
    %v5431 = vpack.c.b16 %v5407, %v5406
    %v5432 = vpack.c.b16 %v5409, %v5408
    %v5433 = vpack.c.b16 %v5411, %v5410
    %v5434 = vpack.c.b16 %v5413, %v5412
    %v5435 = vpack.c.b16 %v5415, %v5414
    %v5436 = vpack.c.b16 %v5417, %v5416
    %v5437 = vpack.c.b16 %v5419, %v5418
    %v5438 = vpack.c.b16 %v5421, %v5420
    %v5439 = vpack.c.b16 %v5423, %v5422
    %v5441 = vsel %vm499, %v5424, 0
    %v5444 = vsel %vm499, %v5425, 0
    %v5447 = vsel %vm499, %v5426, 0
    %v5450 = vsel %vm499, %v5427, 0
    %v5453 = vsel %vm499, %v5428, 0
    %v5456 = vsel %vm499, %v5429, 0
    %v5459 = vsel %vm499, %v5430, 0
    %v5462 = vsel %vm499, %v5431, 0
    %v5465 = vsel %vm499, %v5432, 0
    %v5468 = vsel %vm499, %v5433, 0
    %v5471 = vsel %vm499, %v5434, 0
    %v5474 = vsel %vm499, %v5435, 0
    %v5477 = vsel %vm499, %v5436, 0
    %v5480 = vsel %vm499, %v5437, 0
    %v5483 = vsel %vm499, %v5438, 0
    %v5486 = vsel %vm499, %v5439, 0
    %v5489 = vsel %vm548, %v5359, 0
    %5491 = vmatpush.bf16.msra.mxu0 0
    %5492 = vmatpush.bf16.msra.mxu0 0
    %5493 = vmatpush.bf16.msra.mxu0 0
    %5494 = vmatpush.bf16.msra.mxu0 0
    %5495 = vmatpush.bf16.msra.mxu0 0
    %5496 = vmatpush.bf16.msra.mxu0 0
    %5497 = vmatpush.bf16.msra.mxu0 0
    %5498 = vmatpush.bf16.msra.mxu0 %v5489
    %5499 = vmatmul.bf16.gmra.mxu0 %v5441
    %v5500 = vpop.f32.mrf.mxu0
    %v5501 = vadd.f32 0.0, %v5500
    %v5502 = vpop.f32.mrf.mxu0
    %v5503 = vadd.f32 0.0, %v5502
    %5504 = vmatmul.bf16.gmra.mxu0 %v5444
    %v5505 = vpop.f32.mrf.mxu0
    %v5506 = vadd.f32 0.0, %v5505
    %v5507 = vpop.f32.mrf.mxu0
    %v5508 = vadd.f32 0.0, %v5507
    %5509 = vmatmul.bf16.gmra.mxu0 %v5447
    %v5510 = vpop.f32.mrf.mxu0
    %v5511 = vadd.f32 0.0, %v5510
    %v5512 = vpop.f32.mrf.mxu0
    %v5513 = vadd.f32 0.0, %v5512
    %5514 = vmatmul.bf16.gmra.mxu0 %v5450
    %v5515 = vpop.f32.mrf.mxu0
    %v5516 = vadd.f32 0.0, %v5515
    %v5517 = vpop.f32.mrf.mxu0
    %v5518 = vadd.f32 0.0, %v5517
    %5519 = vmatmul.bf16.gmra.mxu0 %v5453
    %v5520 = vpop.f32.mrf.mxu0
    %v5521 = vadd.f32 0.0, %v5520
    %v5522 = vpop.f32.mrf.mxu0
    %v5523 = vadd.f32 0.0, %v5522
    %5524 = vmatmul.bf16.gmra.mxu0 %v5456
    %v5525 = vpop.f32.mrf.mxu0
    %v5526 = vadd.f32 0.0, %v5525
    %v5527 = vpop.f32.mrf.mxu0
    %v5528 = vadd.f32 0.0, %v5527
    %5529 = vmatmul.bf16.gmra.mxu0 %v5459
    %v5530 = vpop.f32.mrf.mxu0
    %v5531 = vadd.f32 0.0, %v5530
    %v5532 = vpop.f32.mrf.mxu0
    %v5533 = vadd.f32 0.0, %v5532
    %5534 = vmatmul.bf16.gmra.mxu0 %v5462
    %v5535 = vpop.f32.mrf.mxu0
    %v5536 = vadd.f32 0.0, %v5535
    %v5537 = vpop.f32.mrf.mxu0
    %v5538 = vadd.f32 0.0, %v5537
    %5539 = vmatmul.bf16.gmra.mxu0 %v5465
    %v5540 = vpop.f32.mrf.mxu0
    %v5541 = vadd.f32 0.0, %v5540
    %v5542 = vpop.f32.mrf.mxu0
    %v5543 = vadd.f32 0.0, %v5542
    %5544 = vmatmul.bf16.gmra.mxu0 %v5468
    %v5545 = vpop.f32.mrf.mxu0
    %v5546 = vadd.f32 0.0, %v5545
    %v5547 = vpop.f32.mrf.mxu0
    %v5548 = vadd.f32 0.0, %v5547
    %5549 = vmatmul.bf16.gmra.mxu0 %v5471
    %v5550 = vpop.f32.mrf.mxu0
    %v5551 = vadd.f32 0.0, %v5550
    %v5552 = vpop.f32.mrf.mxu0
    %v5553 = vadd.f32 0.0, %v5552
    %5554 = vmatmul.bf16.gmra.mxu0 %v5474
    %v5555 = vpop.f32.mrf.mxu0
    %v5556 = vadd.f32 0.0, %v5555
    %v5557 = vpop.f32.mrf.mxu0
    %v5558 = vadd.f32 0.0, %v5557
    %5559 = vmatmul.bf16.gmra.mxu0 %v5477
    %v5560 = vpop.f32.mrf.mxu0
    %v5561 = vadd.f32 0.0, %v5560
    %v5562 = vpop.f32.mrf.mxu0
    %v5563 = vadd.f32 0.0, %v5562
    %5564 = vmatmul.bf16.gmra.mxu0 %v5480
    %v5565 = vpop.f32.mrf.mxu0
    %v5566 = vadd.f32 0.0, %v5565
    %v5567 = vpop.f32.mrf.mxu0
    %v5568 = vadd.f32 0.0, %v5567
    %5569 = vmatmul.bf16.gmra.mxu0 %v5483
    %v5570 = vpop.f32.mrf.mxu0
    %v5571 = vadd.f32 0.0, %v5570
    %v5572 = vpop.f32.mrf.mxu0
    %v5573 = vadd.f32 0.0, %v5572
    %5574 = vmatmul.bf16.gmra.mxu0 %v5486
    %v5575 = vpop.f32.mrf.mxu0
    %v5576 = vadd.f32 0.0, %v5575
    %v5577 = vpop.f32.mrf.mxu0
    %v5578 = vadd.f32 0.0, %v5577
    %5579 = vdwg.mxu0
    %v5580 = vadd.f32 %v5294, %v5501
    %v5581 = vadd.f32 %v5295, %v5503
    %v5582 = vadd.f32 %v5296, %v5506
    %v5583 = vadd.f32 %v5297, %v5508
    %v5584 = vadd.f32 %v5298, %v5511
    %v5585 = vadd.f32 %v5299, %v5513
    %v5586 = vadd.f32 %v5300, %v5516
    %v5587 = vadd.f32 %v5301, %v5518
    %v5588 = vadd.f32 %v5302, %v5521
    %v5589 = vadd.f32 %v5303, %v5523
    %v5590 = vadd.f32 %v5304, %v5526
    %v5591 = vadd.f32 %v5305, %v5528
    %v5592 = vadd.f32 %v5306, %v5531
    %v5593 = vadd.f32 %v5307, %v5533
    %v5594 = vadd.f32 %v5308, %v5536
    %v5595 = vadd.f32 %v5309, %v5538
    %v5596 = vadd.f32 %v5310, %v5541
    %v5597 = vadd.f32 %v5311, %v5543
    %v5598 = vadd.f32 %v5312, %v5546
    %v5599 = vadd.f32 %v5313, %v5548
    %v5600 = vadd.f32 %v5314, %v5551
    %v5601 = vadd.f32 %v5315, %v5553
    %v5602 = vadd.f32 %v5316, %v5556
    %v5603 = vadd.f32 %v5317, %v5558
    %v5604 = vadd.f32 %v5318, %v5561
    %v5605 = vadd.f32 %v5319, %v5563
    %v5606 = vadd.f32 %v5320, %v5566
    %v5607 = vadd.f32 %v5321, %v5568
    %v5608 = vadd.f32 %v5322, %v5571
    %v5609 = vadd.f32 %v5323, %v5573
    %v5610 = vadd.f32 %v5324, %v5576
    %v5611 = vadd.f32 %v5325, %v5578
    %v5612 = vld [vmem:[%s5326] sm:$0xf]
    %v5613 = vld [vmem:[%s5326 + $0x4] sm:$0xf]
    %v5614 = vld [vmem:[%s5326 + $0x8] sm:$0x1]
    %v5615 = vld [vmem:[%s5326 + $0xc] sm:$0xf]
    %v5616 = vld [vmem:[%s5326 + $0x10] sm:$0xf]
    %v5617 = vld [vmem:[%s5326 + $0x14] sm:$0x1]
    %v5618 = vld [vmem:[%s5326 + $0x18] sm:$0xf]
    %v5619 = vld [vmem:[%s5326 + $0x1c] sm:$0xf]
    %v5620 = vld [vmem:[%s5326 + $0x20] sm:$0x1]
    %v5621 = vld [vmem:[%s5326 + $0x24] sm:$0xf]
    %v5622 = vld [vmem:[%s5326 + $0x28] sm:$0xf]
    %v5623 = vld [vmem:[%s5326 + $0x2c] sm:$0x1]
    %v5624 = vld [vmem:[%s5326 + $0x30] sm:$0xf]
    %v5625 = vld [vmem:[%s5326 + $0x34] sm:$0xf]
    %v5626 = vld [vmem:[%s5326 + $0x38] sm:$0x1]
    %v5627 = vld [vmem:[%s5326 + $0x3c] sm:$0xf]
    %v5628 = vld [vmem:[%s5326 + $0x40] sm:$0xf]
    %v5629 = vld [vmem:[%s5326 + $0x44] sm:$0x1]
    %v5630 = vld [vmem:[%s5326 + $0x48] sm:$0xf]
    %v5631 = vld [vmem:[%s5326 + $0x4c] sm:$0xf]
    %v5632 = vld [vmem:[%s5326 + $0x50] sm:$0x1]
    %v5633 = vld [vmem:[%s5326 + $0x54] sm:$0xf]
    %v5634 = vld [vmem:[%s5326 + $0x58] sm:$0xf]
    %v5635 = vld [vmem:[%s5326 + $0x5c] sm:$0x1]
    %v5636 = vld [vmem:[%s5326 + $0xd8] sm:$0xf]
    %v5637 = vld [vmem:[%s5326 + $0xdc] sm:$0xf]
    %v5638 = vld [vmem:[%s5326 + $0xe0] sm:$0x1]
    %v5639 = vld [vmem:[%s5326 + $0xe4] sm:$0xf]
    %v5640 = vld [vmem:[%s5326 + $0xe8] sm:$0xf]
    %v5641 = vld [vmem:[%s5326 + $0xec] sm:$0x1]
    %v5642 = vld [vmem:[%s5326 + $0xf0] sm:$0xf]
    %v5643 = vld [vmem:[%s5326 + $0xf4] sm:$0xf]
    %v5644 = vld [vmem:[%s5326 + $0xf8] sm:$0x1]
    %v5645 = vld [vmem:[%s5326 + $0xfc] sm:$0xf]
    %v5646 = vld [vmem:[%s5326 + $0x100] sm:$0xf]
    %v5647 = vld [vmem:[%s5326 + $0x104] sm:$0x1]
    %v5648 = vld [vmem:[%s5326 + $0x108] sm:$0xf]
    %v5649 = vld [vmem:[%s5326 + $0x10c] sm:$0xf]
    %v5650 = vld [vmem:[%s5326 + $0x110] sm:$0x1]
    %v5651 = vld [vmem:[%s5326 + $0x114] sm:$0xf]
    %v5652 = vld [vmem:[%s5326 + $0x118] sm:$0xf]
    %v5653 = vld [vmem:[%s5326 + $0x11c] sm:$0x1]
    %v5654 = vld [vmem:[%s5326 + $0x120] sm:$0xf]
    %v5655 = vld [vmem:[%s5326 + $0x124] sm:$0xf]
    %v5656 = vld [vmem:[%s5326 + $0x128] sm:$0x1]
    %v5657 = vld [vmem:[%s5326 + $0x12c] sm:$0xf]
    %v5658 = vld [vmem:[%s5326 + $0x130] sm:$0xf]
    %v5659 = vld [vmem:[%s5326 + $0x134] sm:$0x1]
    %v5661 = vshrl.u32 %v5612, 16
    %v5663 = vrot.slane %v5661, 4
    %v5664 = vshll.u32 %v5612, 16
    %v5666 = vrot.slane %v5664, 5
    %v5667 = vor.u32 %v5663, %v5666
    %v5668 = vrot.slane %v5667, 4
    %v5670 = vshll.u32 %v5613, 16
    %v5672 = vrot.slane %v5670, 5
    %v5673 = vsel %vm64, %v5668, %v5672
    %v5674 = vshrl.u32 %v5613, 16
    %v5676 = vrot.slane %v5674, 4
    %v5677 = vor.u32 %v5676, %v5672
    %v5678 = vrot.slane %v5677, 4
    %v5680 = vshll.u32 %v5614, 16
    %v5682 = vrot.slane %v5680, 5
    %v5683 = vsel %vm64, %v5678, %v5682
    %v5685 = vshrl.u32 %v5615, 16
    %v5687 = vrot.slane %v5685, 4
    %v5688 = vshll.u32 %v5615, 16
    %v5690 = vrot.slane %v5688, 5
    %v5691 = vor.u32 %v5687, %v5690
    %v5692 = vrot.slane %v5691, 4
    %v5694 = vshll.u32 %v5616, 16
    %v5696 = vrot.slane %v5694, 5
    %v5697 = vsel %vm64, %v5692, %v5696
    %v5698 = vshrl.u32 %v5616, 16
    %v5700 = vrot.slane %v5698, 4
    %v5701 = vor.u32 %v5700, %v5696
    %v5702 = vrot.slane %v5701, 4
    %v5704 = vshll.u32 %v5617, 16
    %v5706 = vrot.slane %v5704, 5
    %v5707 = vsel %vm64, %v5702, %v5706
    %v5709 = vshrl.u32 %v5618, 16
    %v5711 = vrot.slane %v5709, 4
    %v5712 = vshll.u32 %v5618, 16
    %v5714 = vrot.slane %v5712, 5
    %v5715 = vor.u32 %v5711, %v5714
    %v5716 = vrot.slane %v5715, 4
    %v5718 = vshll.u32 %v5619, 16
    %v5720 = vrot.slane %v5718, 5
    %v5721 = vsel %vm64, %v5716, %v5720
    %v5722 = vshrl.u32 %v5619, 16
    %v5724 = vrot.slane %v5722, 4
    %v5725 = vor.u32 %v5724, %v5720
    %v5726 = vrot.slane %v5725, 4
    %v5728 = vshll.u32 %v5620, 16
    %v5730 = vrot.slane %v5728, 5
    %v5731 = vsel %vm64, %v5726, %v5730
    %v5733 = vshrl.u32 %v5621, 16
    %v5735 = vrot.slane %v5733, 4
    %v5736 = vshll.u32 %v5621, 16
    %v5738 = vrot.slane %v5736, 5
    %v5739 = vor.u32 %v5735, %v5738
    %v5740 = vrot.slane %v5739, 4
    %v5742 = vshll.u32 %v5622, 16
    %v5744 = vrot.slane %v5742, 5
    %v5745 = vsel %vm64, %v5740, %v5744
    %v5746 = vshrl.u32 %v5622, 16
    %v5748 = vrot.slane %v5746, 4
    %v5749 = vor.u32 %v5748, %v5744
    %v5750 = vrot.slane %v5749, 4
    %v5752 = vshll.u32 %v5623, 16
    %v5754 = vrot.slane %v5752, 5
    %v5755 = vsel %vm64, %v5750, %v5754
    %v5757 = vshrl.u32 %v5624, 16
    %v5759 = vrot.slane %v5757, 4
    %v5760 = vshll.u32 %v5624, 16
    %v5762 = vrot.slane %v5760, 5
    %v5763 = vor.u32 %v5759, %v5762
    %v5764 = vrot.slane %v5763, 4
    %v5766 = vshll.u32 %v5625, 16
    %v5768 = vrot.slane %v5766, 5
    %v5769 = vsel %vm64, %v5764, %v5768
    %v5770 = vshrl.u32 %v5625, 16
    %v5772 = vrot.slane %v5770, 4
    %v5773 = vor.u32 %v5772, %v5768
    %v5774 = vrot.slane %v5773, 4
    %v5776 = vshll.u32 %v5626, 16
    %v5778 = vrot.slane %v5776, 5
    %v5779 = vsel %vm64, %v5774, %v5778
    %v5781 = vshrl.u32 %v5627, 16
    %v5783 = vrot.slane %v5781, 4
    %v5784 = vshll.u32 %v5627, 16
    %v5786 = vrot.slane %v5784, 5
    %v5787 = vor.u32 %v5783, %v5786
    %v5788 = vrot.slane %v5787, 4
    %v5790 = vshll.u32 %v5628, 16
    %v5792 = vrot.slane %v5790, 5
    %v5793 = vsel %vm64, %v5788, %v5792
    %v5794 = vshrl.u32 %v5628, 16
    %v5796 = vrot.slane %v5794, 4
    %v5797 = vor.u32 %v5796, %v5792
    %v5798 = vrot.slane %v5797, 4
    %v5800 = vshll.u32 %v5629, 16
    %v5802 = vrot.slane %v5800, 5
    %v5803 = vsel %vm64, %v5798, %v5802
    %v5805 = vshrl.u32 %v5630, 16
    %v5807 = vrot.slane %v5805, 4
    %v5808 = vshll.u32 %v5630, 16
    %v5810 = vrot.slane %v5808, 5
    %v5811 = vor.u32 %v5807, %v5810
    %v5812 = vrot.slane %v5811, 4
    %v5814 = vshll.u32 %v5631, 16
    %v5816 = vrot.slane %v5814, 5
    %v5817 = vsel %vm64, %v5812, %v5816
    %v5818 = vshrl.u32 %v5631, 16
    %v5820 = vrot.slane %v5818, 4
    %v5821 = vor.u32 %v5820, %v5816
    %v5822 = vrot.slane %v5821, 4
    %v5824 = vshll.u32 %v5632, 16
    %v5826 = vrot.slane %v5824, 5
    %v5827 = vsel %vm64, %v5822, %v5826
    %v5829 = vshrl.u32 %v5633, 16
    %v5831 = vrot.slane %v5829, 4
    %v5832 = vshll.u32 %v5633, 16
    %v5834 = vrot.slane %v5832, 5
    %v5835 = vor.u32 %v5831, %v5834
    %v5836 = vrot.slane %v5835, 4
    %v5838 = vshll.u32 %v5634, 16
    %v5840 = vrot.slane %v5838, 5
    %v5841 = vsel %vm64, %v5836, %v5840
    %v5842 = vshrl.u32 %v5634, 16
    %v5844 = vrot.slane %v5842, 4
    %v5845 = vor.u32 %v5844, %v5840
    %v5846 = vrot.slane %v5845, 4
    %v5848 = vshll.u32 %v5635, 16
    %v5850 = vrot.slane %v5848, 5
    %v5851 = vsel %vm64, %v5846, %v5850
    %v5853 = vshrl.u32 %v5636, 16
    %v5855 = vrot.slane %v5853, 4
    %v5856 = vshll.u32 %v5636, 16
    %v5858 = vrot.slane %v5856, 5
    %v5859 = vor.u32 %v5855, %v5858
    %v5860 = vrot.slane %v5859, 4
    %v5862 = vshll.u32 %v5637, 16
    %v5864 = vrot.slane %v5862, 5
    %v5865 = vsel %vm64, %v5860, %v5864
    %v5866 = vshrl.u32 %v5637, 16
    %v5868 = vrot.slane %v5866, 4
    %v5869 = vor.u32 %v5868, %v5864
    %v5870 = vrot.slane %v5869, 4
    %v5872 = vshll.u32 %v5638, 16
    %v5874 = vrot.slane %v5872, 5
    %v5875 = vsel %vm64, %v5870, %v5874
    %v5877 = vshrl.u32 %v5639, 16
    %v5879 = vrot.slane %v5877, 4
    %v5880 = vshll.u32 %v5639, 16
    %v5882 = vrot.slane %v5880, 5
    %v5883 = vor.u32 %v5879, %v5882
    %v5884 = vrot.slane %v5883, 4
    %v5886 = vshll.u32 %v5640, 16
    %v5888 = vrot.slane %v5886, 5
    %v5889 = vsel %vm64, %v5884, %v5888
    %v5890 = vshrl.u32 %v5640, 16
    %v5892 = vrot.slane %v5890, 4
    %v5893 = vor.u32 %v5892, %v5888
    %v5894 = vrot.slane %v5893, 4
    %v5896 = vshll.u32 %v5641, 16
    %v5898 = vrot.slane %v5896, 5
    %v5899 = vsel %vm64, %v5894, %v5898
    %v5901 = vshrl.u32 %v5642, 16
    %v5903 = vrot.slane %v5901, 4
    %v5904 = vshll.u32 %v5642, 16
    %v5906 = vrot.slane %v5904, 5
    %v5907 = vor.u32 %v5903, %v5906
    %v5908 = vrot.slane %v5907, 4
    %v5910 = vshll.u32 %v5643, 16
    %v5912 = vrot.slane %v5910, 5
    %v5913 = vsel %vm64, %v5908, %v5912
    %v5914 = vshrl.u32 %v5643, 16
    %v5916 = vrot.slane %v5914, 4
    %v5917 = vor.u32 %v5916, %v5912
    %v5918 = vrot.slane %v5917, 4
    %v5920 = vshll.u32 %v5644, 16
    %v5922 = vrot.slane %v5920, 5
    %v5923 = vsel %vm64, %v5918, %v5922
    %v5925 = vshrl.u32 %v5645, 16
    %v5927 = vrot.slane %v5925, 4
    %v5928 = vshll.u32 %v5645, 16
    %v5930 = vrot.slane %v5928, 5
    %v5931 = vor.u32 %v5927, %v5930
    %v5932 = vrot.slane %v5931, 4
    %v5934 = vshll.u32 %v5646, 16
    %v5936 = vrot.slane %v5934, 5
    %v5937 = vsel %vm64, %v5932, %v5936
    %v5938 = vshrl.u32 %v5646, 16
    %v5940 = vrot.slane %v5938, 4
    %v5941 = vor.u32 %v5940, %v5936
    %v5942 = vrot.slane %v5941, 4
    %v5944 = vshll.u32 %v5647, 16
    %v5946 = vrot.slane %v5944, 5
    %v5947 = vsel %vm64, %v5942, %v5946
    %v5949 = vshrl.u32 %v5648, 16
    %v5951 = vrot.slane %v5949, 4
    %v5952 = vshll.u32 %v5648, 16
    %v5954 = vrot.slane %v5952, 5
    %v5955 = vor.u32 %v5951, %v5954
    %v5956 = vrot.slane %v5955, 4
    %v5958 = vshll.u32 %v5649, 16
    %v5960 = vrot.slane %v5958, 5
    %v5961 = vsel %vm64, %v5956, %v5960
    %v5962 = vshrl.u32 %v5649, 16
    %v5964 = vrot.slane %v5962, 4
    %v5965 = vor.u32 %v5964, %v5960
    %v5966 = vrot.slane %v5965, 4
    %v5968 = vshll.u32 %v5650, 16
    %v5970 = vrot.slane %v5968, 5
    %v5971 = vsel %vm64, %v5966, %v5970
    %v5973 = vshrl.u32 %v5651, 16
    %v5975 = vrot.slane %v5973, 4
    %v5976 = vshll.u32 %v5651, 16
    %v5978 = vrot.slane %v5976, 5
    %v5979 = vor.u32 %v5975, %v5978
    %v5980 = vrot.slane %v5979, 4
    %v5982 = vshll.u32 %v5652, 16
    %v5984 = vrot.slane %v5982, 5
    %v5985 = vsel %vm64, %v5980, %v5984
    %v5986 = vshrl.u32 %v5652, 16
    %v5988 = vrot.slane %v5986, 4
    %v5989 = vor.u32 %v5988, %v5984
    %v5990 = vrot.slane %v5989, 4
    %v5992 = vshll.u32 %v5653, 16
    %v5994 = vrot.slane %v5992, 5
    %v5995 = vsel %vm64, %v5990, %v5994
    %v5997 = vshrl.u32 %v5654, 16
    %v5999 = vrot.slane %v5997, 4
    %v6000 = vshll.u32 %v5654, 16
    %v6002 = vrot.slane %v6000, 5
    %v6003 = vor.u32 %v5999, %v6002
    %v6004 = vrot.slane %v6003, 4
    %v6006 = vshll.u32 %v5655, 16
    %v6008 = vrot.slane %v6006, 5
    %v6009 = vsel %vm64, %v6004, %v6008
    %v6010 = vshrl.u32 %v5655, 16
    %v6012 = vrot.slane %v6010, 4
    %v6013 = vor.u32 %v6012, %v6008
    %v6014 = vrot.slane %v6013, 4
    %v6016 = vshll.u32 %v5656, 16
    %v6018 = vrot.slane %v6016, 5
    %v6019 = vsel %vm64, %v6014, %v6018
    %v6021 = vshrl.u32 %v5657, 16
    %v6023 = vrot.slane %v6021, 4
    %v6024 = vshll.u32 %v5657, 16
    %v6026 = vrot.slane %v6024, 5
    %v6027 = vor.u32 %v6023, %v6026
    %v6028 = vrot.slane %v6027, 4
    %v6030 = vshll.u32 %v5658, 16
    %v6032 = vrot.slane %v6030, 5
    %v6033 = vsel %vm64, %v6028, %v6032
    %v6034 = vshrl.u32 %v5658, 16
    %v6036 = vrot.slane %v6034, 4
    %v6037 = vor.u32 %v6036, %v6032
    %v6038 = vrot.slane %v6037, 4
    %v6040 = vshll.u32 %v5659, 16
    %v6042 = vrot.slane %v6040, 5
    %v6043 = vsel %vm64, %v6038, %v6042
    %v6044 = vld [vmem:[%s1965] sm:$0x3]
    %v6045 = vunpack.c.l.b16 %v5673
    %v6046 = vunpack.c.l.b16 %v5683
    %v6047 = vunpack.c.l.b16 %v5697
    %v6048 = vunpack.c.l.b16 %v5707
    %v6049 = vunpack.c.l.b16 %v5721
    %v6050 = vunpack.c.l.b16 %v5731
    %v6051 = vunpack.c.l.b16 %v5745
    %v6052 = vunpack.c.l.b16 %v5755
    %v6053 = vunpack.c.l.b16 %v5769
    %v6054 = vunpack.c.l.b16 %v5779
    %v6055 = vunpack.c.l.b16 %v5793
    %v6056 = vunpack.c.l.b16 %v5803
    %v6057 = vunpack.c.l.b16 %v5817
    %v6058 = vunpack.c.l.b16 %v5827
    %v6059 = vunpack.c.l.b16 %v5841
    %v6060 = vunpack.c.l.b16 %v5851
    %v6061 = vunpack.c.l.b16 %v5865
    %v6062 = vunpack.c.l.b16 %v5875
    %v6063 = vunpack.c.l.b16 %v5889
    %v6064 = vunpack.c.l.b16 %v5899
    %v6065 = vunpack.c.l.b16 %v5913
    %v6066 = vunpack.c.l.b16 %v5923
    %v6067 = vunpack.c.l.b16 %v5937
    %v6068 = vunpack.c.l.b16 %v5947
    %v6069 = vunpack.c.l.b16 %v5961
    %v6070 = vunpack.c.l.b16 %v5971
    %v6071 = vunpack.c.l.b16 %v5985
    %v6072 = vunpack.c.l.b16 %v5995
    %v6073 = vunpack.c.l.b16 %v6009
    %v6074 = vunpack.c.l.b16 %v6019
    %v6075 = vunpack.c.l.b16 %v6033
    %v6076 = vunpack.c.l.b16 %v6043
    %v6077 = vpack.c.b16 %v6046, %v6045
    %v6078 = vpack.c.b16 %v6048, %v6047
    %v6079 = vpack.c.b16 %v6050, %v6049
    %v6080 = vpack.c.b16 %v6052, %v6051
    %v6081 = vpack.c.b16 %v6054, %v6053
    %v6082 = vpack.c.b16 %v6056, %v6055
    %v6083 = vpack.c.b16 %v6058, %v6057
    %v6084 = vpack.c.b16 %v6060, %v6059
    %v6085 = vpack.c.b16 %v6062, %v6061
    %v6086 = vpack.c.b16 %v6064, %v6063
    %v6087 = vpack.c.b16 %v6066, %v6065
    %v6088 = vpack.c.b16 %v6068, %v6067
    %v6089 = vpack.c.b16 %v6070, %v6069
    %v6090 = vpack.c.b16 %v6072, %v6071
    %v6091 = vpack.c.b16 %v6074, %v6073
    %v6092 = vpack.c.b16 %v6076, %v6075
    %v6094 = vsel %vm499, %v6077, 0
    %v6097 = vsel %vm499, %v6078, 0
    %v6100 = vsel %vm499, %v6079, 0
    %v6103 = vsel %vm499, %v6080, 0
    %v6106 = vsel %vm499, %v6081, 0
    %v6109 = vsel %vm499, %v6082, 0
    %v6112 = vsel %vm499, %v6083, 0
    %v6115 = vsel %vm499, %v6084, 0
    %v6118 = vsel %vm499, %v6085, 0
    %v6121 = vsel %vm499, %v6086, 0
    %v6124 = vsel %vm499, %v6087, 0
    %v6127 = vsel %vm499, %v6088, 0
    %v6130 = vsel %vm499, %v6089, 0
    %v6133 = vsel %vm499, %v6090, 0
    %v6136 = vsel %vm499, %v6091, 0
    %v6139 = vsel %vm499, %v6092, 0
    %v6142 = vsel %vm548, %v6044, 0
    %6144 = vmatpush.bf16.msra.mxu0 0
    %6145 = vmatpush.bf16.msra.mxu0 0
    %6146 = vmatpush.bf16.msra.mxu0 0
    %6147 = vmatpush.bf16.msra.mxu0 0
    %6148 = vmatpush.bf16.msra.mxu0 0
    %6149 = vmatpush.bf16.msra.mxu0 0
    %6150 = vmatpush.bf16.msra.mxu0 0
    %6151 = vmatpush.bf16.msra.mxu0 %v6142
    %6152 = vmatmul.bf16.gmra.mxu0 %v6094
    %v6153 = vpop.f32.mrf.mxu0
    %v6154 = vadd.f32 0.0, %v6153
    %v6155 = vpop.f32.mrf.mxu0
    %v6156 = vadd.f32 0.0, %v6155
    %6157 = vmatmul.bf16.gmra.mxu0 %v6097
    %v6158 = vpop.f32.mrf.mxu0
    %v6159 = vadd.f32 0.0, %v6158
    %v6160 = vpop.f32.mrf.mxu0
    %v6161 = vadd.f32 0.0, %v6160
    %6162 = vmatmul.bf16.gmra.mxu0 %v6100
    %v6163 = vpop.f32.mrf.mxu0
    %v6164 = vadd.f32 0.0, %v6163
    %v6165 = vpop.f32.mrf.mxu0
    %v6166 = vadd.f32 0.0, %v6165
    %6167 = vmatmul.bf16.gmra.mxu0 %v6103
    %v6168 = vpop.f32.mrf.mxu0
    %v6169 = vadd.f32 0.0, %v6168
    %v6170 = vpop.f32.mrf.mxu0
    %v6171 = vadd.f32 0.0, %v6170
    %6172 = vmatmul.bf16.gmra.mxu0 %v6106
    %v6173 = vpop.f32.mrf.mxu0
    %v6174 = vadd.f32 0.0, %v6173
    %v6175 = vpop.f32.mrf.mxu0
    %v6176 = vadd.f32 0.0, %v6175
    %6177 = vmatmul.bf16.gmra.mxu0 %v6109
    %v6178 = vpop.f32.mrf.mxu0
    %v6179 = vadd.f32 0.0, %v6178
    %v6180 = vpop.f32.mrf.mxu0
    %v6181 = vadd.f32 0.0, %v6180
    %6182 = vmatmul.bf16.gmra.mxu0 %v6112
    %v6183 = vpop.f32.mrf.mxu0
    %v6184 = vadd.f32 0.0, %v6183
    %v6185 = vpop.f32.mrf.mxu0
    %v6186 = vadd.f32 0.0, %v6185
    %6187 = vmatmul.bf16.gmra.mxu0 %v6115
    %v6188 = vpop.f32.mrf.mxu0
    %v6189 = vadd.f32 0.0, %v6188
    %v6190 = vpop.f32.mrf.mxu0
    %v6191 = vadd.f32 0.0, %v6190
    %6192 = vmatmul.bf16.gmra.mxu0 %v6118
    %v6193 = vpop.f32.mrf.mxu0
    %v6194 = vadd.f32 0.0, %v6193
    %v6195 = vpop.f32.mrf.mxu0
    %v6196 = vadd.f32 0.0, %v6195
    %6197 = vmatmul.bf16.gmra.mxu0 %v6121
    %v6198 = vpop.f32.mrf.mxu0
    %v6199 = vadd.f32 0.0, %v6198
    %v6200 = vpop.f32.mrf.mxu0
    %v6201 = vadd.f32 0.0, %v6200
    %6202 = vmatmul.bf16.gmra.mxu0 %v6124
    %v6203 = vpop.f32.mrf.mxu0
    %v6204 = vadd.f32 0.0, %v6203
    %v6205 = vpop.f32.mrf.mxu0
    %v6206 = vadd.f32 0.0, %v6205
    %6207 = vmatmul.bf16.gmra.mxu0 %v6127
    %v6208 = vpop.f32.mrf.mxu0
    %v6209 = vadd.f32 0.0, %v6208
    %v6210 = vpop.f32.mrf.mxu0
    %v6211 = vadd.f32 0.0, %v6210
    %6212 = vmatmul.bf16.gmra.mxu0 %v6130
    %v6213 = vpop.f32.mrf.mxu0
    %v6214 = vadd.f32 0.0, %v6213
    %v6215 = vpop.f32.mrf.mxu0
    %v6216 = vadd.f32 0.0, %v6215
    %6217 = vmatmul.bf16.gmra.mxu0 %v6133
    %v6218 = vpop.f32.mrf.mxu0
    %v6219 = vadd.f32 0.0, %v6218
    %v6220 = vpop.f32.mrf.mxu0
    %v6221 = vadd.f32 0.0, %v6220
    %6222 = vmatmul.bf16.gmra.mxu0 %v6136
    %v6223 = vpop.f32.mrf.mxu0
    %v6224 = vadd.f32 0.0, %v6223
    %v6225 = vpop.f32.mrf.mxu0
    %v6226 = vadd.f32 0.0, %v6225
    %6227 = vmatmul.bf16.gmra.mxu0 %v6139
    %v6228 = vpop.f32.mrf.mxu0
    %v6229 = vadd.f32 0.0, %v6228
    %v6230 = vpop.f32.mrf.mxu0
    %v6231 = vadd.f32 0.0, %v6230
    %6232 = vdwg.mxu0
    %v6233 = vadd.f32 %v5580, %v6154
    %v6234 = vadd.f32 %v5581, %v6156
    %v6235 = vadd.f32 %v5582, %v6159
    %v6236 = vadd.f32 %v5583, %v6161
    %v6237 = vadd.f32 %v5584, %v6164
    %v6238 = vadd.f32 %v5585, %v6166
    %v6239 = vadd.f32 %v5586, %v6169
    %v6240 = vadd.f32 %v5587, %v6171
    %v6241 = vadd.f32 %v5588, %v6174
    %v6242 = vadd.f32 %v5589, %v6176
    %v6243 = vadd.f32 %v5590, %v6179
    %v6244 = vadd.f32 %v5591, %v6181
    %v6245 = vadd.f32 %v5592, %v6184
    %v6246 = vadd.f32 %v5593, %v6186
    %v6247 = vadd.f32 %v5594, %v6189
    %v6248 = vadd.f32 %v5595, %v6191
    %v6249 = vadd.f32 %v5596, %v6194
    %v6250 = vadd.f32 %v5597, %v6196
    %v6251 = vadd.f32 %v5598, %v6199
    %v6252 = vadd.f32 %v5599, %v6201
    %v6253 = vadd.f32 %v5600, %v6204
    %v6254 = vadd.f32 %v5601, %v6206
    %v6255 = vadd.f32 %v5602, %v6209
    %v6256 = vadd.f32 %v5603, %v6211
    %v6257 = vadd.f32 %v5604, %v6214
    %v6258 = vadd.f32 %v5605, %v6216
    %v6259 = vadd.f32 %v5606, %v6219
    %v6260 = vadd.f32 %v5607, %v6221
    %v6261 = vadd.f32 %v5608, %v6224
    %v6262 = vadd.f32 %v5609, %v6226
    %v6263 = vadd.f32 %v5610, %v6229
    %v6264 = vadd.f32 %v5611, %v6231
    %v6265 = vld [vmem:[%s5326] sm:$0xe]
    %v6266 = vld [vmem:[%s5326 + $0xc] sm:$0xe]
    %v6267 = vld [vmem:[%s5326 + $0x18] sm:$0xe]
    %v6268 = vld [vmem:[%s5326 + $0x24] sm:$0xe]
    %v6269 = vld [vmem:[%s5326 + $0x30] sm:$0xe]
    %v6270 = vld [vmem:[%s5326 + $0x3c] sm:$0xe]
    %v6271 = vld [vmem:[%s5326 + $0x48] sm:$0xe]
    %v6272 = vld [vmem:[%s5326 + $0x54] sm:$0xe]
    %v6273 = vld [vmem:[%s5326 + $0xd8] sm:$0xe]
    %v6274 = vld [vmem:[%s5326 + $0xe4] sm:$0xe]
    %v6275 = vld [vmem:[%s5326 + $0xf0] sm:$0xe]
    %v6276 = vld [vmem:[%s5326 + $0xfc] sm:$0xe]
    %v6277 = vld [vmem:[%s5326 + $0x108] sm:$0xe]
    %v6278 = vld [vmem:[%s5326 + $0x114] sm:$0xe]
    %v6279 = vld [vmem:[%s5326 + $0x120] sm:$0xe]
    %v6280 = vld [vmem:[%s5326 + $0x12c] sm:$0xe]
    %v6329 = vrot.slane %v6265, 5
    %v6330 = vrot.slane %v6329, 4
    %v6331 = vrot.slane %v5613, 5
    %v6332 = vsel %vm911, %v6330, %v6331
    %v6333 = vrot.slane %v6331, 4
    %v6334 = vrot.slane %v5614, 5
    %v6335 = vsel %vm911, %v6333, %v6334
    %v6336 = vrot.slane %v6266, 5
    %v6337 = vrot.slane %v6336, 4
    %v6338 = vrot.slane %v5616, 5
    %v6339 = vsel %vm911, %v6337, %v6338
    %v6340 = vrot.slane %v6338, 4
    %v6341 = vrot.slane %v5617, 5
    %v6342 = vsel %vm911, %v6340, %v6341
    %v6343 = vrot.slane %v6267, 5
    %v6344 = vrot.slane %v6343, 4
    %v6345 = vrot.slane %v5619, 5
    %v6346 = vsel %vm911, %v6344, %v6345
    %v6347 = vrot.slane %v6345, 4
    %v6348 = vrot.slane %v5620, 5
    %v6349 = vsel %vm911, %v6347, %v6348
    %v6350 = vrot.slane %v6268, 5
    %v6351 = vrot.slane %v6350, 4
    %v6352 = vrot.slane %v5622, 5
    %v6353 = vsel %vm911, %v6351, %v6352
    %v6354 = vrot.slane %v6352, 4
    %v6355 = vrot.slane %v5623, 5
    %v6356 = vsel %vm911, %v6354, %v6355
    %v6357 = vrot.slane %v6269, 5
    %v6358 = vrot.slane %v6357, 4
    %v6359 = vrot.slane %v5625, 5
    %v6360 = vsel %vm911, %v6358, %v6359
    %v6361 = vrot.slane %v6359, 4
    %v6362 = vrot.slane %v5626, 5
    %v6363 = vsel %vm911, %v6361, %v6362
    %v6364 = vrot.slane %v6270, 5
    %v6365 = vrot.slane %v6364, 4
    %v6366 = vrot.slane %v5628, 5
    %v6367 = vsel %vm911, %v6365, %v6366
    %v6368 = vrot.slane %v6366, 4
    %v6369 = vrot.slane %v5629, 5
    %v6370 = vsel %vm911, %v6368, %v6369
    %v6371 = vrot.slane %v6271, 5
    %v6372 = vrot.slane %v6371, 4
    %v6373 = vrot.slane %v5631, 5
    %v6374 = vsel %vm911, %v6372, %v6373
    %v6375 = vrot.slane %v6373, 4
    %v6376 = vrot.slane %v5632, 5
    %v6377 = vsel %vm911, %v6375, %v6376
    %v6378 = vrot.slane %v6272, 5
    %v6379 = vrot.slane %v6378, 4
    %v6380 = vrot.slane %v5634, 5
    %v6381 = vsel %vm911, %v6379, %v6380
    %v6382 = vrot.slane %v6380, 4
    %v6383 = vrot.slane %v5635, 5
    %v6384 = vsel %vm911, %v6382, %v6383
    %v6385 = vrot.slane %v6273, 5
    %v6386 = vrot.slane %v6385, 4
    %v6387 = vrot.slane %v5637, 5
    %v6388 = vsel %vm911, %v6386, %v6387
    %v6389 = vrot.slane %v6387, 4
    %v6390 = vrot.slane %v5638, 5
    %v6391 = vsel %vm911, %v6389, %v6390
    %v6392 = vrot.slane %v6274, 5
    %v6393 = vrot.slane %v6392, 4
    %v6394 = vrot.slane %v5640, 5
    %v6395 = vsel %vm911, %v6393, %v6394
    %v6396 = vrot.slane %v6394, 4
    %v6397 = vrot.slane %v5641, 5
    %v6398 = vsel %vm911, %v6396, %v6397
    %v6399 = vrot.slane %v6275, 5
    %v6400 = vrot.slane %v6399, 4
    %v6401 = vrot.slane %v5643, 5
    %v6402 = vsel %vm911, %v6400, %v6401
    %v6403 = vrot.slane %v6401, 4
    %v6404 = vrot.slane %v5644, 5
    %v6405 = vsel %vm911, %v6403, %v6404
    %v6406 = vrot.slane %v6276, 5
    %v6407 = vrot.slane %v6406, 4
    %v6408 = vrot.slane %v5646, 5
    %v6409 = vsel %vm911, %v6407, %v6408
    %v6410 = vrot.slane %v6408, 4
    %v6411 = vrot.slane %v5647, 5
    %v6412 = vsel %vm911, %v6410, %v6411
    %v6413 = vrot.slane %v6277, 5
    %v6414 = vrot.slane %v6413, 4
    %v6415 = vrot.slane %v5649, 5
    %v6416 = vsel %vm911, %v6414, %v6415
    %v6417 = vrot.slane %v6415, 4
    %v6418 = vrot.slane %v5650, 5
    %v6419 = vsel %vm911, %v6417, %v6418
    %v6420 = vrot.slane %v6278, 5
    %v6421 = vrot.slane %v6420, 4
    %v6422 = vrot.slane %v5652, 5
    %v6423 = vsel %vm911, %v6421, %v6422
    %v6424 = vrot.slane %v6422, 4
    %v6425 = vrot.slane %v5653, 5
    %v6426 = vsel %vm911, %v6424, %v6425
    %v6427 = vrot.slane %v6279, 5
    %v6428 = vrot.slane %v6427, 4
    %v6429 = vrot.slane %v5655, 5
    %v6430 = vsel %vm911, %v6428, %v6429
    %v6431 = vrot.slane %v6429, 4
    %v6432 = vrot.slane %v5656, 5
    %v6433 = vsel %vm911, %v6431, %v6432
    %v6434 = vrot.slane %v6280, 5
    %v6435 = vrot.slane %v6434, 4
    %v6436 = vrot.slane %v5658, 5
    %v6437 = vsel %vm911, %v6435, %v6436
    %v6438 = vrot.slane %v6436, 4
    %v6439 = vrot.slane %v5659, 5
    %v6440 = vsel %vm911, %v6438, %v6439
    %v6441 = vld [vmem:[%s2363] sm:$0x3]
    %v6442 = vunpack.c.l.b16 %v6332
    %v6443 = vunpack.c.l.b16 %v6335
    %v6444 = vunpack.c.l.b16 %v6339
    %v6445 = vunpack.c.l.b16 %v6342
    %v6446 = vunpack.c.l.b16 %v6346
    %v6447 = vunpack.c.l.b16 %v6349
    %v6448 = vunpack.c.l.b16 %v6353
    %v6449 = vunpack.c.l.b16 %v6356
    %v6450 = vunpack.c.l.b16 %v6360
    %v6451 = vunpack.c.l.b16 %v6363
    %v6452 = vunpack.c.l.b16 %v6367
    %v6453 = vunpack.c.l.b16 %v6370
    %v6454 = vunpack.c.l.b16 %v6374
    %v6455 = vunpack.c.l.b16 %v6377
    %v6456 = vunpack.c.l.b16 %v6381
    %v6457 = vunpack.c.l.b16 %v6384
    %v6458 = vunpack.c.l.b16 %v6388
    %v6459 = vunpack.c.l.b16 %v6391
    %v6460 = vunpack.c.l.b16 %v6395
    %v6461 = vunpack.c.l.b16 %v6398
    %v6462 = vunpack.c.l.b16 %v6402
    %v6463 = vunpack.c.l.b16 %v6405
    %v6464 = vunpack.c.l.b16 %v6409
    %v6465 = vunpack.c.l.b16 %v6412
    %v6466 = vunpack.c.l.b16 %v6416
    %v6467 = vunpack.c.l.b16 %v6419
    %v6468 = vunpack.c.l.b16 %v6423
    %v6469 = vunpack.c.l.b16 %v6426
    %v6470 = vunpack.c.l.b16 %v6430
    %v6471 = vunpack.c.l.b16 %v6433
    %v6472 = vunpack.c.l.b16 %v6437
    %v6473 = vunpack.c.l.b16 %v6440
    %v6474 = vpack.c.b16 %v6443, %v6442
    %v6475 = vpack.c.b16 %v6445, %v6444
    %v6476 = vpack.c.b16 %v6447, %v6446
    %v6477 = vpack.c.b16 %v6449, %v6448
    %v6478 = vpack.c.b16 %v6451, %v6450
    %v6479 = vpack.c.b16 %v6453, %v6452
    %v6480 = vpack.c.b16 %v6455, %v6454
    %v6481 = vpack.c.b16 %v6457, %v6456
    %v6482 = vpack.c.b16 %v6459, %v6458
    %v6483 = vpack.c.b16 %v6461, %v6460
    %v6484 = vpack.c.b16 %v6463, %v6462
    %v6485 = vpack.c.b16 %v6465, %v6464
    %v6486 = vpack.c.b16 %v6467, %v6466
    %v6487 = vpack.c.b16 %v6469, %v6468
    %v6488 = vpack.c.b16 %v6471, %v6470
    %v6489 = vpack.c.b16 %v6473, %v6472
    %v6491 = vsel %vm499, %v6474, 0
    %v6494 = vsel %vm499, %v6475, 0
    %v6497 = vsel %vm499, %v6476, 0
    %v6500 = vsel %vm499, %v6477, 0
    %v6503 = vsel %vm499, %v6478, 0
    %v6506 = vsel %vm499, %v6479, 0
    %v6509 = vsel %vm499, %v6480, 0
    %v6512 = vsel %vm499, %v6481, 0
    %v6515 = vsel %vm499, %v6482, 0
    %v6518 = vsel %vm499, %v6483, 0
    %v6521 = vsel %vm499, %v6484, 0
    %v6524 = vsel %vm499, %v6485, 0
    %v6527 = vsel %vm499, %v6486, 0
    %v6530 = vsel %vm499, %v6487, 0
    %v6533 = vsel %vm499, %v6488, 0
    %v6536 = vsel %vm499, %v6489, 0
    %v6539 = vsel %vm548, %v6441, 0
    %6541 = vmatpush.bf16.msra.mxu0 0
    %6542 = vmatpush.bf16.msra.mxu0 0
    %6543 = vmatpush.bf16.msra.mxu0 0
    %6544 = vmatpush.bf16.msra.mxu0 0
    %6545 = vmatpush.bf16.msra.mxu0 0
    %6546 = vmatpush.bf16.msra.mxu0 0
    %6547 = vmatpush.bf16.msra.mxu0 0
    %6548 = vmatpush.bf16.msra.mxu0 %v6539
    %6549 = vmatmul.bf16.gmra.mxu0 %v6491
    %v6550 = vpop.f32.mrf.mxu0
    %v6551 = vadd.f32 0.0, %v6550
    %v6552 = vpop.f32.mrf.mxu0
    %v6553 = vadd.f32 0.0, %v6552
    %6554 = vmatmul.bf16.gmra.mxu0 %v6494
    %v6555 = vpop.f32.mrf.mxu0
    %v6556 = vadd.f32 0.0, %v6555
    %v6557 = vpop.f32.mrf.mxu0
    %v6558 = vadd.f32 0.0, %v6557
    %6559 = vmatmul.bf16.gmra.mxu0 %v6497
    %v6560 = vpop.f32.mrf.mxu0
    %v6561 = vadd.f32 0.0, %v6560
    %v6562 = vpop.f32.mrf.mxu0
    %v6563 = vadd.f32 0.0, %v6562
    %6564 = vmatmul.bf16.gmra.mxu0 %v6500
    %v6565 = vpop.f32.mrf.mxu0
    %v6566 = vadd.f32 0.0, %v6565
    %v6567 = vpop.f32.mrf.mxu0
    %v6568 = vadd.f32 0.0, %v6567
    %6569 = vmatmul.bf16.gmra.mxu0 %v6503
    %v6570 = vpop.f32.mrf.mxu0
    %v6571 = vadd.f32 0.0, %v6570
    %v6572 = vpop.f32.mrf.mxu0
    %v6573 = vadd.f32 0.0, %v6572
    %6574 = vmatmul.bf16.gmra.mxu0 %v6506
    %v6575 = vpop.f32.mrf.mxu0
    %v6576 = vadd.f32 0.0, %v6575
    %v6577 = vpop.f32.mrf.mxu0
    %v6578 = vadd.f32 0.0, %v6577
    %6579 = vmatmul.bf16.gmra.mxu0 %v6509
    %v6580 = vpop.f32.mrf.mxu0
    %v6581 = vadd.f32 0.0, %v6580
    %v6582 = vpop.f32.mrf.mxu0
    %v6583 = vadd.f32 0.0, %v6582
    %6584 = vmatmul.bf16.gmra.mxu0 %v6512
    %v6585 = vpop.f32.mrf.mxu0
    %v6586 = vadd.f32 0.0, %v6585
    %v6587 = vpop.f32.mrf.mxu0
    %v6588 = vadd.f32 0.0, %v6587
    %6589 = vmatmul.bf16.gmra.mxu0 %v6515
    %v6590 = vpop.f32.mrf.mxu0
    %v6591 = vadd.f32 0.0, %v6590
    %v6592 = vpop.f32.mrf.mxu0
    %v6593 = vadd.f32 0.0, %v6592
    %6594 = vmatmul.bf16.gmra.mxu0 %v6518
    %v6595 = vpop.f32.mrf.mxu0
    %v6596 = vadd.f32 0.0, %v6595
    %v6597 = vpop.f32.mrf.mxu0
    %v6598 = vadd.f32 0.0, %v6597
    %6599 = vmatmul.bf16.gmra.mxu0 %v6521
    %v6600 = vpop.f32.mrf.mxu0
    %v6601 = vadd.f32 0.0, %v6600
    %v6602 = vpop.f32.mrf.mxu0
    %v6603 = vadd.f32 0.0, %v6602
    %6604 = vmatmul.bf16.gmra.mxu0 %v6524
    %v6605 = vpop.f32.mrf.mxu0
    %v6606 = vadd.f32 0.0, %v6605
    %v6607 = vpop.f32.mrf.mxu0
    %v6608 = vadd.f32 0.0, %v6607
    %6609 = vmatmul.bf16.gmra.mxu0 %v6527
    %v6610 = vpop.f32.mrf.mxu0
    %v6611 = vadd.f32 0.0, %v6610
    %v6612 = vpop.f32.mrf.mxu0
    %v6613 = vadd.f32 0.0, %v6612
    %6614 = vmatmul.bf16.gmra.mxu0 %v6530
    %v6615 = vpop.f32.mrf.mxu0
    %v6616 = vadd.f32 0.0, %v6615
    %v6617 = vpop.f32.mrf.mxu0
    %v6618 = vadd.f32 0.0, %v6617
    %6619 = vmatmul.bf16.gmra.mxu0 %v6533
    %v6620 = vpop.f32.mrf.mxu0
    %v6621 = vadd.f32 0.0, %v6620
    %v6622 = vpop.f32.mrf.mxu0
    %v6623 = vadd.f32 0.0, %v6622
    %6624 = vmatmul.bf16.gmra.mxu0 %v6536
    %v6625 = vpop.f32.mrf.mxu0
    %v6626 = vadd.f32 0.0, %v6625
    %v6627 = vpop.f32.mrf.mxu0
    %v6628 = vadd.f32 0.0, %v6627
    %6629 = vdwg.mxu0
    %v6630 = vadd.f32 %v6233, %v6551
    %v6631 = vadd.f32 %v6234, %v6553
    %v6632 = vadd.f32 %v6235, %v6556
    %v6633 = vadd.f32 %v6236, %v6558
    %v6634 = vadd.f32 %v6237, %v6561
    %v6635 = vadd.f32 %v6238, %v6563
    %v6636 = vadd.f32 %v6239, %v6566
    %v6637 = vadd.f32 %v6240, %v6568
    %v6638 = vadd.f32 %v6241, %v6571
    %v6639 = vadd.f32 %v6242, %v6573
    %v6640 = vadd.f32 %v6243, %v6576
    %v6641 = vadd.f32 %v6244, %v6578
    %v6642 = vadd.f32 %v6245, %v6581
    %v6643 = vadd.f32 %v6246, %v6583
    %v6644 = vadd.f32 %v6247, %v6586
    %v6645 = vadd.f32 %v6248, %v6588
    %v6646 = vadd.f32 %v6249, %v6591
    %v6647 = vadd.f32 %v6250, %v6593
    %v6648 = vadd.f32 %v6251, %v6596
    %v6649 = vadd.f32 %v6252, %v6598
    %v6650 = vadd.f32 %v6253, %v6601
    %v6651 = vadd.f32 %v6254, %v6603
    %v6652 = vadd.f32 %v6255, %v6606
    %v6653 = vadd.f32 %v6256, %v6608
    %v6654 = vadd.f32 %v6257, %v6611
    %v6655 = vadd.f32 %v6258, %v6613
    %v6656 = vadd.f32 %v6259, %v6616
    %v6657 = vadd.f32 %v6260, %v6618
    %v6658 = vadd.f32 %v6261, %v6621
    %v6659 = vadd.f32 %v6262, %v6623
    %v6660 = vadd.f32 %v6263, %v6626
    %v6661 = vadd.f32 %v6264, %v6628
    %s6662 = scalar_lea.vmem %s0, 120
    %v6663 = vld [vmem:[%s6662] sm:$0xf]
    %v6664 = vld [vmem:[%s6662 + $0x4] sm:$0xf]
    %v6665 = vld [vmem:[%s6662 + $0xc] sm:$0xf]
    %v6666 = vld [vmem:[%s6662 + $0x10] sm:$0xf]
    %v6667 = vld [vmem:[%s6662 + $0x18] sm:$0xf]
    %v6668 = vld [vmem:[%s6662 + $0x1c] sm:$0xf]
    %v6669 = vld [vmem:[%s6662 + $0x24] sm:$0xf]
    %v6670 = vld [vmem:[%s6662 + $0x28] sm:$0xf]
    %v6671 = vld [vmem:[%s6662 + $0x30] sm:$0xf]
    %v6672 = vld [vmem:[%s6662 + $0x34] sm:$0xf]
    %v6673 = vld [vmem:[%s6662 + $0x3c] sm:$0xf]
    %v6674 = vld [vmem:[%s6662 + $0x40] sm:$0xf]
    %v6675 = vld [vmem:[%s6662 + $0x48] sm:$0xf]
    %v6676 = vld [vmem:[%s6662 + $0x4c] sm:$0xf]
    %v6677 = vld [vmem:[%s6662 + $0x54] sm:$0xf]
    %v6678 = vld [vmem:[%s6662 + $0x58] sm:$0xf]
    %v6679 = vld [vmem:[%s6662 + $0xd8] sm:$0xf]
    %v6680 = vld [vmem:[%s6662 + $0xdc] sm:$0xf]
    %v6681 = vld [vmem:[%s6662 + $0xe4] sm:$0xf]
    %v6682 = vld [vmem:[%s6662 + $0xe8] sm:$0xf]
    %v6683 = vld [vmem:[%s6662 + $0xf0] sm:$0xf]
    %v6684 = vld [vmem:[%s6662 + $0xf4] sm:$0xf]
    %v6685 = vld [vmem:[%s6662 + $0xfc] sm:$0xf]
    %v6686 = vld [vmem:[%s6662 + $0x100] sm:$0xf]
    %v6687 = vld [vmem:[%s6662 + $0x108] sm:$0xf]
    %v6688 = vld [vmem:[%s6662 + $0x10c] sm:$0xf]
    %v6689 = vld [vmem:[%s6662 + $0x114] sm:$0xf]
    %v6690 = vld [vmem:[%s6662 + $0x118] sm:$0xf]
    %v6691 = vld [vmem:[%s6662 + $0x120] sm:$0xf]
    %v6692 = vld [vmem:[%s6662 + $0x124] sm:$0xf]
    %v6693 = vld [vmem:[%s6662 + $0x12c] sm:$0xf]
    %v6694 = vld [vmem:[%s6662 + $0x130] sm:$0xf]
    %v6695 = vld [vmem:[%s2618] sm:$0x3]
    %v6728 = vunpack.c.l.b16 %v6663
    %v6729 = vunpack.c.l.b16 %v6664
    %v6730 = vunpack.c.l.b16 %v6665
    %v6731 = vunpack.c.l.b16 %v6666
    %v6732 = vunpack.c.l.b16 %v6667
    %v6733 = vunpack.c.l.b16 %v6668
    %v6734 = vunpack.c.l.b16 %v6669
    %v6735 = vunpack.c.l.b16 %v6670
    %v6736 = vunpack.c.l.b16 %v6671
    %v6737 = vunpack.c.l.b16 %v6672
    %v6738 = vunpack.c.l.b16 %v6673
    %v6739 = vunpack.c.l.b16 %v6674
    %v6740 = vunpack.c.l.b16 %v6675
    %v6741 = vunpack.c.l.b16 %v6676
    %v6742 = vunpack.c.l.b16 %v6677
    %v6743 = vunpack.c.l.b16 %v6678
    %v6744 = vunpack.c.l.b16 %v6679
    %v6745 = vunpack.c.l.b16 %v6680
    %v6746 = vunpack.c.l.b16 %v6681
    %v6747 = vunpack.c.l.b16 %v6682
    %v6748 = vunpack.c.l.b16 %v6683
    %v6749 = vunpack.c.l.b16 %v6684
    %v6750 = vunpack.c.l.b16 %v6685
    %v6751 = vunpack.c.l.b16 %v6686
    %v6752 = vunpack.c.l.b16 %v6687
    %v6753 = vunpack.c.l.b16 %v6688
    %v6754 = vunpack.c.l.b16 %v6689
    %v6755 = vunpack.c.l.b16 %v6690
    %v6756 = vunpack.c.l.b16 %v6691
    %v6757 = vunpack.c.l.b16 %v6692
    %v6758 = vunpack.c.l.b16 %v6693
    %v6759 = vunpack.c.l.b16 %v6694
    %v6760 = vpack.c.b16 %v6729, %v6728
    %v6761 = vpack.c.b16 %v6731, %v6730
    %v6762 = vpack.c.b16 %v6733, %v6732
    %v6763 = vpack.c.b16 %v6735, %v6734
    %v6764 = vpack.c.b16 %v6737, %v6736
    %v6765 = vpack.c.b16 %v6739, %v6738
    %v6766 = vpack.c.b16 %v6741, %v6740
    %v6767 = vpack.c.b16 %v6743, %v6742
    %v6768 = vpack.c.b16 %v6745, %v6744
    %v6769 = vpack.c.b16 %v6747, %v6746
    %v6770 = vpack.c.b16 %v6749, %v6748
    %v6771 = vpack.c.b16 %v6751, %v6750
    %v6772 = vpack.c.b16 %v6753, %v6752
    %v6773 = vpack.c.b16 %v6755, %v6754
    %v6774 = vpack.c.b16 %v6757, %v6756
    %v6775 = vpack.c.b16 %v6759, %v6758
    %v6777 = vsel %vm499, %v6760, 0
    %v6780 = vsel %vm499, %v6761, 0
    %v6783 = vsel %vm499, %v6762, 0
    %v6786 = vsel %vm499, %v6763, 0
    %v6789 = vsel %vm499, %v6764, 0
    %v6792 = vsel %vm499, %v6765, 0
    %v6795 = vsel %vm499, %v6766, 0
    %v6798 = vsel %vm499, %v6767, 0
    %v6801 = vsel %vm499, %v6768, 0
    %v6804 = vsel %vm499, %v6769, 0
    %v6807 = vsel %vm499, %v6770, 0
    %v6810 = vsel %vm499, %v6771, 0
    %v6813 = vsel %vm499, %v6772, 0
    %v6816 = vsel %vm499, %v6773, 0
    %v6819 = vsel %vm499, %v6774, 0
    %v6822 = vsel %vm499, %v6775, 0
    %v6825 = vsel %vm548, %v6695, 0
    %6827 = vmatpush.bf16.msra.mxu0 0
    %6828 = vmatpush.bf16.msra.mxu0 0
    %6829 = vmatpush.bf16.msra.mxu0 0
    %6830 = vmatpush.bf16.msra.mxu0 0
    %6831 = vmatpush.bf16.msra.mxu0 0
    %6832 = vmatpush.bf16.msra.mxu0 0
    %6833 = vmatpush.bf16.msra.mxu0 0
    %6834 = vmatpush.bf16.msra.mxu0 %v6825
    %6835 = vmatmul.bf16.gmra.mxu0 %v6777
    %v6836 = vpop.f32.mrf.mxu0
    %v6837 = vadd.f32 0.0, %v6836
    %v6838 = vpop.f32.mrf.mxu0
    %v6839 = vadd.f32 0.0, %v6838
    %6840 = vmatmul.bf16.gmra.mxu0 %v6780
    %v6841 = vpop.f32.mrf.mxu0
    %v6842 = vadd.f32 0.0, %v6841
    %v6843 = vpop.f32.mrf.mxu0
    %v6844 = vadd.f32 0.0, %v6843
    %6845 = vmatmul.bf16.gmra.mxu0 %v6783
    %v6846 = vpop.f32.mrf.mxu0
    %v6847 = vadd.f32 0.0, %v6846
    %v6848 = vpop.f32.mrf.mxu0
    %v6849 = vadd.f32 0.0, %v6848
    %6850 = vmatmul.bf16.gmra.mxu0 %v6786
    %v6851 = vpop.f32.mrf.mxu0
    %v6852 = vadd.f32 0.0, %v6851
    %v6853 = vpop.f32.mrf.mxu0
    %v6854 = vadd.f32 0.0, %v6853
    %6855 = vmatmul.bf16.gmra.mxu0 %v6789
    %v6856 = vpop.f32.mrf.mxu0
    %v6857 = vadd.f32 0.0, %v6856
    %v6858 = vpop.f32.mrf.mxu0
    %v6859 = vadd.f32 0.0, %v6858
    %6860 = vmatmul.bf16.gmra.mxu0 %v6792
    %v6861 = vpop.f32.mrf.mxu0
    %v6862 = vadd.f32 0.0, %v6861
    %v6863 = vpop.f32.mrf.mxu0
    %v6864 = vadd.f32 0.0, %v6863
    %6865 = vmatmul.bf16.gmra.mxu0 %v6795
    %v6866 = vpop.f32.mrf.mxu0
    %v6867 = vadd.f32 0.0, %v6866
    %v6868 = vpop.f32.mrf.mxu0
    %v6869 = vadd.f32 0.0, %v6868
    %6870 = vmatmul.bf16.gmra.mxu0 %v6798
    %v6871 = vpop.f32.mrf.mxu0
    %v6872 = vadd.f32 0.0, %v6871
    %v6873 = vpop.f32.mrf.mxu0
    %v6874 = vadd.f32 0.0, %v6873
    %6875 = vmatmul.bf16.gmra.mxu0 %v6801
    %v6876 = vpop.f32.mrf.mxu0
    %v6877 = vadd.f32 0.0, %v6876
    %v6878 = vpop.f32.mrf.mxu0
    %v6879 = vadd.f32 0.0, %v6878
    %6880 = vmatmul.bf16.gmra.mxu0 %v6804
    %v6881 = vpop.f32.mrf.mxu0
    %v6882 = vadd.f32 0.0, %v6881
    %v6883 = vpop.f32.mrf.mxu0
    %v6884 = vadd.f32 0.0, %v6883
    %6885 = vmatmul.bf16.gmra.mxu0 %v6807
    %v6886 = vpop.f32.mrf.mxu0
    %v6887 = vadd.f32 0.0, %v6886
    %v6888 = vpop.f32.mrf.mxu0
    %v6889 = vadd.f32 0.0, %v6888
    %6890 = vmatmul.bf16.gmra.mxu0 %v6810
    %v6891 = vpop.f32.mrf.mxu0
    %v6892 = vadd.f32 0.0, %v6891
    %v6893 = vpop.f32.mrf.mxu0
    %v6894 = vadd.f32 0.0, %v6893
    %6895 = vmatmul.bf16.gmra.mxu0 %v6813
    %v6896 = vpop.f32.mrf.mxu0
    %v6897 = vadd.f32 0.0, %v6896
    %v6898 = vpop.f32.mrf.mxu0
    %v6899 = vadd.f32 0.0, %v6898
    %6900 = vmatmul.bf16.gmra.mxu0 %v6816
    %v6901 = vpop.f32.mrf.mxu0
    %v6902 = vadd.f32 0.0, %v6901
    %v6903 = vpop.f32.mrf.mxu0
    %v6904 = vadd.f32 0.0, %v6903
    %6905 = vmatmul.bf16.gmra.mxu0 %v6819
    %v6906 = vpop.f32.mrf.mxu0
    %v6907 = vadd.f32 0.0, %v6906
    %v6908 = vpop.f32.mrf.mxu0
    %v6909 = vadd.f32 0.0, %v6908
    %6910 = vmatmul.bf16.gmra.mxu0 %v6822
    %v6911 = vpop.f32.mrf.mxu0
    %v6912 = vadd.f32 0.0, %v6911
    %v6913 = vpop.f32.mrf.mxu0
    %v6914 = vadd.f32 0.0, %v6913
    %6915 = vdwg.mxu0
    %v6916 = vadd.f32 %v6630, %v6837
    %v6917 = vadd.f32 %v6631, %v6839
    %v6918 = vadd.f32 %v6632, %v6842
    %v6919 = vadd.f32 %v6633, %v6844
    %v6920 = vadd.f32 %v6634, %v6847
    %v6921 = vadd.f32 %v6635, %v6849
    %v6922 = vadd.f32 %v6636, %v6852
    %v6923 = vadd.f32 %v6637, %v6854
    %v6924 = vadd.f32 %v6638, %v6857
    %v6925 = vadd.f32 %v6639, %v6859
    %v6926 = vadd.f32 %v6640, %v6862
    %v6927 = vadd.f32 %v6641, %v6864
    %v6928 = vadd.f32 %v6642, %v6867
    %v6929 = vadd.f32 %v6643, %v6869
    %v6930 = vadd.f32 %v6644, %v6872
    %v6931 = vadd.f32 %v6645, %v6874
    %v6932 = vadd.f32 %v6646, %v6877
    %v6933 = vadd.f32 %v6647, %v6879
    %v6934 = vadd.f32 %v6648, %v6882
    %v6935 = vadd.f32 %v6649, %v6884
    %v6936 = vadd.f32 %v6650, %v6887
    %v6937 = vadd.f32 %v6651, %v6889
    %v6938 = vadd.f32 %v6652, %v6892
    %v6939 = vadd.f32 %v6653, %v6894
    %v6940 = vadd.f32 %v6654, %v6897
    %v6941 = vadd.f32 %v6655, %v6899
    %v6942 = vadd.f32 %v6656, %v6902
    %v6943 = vadd.f32 %v6657, %v6904
    %v6944 = vadd.f32 %v6658, %v6907
    %v6945 = vadd.f32 %v6659, %v6909
    %v6946 = vadd.f32 %v6660, %v6912
    %v6947 = vadd.f32 %v6661, %v6914
    %v6948 = vld [vmem:[%s6662] sm:$0xf]
    %v6949 = vld [vmem:[%s6662 + $0x4] sm:$0xf]
    %v6950 = vld [vmem:[%s6662 + $0x8] sm:$0x1]
    %v6951 = vld [vmem:[%s6662 + $0xc] sm:$0xf]
    %v6952 = vld [vmem:[%s6662 + $0x10] sm:$0xf]
    %v6953 = vld [vmem:[%s6662 + $0x14] sm:$0x1]
    %v6954 = vld [vmem:[%s6662 + $0x18] sm:$0xf]
    %v6955 = vld [vmem:[%s6662 + $0x1c] sm:$0xf]
    %v6956 = vld [vmem:[%s6662 + $0x20] sm:$0x1]
    %v6957 = vld [vmem:[%s6662 + $0x24] sm:$0xf]
    %v6958 = vld [vmem:[%s6662 + $0x28] sm:$0xf]
    %v6959 = vld [vmem:[%s6662 + $0x2c] sm:$0x1]
    %v6960 = vld [vmem:[%s6662 + $0x30] sm:$0xf]
    %v6961 = vld [vmem:[%s6662 + $0x34] sm:$0xf]
    %v6962 = vld [vmem:[%s6662 + $0x38] sm:$0x1]
    %v6963 = vld [vmem:[%s6662 + $0x3c] sm:$0xf]
    %v6964 = vld [vmem:[%s6662 + $0x40] sm:$0xf]
    %v6965 = vld [vmem:[%s6662 + $0x44] sm:$0x1]
    %v6966 = vld [vmem:[%s6662 + $0x48] sm:$0xf]
    %v6967 = vld [vmem:[%s6662 + $0x4c] sm:$0xf]
    %v6968 = vld [vmem:[%s6662 + $0x50] sm:$0x1]
    %v6969 = vld [vmem:[%s6662 + $0x54] sm:$0xf]
    %v6970 = vld [vmem:[%s6662 + $0x58] sm:$0xf]
    %v6971 = vld [vmem:[%s6662 + $0x5c] sm:$0x1]
    %v6972 = vld [vmem:[%s6662 + $0xd8] sm:$0xf]
    %v6973 = vld [vmem:[%s6662 + $0xdc] sm:$0xf]
    %v6974 = vld [vmem:[%s6662 + $0xe0] sm:$0x1]
    %v6975 = vld [vmem:[%s6662 + $0xe4] sm:$0xf]
    %v6976 = vld [vmem:[%s6662 + $0xe8] sm:$0xf]
    %v6977 = vld [vmem:[%s6662 + $0xec] sm:$0x1]
    %v6978 = vld [vmem:[%s6662 + $0xf0] sm:$0xf]
    %v6979 = vld [vmem:[%s6662 + $0xf4] sm:$0xf]
    %v6980 = vld [vmem:[%s6662 + $0xf8] sm:$0x1]
    %v6981 = vld [vmem:[%s6662 + $0xfc] sm:$0xf]
    %v6982 = vld [vmem:[%s6662 + $0x100] sm:$0xf]
    %v6983 = vld [vmem:[%s6662 + $0x104] sm:$0x1]
    %v6984 = vld [vmem:[%s6662 + $0x108] sm:$0xf]
    %v6985 = vld [vmem:[%s6662 + $0x10c] sm:$0xf]
    %v6986 = vld [vmem:[%s6662 + $0x110] sm:$0x1]
    %v6987 = vld [vmem:[%s6662 + $0x114] sm:$0xf]
    %v6988 = vld [vmem:[%s6662 + $0x118] sm:$0xf]
    %v6989 = vld [vmem:[%s6662 + $0x11c] sm:$0x1]
    %v6990 = vld [vmem:[%s6662 + $0x120] sm:$0xf]
    %v6991 = vld [vmem:[%s6662 + $0x124] sm:$0xf]
    %v6992 = vld [vmem:[%s6662 + $0x128] sm:$0x1]
    %v6993 = vld [vmem:[%s6662 + $0x12c] sm:$0xf]
    %v6994 = vld [vmem:[%s6662 + $0x130] sm:$0xf]
    %v6995 = vld [vmem:[%s6662 + $0x134] sm:$0x1]
    %v6997 = vshrl.u32 %v6948, 16
    %v6999 = vrot.slane %v6997, 4
    %v7000 = vshll.u32 %v6948, 16
    %v7002 = vrot.slane %v7000, 5
    %v7003 = vor.u32 %v6999, %v7002
    %v7004 = vrot.slane %v7003, 4
    %v7006 = vshll.u32 %v6949, 16
    %v7008 = vrot.slane %v7006, 5
    %v7009 = vsel %vm64, %v7004, %v7008
    %v7010 = vshrl.u32 %v6949, 16
    %v7012 = vrot.slane %v7010, 4
    %v7013 = vor.u32 %v7012, %v7008
    %v7014 = vrot.slane %v7013, 4
    %v7016 = vshll.u32 %v6950, 16
    %v7018 = vrot.slane %v7016, 5
    %v7019 = vsel %vm64, %v7014, %v7018
    %v7021 = vshrl.u32 %v6951, 16
    %v7023 = vrot.slane %v7021, 4
    %v7024 = vshll.u32 %v6951, 16
    %v7026 = vrot.slane %v7024, 5
    %v7027 = vor.u32 %v7023, %v7026
    %v7028 = vrot.slane %v7027, 4
    %v7030 = vshll.u32 %v6952, 16
    %v7032 = vrot.slane %v7030, 5
    %v7033 = vsel %vm64, %v7028, %v7032
    %v7034 = vshrl.u32 %v6952, 16
    %v7036 = vrot.slane %v7034, 4
    %v7037 = vor.u32 %v7036, %v7032
    %v7038 = vrot.slane %v7037, 4
    %v7040 = vshll.u32 %v6953, 16
    %v7042 = vrot.slane %v7040, 5
    %v7043 = vsel %vm64, %v7038, %v7042
    %v7045 = vshrl.u32 %v6954, 16
    %v7047 = vrot.slane %v7045, 4
    %v7048 = vshll.u32 %v6954, 16
    %v7050 = vrot.slane %v7048, 5
    %v7051 = vor.u32 %v7047, %v7050
    %v7052 = vrot.slane %v7051, 4
    %v7054 = vshll.u32 %v6955, 16
    %v7056 = vrot.slane %v7054, 5
    %v7057 = vsel %vm64, %v7052, %v7056
    %v7058 = vshrl.u32 %v6955, 16
    %v7060 = vrot.slane %v7058, 4
    %v7061 = vor.u32 %v7060, %v7056
    %v7062 = vrot.slane %v7061, 4
    %v7064 = vshll.u32 %v6956, 16
    %v7066 = vrot.slane %v7064, 5
    %v7067 = vsel %vm64, %v7062, %v7066
    %v7069 = vshrl.u32 %v6957, 16
    %v7071 = vrot.slane %v7069, 4
    %v7072 = vshll.u32 %v6957, 16
    %v7074 = vrot.slane %v7072, 5
    %v7075 = vor.u32 %v7071, %v7074
    %v7076 = vrot.slane %v7075, 4
    %v7078 = vshll.u32 %v6958, 16
    %v7080 = vrot.slane %v7078, 5
    %v7081 = vsel %vm64, %v7076, %v7080
    %v7082 = vshrl.u32 %v6958, 16
    %v7084 = vrot.slane %v7082, 4
    %v7085 = vor.u32 %v7084, %v7080
    %v7086 = vrot.slane %v7085, 4
    %v7088 = vshll.u32 %v6959, 16
    %v7090 = vrot.slane %v7088, 5
    %v7091 = vsel %vm64, %v7086, %v7090
    %v7093 = vshrl.u32 %v6960, 16
    %v7095 = vrot.slane %v7093, 4
    %v7096 = vshll.u32 %v6960, 16
    %v7098 = vrot.slane %v7096, 5
    %v7099 = vor.u32 %v7095, %v7098
    %v7100 = vrot.slane %v7099, 4
    %v7102 = vshll.u32 %v6961, 16
    %v7104 = vrot.slane %v7102, 5
    %v7105 = vsel %vm64, %v7100, %v7104
    %v7106 = vshrl.u32 %v6961, 16
    %v7108 = vrot.slane %v7106, 4
    %v7109 = vor.u32 %v7108, %v7104
    %v7110 = vrot.slane %v7109, 4
    %v7112 = vshll.u32 %v6962, 16
    %v7114 = vrot.slane %v7112, 5
    %v7115 = vsel %vm64, %v7110, %v7114
    %v7117 = vshrl.u32 %v6963, 16
    %v7119 = vrot.slane %v7117, 4
    %v7120 = vshll.u32 %v6963, 16
    %v7122 = vrot.slane %v7120, 5
    %v7123 = vor.u32 %v7119, %v7122
    %v7124 = vrot.slane %v7123, 4
    %v7126 = vshll.u32 %v6964, 16
    %v7128 = vrot.slane %v7126, 5
    %v7129 = vsel %vm64, %v7124, %v7128
    %v7130 = vshrl.u32 %v6964, 16
    %v7132 = vrot.slane %v7130, 4
    %v7133 = vor.u32 %v7132, %v7128
    %v7134 = vrot.slane %v7133, 4
    %v7136 = vshll.u32 %v6965, 16
    %v7138 = vrot.slane %v7136, 5
    %v7139 = vsel %vm64, %v7134, %v7138
    %v7141 = vshrl.u32 %v6966, 16
    %v7143 = vrot.slane %v7141, 4
    %v7144 = vshll.u32 %v6966, 16
    %v7146 = vrot.slane %v7144, 5
    %v7147 = vor.u32 %v7143, %v7146
    %v7148 = vrot.slane %v7147, 4
    %v7150 = vshll.u32 %v6967, 16
    %v7152 = vrot.slane %v7150, 5
    %v7153 = vsel %vm64, %v7148, %v7152
    %v7154 = vshrl.u32 %v6967, 16
    %v7156 = vrot.slane %v7154, 4
    %v7157 = vor.u32 %v7156, %v7152
    %v7158 = vrot.slane %v7157, 4
    %v7160 = vshll.u32 %v6968, 16
    %v7162 = vrot.slane %v7160, 5
    %v7163 = vsel %vm64, %v7158, %v7162
    %v7165 = vshrl.u32 %v6969, 16
    %v7167 = vrot.slane %v7165, 4
    %v7168 = vshll.u32 %v6969, 16
    %v7170 = vrot.slane %v7168, 5
    %v7171 = vor.u32 %v7167, %v7170
    %v7172 = vrot.slane %v7171, 4
    %v7174 = vshll.u32 %v6970, 16
    %v7176 = vrot.slane %v7174, 5
    %v7177 = vsel %vm64, %v7172, %v7176
    %v7178 = vshrl.u32 %v6970, 16
    %v7180 = vrot.slane %v7178, 4
    %v7181 = vor.u32 %v7180, %v7176
    %v7182 = vrot.slane %v7181, 4
    %v7184 = vshll.u32 %v6971, 16
    %v7186 = vrot.slane %v7184, 5
    %v7187 = vsel %vm64, %v7182, %v7186
    %v7189 = vshrl.u32 %v6972, 16
    %v7191 = vrot.slane %v7189, 4
    %v7192 = vshll.u32 %v6972, 16
    %v7194 = vrot.slane %v7192, 5
    %v7195 = vor.u32 %v7191, %v7194
    %v7196 = vrot.slane %v7195, 4
    %v7198 = vshll.u32 %v6973, 16
    %v7200 = vrot.slane %v7198, 5
    %v7201 = vsel %vm64, %v7196, %v7200
    %v7202 = vshrl.u32 %v6973, 16
    %v7204 = vrot.slane %v7202, 4
    %v7205 = vor.u32 %v7204, %v7200
    %v7206 = vrot.slane %v7205, 4
    %v7208 = vshll.u32 %v6974, 16
    %v7210 = vrot.slane %v7208, 5
    %v7211 = vsel %vm64, %v7206, %v7210
    %v7213 = vshrl.u32 %v6975, 16
    %v7215 = vrot.slane %v7213, 4
    %v7216 = vshll.u32 %v6975, 16
    %v7218 = vrot.slane %v7216, 5
    %v7219 = vor.u32 %v7215, %v7218
    %v7220 = vrot.slane %v7219, 4
    %v7222 = vshll.u32 %v6976, 16
    %v7224 = vrot.slane %v7222, 5
    %v7225 = vsel %vm64, %v7220, %v7224
    %v7226 = vshrl.u32 %v6976, 16
    %v7228 = vrot.slane %v7226, 4
    %v7229 = vor.u32 %v7228, %v7224
    %v7230 = vrot.slane %v7229, 4
    %v7232 = vshll.u32 %v6977, 16
    %v7234 = vrot.slane %v7232, 5
    %v7235 = vsel %vm64, %v7230, %v7234
    %v7237 = vshrl.u32 %v6978, 16
    %v7239 = vrot.slane %v7237, 4
    %v7240 = vshll.u32 %v6978, 16
    %v7242 = vrot.slane %v7240, 5
    %v7243 = vor.u32 %v7239, %v7242
    %v7244 = vrot.slane %v7243, 4
    %v7246 = vshll.u32 %v6979, 16
    %v7248 = vrot.slane %v7246, 5
    %v7249 = vsel %vm64, %v7244, %v7248
    %v7250 = vshrl.u32 %v6979, 16
    %v7252 = vrot.slane %v7250, 4
    %v7253 = vor.u32 %v7252, %v7248
    %v7254 = vrot.slane %v7253, 4
    %v7256 = vshll.u32 %v6980, 16
    %v7258 = vrot.slane %v7256, 5
    %v7259 = vsel %vm64, %v7254, %v7258
    %v7261 = vshrl.u32 %v6981, 16
    %v7263 = vrot.slane %v7261, 4
    %v7264 = vshll.u32 %v6981, 16
    %v7266 = vrot.slane %v7264, 5
    %v7267 = vor.u32 %v7263, %v7266
    %v7268 = vrot.slane %v7267, 4
    %v7270 = vshll.u32 %v6982, 16
    %v7272 = vrot.slane %v7270, 5
    %v7273 = vsel %vm64, %v7268, %v7272
    %v7274 = vshrl.u32 %v6982, 16
    %v7276 = vrot.slane %v7274, 4
    %v7277 = vor.u32 %v7276, %v7272
    %v7278 = vrot.slane %v7277, 4
    %v7280 = vshll.u32 %v6983, 16
    %v7282 = vrot.slane %v7280, 5
    %v7283 = vsel %vm64, %v7278, %v7282
    %v7285 = vshrl.u32 %v6984, 16
    %v7287 = vrot.slane %v7285, 4
    %v7288 = vshll.u32 %v6984, 16
    %v7290 = vrot.slane %v7288, 5
    %v7291 = vor.u32 %v7287, %v7290
    %v7292 = vrot.slane %v7291, 4
    %v7294 = vshll.u32 %v6985, 16
    %v7296 = vrot.slane %v7294, 5
    %v7297 = vsel %vm64, %v7292, %v7296
    %v7298 = vshrl.u32 %v6985, 16
    %v7300 = vrot.slane %v7298, 4
    %v7301 = vor.u32 %v7300, %v7296
    %v7302 = vrot.slane %v7301, 4
    %v7304 = vshll.u32 %v6986, 16
    %v7306 = vrot.slane %v7304, 5
    %v7307 = vsel %vm64, %v7302, %v7306
    %v7309 = vshrl.u32 %v6987, 16
    %v7311 = vrot.slane %v7309, 4
    %v7312 = vshll.u32 %v6987, 16
    %v7314 = vrot.slane %v7312, 5
    %v7315 = vor.u32 %v7311, %v7314
    %v7316 = vrot.slane %v7315, 4
    %v7318 = vshll.u32 %v6988, 16
    %v7320 = vrot.slane %v7318, 5
    %v7321 = vsel %vm64, %v7316, %v7320
    %v7322 = vshrl.u32 %v6988, 16
    %v7324 = vrot.slane %v7322, 4
    %v7325 = vor.u32 %v7324, %v7320
    %v7326 = vrot.slane %v7325, 4
    %v7328 = vshll.u32 %v6989, 16
    %v7330 = vrot.slane %v7328, 5
    %v7331 = vsel %vm64, %v7326, %v7330
    %v7333 = vshrl.u32 %v6990, 16
    %v7335 = vrot.slane %v7333, 4
    %v7336 = vshll.u32 %v6990, 16
    %v7338 = vrot.slane %v7336, 5
    %v7339 = vor.u32 %v7335, %v7338
    %v7340 = vrot.slane %v7339, 4
    %v7342 = vshll.u32 %v6991, 16
    %v7344 = vrot.slane %v7342, 5
    %v7345 = vsel %vm64, %v7340, %v7344
    %v7346 = vshrl.u32 %v6991, 16
    %v7348 = vrot.slane %v7346, 4
    %v7349 = vor.u32 %v7348, %v7344
    %v7350 = vrot.slane %v7349, 4
    %v7352 = vshll.u32 %v6992, 16
    %v7354 = vrot.slane %v7352, 5
    %v7355 = vsel %vm64, %v7350, %v7354
    %v7357 = vshrl.u32 %v6993, 16
    %v7359 = vrot.slane %v7357, 4
    %v7360 = vshll.u32 %v6993, 16
    %v7362 = vrot.slane %v7360, 5
    %v7363 = vor.u32 %v7359, %v7362
    %v7364 = vrot.slane %v7363, 4
    %v7366 = vshll.u32 %v6994, 16
    %v7368 = vrot.slane %v7366, 5
    %v7369 = vsel %vm64, %v7364, %v7368
    %v7370 = vshrl.u32 %v6994, 16
    %v7372 = vrot.slane %v7370, 4
    %v7373 = vor.u32 %v7372, %v7368
    %v7374 = vrot.slane %v7373, 4
    %v7376 = vshll.u32 %v6995, 16
    %v7378 = vrot.slane %v7376, 5
    %v7379 = vsel %vm64, %v7374, %v7378
    %v7380 = vld [vmem:[%s3304] sm:$0x3]
    %v7381 = vunpack.c.l.b16 %v7009
    %v7382 = vunpack.c.l.b16 %v7019
    %v7383 = vunpack.c.l.b16 %v7033
    %v7384 = vunpack.c.l.b16 %v7043
    %v7385 = vunpack.c.l.b16 %v7057
    %v7386 = vunpack.c.l.b16 %v7067
    %v7387 = vunpack.c.l.b16 %v7081
    %v7388 = vunpack.c.l.b16 %v7091
    %v7389 = vunpack.c.l.b16 %v7105
    %v7390 = vunpack.c.l.b16 %v7115
    %v7391 = vunpack.c.l.b16 %v7129
    %v7392 = vunpack.c.l.b16 %v7139
    %v7393 = vunpack.c.l.b16 %v7153
    %v7394 = vunpack.c.l.b16 %v7163
    %v7395 = vunpack.c.l.b16 %v7177
    %v7396 = vunpack.c.l.b16 %v7187
    %v7397 = vunpack.c.l.b16 %v7201
    %v7398 = vunpack.c.l.b16 %v7211
    %v7399 = vunpack.c.l.b16 %v7225
    %v7400 = vunpack.c.l.b16 %v7235
    %v7401 = vunpack.c.l.b16 %v7249
    %v7402 = vunpack.c.l.b16 %v7259
    %v7403 = vunpack.c.l.b16 %v7273
    %v7404 = vunpack.c.l.b16 %v7283
    %v7405 = vunpack.c.l.b16 %v7297
    %v7406 = vunpack.c.l.b16 %v7307
    %v7407 = vunpack.c.l.b16 %v7321
    %v7408 = vunpack.c.l.b16 %v7331
    %v7409 = vunpack.c.l.b16 %v7345
    %v7410 = vunpack.c.l.b16 %v7355
    %v7411 = vunpack.c.l.b16 %v7369
    %v7412 = vunpack.c.l.b16 %v7379
    %v7413 = vpack.c.b16 %v7382, %v7381
    %v7414 = vpack.c.b16 %v7384, %v7383
    %v7415 = vpack.c.b16 %v7386, %v7385
    %v7416 = vpack.c.b16 %v7388, %v7387
    %v7417 = vpack.c.b16 %v7390, %v7389
    %v7418 = vpack.c.b16 %v7392, %v7391
    %v7419 = vpack.c.b16 %v7394, %v7393
    %v7420 = vpack.c.b16 %v7396, %v7395
    %v7421 = vpack.c.b16 %v7398, %v7397
    %v7422 = vpack.c.b16 %v7400, %v7399
    %v7423 = vpack.c.b16 %v7402, %v7401
    %v7424 = vpack.c.b16 %v7404, %v7403
    %v7425 = vpack.c.b16 %v7406, %v7405
    %v7426 = vpack.c.b16 %v7408, %v7407
    %v7427 = vpack.c.b16 %v7410, %v7409
    %v7428 = vpack.c.b16 %v7412, %v7411
    %v7430 = vsel %vm499, %v7413, 0
    %v7433 = vsel %vm499, %v7414, 0
    %v7436 = vsel %vm499, %v7415, 0
    %v7439 = vsel %vm499, %v7416, 0
    %v7442 = vsel %vm499, %v7417, 0
    %v7445 = vsel %vm499, %v7418, 0
    %v7448 = vsel %vm499, %v7419, 0
    %v7451 = vsel %vm499, %v7420, 0
    %v7454 = vsel %vm499, %v7421, 0
    %v7457 = vsel %vm499, %v7422, 0
    %v7460 = vsel %vm499, %v7423, 0
    %v7463 = vsel %vm499, %v7424, 0
    %v7466 = vsel %vm499, %v7425, 0
    %v7469 = vsel %vm499, %v7426, 0
    %v7472 = vsel %vm499, %v7427, 0
    %v7475 = vsel %vm499, %v7428, 0
    %v7478 = vsel %vm548, %v7380, 0
    %7480 = vmatpush.bf16.msra.mxu0 0
    %7481 = vmatpush.bf16.msra.mxu0 0
    %7482 = vmatpush.bf16.msra.mxu0 0
    %7483 = vmatpush.bf16.msra.mxu0 0
    %7484 = vmatpush.bf16.msra.mxu0 0
    %7485 = vmatpush.bf16.msra.mxu0 0
    %7486 = vmatpush.bf16.msra.mxu0 0
    %7487 = vmatpush.bf16.msra.mxu0 %v7478
    %7488 = vmatmul.bf16.gmra.mxu0 %v7430
    %v7489 = vpop.f32.mrf.mxu0
    %v7490 = vadd.f32 0.0, %v7489
    %v7491 = vpop.f32.mrf.mxu0
    %v7492 = vadd.f32 0.0, %v7491
    %7493 = vmatmul.bf16.gmra.mxu0 %v7433
    %v7494 = vpop.f32.mrf.mxu0
    %v7495 = vadd.f32 0.0, %v7494
    %v7496 = vpop.f32.mrf.mxu0
    %v7497 = vadd.f32 0.0, %v7496
    %7498 = vmatmul.bf16.gmra.mxu0 %v7436
    %v7499 = vpop.f32.mrf.mxu0
    %v7500 = vadd.f32 0.0, %v7499
    %v7501 = vpop.f32.mrf.mxu0
    %v7502 = vadd.f32 0.0, %v7501
    %7503 = vmatmul.bf16.gmra.mxu0 %v7439
    %v7504 = vpop.f32.mrf.mxu0
    %v7505 = vadd.f32 0.0, %v7504
    %v7506 = vpop.f32.mrf.mxu0
    %v7507 = vadd.f32 0.0, %v7506
    %7508 = vmatmul.bf16.gmra.mxu0 %v7442
    %v7509 = vpop.f32.mrf.mxu0
    %v7510 = vadd.f32 0.0, %v7509
    %v7511 = vpop.f32.mrf.mxu0
    %v7512 = vadd.f32 0.0, %v7511
    %7513 = vmatmul.bf16.gmra.mxu0 %v7445
    %v7514 = vpop.f32.mrf.mxu0
    %v7515 = vadd.f32 0.0, %v7514
    %v7516 = vpop.f32.mrf.mxu0
    %v7517 = vadd.f32 0.0, %v7516
    %7518 = vmatmul.bf16.gmra.mxu0 %v7448
    %v7519 = vpop.f32.mrf.mxu0
    %v7520 = vadd.f32 0.0, %v7519
    %v7521 = vpop.f32.mrf.mxu0
    %v7522 = vadd.f32 0.0, %v7521
    %7523 = vmatmul.bf16.gmra.mxu0 %v7451
    %v7524 = vpop.f32.mrf.mxu0
    %v7525 = vadd.f32 0.0, %v7524
    %v7526 = vpop.f32.mrf.mxu0
    %v7527 = vadd.f32 0.0, %v7526
    %7528 = vmatmul.bf16.gmra.mxu0 %v7454
    %v7529 = vpop.f32.mrf.mxu0
    %v7530 = vadd.f32 0.0, %v7529
    %v7531 = vpop.f32.mrf.mxu0
    %v7532 = vadd.f32 0.0, %v7531
    %7533 = vmatmul.bf16.gmra.mxu0 %v7457
    %v7534 = vpop.f32.mrf.mxu0
    %v7535 = vadd.f32 0.0, %v7534
    %v7536 = vpop.f32.mrf.mxu0
    %v7537 = vadd.f32 0.0, %v7536
    %7538 = vmatmul.bf16.gmra.mxu0 %v7460
    %v7539 = vpop.f32.mrf.mxu0
    %v7540 = vadd.f32 0.0, %v7539
    %v7541 = vpop.f32.mrf.mxu0
    %v7542 = vadd.f32 0.0, %v7541
    %7543 = vmatmul.bf16.gmra.mxu0 %v7463
    %v7544 = vpop.f32.mrf.mxu0
    %v7545 = vadd.f32 0.0, %v7544
    %v7546 = vpop.f32.mrf.mxu0
    %v7547 = vadd.f32 0.0, %v7546
    %7548 = vmatmul.bf16.gmra.mxu0 %v7466
    %v7549 = vpop.f32.mrf.mxu0
    %v7550 = vadd.f32 0.0, %v7549
    %v7551 = vpop.f32.mrf.mxu0
    %v7552 = vadd.f32 0.0, %v7551
    %7553 = vmatmul.bf16.gmra.mxu0 %v7469
    %v7554 = vpop.f32.mrf.mxu0
    %v7555 = vadd.f32 0.0, %v7554
    %v7556 = vpop.f32.mrf.mxu0
    %v7557 = vadd.f32 0.0, %v7556
    %7558 = vmatmul.bf16.gmra.mxu0 %v7472
    %v7559 = vpop.f32.mrf.mxu0
    %v7560 = vadd.f32 0.0, %v7559
    %v7561 = vpop.f32.mrf.mxu0
    %v7562 = vadd.f32 0.0, %v7561
    %7563 = vmatmul.bf16.gmra.mxu0 %v7475
    %v7564 = vpop.f32.mrf.mxu0
    %v7565 = vadd.f32 0.0, %v7564
    %v7566 = vpop.f32.mrf.mxu0
    %v7567 = vadd.f32 0.0, %v7566
    %7568 = vdwg.mxu0
    %v7569 = vadd.f32 %v6916, %v7490
    %v7570 = vadd.f32 %v6917, %v7492
    %v7571 = vadd.f32 %v6918, %v7495
    %v7572 = vadd.f32 %v6919, %v7497
    %v7573 = vadd.f32 %v6920, %v7500
    %v7574 = vadd.f32 %v6921, %v7502
    %v7575 = vadd.f32 %v6922, %v7505
    %v7576 = vadd.f32 %v6923, %v7507
    %v7577 = vadd.f32 %v6924, %v7510
    %v7578 = vadd.f32 %v6925, %v7512
    %v7579 = vadd.f32 %v6926, %v7515
    %v7580 = vadd.f32 %v6927, %v7517
    %v7581 = vadd.f32 %v6928, %v7520
    %v7582 = vadd.f32 %v6929, %v7522
    %v7583 = vadd.f32 %v6930, %v7525
    %v7584 = vadd.f32 %v6931, %v7527
    %v7585 = vadd.f32 %v6932, %v7530
    %v7586 = vadd.f32 %v6933, %v7532
    %v7587 = vadd.f32 %v6934, %v7535
    %v7588 = vadd.f32 %v6935, %v7537
    %v7589 = vadd.f32 %v6936, %v7540
    %v7590 = vadd.f32 %v6937, %v7542
    %v7591 = vadd.f32 %v6938, %v7545
    %v7592 = vadd.f32 %v6939, %v7547
    %v7593 = vadd.f32 %v6940, %v7550
    %v7594 = vadd.f32 %v6941, %v7552
    %v7595 = vadd.f32 %v6942, %v7555
    %v7596 = vadd.f32 %v6943, %v7557
    %v7597 = vadd.f32 %v6944, %v7560
    %v7598 = vadd.f32 %v6945, %v7562
    %v7599 = vadd.f32 %v6946, %v7565
    %v7600 = vadd.f32 %v6947, %v7567
    %v7601 = vld [vmem:[%s6662] sm:$0xe]
    %v7602 = vld [vmem:[%s6662 + $0xc] sm:$0xe]
    %v7603 = vld [vmem:[%s6662 + $0x18] sm:$0xe]
    %v7604 = vld [vmem:[%s6662 + $0x24] sm:$0xe]
    %v7605 = vld [vmem:[%s6662 + $0x30] sm:$0xe]
    %v7606 = vld [vmem:[%s6662 + $0x3c] sm:$0xe]
    %v7607 = vld [vmem:[%s6662 + $0x48] sm:$0xe]
    %v7608 = vld [vmem:[%s6662 + $0x54] sm:$0xe]
    %v7609 = vld [vmem:[%s6662 + $0xd8] sm:$0xe]
    %v7610 = vld [vmem:[%s6662 + $0xe4] sm:$0xe]
    %v7611 = vld [vmem:[%s6662 + $0xf0] sm:$0xe]
    %v7612 = vld [vmem:[%s6662 + $0xfc] sm:$0xe]
    %v7613 = vld [vmem:[%s6662 + $0x108] sm:$0xe]
    %v7614 = vld [vmem:[%s6662 + $0x114] sm:$0xe]
    %v7615 = vld [vmem:[%s6662 + $0x120] sm:$0xe]
    %v7616 = vld [vmem:[%s6662 + $0x12c] sm:$0xe]
    %v7665 = vrot.slane %v7601, 5
    %v7666 = vrot.slane %v7665, 4
    %v7667 = vrot.slane %v6949, 5
    %v7668 = vsel %vm911, %v7666, %v7667
    %v7669 = vrot.slane %v7667, 4
    %v7670 = vrot.slane %v6950, 5
    %v7671 = vsel %vm911, %v7669, %v7670
    %v7672 = vrot.slane %v7602, 5
    %v7673 = vrot.slane %v7672, 4
    %v7674 = vrot.slane %v6952, 5
    %v7675 = vsel %vm911, %v7673, %v7674
    %v7676 = vrot.slane %v7674, 4
    %v7677 = vrot.slane %v6953, 5
    %v7678 = vsel %vm911, %v7676, %v7677
    %v7679 = vrot.slane %v7603, 5
    %v7680 = vrot.slane %v7679, 4
    %v7681 = vrot.slane %v6955, 5
    %v7682 = vsel %vm911, %v7680, %v7681
    %v7683 = vrot.slane %v7681, 4
    %v7684 = vrot.slane %v6956, 5
    %v7685 = vsel %vm911, %v7683, %v7684
    %v7686 = vrot.slane %v7604, 5
    %v7687 = vrot.slane %v7686, 4
    %v7688 = vrot.slane %v6958, 5
    %v7689 = vsel %vm911, %v7687, %v7688
    %v7690 = vrot.slane %v7688, 4
    %v7691 = vrot.slane %v6959, 5
    %v7692 = vsel %vm911, %v7690, %v7691
    %v7693 = vrot.slane %v7605, 5
    %v7694 = vrot.slane %v7693, 4
    %v7695 = vrot.slane %v6961, 5
    %v7696 = vsel %vm911, %v7694, %v7695
    %v7697 = vrot.slane %v7695, 4
    %v7698 = vrot.slane %v6962, 5
    %v7699 = vsel %vm911, %v7697, %v7698
    %v7700 = vrot.slane %v7606, 5
    %v7701 = vrot.slane %v7700, 4
    %v7702 = vrot.slane %v6964, 5
    %v7703 = vsel %vm911, %v7701, %v7702
    %v7704 = vrot.slane %v7702, 4
    %v7705 = vrot.slane %v6965, 5
    %v7706 = vsel %vm911, %v7704, %v7705
    %v7707 = vrot.slane %v7607, 5
    %v7708 = vrot.slane %v7707, 4
    %v7709 = vrot.slane %v6967, 5
    %v7710 = vsel %vm911, %v7708, %v7709
    %v7711 = vrot.slane %v7709, 4
    %v7712 = vrot.slane %v6968, 5
    %v7713 = vsel %vm911, %v7711, %v7712
    %v7714 = vrot.slane %v7608, 5
    %v7715 = vrot.slane %v7714, 4
    %v7716 = vrot.slane %v6970, 5
    %v7717 = vsel %vm911, %v7715, %v7716
    %v7718 = vrot.slane %v7716, 4
    %v7719 = vrot.slane %v6971, 5
    %v7720 = vsel %vm911, %v7718, %v7719
    %v7721 = vrot.slane %v7609, 5
    %v7722 = vrot.slane %v7721, 4
    %v7723 = vrot.slane %v6973, 5
    %v7724 = vsel %vm911, %v7722, %v7723
    %v7725 = vrot.slane %v7723, 4
    %v7726 = vrot.slane %v6974, 5
    %v7727 = vsel %vm911, %v7725, %v7726
    %v7728 = vrot.slane %v7610, 5
    %v7729 = vrot.slane %v7728, 4
    %v7730 = vrot.slane %v6976, 5
    %v7731 = vsel %vm911, %v7729, %v7730
    %v7732 = vrot.slane %v7730, 4
    %v7733 = vrot.slane %v6977, 5
    %v7734 = vsel %vm911, %v7732, %v7733
    %v7735 = vrot.slane %v7611, 5
    %v7736 = vrot.slane %v7735, 4
    %v7737 = vrot.slane %v6979, 5
    %v7738 = vsel %vm911, %v7736, %v7737
    %v7739 = vrot.slane %v7737, 4
    %v7740 = vrot.slane %v6980, 5
    %v7741 = vsel %vm911, %v7739, %v7740
    %v7742 = vrot.slane %v7612, 5
    %v7743 = vrot.slane %v7742, 4
    %v7744 = vrot.slane %v6982, 5
    %v7745 = vsel %vm911, %v7743, %v7744
    %v7746 = vrot.slane %v7744, 4
    %v7747 = vrot.slane %v6983, 5
    %v7748 = vsel %vm911, %v7746, %v7747
    %v7749 = vrot.slane %v7613, 5
    %v7750 = vrot.slane %v7749, 4
    %v7751 = vrot.slane %v6985, 5
    %v7752 = vsel %vm911, %v7750, %v7751
    %v7753 = vrot.slane %v7751, 4
    %v7754 = vrot.slane %v6986, 5
    %v7755 = vsel %vm911, %v7753, %v7754
    %v7756 = vrot.slane %v7614, 5
    %v7757 = vrot.slane %v7756, 4
    %v7758 = vrot.slane %v6988, 5
    %v7759 = vsel %vm911, %v7757, %v7758
    %v7760 = vrot.slane %v7758, 4
    %v7761 = vrot.slane %v6989, 5
    %v7762 = vsel %vm911, %v7760, %v7761
    %v7763 = vrot.slane %v7615, 5
    %v7764 = vrot.slane %v7763, 4
    %v7765 = vrot.slane %v6991, 5
    %v7766 = vsel %vm911, %v7764, %v7765
    %v7767 = vrot.slane %v7765, 4
    %v7768 = vrot.slane %v6992, 5
    %v7769 = vsel %vm911, %v7767, %v7768
    %v7770 = vrot.slane %v7616, 5
    %v7771 = vrot.slane %v7770, 4
    %v7772 = vrot.slane %v6994, 5
    %v7773 = vsel %vm911, %v7771, %v7772
    %v7774 = vrot.slane %v7772, 4
    %v7775 = vrot.slane %v6995, 5
    %v7776 = vsel %vm911, %v7774, %v7775
    %v7777 = vld [vmem:[%s3702] sm:$0x3]
    %v7778 = vunpack.c.l.b16 %v7668
    %v7779 = vunpack.c.l.b16 %v7671
    %v7780 = vunpack.c.l.b16 %v7675
    %v7781 = vunpack.c.l.b16 %v7678
    %v7782 = vunpack.c.l.b16 %v7682
    %v7783 = vunpack.c.l.b16 %v7685
    %v7784 = vunpack.c.l.b16 %v7689
    %v7785 = vunpack.c.l.b16 %v7692
    %v7786 = vunpack.c.l.b16 %v7696
    %v7787 = vunpack.c.l.b16 %v7699
    %v7788 = vunpack.c.l.b16 %v7703
    %v7789 = vunpack.c.l.b16 %v7706
    %v7790 = vunpack.c.l.b16 %v7710
    %v7791 = vunpack.c.l.b16 %v7713
    %v7792 = vunpack.c.l.b16 %v7717
    %v7793 = vunpack.c.l.b16 %v7720
    %v7794 = vunpack.c.l.b16 %v7724
    %v7795 = vunpack.c.l.b16 %v7727
    %v7796 = vunpack.c.l.b16 %v7731
    %v7797 = vunpack.c.l.b16 %v7734
    %v7798 = vunpack.c.l.b16 %v7738
    %v7799 = vunpack.c.l.b16 %v7741
    %v7800 = vunpack.c.l.b16 %v7745
    %v7801 = vunpack.c.l.b16 %v7748
    %v7802 = vunpack.c.l.b16 %v7752
    %v7803 = vunpack.c.l.b16 %v7755
    %v7804 = vunpack.c.l.b16 %v7759
    %v7805 = vunpack.c.l.b16 %v7762
    %v7806 = vunpack.c.l.b16 %v7766
    %v7807 = vunpack.c.l.b16 %v7769
    %v7808 = vunpack.c.l.b16 %v7773
    %v7809 = vunpack.c.l.b16 %v7776
    %v7810 = vpack.c.b16 %v7779, %v7778
    %v7811 = vpack.c.b16 %v7781, %v7780
    %v7812 = vpack.c.b16 %v7783, %v7782
    %v7813 = vpack.c.b16 %v7785, %v7784
    %v7814 = vpack.c.b16 %v7787, %v7786
    %v7815 = vpack.c.b16 %v7789, %v7788
    %v7816 = vpack.c.b16 %v7791, %v7790
    %v7817 = vpack.c.b16 %v7793, %v7792
    %v7818 = vpack.c.b16 %v7795, %v7794
    %v7819 = vpack.c.b16 %v7797, %v7796
    %v7820 = vpack.c.b16 %v7799, %v7798
    %v7821 = vpack.c.b16 %v7801, %v7800
    %v7822 = vpack.c.b16 %v7803, %v7802
    %v7823 = vpack.c.b16 %v7805, %v7804
    %v7824 = vpack.c.b16 %v7807, %v7806
    %v7825 = vpack.c.b16 %v7809, %v7808
    %v7827 = vsel %vm499, %v7810, 0
    %v7830 = vsel %vm499, %v7811, 0
    %v7833 = vsel %vm499, %v7812, 0
    %v7836 = vsel %vm499, %v7813, 0
    %v7839 = vsel %vm499, %v7814, 0
    %v7842 = vsel %vm499, %v7815, 0
    %v7845 = vsel %vm499, %v7816, 0
    %v7848 = vsel %vm499, %v7817, 0
    %v7851 = vsel %vm499, %v7818, 0
    %v7854 = vsel %vm499, %v7819, 0
    %v7857 = vsel %vm499, %v7820, 0
    %v7860 = vsel %vm499, %v7821, 0
    %v7863 = vsel %vm499, %v7822, 0
    %v7866 = vsel %vm499, %v7823, 0
    %v7869 = vsel %vm499, %v7824, 0
    %v7872 = vsel %vm499, %v7825, 0
    %v7875 = vsel %vm548, %v7777, 0
    %7877 = vmatpush.bf16.msra.mxu0 0
    %7878 = vmatpush.bf16.msra.mxu0 0
    %7879 = vmatpush.bf16.msra.mxu0 0
    %7880 = vmatpush.bf16.msra.mxu0 0
    %7881 = vmatpush.bf16.msra.mxu0 0
    %7882 = vmatpush.bf16.msra.mxu0 0
    %7883 = vmatpush.bf16.msra.mxu0 0
    %7884 = vmatpush.bf16.msra.mxu0 %v7875
    %7885 = vmatmul.bf16.gmra.mxu0 %v7827
    %v7886 = vpop.f32.mrf.mxu0
    %v7887 = vadd.f32 0.0, %v7886
    %v7888 = vpop.f32.mrf.mxu0
    %v7889 = vadd.f32 0.0, %v7888
    %7890 = vmatmul.bf16.gmra.mxu0 %v7830
    %v7891 = vpop.f32.mrf.mxu0
    %v7892 = vadd.f32 0.0, %v7891
    %v7893 = vpop.f32.mrf.mxu0
    %v7894 = vadd.f32 0.0, %v7893
    %7895 = vmatmul.bf16.gmra.mxu0 %v7833
    %v7896 = vpop.f32.mrf.mxu0
    %v7897 = vadd.f32 0.0, %v7896
    %v7898 = vpop.f32.mrf.mxu0
    %v7899 = vadd.f32 0.0, %v7898
    %7900 = vmatmul.bf16.gmra.mxu0 %v7836
    %v7901 = vpop.f32.mrf.mxu0
    %v7902 = vadd.f32 0.0, %v7901
    %v7903 = vpop.f32.mrf.mxu0
    %v7904 = vadd.f32 0.0, %v7903
    %7905 = vmatmul.bf16.gmra.mxu0 %v7839
    %v7906 = vpop.f32.mrf.mxu0
    %v7907 = vadd.f32 0.0, %v7906
    %v7908 = vpop.f32.mrf.mxu0
    %v7909 = vadd.f32 0.0, %v7908
    %7910 = vmatmul.bf16.gmra.mxu0 %v7842
    %v7911 = vpop.f32.mrf.mxu0
    %v7912 = vadd.f32 0.0, %v7911
    %v7913 = vpop.f32.mrf.mxu0
    %v7914 = vadd.f32 0.0, %v7913
    %7915 = vmatmul.bf16.gmra.mxu0 %v7845
    %v7916 = vpop.f32.mrf.mxu0
    %v7917 = vadd.f32 0.0, %v7916
    %v7918 = vpop.f32.mrf.mxu0
    %v7919 = vadd.f32 0.0, %v7918
    %7920 = vmatmul.bf16.gmra.mxu0 %v7848
    %v7921 = vpop.f32.mrf.mxu0
    %v7922 = vadd.f32 0.0, %v7921
    %v7923 = vpop.f32.mrf.mxu0
    %v7924 = vadd.f32 0.0, %v7923
    %7925 = vmatmul.bf16.gmra.mxu0 %v7851
    %v7926 = vpop.f32.mrf.mxu0
    %v7927 = vadd.f32 0.0, %v7926
    %v7928 = vpop.f32.mrf.mxu0
    %v7929 = vadd.f32 0.0, %v7928
    %7930 = vmatmul.bf16.gmra.mxu0 %v7854
    %v7931 = vpop.f32.mrf.mxu0
    %v7932 = vadd.f32 0.0, %v7931
    %v7933 = vpop.f32.mrf.mxu0
    %v7934 = vadd.f32 0.0, %v7933
    %7935 = vmatmul.bf16.gmra.mxu0 %v7857
    %v7936 = vpop.f32.mrf.mxu0
    %v7937 = vadd.f32 0.0, %v7936
    %v7938 = vpop.f32.mrf.mxu0
    %v7939 = vadd.f32 0.0, %v7938
    %7940 = vmatmul.bf16.gmra.mxu0 %v7860
    %v7941 = vpop.f32.mrf.mxu0
    %v7942 = vadd.f32 0.0, %v7941
    %v7943 = vpop.f32.mrf.mxu0
    %v7944 = vadd.f32 0.0, %v7943
    %7945 = vmatmul.bf16.gmra.mxu0 %v7863
    %v7946 = vpop.f32.mrf.mxu0
    %v7947 = vadd.f32 0.0, %v7946
    %v7948 = vpop.f32.mrf.mxu0
    %v7949 = vadd.f32 0.0, %v7948
    %7950 = vmatmul.bf16.gmra.mxu0 %v7866
    %v7951 = vpop.f32.mrf.mxu0
    %v7952 = vadd.f32 0.0, %v7951
    %v7953 = vpop.f32.mrf.mxu0
    %v7954 = vadd.f32 0.0, %v7953
    %7955 = vmatmul.bf16.gmra.mxu0 %v7869
    %v7956 = vpop.f32.mrf.mxu0
    %v7957 = vadd.f32 0.0, %v7956
    %v7958 = vpop.f32.mrf.mxu0
    %v7959 = vadd.f32 0.0, %v7958
    %7960 = vmatmul.bf16.gmra.mxu0 %v7872
    %v7961 = vpop.f32.mrf.mxu0
    %v7962 = vadd.f32 0.0, %v7961
    %v7963 = vpop.f32.mrf.mxu0
    %v7964 = vadd.f32 0.0, %v7963
    %7965 = vdwg.mxu0
    %v7966 = vadd.f32 %v7569, %v7887
    %v7967 = vadd.f32 %v7570, %v7889
    %v7968 = vadd.f32 %v7571, %v7892
    %v7969 = vadd.f32 %v7572, %v7894
    %v7970 = vadd.f32 %v7573, %v7897
    %v7971 = vadd.f32 %v7574, %v7899
    %v7972 = vadd.f32 %v7575, %v7902
    %v7973 = vadd.f32 %v7576, %v7904
    %v7974 = vadd.f32 %v7577, %v7907
    %v7975 = vadd.f32 %v7578, %v7909
    %v7976 = vadd.f32 %v7579, %v7912
    %v7977 = vadd.f32 %v7580, %v7914
    %v7978 = vadd.f32 %v7581, %v7917
    %v7979 = vadd.f32 %v7582, %v7919
    %v7980 = vadd.f32 %v7583, %v7922
    %v7981 = vadd.f32 %v7584, %v7924
    %v7982 = vadd.f32 %v7585, %v7927
    %v7983 = vadd.f32 %v7586, %v7929
    %v7984 = vadd.f32 %v7587, %v7932
    %v7985 = vadd.f32 %v7588, %v7934
    %v7986 = vadd.f32 %v7589, %v7937
    %v7987 = vadd.f32 %v7590, %v7939
    %v7988 = vadd.f32 %v7591, %v7942
    %v7989 = vadd.f32 %v7592, %v7944
    %v7990 = vadd.f32 %v7593, %v7947
    %v7991 = vadd.f32 %v7594, %v7949
    %v7992 = vadd.f32 %v7595, %v7952
    %v7993 = vadd.f32 %v7596, %v7954
    %v7994 = vadd.f32 %v7597, %v7957
    %v7995 = vadd.f32 %v7598, %v7959
    %v7996 = vadd.f32 %v7599, %v7962
    %v7997 = vadd.f32 %v7600, %v7964
    %7998 = vst [vmem:[#allocation2] sm:$0xff] %v7966
    %7999 = vst [vmem:[#allocation2 + $0x8] sm:$0xff] %v7967
    %8000 = vst [vmem:[#allocation2 + $0x10] sm:$0xff] %v7968
    %8001 = vst [vmem:[#allocation2 + $0x18] sm:$0xff] %v7969
    %8002 = vst [vmem:[#allocation2 + $0x20] sm:$0xff] %v7970
    %8003 = vst [vmem:[#allocation2 + $0x28] sm:$0xff] %v7971
    %8004 = vst [vmem:[#allocation2 + $0x30] sm:$0xff] %v7972
    %8005 = vst [vmem:[#allocation2 + $0x38] sm:$0xff] %v7973
    %8006 = vst [vmem:[#allocation2 + $0x40] sm:$0xff] %v7974
    %8007 = vst [vmem:[#allocation2 + $0x48] sm:$0xff] %v7975
    %8008 = vst [vmem:[#allocation2 + $0x50] sm:$0xff] %v7976
    %8009 = vst [vmem:[#allocation2 + $0x58] sm:$0xff] %v7977
    %8010 = vst [vmem:[#allocation2 + $0x60] sm:$0xff] %v7978
    %8011 = vst [vmem:[#allocation2 + $0x68] sm:$0xff] %v7979
    %8012 = vst [vmem:[#allocation2 + $0x70] sm:$0xff] %v7980
    %8013 = vst [vmem:[#allocation2 + $0x78] sm:$0xff] %v7981
    %8014 = vst [vmem:[#allocation2 + $0x80] sm:$0xff] %v7982
    %8015 = vst [vmem:[#allocation2 + $0x88] sm:$0xff] %v7983
    %8016 = vst [vmem:[#allocation2 + $0x90] sm:$0xff] %v7984
    %8017 = vst [vmem:[#allocation2 + $0x98] sm:$0xff] %v7985
    %8018 = vst [vmem:[#allocation2 + $0xa0] sm:$0xff] %v7986
    %8019 = vst [vmem:[#allocation2 + $0xa8] sm:$0xff] %v7987
    %8020 = vst [vmem:[#allocation2 + $0xb0] sm:$0xff] %v7988
    %8021 = vst [vmem:[#allocation2 + $0xb8] sm:$0xff] %v7989
    %8022 = vst [vmem:[#allocation2 + $0xc0] sm:$0xff] %v7990
    %8023 = vst [vmem:[#allocation2 + $0xc8] sm:$0xff] %v7991
    %8024 = vst [vmem:[#allocation2 + $0xd0] sm:$0xff] %v7992
    %8025 = vst [vmem:[#allocation2 + $0xd8] sm:$0xff] %v7993
    %8026 = vst [vmem:[#allocation2 + $0xe0] sm:$0xff] %v7994
    %8027 = vst [vmem:[#allocation2 + $0xe8] sm:$0xff] %v7995
    %8028 = vst [vmem:[#allocation2 + $0xf0] sm:$0xff] %v7996
    %8029 = vst [vmem:[#allocation2 + $0xf8] sm:$0xff] %v7997
    %v8030 = vld [vmem:[#allocation2] sm:$0xff]
    %v8031 = vld [vmem:[#allocation2 + $0x8] sm:$0xff]
    %v8032 = vld [vmem:[#allocation2 + $0x10] sm:$0xff]
    %v8033 = vld [vmem:[#allocation2 + $0x18] sm:$0xff]
    %v8034 = vld [vmem:[#allocation2 + $0x20] sm:$0xff]
    %v8035 = vld [vmem:[#allocation2 + $0x28] sm:$0xff]
    %v8036 = vld [vmem:[#allocation2 + $0x30] sm:$0xff]
    %v8037 = vld [vmem:[#allocation2 + $0x38] sm:$0xff]
    %v8038 = vld [vmem:[#allocation2 + $0x40] sm:$0xff]
    %v8039 = vld [vmem:[#allocation2 + $0x48] sm:$0xff]
    %v8040 = vld [vmem:[#allocation2 + $0x50] sm:$0xff]
    %v8041 = vld [vmem:[#allocation2 + $0x58] sm:$0xff]
    %v8042 = vld [vmem:[#allocation2 + $0x60] sm:$0xff]
    %v8043 = vld [vmem:[#allocation2 + $0x68] sm:$0xff]
    %v8044 = vld [vmem:[#allocation2 + $0x70] sm:$0xff]
    %v8045 = vld [vmem:[#allocation2 + $0x78] sm:$0xff]
    %v8046 = vmul.f32 %v8030, %v8030
    %v8047 = vmul.f32 %v8031, %v8031
    %v8048 = vmul.f32 %v8032, %v8032
    %v8049 = vmul.f32 %v8033, %v8033
    %v8050 = vmul.f32 %v8034, %v8034
    %v8051 = vmul.f32 %v8035, %v8035
    %v8052 = vmul.f32 %v8036, %v8036
    %v8053 = vmul.f32 %v8037, %v8037
    %v8054 = vmul.f32 %v8038, %v8038
    %v8055 = vmul.f32 %v8039, %v8039
    %v8056 = vmul.f32 %v8040, %v8040
    %v8057 = vmul.f32 %v8041, %v8041
    %v8058 = vmul.f32 %v8042, %v8042
    %v8059 = vmul.f32 %v8043, %v8043
    %v8060 = vmul.f32 %v8044, %v8044
    %v8061 = vmul.f32 %v8045, %v8045
    %v8062 = vadd.f32 %v8046, %v8047
    %v8063 = vadd.f32 %v8062, %v8048
    %v8064 = vadd.f32 %v8063, %v8049
    %v8065 = vadd.f32 %v8064, %v8050
    %v8066 = vadd.f32 %v8065, %v8051
    %v8067 = vadd.f32 %v8066, %v8052
    %v8068 = vadd.f32 %v8067, %v8053
    %v8069 = vadd.f32 %v8068, %v8054
    %v8070 = vadd.f32 %v8069, %v8055
    %v8071 = vadd.f32 %v8070, %v8056
    %v8072 = vadd.f32 %v8071, %v8057
    %v8073 = vadd.f32 %v8072, %v8058
    %v8074 = vadd.f32 %v8073, %v8059
    %v8075 = vadd.f32 %v8074, %v8060
    %v8076 = vadd.f32 %v8075, %v8061
    %v8077 = vrot.slane %v8076, 4
    %v8078 = vadd.f32 %v8076, %v8077
    %v8079 = vrot.slane %v8078, 2
    %v8080 = vadd.f32 %v8078, %v8079
    %v8081 = vrot.slane %v8080, 1
    %v8082 = vadd.f32 %v8080, %v8081
    %v8083 = vadd.f32 %v4009, %v8082
    %v8084 = vld [vmem:[#allocation2 + $0x80] sm:$0xff]
    %v8085 = vld [vmem:[#allocation2 + $0x88] sm:$0xff]
    %v8086 = vld [vmem:[#allocation2 + $0x90] sm:$0xff]
    %v8087 = vld [vmem:[#allocation2 + $0x98] sm:$0xff]
    %v8088 = vld [vmem:[#allocation2 + $0xa0] sm:$0xff]
    %v8089 = vld [vmem:[#allocation2 + $0xa8] sm:$0xff]
    %v8090 = vld [vmem:[#allocation2 + $0xb0] sm:$0xff]
    %v8091 = vld [vmem:[#allocation2 + $0xb8] sm:$0xff]
    %v8092 = vld [vmem:[#allocation2 + $0xc0] sm:$0xff]
    %v8093 = vld [vmem:[#allocation2 + $0xc8] sm:$0xff]
    %v8094 = vld [vmem:[#allocation2 + $0xd0] sm:$0xff]
    %v8095 = vld [vmem:[#allocation2 + $0xd8] sm:$0xff]
    %v8096 = vld [vmem:[#allocation2 + $0xe0] sm:$0xff]
    %v8097 = vld [vmem:[#allocation2 + $0xe8] sm:$0xff]
    %v8098 = vld [vmem:[#allocation2 + $0xf0] sm:$0xff]
    %v8099 = vld [vmem:[#allocation2 + $0xf8] sm:$0xff]
    %v8100 = vmul.f32 %v8030, %v8084
    %v8101 = vmul.f32 %v8031, %v8085
    %v8102 = vmul.f32 %v8032, %v8086
    %v8103 = vmul.f32 %v8033, %v8087
    %v8104 = vmul.f32 %v8034, %v8088
    %v8105 = vmul.f32 %v8035, %v8089
    %v8106 = vmul.f32 %v8036, %v8090
    %v8107 = vmul.f32 %v8037, %v8091
    %v8108 = vmul.f32 %v8038, %v8092
    %v8109 = vmul.f32 %v8039, %v8093
    %v8110 = vmul.f32 %v8040, %v8094
    %v8111 = vmul.f32 %v8041, %v8095
    %v8112 = vmul.f32 %v8042, %v8096
    %v8113 = vmul.f32 %v8043, %v8097
    %v8114 = vmul.f32 %v8044, %v8098
    %v8115 = vmul.f32 %v8045, %v8099
    %v8116 = vadd.f32 %v8100, %v8101
    %v8117 = vadd.f32 %v8116, %v8102
    %v8118 = vadd.f32 %v8117, %v8103
    %v8119 = vadd.f32 %v8118, %v8104
    %v8120 = vadd.f32 %v8119, %v8105
    %v8121 = vadd.f32 %v8120, %v8106
    %v8122 = vadd.f32 %v8121, %v8107
    %v8123 = vadd.f32 %v8122, %v8108
    %v8124 = vadd.f32 %v8123, %v8109
    %v8125 = vadd.f32 %v8124, %v8110
    %v8126 = vadd.f32 %v8125, %v8111
    %v8127 = vadd.f32 %v8126, %v8112
    %v8128 = vadd.f32 %v8127, %v8113
    %v8129 = vadd.f32 %v8128, %v8114
    %v8130 = vadd.f32 %v8129, %v8115
    %v8131 = vrot.slane %v8130, 4
    %v8132 = vadd.f32 %v8130, %v8131
    %v8133 = vrot.slane %v8132, 2
    %v8134 = vadd.f32 %v8132, %v8133
    %v8135 = vrot.slane %v8134, 1
    %v8136 = vadd.f32 %v8134, %v8135
    %v8137 = vadd.f32 %v4063, %v8136
    %v8138 = vmul.f32 %v8084, %v8084
    %v8139 = vmul.f32 %v8085, %v8085
    %v8140 = vmul.f32 %v8086, %v8086
    %v8141 = vmul.f32 %v8087, %v8087
    %v8142 = vmul.f32 %v8088, %v8088
    %v8143 = vmul.f32 %v8089, %v8089
    %v8144 = vmul.f32 %v8090, %v8090
    %v8145 = vmul.f32 %v8091, %v8091
    %v8146 = vmul.f32 %v8092, %v8092
    %v8147 = vmul.f32 %v8093, %v8093
    %v8148 = vmul.f32 %v8094, %v8094
    %v8149 = vmul.f32 %v8095, %v8095
    %v8150 = vmul.f32 %v8096, %v8096
    %v8151 = vmul.f32 %v8097, %v8097
    %v8152 = vmul.f32 %v8098, %v8098
    %v8153 = vmul.f32 %v8099, %v8099
    %v8154 = vadd.f32 %v8138, %v8139
    %v8155 = vadd.f32 %v8154, %v8140
    %v8156 = vadd.f32 %v8155, %v8141
    %v8157 = vadd.f32 %v8156, %v8142
    %v8158 = vadd.f32 %v8157, %v8143
    %v8159 = vadd.f32 %v8158, %v8144
    %v8160 = vadd.f32 %v8159, %v8145
    %v8161 = vadd.f32 %v8160, %v8146
    %v8162 = vadd.f32 %v8161, %v8147
    %v8163 = vadd.f32 %v8162, %v8148
    %v8164 = vadd.f32 %v8163, %v8149
    %v8165 = vadd.f32 %v8164, %v8150
    %v8166 = vadd.f32 %v8165, %v8151
    %v8167 = vadd.f32 %v8166, %v8152
    %v8168 = vadd.f32 %v8167, %v8153
    %v8169 = vrot.slane %v8168, 4
    %v8170 = vadd.f32 %v8168, %v8169
    %v8171 = vrot.slane %v8170, 2
    %v8172 = vadd.f32 %v8170, %v8171
    %v8173 = vrot.slane %v8172, 1
    %v8174 = vadd.f32 %v8172, %v8173
    %v8175 = vadd.f32 %v4101, %v8174
    %8176 = vadd.xlane.f32.xlu0 %v8083
    %v8177 = vpop.xlane.xlu0 %8176
    %8178 = vadd.xlane.f32.xlu0 %v8137
    %v8179 = vpop.xlane.xlu0 %8178
    %8180 = vadd.xlane.f32.xlu0 %v8175
    %v8181 = vpop.xlane.xlu0 %8180
    %v8182 = vmax.f32 %v8177, 1e-24
    %v8183 = vrsqrt.pop %v8182
    %v8184 = vmul.f32 %v8183, %v8182
    %v8185 = vmul.f32 %v8184, %v8183
    %v8186 = vmul.f32 0.5, %v8185
    %v8187 = vsub.f32 1.5, %v8186
    %v8188 = vmul.f32 %v8183, %v8187
    %vm8189 = vweird.f32 %v8182
    %vm8190 = vweird.f32 %v8183
    %vm8191 = vmor %vm8189, %vm8190
    %v8192 = vsel %vm8191, %v8183, %v8188
    %v8193 = vmax.f32 %v8181, 1e-24
    %v8194 = vrsqrt.pop %v8193
    %v8195 = vmul.f32 %v8194, %v8193
    %v8196 = vmul.f32 %v8195, %v8194
    %v8197 = vmul.f32 0.5, %v8196
    %v8198 = vsub.f32 1.5, %v8197
    %v8199 = vmul.f32 %v8194, %v8198
    %vm8200 = vweird.f32 %v8193
    %vm8201 = vweird.f32 %v8194
    %vm8202 = vmor %vm8200, %vm8201
    %v8203 = vsel %vm8202, %v8194, %v8199
    %v8204 = vmul.f32 %v8177, %v8192
    %v8205 = vmul.f32 %v8204, %v8192
    %v8206 = vadd.f32 %v8205, 0.0
    %v8207 = vmul.f32 %v8179, %v8192
    %v8208 = vmul.f32 %v8207, %v8203
    %v8209 = vadd.f32 %v8206, %v8208
    %v8210 = vsub.f32 2.0, %v8209
    %v8211 = vadd.f32 %v8210, 0.0
    %v8212 = vmul.f32 %v8179, %v8203
    %v8213 = vmul.f32 %v8212, %v8192
    %v8214 = vadd.f32 %v8213, 0.0
    %v8215 = vmul.f32 %v8181, %v8203
    %v8216 = vmul.f32 %v8215, %v8203
    %v8217 = vadd.f32 %v8214, %v8216
    %v8218 = vsub.f32 2.0, %v8217
    %v8219 = vadd.f32 %v8211, %v8218
    %v8220 = vrcp.pop 2.0
    %v8221 = vmul.f32 2.0, %v8220
    %v8222 = vsub.f32 1.0, %v8221
    %v8223 = vmul.f32 %v8220, %v8222
    %v8224 = vadd.f32 %v8220, %v8223
    %vm8225 = vweird.f32 %v8220
    %v8226 = vsel %vm8225, %v8220, %v8224
    %v8227 = vmul.f32 %v8219, %v8226
    %vm8228 = vcmp.lt.f32.partialorder %v8227, 0.1
    %v8229 = vadd.f32 %v8227, 0.0001
    %v8230 = vlog2.pop %v8229
    %v8231 = vmul.f32 %v8230, 0.6931472
    %v8232 = vsel %vm8228, %v8231, %v8227
    %vm8233 = vcmask 0
    %8234 = vst.msk [vmem:[#allocation3] sm:$0x1] %vm8233, %v8232
    // Predicated region
    $region10: #{tpu_custom_call.1} parent=1 // pred_check
      _
    $region11: #{tpu_custom_call.1} parent=1 // pred_check_branch
      %8236 = sbr.rel (0) target = $region13
    $region12: #{tpu_custom_call.1} parent=1 // pred_region
      %8238 = vsyncadd [#allocation4], 0
      %s8240 = sshll.u32 [#allocation3], 4
      %s8241 = int_to_ptr.vmem [resolvable:$true] %s8240
      %s8242 = sshll.u32 %s2, 4
      %s8243 = int_to_ptr.hbm [resolvable:$true] %s8242
      %8245 = dma.vmem_to_hbm [thread:$0]  %s8241, 16, %s8243, [#allocation4]
    $region13: #{tpu_custom_call.1} parent=1 // pred_fallthru
      _
    // Predicated region
    $region14: #{tpu_custom_call.1} parent=1 // pred_check
      _
    $region15: #{tpu_custom_call.1} parent=1 // pred_check_branch
      %8247 = sbr.rel (0) target = $region17
    $region16: #{tpu_custom_call.1} parent=1 // pred_region
      %8249 = dma.done [#allocation4], 16
    $region17: #{tpu_custom_call.1} parent=1 // pred_fallthru
      _
    %8250 = vsyncpa [#allocation4], 1

</llo_original>
